<compile_context>
chip_gen: v6e
topology: v6e:2x2x1
jax: 0.10.0
libtpu: 0.0.40
codegen_flags: <defaults>
</compile_context>

<pallas_src>
import jax
import jax.numpy as jnp
from jax.experimental import pallas as pl
from jax.experimental.pallas import tpu as pltpu

EPS = 1e-5                   # nn.BatchNorm2d default eps
SLOPE = 0.2                  # LeakyReLU negative slope
MXU_DTYPE = jnp.bfloat16     # matmul operand dtype (accumulation stays f32)


def _leaky(x):
    return jnp.where(x > 0, x, SLOPE * x)


def _batchnorm(x):
    # Training-mode BatchNorm2d with default affine (weight=1, bias=0):
    # biased batch statistics over all (N, H, W) positions, per channel.
    mean = jnp.mean(x, axis=0, keepdims=True)
    var = jnp.mean((x - mean) ** 2, axis=0, keepdims=True)
    return (x - mean) * jax.lax.rsqrt(var + EPS)


def _patch_matrix(xr, t, *, m, ho, wg, cin):
    """Im2col patch matrix for output-column group `t` of a 4x4 / stride-2 conv.

    xr is the row-parity-split PF(m) activation value:
        xr[n, i, j, c, r*cin + ch] == padded_act[n, 2*i + j, m*c + r, ch]
    Only contiguous (static) slices are used.  Returns (N*ho*wg, 16*cin) with
    columns ordered (kh, kw, ch) -- matching the prepacked weight matrices.
    """
    chunks = []
    for kh in range(4):
        a, ph = divmod(kh, 2)            # input row = 2*(oh + a) + ph
        kw = 0
        while kw < 4:
            s = 2 * t + kw               # packed column offset 2*t + kw
            cb, r0 = divmod(s, m)
            run = min(4 - kw, m - r0)    # consecutive kw inside one column block
            chunks.append(
                xr[:, a:a + ho, ph, cb:cb + wg, r0 * cin:(r0 + run) * cin])
            kw += run
    p = jnp.concatenate(chunks, axis=-1)     # (N, ho, wg, 16*cin)
    return p.reshape(-1, 16 * cin)


def _make_kernel(n, nc, ndf):
    """Fused forward kernel for a 64x64 input (64 -> 32 -> 16 -> 8 -> 1)."""
    c1, c2, c3 = ndf, ndf * 2, ndf * 4
    f32 = jnp.float32

    def kernel(x_ref, w1_ref, w2_ref, w3_ref, w4_ref, o_ref, y2_ref, y3_ref):
        # ---- conv1: 64x64xnc -> 32x32xndf, LeakyReLU ------------------------
        # input PF(8): (n, 66, 9, 8*nc); output grouped by ow%4 -> PF(4) scratch
        y2_ref[...] = jnp.zeros_like(y2_ref)
        xr = x_ref[...].reshape(n, 33, 2, 9, 8 * nc)
        for t in range(4):
            p = _patch_matrix(xr, t, m=8, ho=32, wg=8, cin=nc)   # (n*256, 16*nc)
            a = jnp.dot(p.astype(MXU_DTYPE), w1_ref[...],
                        preferred_element_type=f32)              # (n*256, ndf)
            a = _leaky(a).reshape(n, 32, 8, c1)
            r, cb = (t + 1) % 4, (t + 1) // 4
            y2_ref[:, 1:33, cb:cb + 8, r * c1:(r + 1) * c1] = a

        # ---- conv2: 32x32xndf -> 16x16x2ndf, BatchNorm + LeakyReLU ----------
        # input PF(4): (n, 34, 9, 4*ndf); output grouped by ow%2 -> PF(2) scratch
        y3_ref[...] = jnp.zeros_like(y3_ref)
        xr = y2_ref[...].reshape(n, 17, 2, 9, 4 * c1)
        outs = [jnp.dot(_patch_matrix(xr, t, m=4, ho=16, wg=8, cin=c1)
                        .astype(MXU_DTYPE),
                        w2_ref[...], preferred_element_type=f32)  # (n*128, 2ndf)
                for t in range(2)]
        act = _leaky(_batchnorm(jnp.concatenate(outs, axis=0)))   # (n*256, 2ndf)
        m2 = n * 16 * 8
        for t in range(2):
            a = act[t * m2:(t + 1) * m2].reshape(n, 16, 8, c2)
            r, cb = (t + 1) % 2, (t + 1) // 2
            y3_ref[:, 1:17, cb:cb + 8, r * c2:(r + 1) * c2] = a

        # ---- conv3: 16x16x2ndf -> 8x8x4ndf, BatchNorm + LeakyReLU -----------
        # input PF(2): (n, 18, 9, 2*2ndf); output kept in raster order
        xr = y3_ref[...].reshape(n, 9, 2, 9, 2 * c2)
        p = _patch_matrix(xr, 0, m=2, ho=8, wg=8, cin=c2)         # (n*64, 16*2ndf)
        a3 = jnp.dot(p.astype(MXU_DTYPE), w3_ref[...],
                     preferred_element_type=f32)                  # (n*64, 4ndf)
        a3 = _leaky(_batchnorm(a3))

        # ---- conv4: full 8x8 window, cout=1, Sigmoid (VPU dot + reduction) --
        z = a3.reshape(n, 64, c3) * w4_ref[...]                   # (n, 64, 4ndf)
        s = jnp.sum(jnp.sum(z, axis=2, keepdims=True), axis=1, keepdims=True)
        o_ref[...] = jax.nn.sigmoid(s)                            # (n, 1, 1)

    return kernel


def prepack_params(params):
    """One-time repack of PyTorch-layout weights into kernel layouts (hoisted
    out of the forward path)."""
    w1, w2, w3, w4 = params

    def conv_mat(w):   # (Cout, Cin, 4, 4) -> (16*Cin, Cout), rows ordered (kh, kw, ch)
        cout, cin, kh, kw = w.shape
        return jnp.transpose(w, (2, 3, 1, 0)).reshape(kh * kw * cin, cout)

    wm1 = conv_mat(w1).astype(MXU_DTYPE)
    wm2 = conv_mat(w2).astype(MXU_DTYPE)
    wm3 = conv_mat(w3).astype(MXU_DTYPE)
    # conv4 (1, 4ndf, 8, 8) -> (64, 4ndf), rows ordered (kh, kw); f32 (VPU path).
    w4m = jnp.transpose(w4[0], (1, 2, 0)).reshape(64, w4.shape[1])
    return wm1, wm2, wm3, w4m


@jax.jit
def quick_discriminator(x_nchw, packed):
    # TODO(synk): BatchNorm reproduces nn.Module's training-mode semantics
    # (batch statistics); eval-mode running-stats bookkeeping is not modeled.
    wm1, wm2, wm3, w4m = packed
    n, nc, h, w = x_nchw.shape
    assert h == 64 and w == 64, "QuickDiscriminator expects 64x64 inputs"
    ndf = wm1.shape[1]

    # NCHW -> NHWC, pad H by (1,1) and W by (1,7) so padded width 66 rounds up
    # to 72 = 8*9, then pack 8 adjacent columns into the lane axis: PF(8).
    x = jnp.transpose(x_nchw, (0, 2, 3, 1)).astype(jnp.float32)
    xp = jnp.pad(x, ((0, 0), (1, 1), (1, 7), (0, 0)))      # (n, 66, 72, nc)
    xin = xp.reshape(n, 66, 9, 8 * nc)                      # PF(8) layout

    out = pl.pallas_call(
        _make_kernel(n, nc, ndf),
        out_shape=jax.ShapeDtypeStruct((n, 1, 1), jnp.float32),
        in_specs=[pl.BlockSpec(memory_space=pltpu.MemorySpace.VMEM)] * 5,
        out_specs=pl.BlockSpec(memory_space=pltpu.MemorySpace.VMEM),
        scratch_shapes=[
            pltpu.VMEM((n, 34, 9, 4 * ndf), jnp.float32),   # conv2 input, PF(4)
            pltpu.VMEM((n, 18, 9, 4 * ndf), jnp.float32),   # conv3 input, PF(2)
        ],
        compiler_params=pltpu.CompilerParams(
            vmem_limit_bytes=32 * 1024 * 1024),
    )(xin, wm1, wm2, wm3, w4m)
    return out.reshape(-1)                                   # .view(-1,1).squeeze(1)


def init_params(key, nc, ndf):
    """Deterministic DCGAN-style N(0, 0.02) init; shapes match __init__."""
    ks = jax.random.split(key, 4)
    std = 0.02
    w1 = std * jax.random.normal(ks[0], (ndf, nc, 4, 4), jnp.float32)
    w2 = std * jax.random.normal(ks[1], (ndf * 2, ndf, 4, 4), jnp.float32)
    w3 = std * jax.random.normal(ks[2], (ndf * 4, ndf * 2, 4, 4), jnp.float32)
    w4 = std * jax.random.normal(ks[3], (1, ndf * 4, 8, 8), jnp.float32)
    return (w1, w2, w3, w4)


def _reference(x_nchw, params):
    """Pure-JAX (XLA) reference of the PyTorch module, for a sanity check."""
    w1, w2, w3, w4 = params

    def conv(x, w, stride, pad):
        return jax.lax.conv_general_dilated(
            x, w, window_strides=(stride, stride),
            padding=((pad, pad), (pad, pad)),
            dimension_numbers=("NCHW", "OIHW", "NCHW"))

    def bn(x):
        mean = jnp.mean(x, axis=(0, 2, 3), keepdims=True)
        var = jnp.mean((x - mean) ** 2, axis=(0, 2, 3), keepdims=True)
        return (x - mean) * jax.lax.rsqrt(var + EPS)

    h = _leaky(conv(x_nchw, w1, 2, 1))
    h = _leaky(bn(conv(h, w2, 2, 1)))
    h = _leaky(bn(conv(h, w3, 2, 1)))
    return jax.nn.sigmoid(conv(h, w4, 1, 0)).reshape(-1)


if __name__ == "__main__":
    key = jax.random.PRNGKey(0)
    kx, kp = jax.random.split(key)
    # Final conv has kernel 8 / stride 1 / pad 0 -> requires 64x64 input
    # (64 -> 32 -> 16 -> 8 -> 1).  Small batch / channels otherwise.
    N, NC, NDF, S = 2, 3, 8, 64
    x = jax.random.normal(kx, (N, NC, S, S), jnp.float32)
    params = init_params(kp, NC, NDF)
    packed = prepack_params(params)

    out = quick_discriminator(x, packed)
    jax.block_until_ready(out)
    assert out.shape == (N,) and out.dtype == jnp.float32

    ref = _reference(x, params)
    max_err = float(jnp.max(jnp.abs(out - ref)))
    assert max_err < 3e-2, f"mismatch vs reference: {max_err}"
    print("KERNEL_OK")
</pallas_src>

<mosaic_0001>
module attributes {stable_mosaic.version = 11 : i64} {
  func.func @kernel(%arg0: memref<2x66x9x24xf32, #tpu.memory_space<vmem>>, %arg1: memref<48x8xbf16, #tpu.memory_space<vmem>>, %arg2: memref<128x16xbf16, #tpu.memory_space<vmem>>, %arg3: memref<256x32xbf16, #tpu.memory_space<vmem>>, %arg4: memref<64x32xf32, #tpu.memory_space<vmem>>, %arg5: memref<2x1x1xf32, #tpu.memory_space<vmem>>, %arg6: memref<2x34x9x32xf32, #tpu.memory_space<vmem>>, %arg7: memref<2x18x9x32xf32, #tpu.memory_space<vmem>>) attributes {dimension_semantics = [], scalar_prefetch = 0 : i64, scratch_operands = 2 : i64, tpu.core_type = #tpu.core_type<tc>} {
    %cst = arith.constant 0.000000e+00 : f32
    %0 = vector.broadcast %cst : f32 to vector<2x34x9x32xf32>
    %c0 = arith.constant 0 : index
    %c0_0 = arith.constant 0 : index
    %c0_1 = arith.constant 0 : index
    %c0_2 = arith.constant 0 : index
    %1 = vector.load %arg6[%c0, %c0_0, %c0_1, %c0_2] : memref<2x34x9x32xf32, #tpu.memory_space<vmem>>, vector<2x34x9x32xf32>
    tpu.vector_store %arg6[%c0, %c0_0, %c0_1, %c0_2], %0 {strides = array<i32>} : memref<2x34x9x32xf32, #tpu.memory_space<vmem>>, vector<2x34x9x32xf32>,
    %c0_3 = arith.constant 0 : index
    %c0_4 = arith.constant 0 : index
    %c0_5 = arith.constant 0 : index
    %c0_6 = arith.constant 0 : index
    %2 = vector.load %arg0[%c0_3, %c0_4, %c0_5, %c0_6] : memref<2x66x9x24xf32, #tpu.memory_space<vmem>>, vector<2x66x9x24xf32>
    %3 = vector.shape_cast %2 : vector<2x66x9x24xf32> to vector<2x33x2x9x24xf32>
    %4 = vector.extract_strided_slice %3 {offsets = [0, 0, 0, 0, 0], sizes = [2, 32, 1, 8, 12], strides = [1, 1, 1, 1, 1]} : vector<2x33x2x9x24xf32> to vector<2x32x1x8x12xf32>
    %5 = vector.shape_cast %4 : vector<2x32x1x8x12xf32> to vector<2x32x8x12xf32>
    %6 = vector.extract_strided_slice %3 {offsets = [0, 0, 1, 0, 0], sizes = [2, 32, 1, 8, 12], strides = [1, 1, 1, 1, 1]} : vector<2x33x2x9x24xf32> to vector<2x32x1x8x12xf32>
    %7 = vector.shape_cast %6 : vector<2x32x1x8x12xf32> to vector<2x32x8x12xf32>
    %8 = vector.extract_strided_slice %3 {offsets = [0, 1, 0, 0, 0], sizes = [2, 32, 1, 8, 12], strides = [1, 1, 1, 1, 1]} : vector<2x33x2x9x24xf32> to vector<2x32x1x8x12xf32>
    %9 = vector.shape_cast %8 : vector<2x32x1x8x12xf32> to vector<2x32x8x12xf32>
    %10 = vector.extract_strided_slice %3 {offsets = [0, 1, 1, 0, 0], sizes = [2, 32, 1, 8, 12], strides = [1, 1, 1, 1, 1]} : vector<2x33x2x9x24xf32> to vector<2x32x1x8x12xf32>
    %11 = vector.shape_cast %10 : vector<2x32x1x8x12xf32> to vector<2x32x8x12xf32>
    %12 = tpu.concatenate %5, %7, %9, %11 in 3 : vector<2x32x8x12xf32>, vector<2x32x8x12xf32>, vector<2x32x8x12xf32>, vector<2x32x8x12xf32> -> vector<2x32x8x48xf32>
    %13 = vector.shape_cast %12 : vector<2x32x8x48xf32> to vector<512x48xf32>
    %14 = arith.truncf %13 : vector<512x48xf32> to vector<512x48xbf16>
    %c0_7 = arith.constant 0 : index
    %c0_8 = arith.constant 0 : index
    %15 = vector.load %arg1[%c0_7, %c0_8] : memref<48x8xbf16, #tpu.memory_space<vmem>>, vector<48x8xbf16>
    %cst_9 = arith.constant dense<0.000000e+00> : vector<512x8xf32>
    %16 = tpu.matmul %14, %15, %cst_9 {dimension_numbers = #tpu.dot_dimension_numbers<[1], [0], [0], [1], [0, 0, 1, 1], [], []>} : vector<512x48xbf16>, vector<48x8xbf16>, vector<512x8xf32> -> vector<512x8xf32>
    %cst_10 = arith.constant 0.000000e+00 : f32
    %17 = vector.broadcast %cst_10 : f32 to vector<512x8xf32>
    %18 = arith.cmpf ogt, %16, %17 : vector<512x8xf32>
    %cst_11 = arith.constant 2.000000e-01 : f32
    %19 = vector.broadcast %cst_11 : f32 to vector<512x8xf32>
    %20 = arith.mulf %19, %16 : vector<512x8xf32>
    %21 = arith.select %18, %16, %20 : vector<512x8xi1>, vector<512x8xf32>
    %22 = vector.shape_cast %21 : vector<512x8xf32> to vector<2x32x8x8xf32>
    %c0_12 = arith.constant 0 : index
    %c1 = arith.constant 1 : index
    %c0_13 = arith.constant 0 : index
    %c8 = arith.constant 8 : index
    %23 = vector.load %arg6[%c0_12, %c1, %c0_13, %c8] : memref<2x34x9x32xf32, #tpu.memory_space<vmem>>, vector<2x32x8x8xf32>
    tpu.vector_store %arg6[%c0_12, %c1, %c0_13, %c8], %22 {strides = array<i32>} : memref<2x34x9x32xf32, #tpu.memory_space<vmem>>, vector<2x32x8x8xf32>,
    %24 = vector.extract_strided_slice %3 {offsets = [0, 0, 0, 0, 6], sizes = [2, 32, 1, 8, 12], strides = [1, 1, 1, 1, 1]} : vector<2x33x2x9x24xf32> to vector<2x32x1x8x12xf32>
    %25 = vector.shape_cast %24 : vector<2x32x1x8x12xf32> to vector<2x32x8x12xf32>
    %26 = vector.extract_strided_slice %3 {offsets = [0, 0, 1, 0, 6], sizes = [2, 32, 1, 8, 12], strides = [1, 1, 1, 1, 1]} : vector<2x33x2x9x24xf32> to vector<2x32x1x8x12xf32>
    %27 = vector.shape_cast %26 : vector<2x32x1x8x12xf32> to vector<2x32x8x12xf32>
    %28 = vector.extract_strided_slice %3 {offsets = [0, 1, 0, 0, 6], sizes = [2, 32, 1, 8, 12], strides = [1, 1, 1, 1, 1]} : vector<2x33x2x9x24xf32> to vector<2x32x1x8x12xf32>
    %29 = vector.shape_cast %28 : vector<2x32x1x8x12xf32> to vector<2x32x8x12xf32>
    %30 = vector.extract_strided_slice %3 {offsets = [0, 1, 1, 0, 6], sizes = [2, 32, 1, 8, 12], strides = [1, 1, 1, 1, 1]} : vector<2x33x2x9x24xf32> to vector<2x32x1x8x12xf32>
    %31 = vector.shape_cast %30 : vector<2x32x1x8x12xf32> to vector<2x32x8x12xf32>
    %32 = tpu.concatenate %25, %27, %29, %31 in 3 : vector<2x32x8x12xf32>, vector<2x32x8x12xf32>, vector<2x32x8x12xf32>, vector<2x32x8x12xf32> -> vector<2x32x8x48xf32>
    %33 = vector.shape_cast %32 : vector<2x32x8x48xf32> to vector<512x48xf32>
    %34 = arith.truncf %33 : vector<512x48xf32> to vector<512x48xbf16>
    %c0_14 = arith.constant 0 : index
    %c0_15 = arith.constant 0 : index
    %35 = vector.load %arg1[%c0_14, %c0_15] : memref<48x8xbf16, #tpu.memory_space<vmem>>, vector<48x8xbf16>
    %cst_16 = arith.constant dense<0.000000e+00> : vector<512x8xf32>
    %36 = tpu.matmul %34, %35, %cst_16 {dimension_numbers = #tpu.dot_dimension_numbers<[1], [0], [0], [1], [0, 0, 1, 1], [], []>} : vector<512x48xbf16>, vector<48x8xbf16>, vector<512x8xf32> -> vector<512x8xf32>
    %cst_17 = arith.constant 0.000000e+00 : f32
    %37 = vector.broadcast %cst_17 : f32 to vector<512x8xf32>
    %38 = arith.cmpf ogt, %36, %37 : vector<512x8xf32>
    %cst_18 = arith.constant 2.000000e-01 : f32
    %39 = vector.broadcast %cst_18 : f32 to vector<512x8xf32>
    %40 = arith.mulf %39, %36 : vector<512x8xf32>
    %41 = arith.select %38, %36, %40 : vector<512x8xi1>, vector<512x8xf32>
    %42 = vector.shape_cast %41 : vector<512x8xf32> to vector<2x32x8x8xf32>
    %c0_19 = arith.constant 0 : index
    %c1_20 = arith.constant 1 : index
    %c0_21 = arith.constant 0 : index
    %c16 = arith.constant 16 : index
    %43 = vector.load %arg6[%c0_19, %c1_20, %c0_21, %c16] : memref<2x34x9x32xf32, #tpu.memory_space<vmem>>, vector<2x32x8x8xf32>
    tpu.vector_store %arg6[%c0_19, %c1_20, %c0_21, %c16], %42 {strides = array<i32>} : memref<2x34x9x32xf32, #tpu.memory_space<vmem>>, vector<2x32x8x8xf32>,
    %44 = vector.extract_strided_slice %3 {offsets = [0, 0, 0, 0, 12], sizes = [2, 32, 1, 8, 12], strides = [1, 1, 1, 1, 1]} : vector<2x33x2x9x24xf32> to vector<2x32x1x8x12xf32>
    %45 = vector.shape_cast %44 : vector<2x32x1x8x12xf32> to vector<2x32x8x12xf32>
    %46 = vector.extract_strided_slice %3 {offsets = [0, 0, 1, 0, 12], sizes = [2, 32, 1, 8, 12], strides = [1, 1, 1, 1, 1]} : vector<2x33x2x9x24xf32> to vector<2x32x1x8x12xf32>
    %47 = vector.shape_cast %46 : vector<2x32x1x8x12xf32> to vector<2x32x8x12xf32>
    %48 = vector.extract_strided_slice %3 {offsets = [0, 1, 0, 0, 12], sizes = [2, 32, 1, 8, 12], strides = [1, 1, 1, 1, 1]} : vector<2x33x2x9x24xf32> to vector<2x32x1x8x12xf32>
    %49 = vector.shape_cast %48 : vector<2x32x1x8x12xf32> to vector<2x32x8x12xf32>
    %50 = vector.extract_strided_slice %3 {offsets = [0, 1, 1, 0, 12], sizes = [2, 32, 1, 8, 12], strides = [1, 1, 1, 1, 1]} : vector<2x33x2x9x24xf32> to vector<2x32x1x8x12xf32>
    %51 = vector.shape_cast %50 : vector<2x32x1x8x12xf32> to vector<2x32x8x12xf32>
    %52 = tpu.concatenate %45, %47, %49, %51 in 3 : vector<2x32x8x12xf32>, vector<2x32x8x12xf32>, vector<2x32x8x12xf32>, vector<2x32x8x12xf32> -> vector<2x32x8x48xf32>
    %53 = vector.shape_cast %52 : vector<2x32x8x48xf32> to vector<512x48xf32>
    %54 = arith.truncf %53 : vector<512x48xf32> to vector<512x48xbf16>
    %c0_22 = arith.constant 0 : index
    %c0_23 = arith.constant 0 : index
    %55 = vector.load %arg1[%c0_22, %c0_23] : memref<48x8xbf16, #tpu.memory_space<vmem>>, vector<48x8xbf16>
    %cst_24 = arith.constant dense<0.000000e+00> : vector<512x8xf32>
    %56 = tpu.matmul %54, %55, %cst_24 {dimension_numbers = #tpu.dot_dimension_numbers<[1], [0], [0], [1], [0, 0, 1, 1], [], []>} : vector<512x48xbf16>, vector<48x8xbf16>, vector<512x8xf32> -> vector<512x8xf32>
    %cst_25 = arith.constant 0.000000e+00 : f32
    %57 = vector.broadcast %cst_25 : f32 to vector<512x8xf32>
    %58 = arith.cmpf ogt, %56, %57 : vector<512x8xf32>
    %cst_26 = arith.constant 2.000000e-01 : f32
    %59 = vector.broadcast %cst_26 : f32 to vector<512x8xf32>
    %60 = arith.mulf %59, %56 : vector<512x8xf32>
    %61 = arith.select %58, %56, %60 : vector<512x8xi1>, vector<512x8xf32>
    %62 = vector.shape_cast %61 : vector<512x8xf32> to vector<2x32x8x8xf32>
    %c0_27 = arith.constant 0 : index
    %c1_28 = arith.constant 1 : index
    %c0_29 = arith.constant 0 : index
    %c24 = arith.constant 24 : index
    %63 = vector.load %arg6[%c0_27, %c1_28, %c0_29, %c24] : memref<2x34x9x32xf32, #tpu.memory_space<vmem>>, vector<2x32x8x8xf32>
    tpu.vector_store %arg6[%c0_27, %c1_28, %c0_29, %c24], %62 {strides = array<i32>} : memref<2x34x9x32xf32, #tpu.memory_space<vmem>>, vector<2x32x8x8xf32>,
    %64 = vector.extract_strided_slice %3 {offsets = [0, 0, 0, 0, 18], sizes = [2, 32, 1, 8, 6], strides = [1, 1, 1, 1, 1]} : vector<2x33x2x9x24xf32> to vector<2x32x1x8x6xf32>
    %65 = vector.shape_cast %64 : vector<2x32x1x8x6xf32> to vector<2x32x8x6xf32>
    %66 = vector.extract_strided_slice %3 {offsets = [0, 0, 0, 1, 0], sizes = [2, 32, 1, 8, 6], strides = [1, 1, 1, 1, 1]} : vector<2x33x2x9x24xf32> to vector<2x32x1x8x6xf32>
    %67 = vector.shape_cast %66 : vector<2x32x1x8x6xf32> to vector<2x32x8x6xf32>
    %68 = vector.extract_strided_slice %3 {offsets = [0, 0, 1, 0, 18], sizes = [2, 32, 1, 8, 6], strides = [1, 1, 1, 1, 1]} : vector<2x33x2x9x24xf32> to vector<2x32x1x8x6xf32>
    %69 = vector.shape_cast %68 : vector<2x32x1x8x6xf32> to vector<2x32x8x6xf32>
    %70 = vector.extract_strided_slice %3 {offsets = [0, 0, 1, 1, 0], sizes = [2, 32, 1, 8, 6], strides = [1, 1, 1, 1, 1]} : vector<2x33x2x9x24xf32> to vector<2x32x1x8x6xf32>
    %71 = vector.shape_cast %70 : vector<2x32x1x8x6xf32> to vector<2x32x8x6xf32>
    %72 = vector.extract_strided_slice %3 {offsets = [0, 1, 0, 0, 18], sizes = [2, 32, 1, 8, 6], strides = [1, 1, 1, 1, 1]} : vector<2x33x2x9x24xf32> to vector<2x32x1x8x6xf32>
    %73 = vector.shape_cast %72 : vector<2x32x1x8x6xf32> to vector<2x32x8x6xf32>
    %74 = vector.extract_strided_slice %3 {offsets = [0, 1, 0, 1, 0], sizes = [2, 32, 1, 8, 6], strides = [1, 1, 1, 1, 1]} : vector<2x33x2x9x24xf32> to vector<2x32x1x8x6xf32>
    %75 = vector.shape_cast %74 : vector<2x32x1x8x6xf32> to vector<2x32x8x6xf32>
    %76 = vector.extract_strided_slice %3 {offsets = [0, 1, 1, 0, 18], sizes = [2, 32, 1, 8, 6], strides = [1, 1, 1, 1, 1]} : vector<2x33x2x9x24xf32> to vector<2x32x1x8x6xf32>
    %77 = vector.shape_cast %76 : vector<2x32x1x8x6xf32> to vector<2x32x8x6xf32>
    %78 = vector.extract_strided_slice %3 {offsets = [0, 1, 1, 1, 0], sizes = [2, 32, 1, 8, 6], strides = [1, 1, 1, 1, 1]} : vector<2x33x2x9x24xf32> to vector<2x32x1x8x6xf32>
    %79 = vector.shape_cast %78 : vector<2x32x1x8x6xf32> to vector<2x32x8x6xf32>
    %80 = tpu.concatenate %65, %67, %69, %71, %73, %75, %77, %79 in 3 : vector<2x32x8x6xf32>, vector<2x32x8x6xf32>, vector<2x32x8x6xf32>, vector<2x32x8x6xf32>, vector<2x32x8x6xf32>, vector<2x32x8x6xf32>, vector<2x32x8x6xf32>, vector<2x32x8x6xf32> -> vector<2x32x8x48xf32>
    %81 = vector.shape_cast %80 : vector<2x32x8x48xf32> to vector<512x48xf32>
    %82 = arith.truncf %81 : vector<512x48xf32> to vector<512x48xbf16>
    %c0_30 = arith.constant 0 : index
    %c0_31 = arith.constant 0 : index
    %83 = vector.load %arg1[%c0_30, %c0_31] : memref<48x8xbf16, #tpu.memory_space<vmem>>, vector<48x8xbf16>
    %cst_32 = arith.constant dense<0.000000e+00> : vector<512x8xf32>
    %84 = tpu.matmul %82, %83, %cst_32 {dimension_numbers = #tpu.dot_dimension_numbers<[1], [0], [0], [1], [0, 0, 1, 1], [], []>} : vector<512x48xbf16>, vector<48x8xbf16>, vector<512x8xf32> -> vector<512x8xf32>
    %cst_33 = arith.constant 0.000000e+00 : f32
    %85 = vector.broadcast %cst_33 : f32 to vector<512x8xf32>
    %86 = arith.cmpf ogt, %84, %85 : vector<512x8xf32>
    %cst_34 = arith.constant 2.000000e-01 : f32
    %87 = vector.broadcast %cst_34 : f32 to vector<512x8xf32>
    %88 = arith.mulf %87, %84 : vector<512x8xf32>
    %89 = arith.select %86, %84, %88 : vector<512x8xi1>, vector<512x8xf32>
    %90 = vector.shape_cast %89 : vector<512x8xf32> to vector<2x32x8x8xf32>
    %c0_35 = arith.constant 0 : index
    %c1_36 = arith.constant 1 : index
    %c1_37 = arith.constant 1 : index
    %c0_38 = arith.constant 0 : index
    %91 = vector.load %arg6[%c0_35, %c1_36, %c1_37, %c0_38] : memref<2x34x9x32xf32, #tpu.memory_space<vmem>>, vector<2x32x8x8xf32>
    tpu.vector_store %arg6[%c0_35, %c1_36, %c1_37, %c0_38], %90 {strides = array<i32>} : memref<2x34x9x32xf32, #tpu.memory_space<vmem>>, vector<2x32x8x8xf32>,
    %cst_39 = arith.constant 0.000000e+00 : f32
    %92 = vector.broadcast %cst_39 : f32 to vector<2x18x9x32xf32>
    %c0_40 = arith.constant 0 : index
    %c0_41 = arith.constant 0 : index
    %c0_42 = arith.constant 0 : index
    %c0_43 = arith.constant 0 : index
    %93 = vector.load %arg7[%c0_40, %c0_41, %c0_42, %c0_43] : memref<2x18x9x32xf32, #tpu.memory_space<vmem>>, vector<2x18x9x32xf32>
    tpu.vector_store %arg7[%c0_40, %c0_41, %c0_42, %c0_43], %92 {strides = array<i32>} : memref<2x18x9x32xf32, #tpu.memory_space<vmem>>, vector<2x18x9x32xf32>,
    %c0_44 = arith.constant 0 : index
    %c0_45 = arith.constant 0 : index
    %c0_46 = arith.constant 0 : index
    %c0_47 = arith.constant 0 : index
    %94 = vector.load %arg6[%c0_44, %c0_45, %c0_46, %c0_47] : memref<2x34x9x32xf32, #tpu.memory_space<vmem>>, vector<2x34x9x32xf32>
    %95 = vector.shape_cast %94 : vector<2x34x9x32xf32> to vector<2x17x2x9x32xf32>
    %96 = vector.extract_strided_slice %95 {offsets = [0, 0, 0, 0, 0], sizes = [2, 16, 1, 8, 32], strides = [1, 1, 1, 1, 1]} : vector<2x17x2x9x32xf32> to vector<2x16x1x8x32xf32>
    %97 = vector.shape_cast %96 : vector<2x16x1x8x32xf32> to vector<2x16x8x32xf32>
    %98 = vector.extract_strided_slice %95 {offsets = [0, 0, 1, 0, 0], sizes = [2, 16, 1, 8, 32], strides = [1, 1, 1, 1, 1]} : vector<2x17x2x9x32xf32> to vector<2x16x1x8x32xf32>
    %99 = vector.shape_cast %98 : vector<2x16x1x8x32xf32> to vector<2x16x8x32xf32>
    %100 = vector.extract_strided_slice %95 {offsets = [0, 1, 0, 0, 0], sizes = [2, 16, 1, 8, 32], strides = [1, 1, 1, 1, 1]} : vector<2x17x2x9x32xf32> to vector<2x16x1x8x32xf32>
    %101 = vector.shape_cast %100 : vector<2x16x1x8x32xf32> to vector<2x16x8x32xf32>
    %102 = vector.extract_strided_slice %95 {offsets = [0, 1, 1, 0, 0], sizes = [2, 16, 1, 8, 32], strides = [1, 1, 1, 1, 1]} : vector<2x17x2x9x32xf32> to vector<2x16x1x8x32xf32>
    %103 = vector.shape_cast %102 : vector<2x16x1x8x32xf32> to vector<2x16x8x32xf32>
    %104 = tpu.concatenate %97, %99, %101, %103 in 3 : vector<2x16x8x32xf32>, vector<2x16x8x32xf32>, vector<2x16x8x32xf32>, vector<2x16x8x32xf32> -> vector<2x16x8x128xf32>
    %105 = vector.shape_cast %104 : vector<2x16x8x128xf32> to vector<256x128xf32>
    %106 = arith.truncf %105 : vector<256x128xf32> to vector<256x128xbf16>
    %c0_48 = arith.constant 0 : index
    %c0_49 = arith.constant 0 : index
    %107 = vector.load %arg2[%c0_48, %c0_49] : memref<128x16xbf16, #tpu.memory_space<vmem>>, vector<128x16xbf16>
    %cst_50 = arith.constant dense<0.000000e+00> : vector<256x16xf32>
    %108 = tpu.matmul %106, %107, %cst_50 {dimension_numbers = #tpu.dot_dimension_numbers<[1], [0], [0], [1], [0, 0, 1, 1], [], []>} : vector<256x128xbf16>, vector<128x16xbf16>, vector<256x16xf32> -> vector<256x16xf32>
    %109 = vector.extract_strided_slice %95 {offsets = [0, 0, 0, 0, 16], sizes = [2, 16, 1, 8, 16], strides = [1, 1, 1, 1, 1]} : vector<2x17x2x9x32xf32> to vector<2x16x1x8x16xf32>
    %110 = vector.shape_cast %109 : vector<2x16x1x8x16xf32> to vector<2x16x8x16xf32>
    %111 = vector.extract_strided_slice %95 {offsets = [0, 0, 0, 1, 0], sizes = [2, 16, 1, 8, 16], strides = [1, 1, 1, 1, 1]} : vector<2x17x2x9x32xf32> to vector<2x16x1x8x16xf32>
    %112 = vector.shape_cast %111 : vector<2x16x1x8x16xf32> to vector<2x16x8x16xf32>
    %113 = vector.extract_strided_slice %95 {offsets = [0, 0, 1, 0, 16], sizes = [2, 16, 1, 8, 16], strides = [1, 1, 1, 1, 1]} : vector<2x17x2x9x32xf32> to vector<2x16x1x8x16xf32>
    %114 = vector.shape_cast %113 : vector<2x16x1x8x16xf32> to vector<2x16x8x16xf32>
    %115 = vector.extract_strided_slice %95 {offsets = [0, 0, 1, 1, 0], sizes = [2, 16, 1, 8, 16], strides = [1, 1, 1, 1, 1]} : vector<2x17x2x9x32xf32> to vector<2x16x1x8x16xf32>
    %116 = vector.shape_cast %115 : vector<2x16x1x8x16xf32> to vector<2x16x8x16xf32>
    %117 = vector.extract_strided_slice %95 {offsets = [0, 1, 0, 0, 16], sizes = [2, 16, 1, 8, 16], strides = [1, 1, 1, 1, 1]} : vector<2x17x2x9x32xf32> to vector<2x16x1x8x16xf32>
    %118 = vector.shape_cast %117 : vector<2x16x1x8x16xf32> to vector<2x16x8x16xf32>
    %119 = vector.extract_strided_slice %95 {offsets = [0, 1, 0, 1, 0], sizes = [2, 16, 1, 8, 16], strides = [1, 1, 1, 1, 1]} : vector<2x17x2x9x32xf32> to vector<2x16x1x8x16xf32>
    %120 = vector.shape_cast %119 : vector<2x16x1x8x16xf32> to vector<2x16x8x16xf32>
    %121 = vector.extract_strided_slice %95 {offsets = [0, 1, 1, 0, 16], sizes = [2, 16, 1, 8, 16], strides = [1, 1, 1, 1, 1]} : vector<2x17x2x9x32xf32> to vector<2x16x1x8x16xf32>
    %122 = vector.shape_cast %121 : vector<2x16x1x8x16xf32> to vector<2x16x8x16xf32>
    %123 = vector.extract_strided_slice %95 {offsets = [0, 1, 1, 1, 0], sizes = [2, 16, 1, 8, 16], strides = [1, 1, 1, 1, 1]} : vector<2x17x2x9x32xf32> to vector<2x16x1x8x16xf32>
    %124 = vector.shape_cast %123 : vector<2x16x1x8x16xf32> to vector<2x16x8x16xf32>
    %125 = tpu.concatenate %110, %112, %114, %116, %118, %120, %122, %124 in 3 : vector<2x16x8x16xf32>, vector<2x16x8x16xf32>, vector<2x16x8x16xf32>, vector<2x16x8x16xf32>, vector<2x16x8x16xf32>, vector<2x16x8x16xf32>, vector<2x16x8x16xf32>, vector<2x16x8x16xf32> -> vector<2x16x8x128xf32>
    %126 = vector.shape_cast %125 : vector<2x16x8x128xf32> to vector<256x128xf32>
    %127 = arith.truncf %126 : vector<256x128xf32> to vector<256x128xbf16>
    %c0_51 = arith.constant 0 : index
    %c0_52 = arith.constant 0 : index
    %128 = vector.load %arg2[%c0_51, %c0_52] : memref<128x16xbf16, #tpu.memory_space<vmem>>, vector<128x16xbf16>
    %cst_53 = arith.constant dense<0.000000e+00> : vector<256x16xf32>
    %129 = tpu.matmul %127, %128, %cst_53 {dimension_numbers = #tpu.dot_dimension_numbers<[1], [0], [0], [1], [0, 0, 1, 1], [], []>} : vector<256x128xbf16>, vector<128x16xbf16>, vector<256x16xf32> -> vector<256x16xf32>
    %130 = tpu.concatenate %108, %129 in 0 : vector<256x16xf32>, vector<256x16xf32> -> vector<512x16xf32>
    %cst_54 = arith.constant dense<0.000000e+00> : vector<16xf32>
    %131 = vector.multi_reduction <add>, %130, %cst_54 [0] : vector<512x16xf32> to vector<16xf32>
    %132 = vector.shape_cast %131 : vector<16xf32> to vector<1x16xf32>
    %cst_55 = arith.constant 5.120000e+02 : f32
    %133 = vector.broadcast %cst_55 : f32 to vector<1x16xf32>
    %134 = arith.divf %132, %133 : vector<1x16xf32>
    %135 = vector.broadcast %134 : vector<1x16xf32> to vector<512x16xf32>
    %136 = arith.subf %130, %135 : vector<512x16xf32>
    %137 = arith.mulf %136, %136 : vector<512x16xf32>
    %cst_56 = arith.constant dense<0.000000e+00> : vector<16xf32>
    %138 = vector.multi_reduction <add>, %137, %cst_56 [0] : vector<512x16xf32> to vector<16xf32>
    %139 = vector.shape_cast %138 : vector<16xf32> to vector<1x16xf32>
    %cst_57 = arith.constant 5.120000e+02 : f32
    %140 = vector.broadcast %cst_57 : f32 to vector<1x16xf32>
    %141 = arith.divf %139, %140 : vector<1x16xf32>
    %142 = vector.broadcast %134 : vector<1x16xf32> to vector<512x16xf32>
    %143 = arith.subf %130, %142 : vector<512x16xf32>
    %cst_58 = arith.constant 9.99999974E-6 : f32
    %144 = vector.broadcast %cst_58 : f32 to vector<1x16xf32>
    %145 = arith.addf %141, %144 : vector<1x16xf32>
    %146 = math.rsqrt %145 : vector<1x16xf32>
    %147 = vector.broadcast %146 : vector<1x16xf32> to vector<512x16xf32>
    %148 = arith.mulf %143, %147 : vector<512x16xf32>
    %cst_59 = arith.constant 0.000000e+00 : f32
    %149 = vector.broadcast %cst_59 : f32 to vector<512x16xf32>
    %150 = arith.cmpf ogt, %148, %149 : vector<512x16xf32>
    %cst_60 = arith.constant 2.000000e-01 : f32
    %151 = vector.broadcast %cst_60 : f32 to vector<512x16xf32>
    %152 = arith.mulf %151, %148 : vector<512x16xf32>
    %153 = arith.select %150, %148, %152 : vector<512x16xi1>, vector<512x16xf32>
    %154 = vector.extract_strided_slice %153 {offsets = [0, 0], sizes = [256, 16], strides = [1, 1]} : vector<512x16xf32> to vector<256x16xf32>
    %155 = vector.shape_cast %154 : vector<256x16xf32> to vector<2x16x8x16xf32>
    %c0_61 = arith.constant 0 : index
    %c1_62 = arith.constant 1 : index
    %c0_63 = arith.constant 0 : index
    %c16_64 = arith.constant 16 : index
    %156 = vector.load %arg7[%c0_61, %c1_62, %c0_63, %c16_64] : memref<2x18x9x32xf32, #tpu.memory_space<vmem>>, vector<2x16x8x16xf32>
    tpu.vector_store %arg7[%c0_61, %c1_62, %c0_63, %c16_64], %155 {strides = array<i32>} : memref<2x18x9x32xf32, #tpu.memory_space<vmem>>, vector<2x16x8x16xf32>,
    %157 = vector.extract_strided_slice %153 {offsets = [256, 0], sizes = [256, 16], strides = [1, 1]} : vector<512x16xf32> to vector<256x16xf32>
    %158 = vector.shape_cast %157 : vector<256x16xf32> to vector<2x16x8x16xf32>
    %c0_65 = arith.constant 0 : index
    %c1_66 = arith.constant 1 : index
    %c1_67 = arith.constant 1 : index
    %c0_68 = arith.constant 0 : index
    %159 = vector.load %arg7[%c0_65, %c1_66, %c1_67, %c0_68] : memref<2x18x9x32xf32, #tpu.memory_space<vmem>>, vector<2x16x8x16xf32>
    tpu.vector_store %arg7[%c0_65, %c1_66, %c1_67, %c0_68], %158 {strides = array<i32>} : memref<2x18x9x32xf32, #tpu.memory_space<vmem>>, vector<2x16x8x16xf32>,
    %c0_69 = arith.constant 0 : index
    %c0_70 = arith.constant 0 : index
    %c0_71 = arith.constant 0 : index
    %c0_72 = arith.constant 0 : index
    %160 = vector.load %arg7[%c0_69, %c0_70, %c0_71, %c0_72] : memref<2x18x9x32xf32, #tpu.memory_space<vmem>>, vector<2x18x9x32xf32>
    %161 = vector.shape_cast %160 : vector<2x18x9x32xf32> to vector<2x9x2x9x32xf32>
    %162 = vector.extract_strided_slice %161 {offsets = [0, 0, 0, 0, 0], sizes = [2, 8, 1, 8, 32], strides = [1, 1, 1, 1, 1]} : vector<2x9x2x9x32xf32> to vector<2x8x1x8x32xf32>
    %163 = vector.shape_cast %162 : vector<2x8x1x8x32xf32> to vector<2x8x8x32xf32>
    %164 = vector.extract_strided_slice %161 {offsets = [0, 0, 0, 1, 0], sizes = [2, 8, 1, 8, 32], strides = [1, 1, 1, 1, 1]} : vector<2x9x2x9x32xf32> to vector<2x8x1x8x32xf32>
    %165 = vector.shape_cast %164 : vector<2x8x1x8x32xf32> to vector<2x8x8x32xf32>
    %166 = vector.extract_strided_slice %161 {offsets = [0, 0, 1, 0, 0], sizes = [2, 8, 1, 8, 32], strides = [1, 1, 1, 1, 1]} : vector<2x9x2x9x32xf32> to vector<2x8x1x8x32xf32>
    %167 = vector.shape_cast %166 : vector<2x8x1x8x32xf32> to vector<2x8x8x32xf32>
    %168 = vector.extract_strided_slice %161 {offsets = [0, 0, 1, 1, 0], sizes = [2, 8, 1, 8, 32], strides = [1, 1, 1, 1, 1]} : vector<2x9x2x9x32xf32> to vector<2x8x1x8x32xf32>
    %169 = vector.shape_cast %168 : vector<2x8x1x8x32xf32> to vector<2x8x8x32xf32>
    %170 = vector.extract_strided_slice %161 {offsets = [0, 1, 0, 0, 0], sizes = [2, 8, 1, 8, 32], strides = [1, 1, 1, 1, 1]} : vector<2x9x2x9x32xf32> to vector<2x8x1x8x32xf32>
    %171 = vector.shape_cast %170 : vector<2x8x1x8x32xf32> to vector<2x8x8x32xf32>
    %172 = vector.extract_strided_slice %161 {offsets = [0, 1, 0, 1, 0], sizes = [2, 8, 1, 8, 32], strides = [1, 1, 1, 1, 1]} : vector<2x9x2x9x32xf32> to vector<2x8x1x8x32xf32>
    %173 = vector.shape_cast %172 : vector<2x8x1x8x32xf32> to vector<2x8x8x32xf32>
    %174 = vector.extract_strided_slice %161 {offsets = [0, 1, 1, 0, 0], sizes = [2, 8, 1, 8, 32], strides = [1, 1, 1, 1, 1]} : vector<2x9x2x9x32xf32> to vector<2x8x1x8x32xf32>
    %175 = vector.shape_cast %174 : vector<2x8x1x8x32xf32> to vector<2x8x8x32xf32>
    %176 = vector.extract_strided_slice %161 {offsets = [0, 1, 1, 1, 0], sizes = [2, 8, 1, 8, 32], strides = [1, 1, 1, 1, 1]} : vector<2x9x2x9x32xf32> to vector<2x8x1x8x32xf32>
    %177 = vector.shape_cast %176 : vector<2x8x1x8x32xf32> to vector<2x8x8x32xf32>
    %178 = tpu.concatenate %163, %165, %167, %169, %171, %173, %175, %177 in 3 : vector<2x8x8x32xf32>, vector<2x8x8x32xf32>, vector<2x8x8x32xf32>, vector<2x8x8x32xf32>, vector<2x8x8x32xf32>, vector<2x8x8x32xf32>, vector<2x8x8x32xf32>, vector<2x8x8x32xf32> -> vector<2x8x8x256xf32>
    %179 = vector.shape_cast %178 : vector<2x8x8x256xf32> to vector<128x256xf32>
    %180 = arith.truncf %179 : vector<128x256xf32> to vector<128x256xbf16>
    %c0_73 = arith.constant 0 : index
    %c0_74 = arith.constant 0 : index
    %181 = vector.load %arg3[%c0_73, %c0_74] : memref<256x32xbf16, #tpu.memory_space<vmem>>, vector<256x32xbf16>
    %cst_75 = arith.constant dense<0.000000e+00> : vector<128x32xf32>
    %182 = tpu.matmul %180, %181, %cst_75 {dimension_numbers = #tpu.dot_dimension_numbers<[1], [0], [0], [1], [0, 0, 1, 1], [], []>} : vector<128x256xbf16>, vector<256x32xbf16>, vector<128x32xf32> -> vector<128x32xf32>
    %cst_76 = arith.constant dense<0.000000e+00> : vector<32xf32>
    %183 = vector.multi_reduction <add>, %182, %cst_76 [0] : vector<128x32xf32> to vector<32xf32>
    %184 = vector.shape_cast %183 : vector<32xf32> to vector<1x32xf32>
    %cst_77 = arith.constant 1.280000e+02 : f32
    %185 = vector.broadcast %cst_77 : f32 to vector<1x32xf32>
    %186 = arith.divf %184, %185 : vector<1x32xf32>
    %187 = vector.broadcast %186 : vector<1x32xf32> to vector<128x32xf32>
    %188 = arith.subf %182, %187 : vector<128x32xf32>
    %189 = arith.mulf %188, %188 : vector<128x32xf32>
    %cst_78 = arith.constant dense<0.000000e+00> : vector<32xf32>
    %190 = vector.multi_reduction <add>, %189, %cst_78 [0] : vector<128x32xf32> to vector<32xf32>
    %191 = vector.shape_cast %190 : vector<32xf32> to vector<1x32xf32>
    %cst_79 = arith.constant 1.280000e+02 : f32
    %192 = vector.broadcast %cst_79 : f32 to vector<1x32xf32>
    %193 = arith.divf %191, %192 : vector<1x32xf32>
    %194 = vector.broadcast %186 : vector<1x32xf32> to vector<128x32xf32>
    %195 = arith.subf %182, %194 : vector<128x32xf32>
    %cst_80 = arith.constant 9.99999974E-6 : f32
    %196 = vector.broadcast %cst_80 : f32 to vector<1x32xf32>
    %197 = arith.addf %193, %196 : vector<1x32xf32>
    %198 = math.rsqrt %197 : vector<1x32xf32>
    %199 = vector.broadcast %198 : vector<1x32xf32> to vector<128x32xf32>
    %200 = arith.mulf %195, %199 : vector<128x32xf32>
    %cst_81 = arith.constant 0.000000e+00 : f32
    %201 = vector.broadcast %cst_81 : f32 to vector<128x32xf32>
    %202 = arith.cmpf ogt, %200, %201 : vector<128x32xf32>
    %cst_82 = arith.constant 2.000000e-01 : f32
    %203 = vector.broadcast %cst_82 : f32 to vector<128x32xf32>
    %204 = arith.mulf %203, %200 : vector<128x32xf32>
    %205 = arith.select %202, %200, %204 : vector<128x32xi1>, vector<128x32xf32>
    %206 = vector.shape_cast %205 : vector<128x32xf32> to vector<2x64x32xf32>
    %c0_83 = arith.constant 0 : index
    %c0_84 = arith.constant 0 : index
    %207 = vector.load %arg4[%c0_83, %c0_84] : memref<64x32xf32, #tpu.memory_space<vmem>>, vector<64x32xf32>
    %208 = vector.shape_cast %207 : vector<64x32xf32> to vector<1x64x32xf32>
    %209 = vector.broadcast %208 : vector<1x64x32xf32> to vector<2x64x32xf32>
    %210 = arith.mulf %206, %209 : vector<2x64x32xf32>
    %cst_85 = arith.constant dense<0.000000e+00> : vector<2x64xf32>
    %211 = vector.multi_reduction <add>, %210, %cst_85 [2] : vector<2x64x32xf32> to vector<2x64xf32>
    %212 = vector.shape_cast %211 : vector<2x64xf32> to vector<2x64x1xf32>
    %cst_86 = arith.constant dense<0.000000e+00> : vector<2x1xf32>
    %213 = vector.multi_reduction <add>, %212, %cst_86 [1] : vector<2x64x1xf32> to vector<2x1xf32>
    %214 = vector.shape_cast %213 : vector<2x1xf32> to vector<2x1x1xf32>
    %215 = arith.negf %214 : vector<2x1x1xf32>
    %216 = math.exp %215 : vector<2x1x1xf32>
    %cst_87 = arith.constant 1.000000e+00 : f32
    %217 = vector.broadcast %cst_87 : f32 to vector<2x1x1xf32>
    %218 = arith.addf %217, %216 : vector<2x1x1xf32>
    %219 = arith.divf %217, %218 : vector<2x1x1xf32>
    %c0_88 = arith.constant 0 : index
    %c0_89 = arith.constant 0 : index
    %c0_90 = arith.constant 0 : index
    %220 = vector.load %arg5[%c0_88, %c0_89, %c0_90] : memref<2x1x1xf32, #tpu.memory_space<vmem>>, vector<2x1x1xf32>
    tpu.vector_store %arg5[%c0_88, %c0_89, %c0_90], %219 {strides = array<i32>} : memref<2x1x1xf32, #tpu.memory_space<vmem>>, vector<2x1x1xf32>,
    return
  }
}

</mosaic_0001>

<llo_original>
// kernel: quick_discriminator.1
$region0: #{quick_discriminator.1}
  #allocation0 [shape = 'u32[]', space=smem, size = 0x4, offset = 0x4, fixed_abs, tag = 'smem constant byte address 0x4 - core index']
  #allocation1 [shape = 'u32[144,128]{1,0:T(1,128)}', space=vmem, size = 0x12000, scoped, tag = 'internal scratch']
  #allocation2 [shape = 'f32[2,34,9,32]{3,2,1,0:T(8,128)}', space=vmem, size = 0x88000, scoped, tag = 'scratch operand']
  #allocation3 [shape = 'f32[2,18,9,32]{3,2,1,0:T(8,128)}', space=vmem, size = 0x48000, scoped, tag = 'scratch operand']
  %s0 = inlined_call_operand.vmem [shape: f32[2,66,9,24], index: 0, kind: input, shape index: {}]
  %s1 = inlined_call_operand.vmem [shape: bf16[48,8], index: 1, kind: input, shape index: {}]
  %s2 = inlined_call_operand.vmem [shape: bf16[128,16], index: 2, kind: input, shape index: {}]
  %s3 = inlined_call_operand.vmem [shape: bf16[256,32], index: 3, kind: input, shape index: {}]
  %s4 = inlined_call_operand.vmem [shape: f32[64,32], index: 4, kind: input, shape index: {}]
  %s5 = inlined_call_operand.vmem [shape: f32[2,1,1], index: 5, kind: output, shape index: {}]
  %s6 = sld [smem:[#allocation0]]
  $region30: #{quick_discriminator.1} parent=0
    _
  %s8 = ssub.s32 1, %s6
  %s9 = scalar_select 0, %s8, %s6
  // Predicated region
  $region2: #{quick_discriminator.1} parent=0 // pred_check
    _
  $region3: #{quick_discriminator.1} parent=0 // pred_check_branch
    %11 = sbr.rel (0) target = $region5
  $region4: #{quick_discriminator.1} parent=0 // pred_region
    _
  $region5: #{quick_discriminator.1} parent=0 // pred_fallthru
    _
  // Predicated region
  $region6: #{quick_discriminator.1} parent=0 // pred_check
    _
  $region7: #{quick_discriminator.1} parent=0 // pred_check_branch
    %13 = sbr.rel (0) target = $region9
  $region8: #{quick_discriminator.1} parent=0 // pred_region
    _
  $region9: #{quick_discriminator.1} parent=0 // pred_fallthru
    _
  // Predicated region
  $region10: #{quick_discriminator.1} parent=0 // pred_check
    _
  $region11: #{quick_discriminator.1} parent=0 // pred_check_branch
    %15 = sbr.rel (0) target = $region13
  $region12: #{quick_discriminator.1} parent=0 // pred_region
    _
  $region13: #{quick_discriminator.1} parent=0 // pred_fallthru
    _
  // Predicated region
  $region14: #{quick_discriminator.1} parent=0 // pred_check
    _
  $region15: #{quick_discriminator.1} parent=0 // pred_check_branch
    %17 = sbr.rel (0) target = $region17
  $region16: #{quick_discriminator.1} parent=0 // pred_region
    _
  $region17: #{quick_discriminator.1} parent=0 // pred_fallthru
    _
  // Predicated region
  $region18: #{quick_discriminator.1} parent=0 // pred_check
    _
  $region19: #{quick_discriminator.1} parent=0 // pred_check_branch
    %19 = sbr.rel (0) target = $region21
  $region20: #{quick_discriminator.1} parent=0 // pred_region
    _
  $region21: #{quick_discriminator.1} parent=0 // pred_fallthru
    _
  %vm21 = vcmask 261120
  %22 = vst.msk [vmem:[#allocation2] sm:$0xff] %vm21, 0.0
  %vm23 = vcmask 253952
  %24 = vst.msk [vmem:[#allocation2 + $0x8] sm:$0x1] %vm23, 0.0
  %25 = vst.msk [vmem:[#allocation2 + $0x10] sm:$0xff] %vm21, 0.0
  %26 = vst.msk [vmem:[#allocation2 + $0x18] sm:$0x1] %vm23, 0.0
  %27 = vst.msk [vmem:[#allocation2 + $0x20] sm:$0xff] %vm21, 0.0
  %28 = vst.msk [vmem:[#allocation2 + $0x28] sm:$0x1] %vm23, 0.0
  %29 = vst.msk [vmem:[#allocation2 + $0x30] sm:$0xff] %vm21, 0.0
  %30 = vst.msk [vmem:[#allocation2 + $0x38] sm:$0x1] %vm23, 0.0
  %31 = vst.msk [vmem:[#allocation2 + $0x40] sm:$0xff] %vm21, 0.0
  %32 = vst.msk [vmem:[#allocation2 + $0x48] sm:$0x1] %vm23, 0.0
  %33 = vst.msk [vmem:[#allocation2 + $0x50] sm:$0xff] %vm21, 0.0
  %34 = vst.msk [vmem:[#allocation2 + $0x58] sm:$0x1] %vm23, 0.0
  %35 = vst.msk [vmem:[#allocation2 + $0x60] sm:$0xff] %vm21, 0.0
  %36 = vst.msk [vmem:[#allocation2 + $0x68] sm:$0x1] %vm23, 0.0
  %37 = vst.msk [vmem:[#allocation2 + $0x70] sm:$0xff] %vm21, 0.0
  %38 = vst.msk [vmem:[#allocation2 + $0x78] sm:$0x1] %vm23, 0.0
  %39 = vst.msk [vmem:[#allocation2 + $0x80] sm:$0xff] %vm21, 0.0
  %40 = vst.msk [vmem:[#allocation2 + $0x88] sm:$0x1] %vm23, 0.0
  %41 = vst.msk [vmem:[#allocation2 + $0x90] sm:$0xff] %vm21, 0.0
  %42 = vst.msk [vmem:[#allocation2 + $0x98] sm:$0x1] %vm23, 0.0
  %43 = vst.msk [vmem:[#allocation2 + $0xa0] sm:$0xff] %vm21, 0.0
  %44 = vst.msk [vmem:[#allocation2 + $0xa8] sm:$0x1] %vm23, 0.0
  %45 = vst.msk [vmem:[#allocation2 + $0xb0] sm:$0xff] %vm21, 0.0
  %46 = vst.msk [vmem:[#allocation2 + $0xb8] sm:$0x1] %vm23, 0.0
  %47 = vst.msk [vmem:[#allocation2 + $0xc0] sm:$0xff] %vm21, 0.0
  %48 = vst.msk [vmem:[#allocation2 + $0xc8] sm:$0x1] %vm23, 0.0
  %49 = vst.msk [vmem:[#allocation2 + $0xd0] sm:$0xff] %vm21, 0.0
  %50 = vst.msk [vmem:[#allocation2 + $0xd8] sm:$0x1] %vm23, 0.0
  %51 = vst.msk [vmem:[#allocation2 + $0xe0] sm:$0xff] %vm21, 0.0
  %52 = vst.msk [vmem:[#allocation2 + $0xe8] sm:$0x1] %vm23, 0.0
  %53 = vst.msk [vmem:[#allocation2 + $0xf0] sm:$0xff] %vm21, 0.0
  %54 = vst.msk [vmem:[#allocation2 + $0xf8] sm:$0x1] %vm23, 0.0
  %55 = vst.msk [vmem:[#allocation2 + $0x100] sm:$0xff] %vm21, 0.0
  %56 = vst.msk [vmem:[#allocation2 + $0x108] sm:$0x1] %vm23, 0.0
  %57 = vst.msk [vmem:[#allocation2 + $0x110] sm:$0xff] %vm21, 0.0
  %58 = vst.msk [vmem:[#allocation2 + $0x118] sm:$0x1] %vm23, 0.0
  %59 = vst.msk [vmem:[#allocation2 + $0x120] sm:$0xff] %vm21, 0.0
  %60 = vst.msk [vmem:[#allocation2 + $0x128] sm:$0x1] %vm23, 0.0
  %61 = vst.msk [vmem:[#allocation2 + $0x130] sm:$0xff] %vm21, 0.0
  %62 = vst.msk [vmem:[#allocation2 + $0x138] sm:$0x1] %vm23, 0.0
  %63 = vst.msk [vmem:[#allocation2 + $0x140] sm:$0xff] %vm21, 0.0
  %64 = vst.msk [vmem:[#allocation2 + $0x148] sm:$0x1] %vm23, 0.0
  %65 = vst.msk [vmem:[#allocation2 + $0x150] sm:$0xff] %vm21, 0.0
  %66 = vst.msk [vmem:[#allocation2 + $0x158] sm:$0x1] %vm23, 0.0
  %67 = vst.msk [vmem:[#allocation2 + $0x160] sm:$0xff] %vm21, 0.0
  %68 = vst.msk [vmem:[#allocation2 + $0x168] sm:$0x1] %vm23, 0.0
  %69 = vst.msk [vmem:[#allocation2 + $0x170] sm:$0xff] %vm21, 0.0
  %70 = vst.msk [vmem:[#allocation2 + $0x178] sm:$0x1] %vm23, 0.0
  %71 = vst.msk [vmem:[#allocation2 + $0x180] sm:$0xff] %vm21, 0.0
  %72 = vst.msk [vmem:[#allocation2 + $0x188] sm:$0x1] %vm23, 0.0
  %73 = vst.msk [vmem:[#allocation2 + $0x190] sm:$0xff] %vm21, 0.0
  %74 = vst.msk [vmem:[#allocation2 + $0x198] sm:$0x1] %vm23, 0.0
  %75 = vst.msk [vmem:[#allocation2 + $0x1a0] sm:$0xff] %vm21, 0.0
  %76 = vst.msk [vmem:[#allocation2 + $0x1a8] sm:$0x1] %vm23, 0.0
  %77 = vst.msk [vmem:[#allocation2 + $0x1b0] sm:$0xff] %vm21, 0.0
  %78 = vst.msk [vmem:[#allocation2 + $0x1b8] sm:$0x1] %vm23, 0.0
  %79 = vst.msk [vmem:[#allocation2 + $0x1c0] sm:$0xff] %vm21, 0.0
  %80 = vst.msk [vmem:[#allocation2 + $0x1c8] sm:$0x1] %vm23, 0.0
  %81 = vst.msk [vmem:[#allocation2 + $0x1d0] sm:$0xff] %vm21, 0.0
  %82 = vst.msk [vmem:[#allocation2 + $0x1d8] sm:$0x1] %vm23, 0.0
  %83 = vst.msk [vmem:[#allocation2 + $0x1e0] sm:$0xff] %vm21, 0.0
  %84 = vst.msk [vmem:[#allocation2 + $0x1e8] sm:$0x1] %vm23, 0.0
  %85 = vst.msk [vmem:[#allocation2 + $0x1f0] sm:$0xff] %vm21, 0.0
  %86 = vst.msk [vmem:[#allocation2 + $0x1f8] sm:$0x1] %vm23, 0.0
  %87 = vst.msk [vmem:[#allocation2 + $0x200] sm:$0xff] %vm21, 0.0
  %88 = vst.msk [vmem:[#allocation2 + $0x208] sm:$0x1] %vm23, 0.0
  %89 = vst.msk [vmem:[#allocation2 + $0x210] sm:$0xff] %vm21, 0.0
  %90 = vst.msk [vmem:[#allocation2 + $0x218] sm:$0x1] %vm23, 0.0
  %91 = vst.msk [vmem:[#allocation2 + $0x220] sm:$0xff] %vm21, 0.0
  %92 = vst.msk [vmem:[#allocation2 + $0x228] sm:$0x1] %vm23, 0.0
  %93 = vst.msk [vmem:[#allocation2 + $0x230] sm:$0xff] %vm21, 0.0
  %94 = vst.msk [vmem:[#allocation2 + $0x238] sm:$0x1] %vm23, 0.0
  %95 = vst.msk [vmem:[#allocation2 + $0x240] sm:$0xff] %vm21, 0.0
  %96 = vst.msk [vmem:[#allocation2 + $0x248] sm:$0x1] %vm23, 0.0
  %97 = vst.msk [vmem:[#allocation2 + $0x250] sm:$0xff] %vm21, 0.0
  %98 = vst.msk [vmem:[#allocation2 + $0x258] sm:$0x1] %vm23, 0.0
  %99 = vst.msk [vmem:[#allocation2 + $0x260] sm:$0xff] %vm21, 0.0
  %100 = vst.msk [vmem:[#allocation2 + $0x268] sm:$0x1] %vm23, 0.0
  %101 = vst.msk [vmem:[#allocation2 + $0x270] sm:$0xff] %vm21, 0.0
  %102 = vst.msk [vmem:[#allocation2 + $0x278] sm:$0x1] %vm23, 0.0
  %103 = vst.msk [vmem:[#allocation2 + $0x280] sm:$0xff] %vm21, 0.0
  %104 = vst.msk [vmem:[#allocation2 + $0x288] sm:$0x1] %vm23, 0.0
  %105 = vst.msk [vmem:[#allocation2 + $0x290] sm:$0xff] %vm21, 0.0
  %106 = vst.msk [vmem:[#allocation2 + $0x298] sm:$0x1] %vm23, 0.0
  %107 = vst.msk [vmem:[#allocation2 + $0x2a0] sm:$0xff] %vm21, 0.0
  %108 = vst.msk [vmem:[#allocation2 + $0x2a8] sm:$0x1] %vm23, 0.0
  %109 = vst.msk [vmem:[#allocation2 + $0x2b0] sm:$0xff] %vm21, 0.0
  %110 = vst.msk [vmem:[#allocation2 + $0x2b8] sm:$0x1] %vm23, 0.0
  %111 = vst.msk [vmem:[#allocation2 + $0x2c0] sm:$0xff] %vm21, 0.0
  %112 = vst.msk [vmem:[#allocation2 + $0x2c8] sm:$0x1] %vm23, 0.0
  %113 = vst.msk [vmem:[#allocation2 + $0x2d0] sm:$0xff] %vm21, 0.0
  %114 = vst.msk [vmem:[#allocation2 + $0x2d8] sm:$0x1] %vm23, 0.0
  %115 = vst.msk [vmem:[#allocation2 + $0x2e0] sm:$0xff] %vm21, 0.0
  %116 = vst.msk [vmem:[#allocation2 + $0x2e8] sm:$0x1] %vm23, 0.0
  %117 = vst.msk [vmem:[#allocation2 + $0x2f0] sm:$0xff] %vm21, 0.0
  %118 = vst.msk [vmem:[#allocation2 + $0x2f8] sm:$0x1] %vm23, 0.0
  %119 = vst.msk [vmem:[#allocation2 + $0x300] sm:$0xff] %vm21, 0.0
  %120 = vst.msk [vmem:[#allocation2 + $0x308] sm:$0x1] %vm23, 0.0
  %121 = vst.msk [vmem:[#allocation2 + $0x310] sm:$0xff] %vm21, 0.0
  %122 = vst.msk [vmem:[#allocation2 + $0x318] sm:$0x1] %vm23, 0.0
  %123 = vst.msk [vmem:[#allocation2 + $0x320] sm:$0xff] %vm21, 0.0
  %124 = vst.msk [vmem:[#allocation2 + $0x328] sm:$0x1] %vm23, 0.0
  %125 = vst.msk [vmem:[#allocation2 + $0x330] sm:$0xff] %vm21, 0.0
  %126 = vst.msk [vmem:[#allocation2 + $0x338] sm:$0x1] %vm23, 0.0
  %127 = vst.msk [vmem:[#allocation2 + $0x340] sm:$0xff] %vm21, 0.0
  %128 = vst.msk [vmem:[#allocation2 + $0x348] sm:$0x1] %vm23, 0.0
  %129 = vst.msk [vmem:[#allocation2 + $0x350] sm:$0xff] %vm21, 0.0
  %130 = vst.msk [vmem:[#allocation2 + $0x358] sm:$0x1] %vm23, 0.0
  %131 = vst.msk [vmem:[#allocation2 + $0x360] sm:$0xff] %vm21, 0.0
  %132 = vst.msk [vmem:[#allocation2 + $0x368] sm:$0x1] %vm23, 0.0
  %133 = vst.msk [vmem:[#allocation2 + $0x370] sm:$0xff] %vm21, 0.0
  %134 = vst.msk [vmem:[#allocation2 + $0x378] sm:$0x1] %vm23, 0.0
  %135 = vst.msk [vmem:[#allocation2 + $0x380] sm:$0xff] %vm21, 0.0
  %136 = vst.msk [vmem:[#allocation2 + $0x388] sm:$0x1] %vm23, 0.0
  %137 = vst.msk [vmem:[#allocation2 + $0x390] sm:$0xff] %vm21, 0.0
  %138 = vst.msk [vmem:[#allocation2 + $0x398] sm:$0x1] %vm23, 0.0
  %139 = vst.msk [vmem:[#allocation2 + $0x3a0] sm:$0xff] %vm21, 0.0
  %140 = vst.msk [vmem:[#allocation2 + $0x3a8] sm:$0x1] %vm23, 0.0
  %141 = vst.msk [vmem:[#allocation2 + $0x3b0] sm:$0xff] %vm21, 0.0
  %142 = vst.msk [vmem:[#allocation2 + $0x3b8] sm:$0x1] %vm23, 0.0
  %143 = vst.msk [vmem:[#allocation2 + $0x3c0] sm:$0xff] %vm21, 0.0
  %144 = vst.msk [vmem:[#allocation2 + $0x3c8] sm:$0x1] %vm23, 0.0
  %145 = vst.msk [vmem:[#allocation2 + $0x3d0] sm:$0xff] %vm21, 0.0
  %146 = vst.msk [vmem:[#allocation2 + $0x3d8] sm:$0x1] %vm23, 0.0
  %147 = vst.msk [vmem:[#allocation2 + $0x3e0] sm:$0xff] %vm21, 0.0
  %148 = vst.msk [vmem:[#allocation2 + $0x3e8] sm:$0x1] %vm23, 0.0
  %149 = vst.msk [vmem:[#allocation2 + $0x3f0] sm:$0xff] %vm21, 0.0
  %150 = vst.msk [vmem:[#allocation2 + $0x3f8] sm:$0x1] %vm23, 0.0
  %151 = vst.msk [vmem:[#allocation2 + $0x400] sm:$0xff] %vm21, 0.0
  %152 = vst.msk [vmem:[#allocation2 + $0x408] sm:$0x1] %vm23, 0.0
  %153 = vst.msk [vmem:[#allocation2 + $0x410] sm:$0xff] %vm21, 0.0
  %154 = vst.msk [vmem:[#allocation2 + $0x418] sm:$0x1] %vm23, 0.0
  %155 = vst.msk [vmem:[#allocation2 + $0x420] sm:$0xff] %vm21, 0.0
  %156 = vst.msk [vmem:[#allocation2 + $0x428] sm:$0x1] %vm23, 0.0
  %157 = vst.msk [vmem:[#allocation2 + $0x430] sm:$0xff] %vm21, 0.0
  %158 = vst.msk [vmem:[#allocation2 + $0x438] sm:$0x1] %vm23, 0.0
  %v159 = vld [vmem:[%s0] sm:$0xff]
  %v160 = vld [vmem:[%s0 + $0x8] sm:$0x1]
  %v161 = vld [vmem:[%s0 + $0x10] sm:$0xff]
  %v162 = vld [vmem:[%s0 + $0x18] sm:$0x1]
  %v163 = vld [vmem:[%s0 + $0x20] sm:$0xff]
  %v164 = vld [vmem:[%s0 + $0x28] sm:$0x1]
  %v165 = vld [vmem:[%s0 + $0x30] sm:$0xff]
  %v166 = vld [vmem:[%s0 + $0x38] sm:$0x1]
  %v167 = vld [vmem:[%s0 + $0x40] sm:$0xff]
  %v168 = vld [vmem:[%s0 + $0x48] sm:$0x1]
  %v169 = vld [vmem:[%s0 + $0x50] sm:$0xff]
  %v170 = vld [vmem:[%s0 + $0x58] sm:$0x1]
  %v171 = vld [vmem:[%s0 + $0x60] sm:$0xff]
  %v172 = vld [vmem:[%s0 + $0x68] sm:$0x1]
  %v173 = vld [vmem:[%s0 + $0x70] sm:$0xff]
  %v174 = vld [vmem:[%s0 + $0x78] sm:$0x1]
  %v175 = vld [vmem:[%s0 + $0x80] sm:$0xff]
  %v176 = vld [vmem:[%s0 + $0x88] sm:$0x1]
  %v177 = vld [vmem:[%s0 + $0x90] sm:$0xff]
  %v178 = vld [vmem:[%s0 + $0x98] sm:$0x1]
  %v179 = vld [vmem:[%s0 + $0xa0] sm:$0xff]
  %v180 = vld [vmem:[%s0 + $0xa8] sm:$0x1]
  %v181 = vld [vmem:[%s0 + $0xb0] sm:$0xff]
  %v182 = vld [vmem:[%s0 + $0xb8] sm:$0x1]
  %v183 = vld [vmem:[%s0 + $0xc0] sm:$0xff]
  %v184 = vld [vmem:[%s0 + $0xc8] sm:$0x1]
  %v185 = vld [vmem:[%s0 + $0xd0] sm:$0xff]
  %v186 = vld [vmem:[%s0 + $0xd8] sm:$0x1]
  %v187 = vld [vmem:[%s0 + $0xe0] sm:$0xff]
  %v188 = vld [vmem:[%s0 + $0xe8] sm:$0x1]
  %v189 = vld [vmem:[%s0 + $0xf0] sm:$0xff]
  %v190 = vld [vmem:[%s0 + $0xf8] sm:$0x1]
  %v191 = vld [vmem:[%s0 + $0x100] sm:$0xff]
  %v192 = vld [vmem:[%s0 + $0x108] sm:$0x1]
  %v193 = vld [vmem:[%s0 + $0x110] sm:$0xff]
  %v194 = vld [vmem:[%s0 + $0x118] sm:$0x1]
  %v195 = vld [vmem:[%s0 + $0x120] sm:$0xff]
  %v196 = vld [vmem:[%s0 + $0x128] sm:$0x1]
  %v197 = vld [vmem:[%s0 + $0x130] sm:$0xff]
  %v198 = vld [vmem:[%s0 + $0x138] sm:$0x1]
  %v199 = vld [vmem:[%s0 + $0x140] sm:$0xff]
  %v200 = vld [vmem:[%s0 + $0x148] sm:$0x1]
  %v201 = vld [vmem:[%s0 + $0x150] sm:$0xff]
  %v202 = vld [vmem:[%s0 + $0x158] sm:$0x1]
  %v203 = vld [vmem:[%s0 + $0x160] sm:$0xff]
  %v204 = vld [vmem:[%s0 + $0x168] sm:$0x1]
  %v205 = vld [vmem:[%s0 + $0x170] sm:$0xff]
  %v206 = vld [vmem:[%s0 + $0x178] sm:$0x1]
  %v207 = vld [vmem:[%s0 + $0x180] sm:$0xff]
  %v208 = vld [vmem:[%s0 + $0x188] sm:$0x1]
  %v209 = vld [vmem:[%s0 + $0x190] sm:$0xff]
  %v210 = vld [vmem:[%s0 + $0x198] sm:$0x1]
  %v211 = vld [vmem:[%s0 + $0x1a0] sm:$0xff]
  %v212 = vld [vmem:[%s0 + $0x1a8] sm:$0x1]
  %v213 = vld [vmem:[%s0 + $0x1b0] sm:$0xff]
  %v214 = vld [vmem:[%s0 + $0x1b8] sm:$0x1]
  %v215 = vld [vmem:[%s0 + $0x1c0] sm:$0xff]
  %v216 = vld [vmem:[%s0 + $0x1c8] sm:$0x1]
  %v217 = vld [vmem:[%s0 + $0x1d0] sm:$0xff]
  %v218 = vld [vmem:[%s0 + $0x1d8] sm:$0x1]
  %v219 = vld [vmem:[%s0 + $0x1e0] sm:$0xff]
  %v220 = vld [vmem:[%s0 + $0x1e8] sm:$0x1]
  %v221 = vld [vmem:[%s0 + $0x1f0] sm:$0xff]
  %v222 = vld [vmem:[%s0 + $0x1f8] sm:$0x1]
  %v223 = vld [vmem:[%s0 + $0x200] sm:$0xff]
  %v224 = vld [vmem:[%s0 + $0x208] sm:$0x1]
  %v225 = vld [vmem:[%s0 + $0x210] sm:$0xff]
  %v226 = vld [vmem:[%s0 + $0x218] sm:$0x1]
  %v227 = vld [vmem:[%s0 + $0x220] sm:$0xff]
  %v228 = vld [vmem:[%s0 + $0x228] sm:$0x1]
  %v229 = vld [vmem:[%s0 + $0x230] sm:$0xff]
  %v230 = vld [vmem:[%s0 + $0x238] sm:$0x1]
  %v231 = vld [vmem:[%s0 + $0x240] sm:$0xff]
  %v232 = vld [vmem:[%s0 + $0x248] sm:$0x1]
  %v233 = vld [vmem:[%s0 + $0x250] sm:$0xff]
  %v234 = vld [vmem:[%s0 + $0x258] sm:$0x1]
  %v235 = vld [vmem:[%s0 + $0x260] sm:$0xff]
  %v236 = vld [vmem:[%s0 + $0x268] sm:$0x1]
  %v237 = vld [vmem:[%s0 + $0x270] sm:$0xff]
  %v238 = vld [vmem:[%s0 + $0x278] sm:$0x1]
  %v239 = vld [vmem:[%s0 + $0x280] sm:$0xff]
  %v240 = vld [vmem:[%s0 + $0x288] sm:$0x1]
  %v241 = vld [vmem:[%s0 + $0x290] sm:$0xff]
  %v242 = vld [vmem:[%s0 + $0x298] sm:$0x1]
  %v243 = vld [vmem:[%s0 + $0x2a0] sm:$0xff]
  %v244 = vld [vmem:[%s0 + $0x2a8] sm:$0x1]
  %v245 = vld [vmem:[%s0 + $0x2b0] sm:$0xff]
  %v246 = vld [vmem:[%s0 + $0x2b8] sm:$0x1]
  %v247 = vld [vmem:[%s0 + $0x2c0] sm:$0xff]
  %v248 = vld [vmem:[%s0 + $0x2c8] sm:$0x1]
  %v249 = vld [vmem:[%s0 + $0x2d0] sm:$0xff]
  %v250 = vld [vmem:[%s0 + $0x2d8] sm:$0x1]
  %v251 = vld [vmem:[%s0 + $0x2e0] sm:$0xff]
  %v252 = vld [vmem:[%s0 + $0x2e8] sm:$0x1]
  %v253 = vld [vmem:[%s0 + $0x2f0] sm:$0xff]
  %v254 = vld [vmem:[%s0 + $0x2f8] sm:$0x1]
  %v255 = vld [vmem:[%s0 + $0x300] sm:$0xff]
  %v256 = vld [vmem:[%s0 + $0x308] sm:$0x1]
  %v257 = vld [vmem:[%s0 + $0x310] sm:$0xff]
  %v258 = vld [vmem:[%s0 + $0x318] sm:$0x1]
  %v259 = vld [vmem:[%s0 + $0x320] sm:$0xff]
  %v260 = vld [vmem:[%s0 + $0x328] sm:$0x1]
  %v261 = vld [vmem:[%s0 + $0x330] sm:$0xff]
  %v262 = vld [vmem:[%s0 + $0x338] sm:$0x1]
  %v263 = vld [vmem:[%s0 + $0x340] sm:$0xff]
  %v264 = vld [vmem:[%s0 + $0x348] sm:$0x1]
  %v265 = vld [vmem:[%s0 + $0x350] sm:$0xff]
  %v266 = vld [vmem:[%s0 + $0x358] sm:$0x1]
  %v267 = vld [vmem:[%s0 + $0x360] sm:$0xff]
  %v268 = vld [vmem:[%s0 + $0x368] sm:$0x1]
  %v269 = vld [vmem:[%s0 + $0x370] sm:$0xff]
  %v270 = vld [vmem:[%s0 + $0x378] sm:$0x1]
  %v271 = vld [vmem:[%s0 + $0x380] sm:$0xff]
  %v272 = vld [vmem:[%s0 + $0x388] sm:$0x1]
  %v273 = vld [vmem:[%s0 + $0x390] sm:$0xff]
  %v274 = vld [vmem:[%s0 + $0x398] sm:$0x1]
  %v275 = vld [vmem:[%s0 + $0x3a0] sm:$0xff]
  %v276 = vld [vmem:[%s0 + $0x3a8] sm:$0x1]
  %v277 = vld [vmem:[%s0 + $0x3b0] sm:$0xff]
  %v278 = vld [vmem:[%s0 + $0x3b8] sm:$0x1]
  %v279 = vld [vmem:[%s0 + $0x3c0] sm:$0xff]
  %v280 = vld [vmem:[%s0 + $0x3c8] sm:$0x1]
  %v281 = vld [vmem:[%s0 + $0x3d0] sm:$0xff]
  %v282 = vld [vmem:[%s0 + $0x3d8] sm:$0x1]
  %v283 = vld [vmem:[%s0 + $0x3e0] sm:$0xff]
  %v284 = vld [vmem:[%s0 + $0x3e8] sm:$0x1]
  %v285 = vld [vmem:[%s0 + $0x3f0] sm:$0xff]
  %v286 = vld [vmem:[%s0 + $0x3f8] sm:$0x1]
  %v287 = vld [vmem:[%s0 + $0x400] sm:$0xff]
  %v288 = vld [vmem:[%s0 + $0x408] sm:$0x1]
  %v289 = vld [vmem:[%s0 + $0x410] sm:$0xff]
  %v290 = vld [vmem:[%s0 + $0x418] sm:$0x1]
  %v291 = vld [vmem:[%s0 + $0x420] sm:$0xff]
  %v292 = vld [vmem:[%s0 + $0x428] sm:$0x1]
  %v293 = vld [vmem:[%s0 + $0x430] sm:$0xff]
  %v294 = vld [vmem:[%s0 + $0x438] sm:$0x1]
  %v295 = vld [vmem:[%s0 + $0x440] sm:$0xff]
  %v296 = vld [vmem:[%s0 + $0x448] sm:$0x1]
  %v297 = vld [vmem:[%s0 + $0x450] sm:$0xff]
  %v298 = vld [vmem:[%s0 + $0x458] sm:$0x1]
  %v299 = vld [vmem:[%s0 + $0x460] sm:$0xff]
  %v300 = vld [vmem:[%s0 + $0x468] sm:$0x1]
  %v301 = vld [vmem:[%s0 + $0x470] sm:$0xff]
  %v302 = vld [vmem:[%s0 + $0x478] sm:$0x1]
  %v303 = vld [vmem:[%s0 + $0x480] sm:$0xff]
  %v304 = vld [vmem:[%s0 + $0x488] sm:$0x1]
  %v305 = vld [vmem:[%s0 + $0x490] sm:$0xff]
  %v306 = vld [vmem:[%s0 + $0x498] sm:$0x1]
  %v307 = vld [vmem:[%s0 + $0x4a0] sm:$0xff]
  %v308 = vld [vmem:[%s0 + $0x4a8] sm:$0x1]
  %v309 = vld [vmem:[%s0 + $0x4b0] sm:$0xff]
  %v310 = vld [vmem:[%s0 + $0x4b8] sm:$0x1]
  %v311 = vld [vmem:[%s0 + $0x4c0] sm:$0xff]
  %v312 = vld [vmem:[%s0 + $0x4c8] sm:$0x1]
  %v313 = vld [vmem:[%s0 + $0x4d0] sm:$0xff]
  %v314 = vld [vmem:[%s0 + $0x4d8] sm:$0x1]
  %v315 = vld [vmem:[%s0 + $0x4e0] sm:$0xff]
  %v316 = vld [vmem:[%s0 + $0x4e8] sm:$0x1]
  %v317 = vld [vmem:[%s0 + $0x4f0] sm:$0xff]
  %v318 = vld [vmem:[%s0 + $0x4f8] sm:$0x1]
  %v319 = vld [vmem:[%s0 + $0x500] sm:$0xff]
  %v320 = vld [vmem:[%s0 + $0x508] sm:$0x1]
  %v321 = vld [vmem:[%s0 + $0x510] sm:$0xff]
  %v322 = vld [vmem:[%s0 + $0x518] sm:$0x1]
  %v323 = vld [vmem:[%s0 + $0x520] sm:$0xff]
  %v324 = vld [vmem:[%s0 + $0x528] sm:$0x1]
  %v325 = vld [vmem:[%s0 + $0x530] sm:$0xff]
  %v326 = vld [vmem:[%s0 + $0x538] sm:$0x1]
  %v327 = vld [vmem:[%s0 + $0x540] sm:$0xff]
  %v328 = vld [vmem:[%s0 + $0x548] sm:$0x1]
  %v329 = vld [vmem:[%s0 + $0x550] sm:$0xff]
  %v330 = vld [vmem:[%s0 + $0x558] sm:$0x1]
  %v331 = vld [vmem:[%s0 + $0x560] sm:$0xff]
  %v332 = vld [vmem:[%s0 + $0x568] sm:$0x1]
  %v333 = vld [vmem:[%s0 + $0x570] sm:$0xff]
  %v334 = vld [vmem:[%s0 + $0x578] sm:$0x1]
  %v335 = vld [vmem:[%s0 + $0x580] sm:$0xff]
  %v336 = vld [vmem:[%s0 + $0x588] sm:$0x1]
  %v337 = vld [vmem:[%s0 + $0x590] sm:$0xff]
  %v338 = vld [vmem:[%s0 + $0x598] sm:$0x1]
  %v339 = vld [vmem:[%s0 + $0x5a0] sm:$0xff]
  %v340 = vld [vmem:[%s0 + $0x5a8] sm:$0x1]
  %v341 = vld [vmem:[%s0 + $0x5b0] sm:$0xff]
  %v342 = vld [vmem:[%s0 + $0x5b8] sm:$0x1]
  %v343 = vld [vmem:[%s0 + $0x5c0] sm:$0xff]
  %v344 = vld [vmem:[%s0 + $0x5c8] sm:$0x1]
  %v345 = vld [vmem:[%s0 + $0x5d0] sm:$0xff]
  %v346 = vld [vmem:[%s0 + $0x5d8] sm:$0x1]
  %v347 = vld [vmem:[%s0 + $0x5e0] sm:$0xff]
  %v348 = vld [vmem:[%s0 + $0x5e8] sm:$0x1]
  %v349 = vld [vmem:[%s0 + $0x5f0] sm:$0xff]
  %v350 = vld [vmem:[%s0 + $0x5f8] sm:$0x1]
  %v351 = vld [vmem:[%s0 + $0x600] sm:$0xff]
  %v352 = vld [vmem:[%s0 + $0x608] sm:$0x1]
  %v353 = vld [vmem:[%s0 + $0x610] sm:$0xff]
  %v354 = vld [vmem:[%s0 + $0x618] sm:$0x1]
  %v355 = vld [vmem:[%s0 + $0x620] sm:$0xff]
  %v356 = vld [vmem:[%s0 + $0x628] sm:$0x1]
  %v357 = vld [vmem:[%s0 + $0x630] sm:$0xff]
  %v358 = vld [vmem:[%s0 + $0x638] sm:$0x1]
  %v359 = vld [vmem:[%s0 + $0x640] sm:$0xff]
  %v360 = vld [vmem:[%s0 + $0x648] sm:$0x1]
  %v361 = vld [vmem:[%s0 + $0x650] sm:$0xff]
  %v362 = vld [vmem:[%s0 + $0x658] sm:$0x1]
  %v363 = vld [vmem:[%s0 + $0x660] sm:$0xff]
  %v364 = vld [vmem:[%s0 + $0x668] sm:$0x1]
  %v365 = vld [vmem:[%s0 + $0x670] sm:$0xff]
  %v366 = vld [vmem:[%s0 + $0x678] sm:$0x1]
  %v367 = vld [vmem:[%s0 + $0x680] sm:$0xff]
  %v368 = vld [vmem:[%s0 + $0x688] sm:$0x1]
  %v369 = vld [vmem:[%s0 + $0x690] sm:$0xff]
  %v370 = vld [vmem:[%s0 + $0x698] sm:$0x1]
  %v371 = vld [vmem:[%s0 + $0x6a0] sm:$0xff]
  %v372 = vld [vmem:[%s0 + $0x6a8] sm:$0x1]
  %v373 = vld [vmem:[%s0 + $0x6b0] sm:$0xff]
  %v374 = vld [vmem:[%s0 + $0x6b8] sm:$0x1]
  %v375 = vld [vmem:[%s0 + $0x6c0] sm:$0xff]
  %v376 = vld [vmem:[%s0 + $0x6c8] sm:$0x1]
  %v377 = vld [vmem:[%s0 + $0x6d0] sm:$0xff]
  %v378 = vld [vmem:[%s0 + $0x6d8] sm:$0x1]
  %v379 = vld [vmem:[%s0 + $0x6e0] sm:$0xff]
  %v380 = vld [vmem:[%s0 + $0x6e8] sm:$0x1]
  %v381 = vld [vmem:[%s0 + $0x6f0] sm:$0xff]
  %v382 = vld [vmem:[%s0 + $0x6f8] sm:$0x1]
  %v383 = vld [vmem:[%s0 + $0x700] sm:$0xff]
  %v384 = vld [vmem:[%s0 + $0x708] sm:$0x1]
  %v385 = vld [vmem:[%s0 + $0x710] sm:$0xff]
  %v386 = vld [vmem:[%s0 + $0x718] sm:$0x1]
  %v387 = vld [vmem:[%s0 + $0x720] sm:$0xff]
  %v388 = vld [vmem:[%s0 + $0x728] sm:$0x1]
  %v389 = vld [vmem:[%s0 + $0x730] sm:$0xff]
  %v390 = vld [vmem:[%s0 + $0x738] sm:$0x1]
  %v391 = vld [vmem:[%s0 + $0x740] sm:$0xff]
  %v392 = vld [vmem:[%s0 + $0x748] sm:$0x1]
  %v393 = vld [vmem:[%s0 + $0x750] sm:$0xff]
  %v394 = vld [vmem:[%s0 + $0x758] sm:$0x1]
  %v395 = vld [vmem:[%s0 + $0x760] sm:$0xff]
  %v396 = vld [vmem:[%s0 + $0x768] sm:$0x1]
  %v397 = vld [vmem:[%s0 + $0x770] sm:$0xff]
  %v398 = vld [vmem:[%s0 + $0x778] sm:$0x1]
  %v399 = vld [vmem:[%s0 + $0x780] sm:$0xff]
  %v400 = vld [vmem:[%s0 + $0x788] sm:$0x1]
  %v401 = vld [vmem:[%s0 + $0x790] sm:$0xff]
  %v402 = vld [vmem:[%s0 + $0x798] sm:$0x1]
  %v403 = vld [vmem:[%s0 + $0x7a0] sm:$0xff]
  %v404 = vld [vmem:[%s0 + $0x7a8] sm:$0x1]
  %v405 = vld [vmem:[%s0 + $0x7b0] sm:$0xff]
  %v406 = vld [vmem:[%s0 + $0x7b8] sm:$0x1]
  %v407 = vld [vmem:[%s0 + $0x7c0] sm:$0xff]
  %v408 = vld [vmem:[%s0 + $0x7c8] sm:$0x1]
  %v409 = vld [vmem:[%s0 + $0x7d0] sm:$0xff]
  %v410 = vld [vmem:[%s0 + $0x7d8] sm:$0x1]
  %v411 = vld [vmem:[%s0 + $0x7e0] sm:$0xff]
  %v412 = vld [vmem:[%s0 + $0x7e8] sm:$0x1]
  %v413 = vld [vmem:[%s0 + $0x7f0] sm:$0xff]
  %v414 = vld [vmem:[%s0 + $0x7f8] sm:$0x1]
  %v415 = vld [vmem:[%s0 + $0x800] sm:$0xff]
  %v416 = vld [vmem:[%s0 + $0x808] sm:$0x1]
  %v417 = vld [vmem:[%s0 + $0x810] sm:$0xff]
  %v418 = vld [vmem:[%s0 + $0x818] sm:$0x1]
  %v419 = vld [vmem:[%s0 + $0x820] sm:$0xff]
  %v420 = vld [vmem:[%s0 + $0x828] sm:$0x1]
  %v421 = vld [vmem:[%s0 + $0x830] sm:$0xff]
  %v422 = vld [vmem:[%s0 + $0x838] sm:$0x1]
  %487 = vrot.lane.b32.xlu0 %v161, 12
  %v488 = vpop.permute.xlu0 %487
  %489 = vrot.lane.b32.xlu0 %v165, 12
  %v490 = vpop.permute.xlu0 %489
  %491 = vrot.lane.b32.xlu0 %v169, 12
  %v492 = vpop.permute.xlu0 %491
  %493 = vrot.lane.b32.xlu0 %v173, 12
  %v494 = vpop.permute.xlu0 %493
  %495 = vrot.lane.b32.xlu0 %v177, 12
  %v496 = vpop.permute.xlu0 %495
  %497 = vrot.lane.b32.xlu0 %v181, 12
  %v498 = vpop.permute.xlu0 %497
  %499 = vrot.lane.b32.xlu0 %v185, 12
  %v500 = vpop.permute.xlu0 %499
  %501 = vrot.lane.b32.xlu0 %v189, 12
  %v502 = vpop.permute.xlu0 %501
  %503 = vrot.lane.b32.xlu0 %v193, 12
  %v504 = vpop.permute.xlu0 %503
  %505 = vrot.lane.b32.xlu0 %v197, 12
  %v506 = vpop.permute.xlu0 %505
  %507 = vrot.lane.b32.xlu0 %v201, 12
  %v508 = vpop.permute.xlu0 %507
  %509 = vrot.lane.b32.xlu0 %v205, 12
  %v510 = vpop.permute.xlu0 %509
  %511 = vrot.lane.b32.xlu0 %v209, 12
  %v512 = vpop.permute.xlu0 %511
  %513 = vrot.lane.b32.xlu0 %v213, 12
  %v514 = vpop.permute.xlu0 %513
  %515 = vrot.lane.b32.xlu0 %v217, 12
  %v516 = vpop.permute.xlu0 %515
  %517 = vrot.lane.b32.xlu0 %v221, 12
  %v518 = vpop.permute.xlu0 %517
  %519 = vrot.lane.b32.xlu0 %v225, 12
  %v520 = vpop.permute.xlu0 %519
  %521 = vrot.lane.b32.xlu0 %v229, 12
  %v522 = vpop.permute.xlu0 %521
  %523 = vrot.lane.b32.xlu0 %v233, 12
  %v524 = vpop.permute.xlu0 %523
  %525 = vrot.lane.b32.xlu0 %v237, 12
  %v526 = vpop.permute.xlu0 %525
  %527 = vrot.lane.b32.xlu0 %v241, 12
  %v528 = vpop.permute.xlu0 %527
  %529 = vrot.lane.b32.xlu0 %v245, 12
  %v530 = vpop.permute.xlu0 %529
  %531 = vrot.lane.b32.xlu0 %v249, 12
  %v532 = vpop.permute.xlu0 %531
  %533 = vrot.lane.b32.xlu0 %v253, 12
  %v534 = vpop.permute.xlu0 %533
  %535 = vrot.lane.b32.xlu0 %v257, 12
  %v536 = vpop.permute.xlu0 %535
  %537 = vrot.lane.b32.xlu0 %v261, 12
  %v538 = vpop.permute.xlu0 %537
  %539 = vrot.lane.b32.xlu0 %v265, 12
  %v540 = vpop.permute.xlu0 %539
  %541 = vrot.lane.b32.xlu0 %v269, 12
  %v542 = vpop.permute.xlu0 %541
  %543 = vrot.lane.b32.xlu0 %v273, 12
  %v544 = vpop.permute.xlu0 %543
  %545 = vrot.lane.b32.xlu0 %v277, 12
  %v546 = vpop.permute.xlu0 %545
  %547 = vrot.lane.b32.xlu0 %v281, 12
  %v548 = vpop.permute.xlu0 %547
  %549 = vrot.lane.b32.xlu0 %v285, 12
  %v550 = vpop.permute.xlu0 %549
  %551 = vrot.lane.b32.xlu0 %v293, 12
  %v552 = vpop.permute.xlu0 %551
  %553 = vrot.lane.b32.xlu0 %v297, 12
  %v554 = vpop.permute.xlu0 %553
  %555 = vrot.lane.b32.xlu0 %v301, 12
  %v556 = vpop.permute.xlu0 %555
  %557 = vrot.lane.b32.xlu0 %v305, 12
  %v558 = vpop.permute.xlu0 %557
  %559 = vrot.lane.b32.xlu0 %v309, 12
  %v560 = vpop.permute.xlu0 %559
  %561 = vrot.lane.b32.xlu0 %v313, 12
  %v562 = vpop.permute.xlu0 %561
  %563 = vrot.lane.b32.xlu0 %v317, 12
  %v564 = vpop.permute.xlu0 %563
  %565 = vrot.lane.b32.xlu0 %v321, 12
  %v566 = vpop.permute.xlu0 %565
  %567 = vrot.lane.b32.xlu0 %v325, 12
  %v568 = vpop.permute.xlu0 %567
  %569 = vrot.lane.b32.xlu0 %v329, 12
  %v570 = vpop.permute.xlu0 %569
  %571 = vrot.lane.b32.xlu0 %v333, 12
  %v572 = vpop.permute.xlu0 %571
  %573 = vrot.lane.b32.xlu0 %v337, 12
  %v574 = vpop.permute.xlu0 %573
  %575 = vrot.lane.b32.xlu0 %v341, 12
  %v576 = vpop.permute.xlu0 %575
  %577 = vrot.lane.b32.xlu0 %v345, 12
  %v578 = vpop.permute.xlu0 %577
  %579 = vrot.lane.b32.xlu0 %v349, 12
  %v580 = vpop.permute.xlu0 %579
  %581 = vrot.lane.b32.xlu0 %v353, 12
  %v582 = vpop.permute.xlu0 %581
  %583 = vrot.lane.b32.xlu0 %v357, 12
  %v584 = vpop.permute.xlu0 %583
  %585 = vrot.lane.b32.xlu0 %v361, 12
  %v586 = vpop.permute.xlu0 %585
  %587 = vrot.lane.b32.xlu0 %v365, 12
  %v588 = vpop.permute.xlu0 %587
  %589 = vrot.lane.b32.xlu0 %v369, 12
  %v590 = vpop.permute.xlu0 %589
  %591 = vrot.lane.b32.xlu0 %v373, 12
  %v592 = vpop.permute.xlu0 %591
  %593 = vrot.lane.b32.xlu0 %v377, 12
  %v594 = vpop.permute.xlu0 %593
  %595 = vrot.lane.b32.xlu0 %v381, 12
  %v596 = vpop.permute.xlu0 %595
  %597 = vrot.lane.b32.xlu0 %v385, 12
  %v598 = vpop.permute.xlu0 %597
  %599 = vrot.lane.b32.xlu0 %v389, 12
  %v600 = vpop.permute.xlu0 %599
  %601 = vrot.lane.b32.xlu0 %v393, 12
  %v602 = vpop.permute.xlu0 %601
  %603 = vrot.lane.b32.xlu0 %v397, 12
  %v604 = vpop.permute.xlu0 %603
  %605 = vrot.lane.b32.xlu0 %v401, 12
  %v606 = vpop.permute.xlu0 %605
  %607 = vrot.lane.b32.xlu0 %v405, 12
  %v608 = vpop.permute.xlu0 %607
  %609 = vrot.lane.b32.xlu0 %v409, 12
  %v610 = vpop.permute.xlu0 %609
  %611 = vrot.lane.b32.xlu0 %v413, 12
  %v612 = vpop.permute.xlu0 %611
  %613 = vrot.lane.b32.xlu0 %v417, 12
  %v614 = vpop.permute.xlu0 %613
  %743 = vrot.lane.b32.xlu0 %v163, 24
  %v744 = vpop.permute.xlu0 %743
  %745 = vrot.lane.b32.xlu0 %v167, 24
  %v746 = vpop.permute.xlu0 %745
  %747 = vrot.lane.b32.xlu0 %v171, 24
  %v748 = vpop.permute.xlu0 %747
  %749 = vrot.lane.b32.xlu0 %v175, 24
  %v750 = vpop.permute.xlu0 %749
  %751 = vrot.lane.b32.xlu0 %v179, 24
  %v752 = vpop.permute.xlu0 %751
  %753 = vrot.lane.b32.xlu0 %v183, 24
  %v754 = vpop.permute.xlu0 %753
  %755 = vrot.lane.b32.xlu0 %v187, 24
  %v756 = vpop.permute.xlu0 %755
  %757 = vrot.lane.b32.xlu0 %v191, 24
  %v758 = vpop.permute.xlu0 %757
  %759 = vrot.lane.b32.xlu0 %v195, 24
  %v760 = vpop.permute.xlu0 %759
  %761 = vrot.lane.b32.xlu0 %v199, 24
  %v762 = vpop.permute.xlu0 %761
  %763 = vrot.lane.b32.xlu0 %v203, 24
  %v764 = vpop.permute.xlu0 %763
  %765 = vrot.lane.b32.xlu0 %v207, 24
  %v766 = vpop.permute.xlu0 %765
  %767 = vrot.lane.b32.xlu0 %v211, 24
  %v768 = vpop.permute.xlu0 %767
  %769 = vrot.lane.b32.xlu0 %v215, 24
  %v770 = vpop.permute.xlu0 %769
  %771 = vrot.lane.b32.xlu0 %v219, 24
  %v772 = vpop.permute.xlu0 %771
  %773 = vrot.lane.b32.xlu0 %v223, 24
  %v774 = vpop.permute.xlu0 %773
  %775 = vrot.lane.b32.xlu0 %v227, 24
  %v776 = vpop.permute.xlu0 %775
  %777 = vrot.lane.b32.xlu0 %v231, 24
  %v778 = vpop.permute.xlu0 %777
  %779 = vrot.lane.b32.xlu0 %v235, 24
  %v780 = vpop.permute.xlu0 %779
  %781 = vrot.lane.b32.xlu0 %v239, 24
  %v782 = vpop.permute.xlu0 %781
  %783 = vrot.lane.b32.xlu0 %v243, 24
  %v784 = vpop.permute.xlu0 %783
  %785 = vrot.lane.b32.xlu0 %v247, 24
  %v786 = vpop.permute.xlu0 %785
  %787 = vrot.lane.b32.xlu0 %v251, 24
  %v788 = vpop.permute.xlu0 %787
  %789 = vrot.lane.b32.xlu0 %v255, 24
  %v790 = vpop.permute.xlu0 %789
  %791 = vrot.lane.b32.xlu0 %v259, 24
  %v792 = vpop.permute.xlu0 %791
  %793 = vrot.lane.b32.xlu0 %v263, 24
  %v794 = vpop.permute.xlu0 %793
  %795 = vrot.lane.b32.xlu0 %v267, 24
  %v796 = vpop.permute.xlu0 %795
  %797 = vrot.lane.b32.xlu0 %v271, 24
  %v798 = vpop.permute.xlu0 %797
  %799 = vrot.lane.b32.xlu0 %v275, 24
  %v800 = vpop.permute.xlu0 %799
  %801 = vrot.lane.b32.xlu0 %v279, 24
  %v802 = vpop.permute.xlu0 %801
  %803 = vrot.lane.b32.xlu0 %v283, 24
  %v804 = vpop.permute.xlu0 %803
  %805 = vrot.lane.b32.xlu0 %v287, 24
  %v806 = vpop.permute.xlu0 %805
  %807 = vrot.lane.b32.xlu0 %v295, 24
  %v808 = vpop.permute.xlu0 %807
  %809 = vrot.lane.b32.xlu0 %v299, 24
  %v810 = vpop.permute.xlu0 %809
  %811 = vrot.lane.b32.xlu0 %v303, 24
  %v812 = vpop.permute.xlu0 %811
  %813 = vrot.lane.b32.xlu0 %v307, 24
  %v814 = vpop.permute.xlu0 %813
  %815 = vrot.lane.b32.xlu0 %v311, 24
  %v816 = vpop.permute.xlu0 %815
  %817 = vrot.lane.b32.xlu0 %v315, 24
  %v818 = vpop.permute.xlu0 %817
  %819 = vrot.lane.b32.xlu0 %v319, 24
  %v820 = vpop.permute.xlu0 %819
  %821 = vrot.lane.b32.xlu0 %v323, 24
  %v822 = vpop.permute.xlu0 %821
  %823 = vrot.lane.b32.xlu0 %v327, 24
  %v824 = vpop.permute.xlu0 %823
  %825 = vrot.lane.b32.xlu0 %v331, 24
  %v826 = vpop.permute.xlu0 %825
  %827 = vrot.lane.b32.xlu0 %v335, 24
  %v828 = vpop.permute.xlu0 %827
  %829 = vrot.lane.b32.xlu0 %v339, 24
  %v830 = vpop.permute.xlu0 %829
  %831 = vrot.lane.b32.xlu0 %v343, 24
  %v832 = vpop.permute.xlu0 %831
  %833 = vrot.lane.b32.xlu0 %v347, 24
  %v834 = vpop.permute.xlu0 %833
  %835 = vrot.lane.b32.xlu0 %v351, 24
  %v836 = vpop.permute.xlu0 %835
  %837 = vrot.lane.b32.xlu0 %v355, 24
  %v838 = vpop.permute.xlu0 %837
  %839 = vrot.lane.b32.xlu0 %v359, 24
  %v840 = vpop.permute.xlu0 %839
  %841 = vrot.lane.b32.xlu0 %v363, 24
  %v842 = vpop.permute.xlu0 %841
  %843 = vrot.lane.b32.xlu0 %v367, 24
  %v844 = vpop.permute.xlu0 %843
  %845 = vrot.lane.b32.xlu0 %v371, 24
  %v846 = vpop.permute.xlu0 %845
  %847 = vrot.lane.b32.xlu0 %v375, 24
  %v848 = vpop.permute.xlu0 %847
  %849 = vrot.lane.b32.xlu0 %v379, 24
  %v850 = vpop.permute.xlu0 %849
  %851 = vrot.lane.b32.xlu0 %v383, 24
  %v852 = vpop.permute.xlu0 %851
  %853 = vrot.lane.b32.xlu0 %v387, 24
  %v854 = vpop.permute.xlu0 %853
  %855 = vrot.lane.b32.xlu0 %v391, 24
  %v856 = vpop.permute.xlu0 %855
  %857 = vrot.lane.b32.xlu0 %v395, 24
  %v858 = vpop.permute.xlu0 %857
  %859 = vrot.lane.b32.xlu0 %v399, 24
  %v860 = vpop.permute.xlu0 %859
  %861 = vrot.lane.b32.xlu0 %v403, 24
  %v862 = vpop.permute.xlu0 %861
  %863 = vrot.lane.b32.xlu0 %v407, 24
  %v864 = vpop.permute.xlu0 %863
  %865 = vrot.lane.b32.xlu0 %v411, 24
  %v866 = vpop.permute.xlu0 %865
  %867 = vrot.lane.b32.xlu0 %v415, 24
  %v868 = vpop.permute.xlu0 %867
  %869 = vrot.lane.b32.xlu0 %v419, 24
  %v870 = vpop.permute.xlu0 %869
  %937 = vrot.lane.b32.xlu0 %v165, 36
  %v938 = vpop.permute.xlu0 %937
  %939 = vrot.lane.b32.xlu0 %v169, 36
  %v940 = vpop.permute.xlu0 %939
  %941 = vrot.lane.b32.xlu0 %v173, 36
  %v942 = vpop.permute.xlu0 %941
  %943 = vrot.lane.b32.xlu0 %v177, 36
  %v944 = vpop.permute.xlu0 %943
  %945 = vrot.lane.b32.xlu0 %v181, 36
  %v946 = vpop.permute.xlu0 %945
  %947 = vrot.lane.b32.xlu0 %v185, 36
  %v948 = vpop.permute.xlu0 %947
  %949 = vrot.lane.b32.xlu0 %v189, 36
  %v950 = vpop.permute.xlu0 %949
  %951 = vrot.lane.b32.xlu0 %v193, 36
  %v952 = vpop.permute.xlu0 %951
  %953 = vrot.lane.b32.xlu0 %v197, 36
  %v954 = vpop.permute.xlu0 %953
  %955 = vrot.lane.b32.xlu0 %v201, 36
  %v956 = vpop.permute.xlu0 %955
  %957 = vrot.lane.b32.xlu0 %v205, 36
  %v958 = vpop.permute.xlu0 %957
  %959 = vrot.lane.b32.xlu0 %v209, 36
  %v960 = vpop.permute.xlu0 %959
  %961 = vrot.lane.b32.xlu0 %v213, 36
  %v962 = vpop.permute.xlu0 %961
  %963 = vrot.lane.b32.xlu0 %v217, 36
  %v964 = vpop.permute.xlu0 %963
  %965 = vrot.lane.b32.xlu0 %v221, 36
  %v966 = vpop.permute.xlu0 %965
  %967 = vrot.lane.b32.xlu0 %v225, 36
  %v968 = vpop.permute.xlu0 %967
  %969 = vrot.lane.b32.xlu0 %v229, 36
  %v970 = vpop.permute.xlu0 %969
  %971 = vrot.lane.b32.xlu0 %v233, 36
  %v972 = vpop.permute.xlu0 %971
  %973 = vrot.lane.b32.xlu0 %v237, 36
  %v974 = vpop.permute.xlu0 %973
  %975 = vrot.lane.b32.xlu0 %v241, 36
  %v976 = vpop.permute.xlu0 %975
  %977 = vrot.lane.b32.xlu0 %v245, 36
  %v978 = vpop.permute.xlu0 %977
  %979 = vrot.lane.b32.xlu0 %v249, 36
  %v980 = vpop.permute.xlu0 %979
  %981 = vrot.lane.b32.xlu0 %v253, 36
  %v982 = vpop.permute.xlu0 %981
  %983 = vrot.lane.b32.xlu0 %v257, 36
  %v984 = vpop.permute.xlu0 %983
  %985 = vrot.lane.b32.xlu0 %v261, 36
  %v986 = vpop.permute.xlu0 %985
  %987 = vrot.lane.b32.xlu0 %v265, 36
  %v988 = vpop.permute.xlu0 %987
  %989 = vrot.lane.b32.xlu0 %v269, 36
  %v990 = vpop.permute.xlu0 %989
  %991 = vrot.lane.b32.xlu0 %v273, 36
  %v992 = vpop.permute.xlu0 %991
  %993 = vrot.lane.b32.xlu0 %v277, 36
  %v994 = vpop.permute.xlu0 %993
  %995 = vrot.lane.b32.xlu0 %v281, 36
  %v996 = vpop.permute.xlu0 %995
  %997 = vrot.lane.b32.xlu0 %v285, 36
  %v998 = vpop.permute.xlu0 %997
  %999 = vrot.lane.b32.xlu0 %v289, 36
  %v1000 = vpop.permute.xlu0 %999
  %1001 = vrot.lane.b32.xlu0 %v297, 36
  %v1002 = vpop.permute.xlu0 %1001
  %1003 = vrot.lane.b32.xlu0 %v301, 36
  %v1004 = vpop.permute.xlu0 %1003
  %1005 = vrot.lane.b32.xlu0 %v305, 36
  %v1006 = vpop.permute.xlu0 %1005
  %1007 = vrot.lane.b32.xlu0 %v309, 36
  %v1008 = vpop.permute.xlu0 %1007
  %1009 = vrot.lane.b32.xlu0 %v313, 36
  %v1010 = vpop.permute.xlu0 %1009
  %1011 = vrot.lane.b32.xlu0 %v317, 36
  %v1012 = vpop.permute.xlu0 %1011
  %1013 = vrot.lane.b32.xlu0 %v321, 36
  %v1014 = vpop.permute.xlu0 %1013
  %1015 = vrot.lane.b32.xlu0 %v325, 36
  %v1016 = vpop.permute.xlu0 %1015
  %1017 = vrot.lane.b32.xlu0 %v329, 36
  %v1018 = vpop.permute.xlu0 %1017
  %1019 = vrot.lane.b32.xlu0 %v333, 36
  %v1020 = vpop.permute.xlu0 %1019
  %1021 = vrot.lane.b32.xlu0 %v337, 36
  %v1022 = vpop.permute.xlu0 %1021
  %1023 = vrot.lane.b32.xlu0 %v341, 36
  %v1024 = vpop.permute.xlu0 %1023
  %1025 = vrot.lane.b32.xlu0 %v345, 36
  %v1026 = vpop.permute.xlu0 %1025
  %1027 = vrot.lane.b32.xlu0 %v349, 36
  %v1028 = vpop.permute.xlu0 %1027
  %1029 = vrot.lane.b32.xlu0 %v353, 36
  %v1030 = vpop.permute.xlu0 %1029
  %1031 = vrot.lane.b32.xlu0 %v357, 36
  %v1032 = vpop.permute.xlu0 %1031
  %1033 = vrot.lane.b32.xlu0 %v361, 36
  %v1034 = vpop.permute.xlu0 %1033
  %1035 = vrot.lane.b32.xlu0 %v365, 36
  %v1036 = vpop.permute.xlu0 %1035
  %1037 = vrot.lane.b32.xlu0 %v369, 36
  %v1038 = vpop.permute.xlu0 %1037
  %1039 = vrot.lane.b32.xlu0 %v373, 36
  %v1040 = vpop.permute.xlu0 %1039
  %1041 = vrot.lane.b32.xlu0 %v377, 36
  %v1042 = vpop.permute.xlu0 %1041
  %1043 = vrot.lane.b32.xlu0 %v381, 36
  %v1044 = vpop.permute.xlu0 %1043
  %1045 = vrot.lane.b32.xlu0 %v385, 36
  %v1046 = vpop.permute.xlu0 %1045
  %1047 = vrot.lane.b32.xlu0 %v389, 36
  %v1048 = vpop.permute.xlu0 %1047
  %1049 = vrot.lane.b32.xlu0 %v393, 36
  %v1050 = vpop.permute.xlu0 %1049
  %1051 = vrot.lane.b32.xlu0 %v397, 36
  %v1052 = vpop.permute.xlu0 %1051
  %1053 = vrot.lane.b32.xlu0 %v401, 36
  %v1054 = vpop.permute.xlu0 %1053
  %1055 = vrot.lane.b32.xlu0 %v405, 36
  %v1056 = vpop.permute.xlu0 %1055
  %1057 = vrot.lane.b32.xlu0 %v409, 36
  %v1058 = vpop.permute.xlu0 %1057
  %1059 = vrot.lane.b32.xlu0 %v413, 36
  %v1060 = vpop.permute.xlu0 %1059
  %1061 = vrot.lane.b32.xlu0 %v417, 36
  %v1062 = vpop.permute.xlu0 %1061
  %1063 = vrot.lane.b32.xlu0 %v421, 36
  %v1064 = vpop.permute.xlu0 %1063
  %vm1129 = vcmask 97280
  %v1130 = vsel %vm1129, %v159, %v488
  %v1131 = vsel %vm1129, %v163, %v490
  %v1132 = vsel %vm1129, %v167, %v492
  %v1133 = vsel %vm1129, %v171, %v494
  %v1134 = vsel %vm1129, %v175, %v496
  %v1135 = vsel %vm1129, %v179, %v498
  %v1136 = vsel %vm1129, %v183, %v500
  %v1137 = vsel %vm1129, %v187, %v502
  %v1138 = vsel %vm1129, %v191, %v504
  %v1139 = vsel %vm1129, %v195, %v506
  %v1140 = vsel %vm1129, %v199, %v508
  %v1141 = vsel %vm1129, %v203, %v510
  %v1142 = vsel %vm1129, %v207, %v512
  %v1143 = vsel %vm1129, %v211, %v514
  %v1144 = vsel %vm1129, %v215, %v516
  %v1145 = vsel %vm1129, %v219, %v518
  %v1146 = vsel %vm1129, %v223, %v520
  %v1147 = vsel %vm1129, %v227, %v522
  %v1148 = vsel %vm1129, %v231, %v524
  %v1149 = vsel %vm1129, %v235, %v526
  %v1150 = vsel %vm1129, %v239, %v528
  %v1151 = vsel %vm1129, %v243, %v530
  %v1152 = vsel %vm1129, %v247, %v532
  %v1153 = vsel %vm1129, %v251, %v534
  %v1154 = vsel %vm1129, %v255, %v536
  %v1155 = vsel %vm1129, %v259, %v538
  %v1156 = vsel %vm1129, %v263, %v540
  %v1157 = vsel %vm1129, %v267, %v542
  %v1158 = vsel %vm1129, %v271, %v544
  %v1159 = vsel %vm1129, %v275, %v546
  %v1160 = vsel %vm1129, %v279, %v548
  %v1161 = vsel %vm1129, %v283, %v550
  %v1162 = vsel %vm1129, %v291, %v552
  %v1163 = vsel %vm1129, %v295, %v554
  %v1164 = vsel %vm1129, %v299, %v556
  %v1165 = vsel %vm1129, %v303, %v558
  %v1166 = vsel %vm1129, %v307, %v560
  %v1167 = vsel %vm1129, %v311, %v562
  %v1168 = vsel %vm1129, %v315, %v564
  %v1169 = vsel %vm1129, %v319, %v566
  %v1170 = vsel %vm1129, %v323, %v568
  %v1171 = vsel %vm1129, %v327, %v570
  %v1172 = vsel %vm1129, %v331, %v572
  %v1173 = vsel %vm1129, %v335, %v574
  %v1174 = vsel %vm1129, %v339, %v576
  %v1175 = vsel %vm1129, %v343, %v578
  %v1176 = vsel %vm1129, %v347, %v580
  %v1177 = vsel %vm1129, %v351, %v582
  %v1178 = vsel %vm1129, %v355, %v584
  %v1179 = vsel %vm1129, %v359, %v586
  %v1180 = vsel %vm1129, %v363, %v588
  %v1181 = vsel %vm1129, %v367, %v590
  %v1182 = vsel %vm1129, %v371, %v592
  %v1183 = vsel %vm1129, %v375, %v594
  %v1184 = vsel %vm1129, %v379, %v596
  %v1185 = vsel %vm1129, %v383, %v598
  %v1186 = vsel %vm1129, %v387, %v600
  %v1187 = vsel %vm1129, %v391, %v602
  %v1188 = vsel %vm1129, %v395, %v604
  %v1189 = vsel %vm1129, %v399, %v606
  %v1190 = vsel %vm1129, %v403, %v608
  %v1191 = vsel %vm1129, %v407, %v610
  %v1192 = vsel %vm1129, %v411, %v612
  %v1193 = vsel %vm1129, %v415, %v614
  %vm1194 = vcmask 195584
  %v1195 = vsel %vm1194, %v1130, %v744
  %v1196 = vsel %vm1194, %v1131, %v746
  %v1197 = vsel %vm1194, %v1132, %v748
  %v1198 = vsel %vm1194, %v1133, %v750
  %v1199 = vsel %vm1194, %v1134, %v752
  %v1200 = vsel %vm1194, %v1135, %v754
  %v1201 = vsel %vm1194, %v1136, %v756
  %v1202 = vsel %vm1194, %v1137, %v758
  %v1203 = vsel %vm1194, %v1138, %v760
  %v1204 = vsel %vm1194, %v1139, %v762
  %v1205 = vsel %vm1194, %v1140, %v764
  %v1206 = vsel %vm1194, %v1141, %v766
  %v1207 = vsel %vm1194, %v1142, %v768
  %v1208 = vsel %vm1194, %v1143, %v770
  %v1209 = vsel %vm1194, %v1144, %v772
  %v1210 = vsel %vm1194, %v1145, %v774
  %v1211 = vsel %vm1194, %v1146, %v776
  %v1212 = vsel %vm1194, %v1147, %v778
  %v1213 = vsel %vm1194, %v1148, %v780
  %v1214 = vsel %vm1194, %v1149, %v782
  %v1215 = vsel %vm1194, %v1150, %v784
  %v1216 = vsel %vm1194, %v1151, %v786
  %v1217 = vsel %vm1194, %v1152, %v788
  %v1218 = vsel %vm1194, %v1153, %v790
  %v1219 = vsel %vm1194, %v1154, %v792
  %v1220 = vsel %vm1194, %v1155, %v794
  %v1221 = vsel %vm1194, %v1156, %v796
  %v1222 = vsel %vm1194, %v1157, %v798
  %v1223 = vsel %vm1194, %v1158, %v800
  %v1224 = vsel %vm1194, %v1159, %v802
  %v1225 = vsel %vm1194, %v1160, %v804
  %v1226 = vsel %vm1194, %v1161, %v806
  %v1227 = vsel %vm1194, %v1162, %v808
  %v1228 = vsel %vm1194, %v1163, %v810
  %v1229 = vsel %vm1194, %v1164, %v812
  %v1230 = vsel %vm1194, %v1165, %v814
  %v1231 = vsel %vm1194, %v1166, %v816
  %v1232 = vsel %vm1194, %v1167, %v818
  %v1233 = vsel %vm1194, %v1168, %v820
  %v1234 = vsel %vm1194, %v1169, %v822
  %v1235 = vsel %vm1194, %v1170, %v824
  %v1236 = vsel %vm1194, %v1171, %v826
  %v1237 = vsel %vm1194, %v1172, %v828
  %v1238 = vsel %vm1194, %v1173, %v830
  %v1239 = vsel %vm1194, %v1174, %v832
  %v1240 = vsel %vm1194, %v1175, %v834
  %v1241 = vsel %vm1194, %v1176, %v836
  %v1242 = vsel %vm1194, %v1177, %v838
  %v1243 = vsel %vm1194, %v1178, %v840
  %v1244 = vsel %vm1194, %v1179, %v842
  %v1245 = vsel %vm1194, %v1180, %v844
  %v1246 = vsel %vm1194, %v1181, %v846
  %v1247 = vsel %vm1194, %v1182, %v848
  %v1248 = vsel %vm1194, %v1183, %v850
  %v1249 = vsel %vm1194, %v1184, %v852
  %v1250 = vsel %vm1194, %v1185, %v854
  %v1251 = vsel %vm1194, %v1186, %v856
  %v1252 = vsel %vm1194, %v1187, %v858
  %v1253 = vsel %vm1194, %v1188, %v860
  %v1254 = vsel %vm1194, %v1189, %v862
  %v1255 = vsel %vm1194, %v1190, %v864
  %v1256 = vsel %vm1194, %v1191, %v866
  %v1257 = vsel %vm1194, %v1192, %v868
  %v1258 = vsel %vm1194, %v1193, %v870
  %vm1259 = vcmask 293888
  %v1260 = vsel %vm1259, %v1195, %v938
  %v1261 = vsel %vm1259, %v1196, %v940
  %v1262 = vsel %vm1259, %v1197, %v942
  %v1263 = vsel %vm1259, %v1198, %v944
  %v1264 = vsel %vm1259, %v1199, %v946
  %v1265 = vsel %vm1259, %v1200, %v948
  %v1266 = vsel %vm1259, %v1201, %v950
  %v1267 = vsel %vm1259, %v1202, %v952
  %v1268 = vsel %vm1259, %v1203, %v954
  %v1269 = vsel %vm1259, %v1204, %v956
  %v1270 = vsel %vm1259, %v1205, %v958
  %v1271 = vsel %vm1259, %v1206, %v960
  %v1272 = vsel %vm1259, %v1207, %v962
  %v1273 = vsel %vm1259, %v1208, %v964
  %v1274 = vsel %vm1259, %v1209, %v966
  %v1275 = vsel %vm1259, %v1210, %v968
  %v1276 = vsel %vm1259, %v1211, %v970
  %v1277 = vsel %vm1259, %v1212, %v972
  %v1278 = vsel %vm1259, %v1213, %v974
  %v1279 = vsel %vm1259, %v1214, %v976
  %v1280 = vsel %vm1259, %v1215, %v978
  %v1281 = vsel %vm1259, %v1216, %v980
  %v1282 = vsel %vm1259, %v1217, %v982
  %v1283 = vsel %vm1259, %v1218, %v984
  %v1284 = vsel %vm1259, %v1219, %v986
  %v1285 = vsel %vm1259, %v1220, %v988
  %v1286 = vsel %vm1259, %v1221, %v990
  %v1287 = vsel %vm1259, %v1222, %v992
  %v1288 = vsel %vm1259, %v1223, %v994
  %v1289 = vsel %vm1259, %v1224, %v996
  %v1290 = vsel %vm1259, %v1225, %v998
  %v1291 = vsel %vm1259, %v1226, %v1000
  %v1292 = vsel %vm1259, %v1227, %v1002
  %v1293 = vsel %vm1259, %v1228, %v1004
  %v1294 = vsel %vm1259, %v1229, %v1006
  %v1295 = vsel %vm1259, %v1230, %v1008
  %v1296 = vsel %vm1259, %v1231, %v1010
  %v1297 = vsel %vm1259, %v1232, %v1012
  %v1298 = vsel %vm1259, %v1233, %v1014
  %v1299 = vsel %vm1259, %v1234, %v1016
  %v1300 = vsel %vm1259, %v1235, %v1018
  %v1301 = vsel %vm1259, %v1236, %v1020
  %v1302 = vsel %vm1259, %v1237, %v1022
  %v1303 = vsel %vm1259, %v1238, %v1024
  %v1304 = vsel %vm1259, %v1239, %v1026
  %v1305 = vsel %vm1259, %v1240, %v1028
  %v1306 = vsel %vm1259, %v1241, %v1030
  %v1307 = vsel %vm1259, %v1242, %v1032
  %v1308 = vsel %vm1259, %v1243, %v1034
  %v1309 = vsel %vm1259, %v1244, %v1036
  %v1310 = vsel %vm1259, %v1245, %v1038
  %v1311 = vsel %vm1259, %v1246, %v1040
  %v1312 = vsel %vm1259, %v1247, %v1042
  %v1313 = vsel %vm1259, %v1248, %v1044
  %v1314 = vsel %vm1259, %v1249, %v1046
  %v1315 = vsel %vm1259, %v1250, %v1048
  %v1316 = vsel %vm1259, %v1251, %v1050
  %v1317 = vsel %vm1259, %v1252, %v1052
  %v1318 = vsel %vm1259, %v1253, %v1054
  %v1319 = vsel %vm1259, %v1254, %v1056
  %v1320 = vsel %vm1259, %v1255, %v1058
  %v1321 = vsel %vm1259, %v1256, %v1060
  %v1322 = vsel %vm1259, %v1257, %v1062
  %v1323 = vsel %vm1259, %v1258, %v1064
  %v1324 = vpack.c.bf16 %v1261, %v1260
  %v1325 = vpack.c.bf16 %v1263, %v1262
  %v1326 = vpack.c.bf16 %v1265, %v1264
  %v1327 = vpack.c.bf16 %v1267, %v1266
  %v1328 = vpack.c.bf16 %v1269, %v1268
  %v1329 = vpack.c.bf16 %v1271, %v1270
  %v1330 = vpack.c.bf16 %v1273, %v1272
  %v1331 = vpack.c.bf16 %v1275, %v1274
  %v1332 = vpack.c.bf16 %v1277, %v1276
  %v1333 = vpack.c.bf16 %v1279, %v1278
  %v1334 = vpack.c.bf16 %v1281, %v1280
  %v1335 = vpack.c.bf16 %v1283, %v1282
  %v1336 = vpack.c.bf16 %v1285, %v1284
  %v1337 = vpack.c.bf16 %v1287, %v1286
  %v1338 = vpack.c.bf16 %v1289, %v1288
  %v1339 = vpack.c.bf16 %v1291, %v1290
  %v1340 = vpack.c.bf16 %v1293, %v1292
  %v1341 = vpack.c.bf16 %v1295, %v1294
  %v1342 = vpack.c.bf16 %v1297, %v1296
  %v1343 = vpack.c.bf16 %v1299, %v1298
  %v1344 = vpack.c.bf16 %v1301, %v1300
  %v1345 = vpack.c.bf16 %v1303, %v1302
  %v1346 = vpack.c.bf16 %v1305, %v1304
  %v1347 = vpack.c.bf16 %v1307, %v1306
  %v1348 = vpack.c.bf16 %v1309, %v1308
  %v1349 = vpack.c.bf16 %v1311, %v1310
  %v1350 = vpack.c.bf16 %v1313, %v1312
  %v1351 = vpack.c.bf16 %v1315, %v1314
  %v1352 = vpack.c.bf16 %v1317, %v1316
  %v1353 = vpack.c.bf16 %v1319, %v1318
  %v1354 = vpack.c.bf16 %v1321, %v1320
  %v1355 = vpack.c.bf16 %v1323, %v1322
  %v1356 = vld [vmem:[%s1] sm:$0xf]
  %v1357 = vld [vmem:[%s1 + $0x4] sm:$0xf]
  %v1358 = vld [vmem:[%s1 + $0x8] sm:$0xf]
  %v1359 = vld [vmem:[%s1 + $0xc] sm:$0xf]
  %v1360 = vld [vmem:[%s1 + $0x10] sm:$0xf]
  %v1361 = vld [vmem:[%s1 + $0x14] sm:$0xf]
  %v1368 = vunpack.c.l.b16 %v1356
  %v1369 = vunpack.c.l.b16 %v1357
  %v1370 = vunpack.c.l.b16 %v1358
  %v1371 = vunpack.c.l.b16 %v1359
  %v1372 = vunpack.c.l.b16 %v1360
  %v1373 = vunpack.c.l.b16 %v1361
  %v1374 = vpack.c.b16 %v1369, %v1368
  %v1375 = vpack.c.b16 %v1371, %v1370
  %v1376 = vpack.c.b16 %v1373, %v1372
  %vm1380 = vcmask 392192
  %v1382 = vsel %vm1380, %v1324, 0
  %v1385 = vsel %vm1380, %v1325, 0
  %v1388 = vsel %vm1380, %v1326, 0
  %v1391 = vsel %vm1380, %v1327, 0
  %v1394 = vsel %vm1380, %v1328, 0
  %v1397 = vsel %vm1380, %v1329, 0
  %v1400 = vsel %vm1380, %v1330, 0
  %v1403 = vsel %vm1380, %v1331, 0
  %v1406 = vsel %vm1380, %v1332, 0
  %v1409 = vsel %vm1380, %v1333, 0
  %v1412 = vsel %vm1380, %v1334, 0
  %v1415 = vsel %vm1380, %v1335, 0
  %v1418 = vsel %vm1380, %v1336, 0
  %v1421 = vsel %vm1380, %v1337, 0
  %v1424 = vsel %vm1380, %v1338, 0
  %v1427 = vsel %vm1380, %v1339, 0
  %v1430 = vsel %vm1380, %v1340, 0
  %v1433 = vsel %vm1380, %v1341, 0
  %v1436 = vsel %vm1380, %v1342, 0
  %v1439 = vsel %vm1380, %v1343, 0
  %v1442 = vsel %vm1380, %v1344, 0
  %v1445 = vsel %vm1380, %v1345, 0
  %v1448 = vsel %vm1380, %v1346, 0
  %v1451 = vsel %vm1380, %v1347, 0
  %v1454 = vsel %vm1380, %v1348, 0
  %v1457 = vsel %vm1380, %v1349, 0
  %v1460 = vsel %vm1380, %v1350, 0
  %v1463 = vsel %vm1380, %v1351, 0
  %v1466 = vsel %vm1380, %v1352, 0
  %v1469 = vsel %vm1380, %v1353, 0
  %v1472 = vsel %vm1380, %v1354, 0
  %v1475 = vsel %vm1380, %v1355, 0
  %1477 = vmatprep.subr.bf16.mxu0 0
  %1478 = vmatpush1.bf16.msra.mxu0 0
  %1479 = vmatprep.subr.bf16.mxu0 0
  %1480 = vmatpush1.bf16.msra.mxu0 0
  %1481 = vmatprep.subr.bf16.mxu0 0
  %1482 = vmatpush1.bf16.msra.mxu0 0
  %1483 = vmatprep.subr.bf16.mxu0 0
  %1484 = vmatpush1.bf16.msra.mxu0 0
  %1485 = vmatprep.subr.bf16.mxu0 0
  %1486 = vmatpush1.bf16.msra.mxu0 0
  %1487 = vmatprep.subr.bf16.mxu0 0
  %1488 = vmatpush1.bf16.msra.mxu0 %v1376
  %1489 = vmatprep.subr.bf16.mxu0 0
  %1490 = vmatpush1.bf16.msra.mxu0 %v1375
  %1491 = vmatprep.subr.bf16.mxu0 0
  %1492 = vmatpush1.bf16.msra.mxu0 %v1374
  %1493 = vmatprep.subr.bf16.mxu0 0
  %1494 = vmatpush2.bf16.msra.mxu0 0
  %1495 = vmatprep.subr.bf16.mxu0 0
  %1496 = vmatpush2.bf16.msra.mxu0 0
  %1497 = vmatprep.subr.bf16.mxu0 0
  %1498 = vmatpush2.bf16.msra.mxu0 0
  %1499 = vmatprep.subr.bf16.mxu0 0
  %1500 = vmatpush2.bf16.msra.mxu0 0
  %1501 = vmatprep.subr.bf16.mxu0 0
  %1502 = vmatpush2.bf16.msra.mxu0 0
  %1503 = vmatprep.subr.bf16.mxu0 0
  %1504 = vmatpush2.bf16.msra.mxu0 0
  %1505 = vmatprep.subr.bf16.mxu0 0
  %1506 = vmatpush2.bf16.msra.mxu0 0
  %1507 = vmatprep.subr.bf16.mxu0 0
  %1508 = vmatpush2.bf16.msra.mxu0 0
  %1509 = vmatprep.mubr.bf16.mxu0 0
  %1510 = vmatmul.mubr.bf16.gmra.mxu0 %v1382
  %v1511 = vpop.f32.mrf.mxu0
  %v1512 = vadd.f32 0.0, %v1511
  %v1513 = vpop.f32.mrf.mxu0
  %v1514 = vpop.f32.mrf.mxu0
  %v1515 = vadd.f32 0.0, %v1514
  %v1516 = vpop.f32.mrf.mxu0
  %1517 = vmatprep.mubr.bf16.mxu0 0
  %1518 = vmatmul.mubr.bf16.gmra.mxu0 %v1385
  %v1519 = vpop.f32.mrf.mxu0
  %v1520 = vadd.f32 0.0, %v1519
  %v1521 = vpop.f32.mrf.mxu0
  %v1522 = vpop.f32.mrf.mxu0
  %v1523 = vadd.f32 0.0, %v1522
  %v1524 = vpop.f32.mrf.mxu0
  %1525 = vmatprep.mubr.bf16.mxu0 0
  %1526 = vmatmul.mubr.bf16.gmra.mxu0 %v1388
  %v1527 = vpop.f32.mrf.mxu0
  %v1528 = vadd.f32 0.0, %v1527
  %v1529 = vpop.f32.mrf.mxu0
  %v1530 = vpop.f32.mrf.mxu0
  %v1531 = vadd.f32 0.0, %v1530
  %v1532 = vpop.f32.mrf.mxu0
  %1533 = vmatprep.mubr.bf16.mxu0 0
  %1534 = vmatmul.mubr.bf16.gmra.mxu0 %v1391
  %v1535 = vpop.f32.mrf.mxu0
  %v1536 = vadd.f32 0.0, %v1535
  %v1537 = vpop.f32.mrf.mxu0
  %v1538 = vpop.f32.mrf.mxu0
  %v1539 = vadd.f32 0.0, %v1538
  %v1540 = vpop.f32.mrf.mxu0
  %1541 = vmatprep.mubr.bf16.mxu0 0
  %1542 = vmatmul.mubr.bf16.gmra.mxu0 %v1394
  %v1543 = vpop.f32.mrf.mxu0
  %v1544 = vadd.f32 0.0, %v1543
  %v1545 = vpop.f32.mrf.mxu0
  %v1546 = vpop.f32.mrf.mxu0
  %v1547 = vadd.f32 0.0, %v1546
  %v1548 = vpop.f32.mrf.mxu0
  %1549 = vmatprep.mubr.bf16.mxu0 0
  %1550 = vmatmul.mubr.bf16.gmra.mxu0 %v1397
  %v1551 = vpop.f32.mrf.mxu0
  %v1552 = vadd.f32 0.0, %v1551
  %v1553 = vpop.f32.mrf.mxu0
  %v1554 = vpop.f32.mrf.mxu0
  %v1555 = vadd.f32 0.0, %v1554
  %v1556 = vpop.f32.mrf.mxu0
  %1557 = vmatprep.mubr.bf16.mxu0 0
  %1558 = vmatmul.mubr.bf16.gmra.mxu0 %v1400
  %v1559 = vpop.f32.mrf.mxu0
  %v1560 = vadd.f32 0.0, %v1559
  %v1561 = vpop.f32.mrf.mxu0
  %v1562 = vpop.f32.mrf.mxu0
  %v1563 = vadd.f32 0.0, %v1562
  %v1564 = vpop.f32.mrf.mxu0
  %1565 = vmatprep.mubr.bf16.mxu0 0
  %1566 = vmatmul.mubr.bf16.gmra.mxu0 %v1403
  %v1567 = vpop.f32.mrf.mxu0
  %v1568 = vadd.f32 0.0, %v1567
  %v1569 = vpop.f32.mrf.mxu0
  %v1570 = vpop.f32.mrf.mxu0
  %v1571 = vadd.f32 0.0, %v1570
  %v1572 = vpop.f32.mrf.mxu0
  %1573 = vmatprep.mubr.bf16.mxu0 0
  %1574 = vmatmul.mubr.bf16.gmra.mxu0 %v1406
  %v1575 = vpop.f32.mrf.mxu0
  %v1576 = vadd.f32 0.0, %v1575
  %v1577 = vpop.f32.mrf.mxu0
  %v1578 = vpop.f32.mrf.mxu0
  %v1579 = vadd.f32 0.0, %v1578
  %v1580 = vpop.f32.mrf.mxu0
  %1581 = vmatprep.mubr.bf16.mxu0 0
  %1582 = vmatmul.mubr.bf16.gmra.mxu0 %v1409
  %v1583 = vpop.f32.mrf.mxu0
  %v1584 = vadd.f32 0.0, %v1583
  %v1585 = vpop.f32.mrf.mxu0
  %v1586 = vpop.f32.mrf.mxu0
  %v1587 = vadd.f32 0.0, %v1586
  %v1588 = vpop.f32.mrf.mxu0
  %1589 = vmatprep.mubr.bf16.mxu0 0
  %1590 = vmatmul.mubr.bf16.gmra.mxu0 %v1412
  %v1591 = vpop.f32.mrf.mxu0
  %v1592 = vadd.f32 0.0, %v1591
  %v1593 = vpop.f32.mrf.mxu0
  %v1594 = vpop.f32.mrf.mxu0
  %v1595 = vadd.f32 0.0, %v1594
  %v1596 = vpop.f32.mrf.mxu0
  %1597 = vmatprep.mubr.bf16.mxu0 0
  %1598 = vmatmul.mubr.bf16.gmra.mxu0 %v1415
  %v1599 = vpop.f32.mrf.mxu0
  %v1600 = vadd.f32 0.0, %v1599
  %v1601 = vpop.f32.mrf.mxu0
  %v1602 = vpop.f32.mrf.mxu0
  %v1603 = vadd.f32 0.0, %v1602
  %v1604 = vpop.f32.mrf.mxu0
  %1605 = vmatprep.mubr.bf16.mxu0 0
  %1606 = vmatmul.mubr.bf16.gmra.mxu0 %v1418
  %v1607 = vpop.f32.mrf.mxu0
  %v1608 = vadd.f32 0.0, %v1607
  %v1609 = vpop.f32.mrf.mxu0
  %v1610 = vpop.f32.mrf.mxu0
  %v1611 = vadd.f32 0.0, %v1610
  %v1612 = vpop.f32.mrf.mxu0
  %1613 = vmatprep.mubr.bf16.mxu0 0
  %1614 = vmatmul.mubr.bf16.gmra.mxu0 %v1421
  %v1615 = vpop.f32.mrf.mxu0
  %v1616 = vadd.f32 0.0, %v1615
  %v1617 = vpop.f32.mrf.mxu0
  %v1618 = vpop.f32.mrf.mxu0
  %v1619 = vadd.f32 0.0, %v1618
  %v1620 = vpop.f32.mrf.mxu0
  %1621 = vmatprep.mubr.bf16.mxu0 0
  %1622 = vmatmul.mubr.bf16.gmra.mxu0 %v1424
  %v1623 = vpop.f32.mrf.mxu0
  %v1624 = vadd.f32 0.0, %v1623
  %v1625 = vpop.f32.mrf.mxu0
  %v1626 = vpop.f32.mrf.mxu0
  %v1627 = vadd.f32 0.0, %v1626
  %v1628 = vpop.f32.mrf.mxu0
  %1629 = vmatprep.mubr.bf16.mxu0 0
  %1630 = vmatmul.mubr.bf16.gmra.mxu0 %v1427
  %v1631 = vpop.f32.mrf.mxu0
  %v1632 = vadd.f32 0.0, %v1631
  %v1633 = vpop.f32.mrf.mxu0
  %v1634 = vpop.f32.mrf.mxu0
  %v1635 = vadd.f32 0.0, %v1634
  %v1636 = vpop.f32.mrf.mxu0
  %1637 = vmatprep.mubr.bf16.mxu0 0
  %1638 = vmatmul.mubr.bf16.gmra.mxu0 %v1430
  %v1639 = vpop.f32.mrf.mxu0
  %v1640 = vadd.f32 0.0, %v1639
  %v1641 = vpop.f32.mrf.mxu0
  %v1642 = vpop.f32.mrf.mxu0
  %v1643 = vadd.f32 0.0, %v1642
  %v1644 = vpop.f32.mrf.mxu0
  %1645 = vmatprep.mubr.bf16.mxu0 0
  %1646 = vmatmul.mubr.bf16.gmra.mxu0 %v1433
  %v1647 = vpop.f32.mrf.mxu0
  %v1648 = vadd.f32 0.0, %v1647
  %v1649 = vpop.f32.mrf.mxu0
  %v1650 = vpop.f32.mrf.mxu0
  %v1651 = vadd.f32 0.0, %v1650
  %v1652 = vpop.f32.mrf.mxu0
  %1653 = vmatprep.mubr.bf16.mxu0 0
  %1654 = vmatmul.mubr.bf16.gmra.mxu0 %v1436
  %v1655 = vpop.f32.mrf.mxu0
  %v1656 = vadd.f32 0.0, %v1655
  %v1657 = vpop.f32.mrf.mxu0
  %v1658 = vpop.f32.mrf.mxu0
  %v1659 = vadd.f32 0.0, %v1658
  %v1660 = vpop.f32.mrf.mxu0
  %1661 = vmatprep.mubr.bf16.mxu0 0
  %1662 = vmatmul.mubr.bf16.gmra.mxu0 %v1439
  %v1663 = vpop.f32.mrf.mxu0
  %v1664 = vadd.f32 0.0, %v1663
  %v1665 = vpop.f32.mrf.mxu0
  %v1666 = vpop.f32.mrf.mxu0
  %v1667 = vadd.f32 0.0, %v1666
  %v1668 = vpop.f32.mrf.mxu0
  %1669 = vmatprep.mubr.bf16.mxu0 0
  %1670 = vmatmul.mubr.bf16.gmra.mxu0 %v1442
  %v1671 = vpop.f32.mrf.mxu0
  %v1672 = vadd.f32 0.0, %v1671
  %v1673 = vpop.f32.mrf.mxu0
  %v1674 = vpop.f32.mrf.mxu0
  %v1675 = vadd.f32 0.0, %v1674
  %v1676 = vpop.f32.mrf.mxu0
  %1677 = vmatprep.mubr.bf16.mxu0 0
  %1678 = vmatmul.mubr.bf16.gmra.mxu0 %v1445
  %v1679 = vpop.f32.mrf.mxu0
  %v1680 = vadd.f32 0.0, %v1679
  %v1681 = vpop.f32.mrf.mxu0
  %v1682 = vpop.f32.mrf.mxu0
  %v1683 = vadd.f32 0.0, %v1682
  %v1684 = vpop.f32.mrf.mxu0
  %1685 = vmatprep.mubr.bf16.mxu0 0
  %1686 = vmatmul.mubr.bf16.gmra.mxu0 %v1448
  %v1687 = vpop.f32.mrf.mxu0
  %v1688 = vadd.f32 0.0, %v1687
  %v1689 = vpop.f32.mrf.mxu0
  %v1690 = vpop.f32.mrf.mxu0
  %v1691 = vadd.f32 0.0, %v1690
  %v1692 = vpop.f32.mrf.mxu0
  %1693 = vmatprep.mubr.bf16.mxu0 0
  %1694 = vmatmul.mubr.bf16.gmra.mxu0 %v1451
  %v1695 = vpop.f32.mrf.mxu0
  %v1696 = vadd.f32 0.0, %v1695
  %v1697 = vpop.f32.mrf.mxu0
  %v1698 = vpop.f32.mrf.mxu0
  %v1699 = vadd.f32 0.0, %v1698
  %v1700 = vpop.f32.mrf.mxu0
  %1701 = vmatprep.mubr.bf16.mxu0 0
  %1702 = vmatmul.mubr.bf16.gmra.mxu0 %v1454
  %v1703 = vpop.f32.mrf.mxu0
  %v1704 = vadd.f32 0.0, %v1703
  %v1705 = vpop.f32.mrf.mxu0
  %v1706 = vpop.f32.mrf.mxu0
  %v1707 = vadd.f32 0.0, %v1706
  %v1708 = vpop.f32.mrf.mxu0
  %1709 = vmatprep.mubr.bf16.mxu0 0
  %1710 = vmatmul.mubr.bf16.gmra.mxu0 %v1457
  %v1711 = vpop.f32.mrf.mxu0
  %v1712 = vadd.f32 0.0, %v1711
  %v1713 = vpop.f32.mrf.mxu0
  %v1714 = vpop.f32.mrf.mxu0
  %v1715 = vadd.f32 0.0, %v1714
  %v1716 = vpop.f32.mrf.mxu0
  %1717 = vmatprep.mubr.bf16.mxu0 0
  %1718 = vmatmul.mubr.bf16.gmra.mxu0 %v1460
  %v1719 = vpop.f32.mrf.mxu0
  %v1720 = vadd.f32 0.0, %v1719
  %v1721 = vpop.f32.mrf.mxu0
  %v1722 = vpop.f32.mrf.mxu0
  %v1723 = vadd.f32 0.0, %v1722
  %v1724 = vpop.f32.mrf.mxu0
  %1725 = vmatprep.mubr.bf16.mxu0 0
  %1726 = vmatmul.mubr.bf16.gmra.mxu0 %v1463
  %v1727 = vpop.f32.mrf.mxu0
  %v1728 = vadd.f32 0.0, %v1727
  %v1729 = vpop.f32.mrf.mxu0
  %v1730 = vpop.f32.mrf.mxu0
  %v1731 = vadd.f32 0.0, %v1730
  %v1732 = vpop.f32.mrf.mxu0
  %1733 = vmatprep.mubr.bf16.mxu0 0
  %1734 = vmatmul.mubr.bf16.gmra.mxu0 %v1466
  %v1735 = vpop.f32.mrf.mxu0
  %v1736 = vadd.f32 0.0, %v1735
  %v1737 = vpop.f32.mrf.mxu0
  %v1738 = vpop.f32.mrf.mxu0
  %v1739 = vadd.f32 0.0, %v1738
  %v1740 = vpop.f32.mrf.mxu0
  %1741 = vmatprep.mubr.bf16.mxu0 0
  %1742 = vmatmul.mubr.bf16.gmra.mxu0 %v1469
  %v1743 = vpop.f32.mrf.mxu0
  %v1744 = vadd.f32 0.0, %v1743
  %v1745 = vpop.f32.mrf.mxu0
  %v1746 = vpop.f32.mrf.mxu0
  %v1747 = vadd.f32 0.0, %v1746
  %v1748 = vpop.f32.mrf.mxu0
  %1749 = vmatprep.mubr.bf16.mxu0 0
  %1750 = vmatmul.mubr.bf16.gmra.mxu0 %v1472
  %v1751 = vpop.f32.mrf.mxu0
  %v1752 = vadd.f32 0.0, %v1751
  %v1753 = vpop.f32.mrf.mxu0
  %v1754 = vpop.f32.mrf.mxu0
  %v1755 = vadd.f32 0.0, %v1754
  %v1756 = vpop.f32.mrf.mxu0
  %1757 = vmatprep.mubr.bf16.mxu0 0
  %1758 = vmatmul.mubr.bf16.gmra.mxu0 %v1475
  %v1759 = vpop.f32.mrf.mxu0
  %v1760 = vadd.f32 0.0, %v1759
  %v1761 = vpop.f32.mrf.mxu0
  %v1762 = vpop.f32.mrf.mxu0
  %v1763 = vadd.f32 0.0, %v1762
  %v1764 = vpop.f32.mrf.mxu0
  %1765 = vdwg.mxu0
  %vm1766 = vcmp.gt.f32.partialorder %v1512, 0.0
  %vm1767 = vcmp.gt.f32.partialorder %v1515, 0.0
  %vm1768 = vcmp.gt.f32.partialorder %v1520, 0.0
  %vm1769 = vcmp.gt.f32.partialorder %v1523, 0.0
  %vm1770 = vcmp.gt.f32.partialorder %v1528, 0.0
  %vm1771 = vcmp.gt.f32.partialorder %v1531, 0.0
  %vm1772 = vcmp.gt.f32.partialorder %v1536, 0.0
  %vm1773 = vcmp.gt.f32.partialorder %v1539, 0.0
  %vm1774 = vcmp.gt.f32.partialorder %v1544, 0.0
  %vm1775 = vcmp.gt.f32.partialorder %v1547, 0.0
  %vm1776 = vcmp.gt.f32.partialorder %v1552, 0.0
  %vm1777 = vcmp.gt.f32.partialorder %v1555, 0.0
  %vm1778 = vcmp.gt.f32.partialorder %v1560, 0.0
  %vm1779 = vcmp.gt.f32.partialorder %v1563, 0.0
  %vm1780 = vcmp.gt.f32.partialorder %v1568, 0.0
  %vm1781 = vcmp.gt.f32.partialorder %v1571, 0.0
  %vm1782 = vcmp.gt.f32.partialorder %v1576, 0.0
  %vm1783 = vcmp.gt.f32.partialorder %v1579, 0.0
  %vm1784 = vcmp.gt.f32.partialorder %v1584, 0.0
  %vm1785 = vcmp.gt.f32.partialorder %v1587, 0.0
  %vm1786 = vcmp.gt.f32.partialorder %v1592, 0.0
  %vm1787 = vcmp.gt.f32.partialorder %v1595, 0.0
  %vm1788 = vcmp.gt.f32.partialorder %v1600, 0.0
  %vm1789 = vcmp.gt.f32.partialorder %v1603, 0.0
  %vm1790 = vcmp.gt.f32.partialorder %v1608, 0.0
  %vm1791 = vcmp.gt.f32.partialorder %v1611, 0.0
  %vm1792 = vcmp.gt.f32.partialorder %v1616, 0.0
  %vm1793 = vcmp.gt.f32.partialorder %v1619, 0.0
  %vm1794 = vcmp.gt.f32.partialorder %v1624, 0.0
  %vm1795 = vcmp.gt.f32.partialorder %v1627, 0.0
  %vm1796 = vcmp.gt.f32.partialorder %v1632, 0.0
  %vm1797 = vcmp.gt.f32.partialorder %v1635, 0.0
  %vm1798 = vcmp.gt.f32.partialorder %v1640, 0.0
  %vm1799 = vcmp.gt.f32.partialorder %v1643, 0.0
  %vm1800 = vcmp.gt.f32.partialorder %v1648, 0.0
  %vm1801 = vcmp.gt.f32.partialorder %v1651, 0.0
  %vm1802 = vcmp.gt.f32.partialorder %v1656, 0.0
  %vm1803 = vcmp.gt.f32.partialorder %v1659, 0.0
  %vm1804 = vcmp.gt.f32.partialorder %v1664, 0.0
  %vm1805 = vcmp.gt.f32.partialorder %v1667, 0.0
  %vm1806 = vcmp.gt.f32.partialorder %v1672, 0.0
  %vm1807 = vcmp.gt.f32.partialorder %v1675, 0.0
  %vm1808 = vcmp.gt.f32.partialorder %v1680, 0.0
  %vm1809 = vcmp.gt.f32.partialorder %v1683, 0.0
  %vm1810 = vcmp.gt.f32.partialorder %v1688, 0.0
  %vm1811 = vcmp.gt.f32.partialorder %v1691, 0.0
  %vm1812 = vcmp.gt.f32.partialorder %v1696, 0.0
  %vm1813 = vcmp.gt.f32.partialorder %v1699, 0.0
  %vm1814 = vcmp.gt.f32.partialorder %v1704, 0.0
  %vm1815 = vcmp.gt.f32.partialorder %v1707, 0.0
  %vm1816 = vcmp.gt.f32.partialorder %v1712, 0.0
  %vm1817 = vcmp.gt.f32.partialorder %v1715, 0.0
  %vm1818 = vcmp.gt.f32.partialorder %v1720, 0.0
  %vm1819 = vcmp.gt.f32.partialorder %v1723, 0.0
  %vm1820 = vcmp.gt.f32.partialorder %v1728, 0.0
  %vm1821 = vcmp.gt.f32.partialorder %v1731, 0.0
  %vm1822 = vcmp.gt.f32.partialorder %v1736, 0.0
  %vm1823 = vcmp.gt.f32.partialorder %v1739, 0.0
  %vm1824 = vcmp.gt.f32.partialorder %v1744, 0.0
  %vm1825 = vcmp.gt.f32.partialorder %v1747, 0.0
  %vm1826 = vcmp.gt.f32.partialorder %v1752, 0.0
  %vm1827 = vcmp.gt.f32.partialorder %v1755, 0.0
  %vm1828 = vcmp.gt.f32.partialorder %v1760, 0.0
  %vm1829 = vcmp.gt.f32.partialorder %v1763, 0.0
  %v1830 = vmul.f32 %v1512, 0.2
  %v1831 = vmul.f32 %v1515, 0.2
  %v1832 = vmul.f32 %v1520, 0.2
  %v1833 = vmul.f32 %v1523, 0.2
  %v1834 = vmul.f32 %v1528, 0.2
  %v1835 = vmul.f32 %v1531, 0.2
  %v1836 = vmul.f32 %v1536, 0.2
  %v1837 = vmul.f32 %v1539, 0.2
  %v1838 = vmul.f32 %v1544, 0.2
  %v1839 = vmul.f32 %v1547, 0.2
  %v1840 = vmul.f32 %v1552, 0.2
  %v1841 = vmul.f32 %v1555, 0.2
  %v1842 = vmul.f32 %v1560, 0.2
  %v1843 = vmul.f32 %v1563, 0.2
  %v1844 = vmul.f32 %v1568, 0.2
  %v1845 = vmul.f32 %v1571, 0.2
  %v1846 = vmul.f32 %v1576, 0.2
  %v1847 = vmul.f32 %v1579, 0.2
  %v1848 = vmul.f32 %v1584, 0.2
  %v1849 = vmul.f32 %v1587, 0.2
  %v1850 = vmul.f32 %v1592, 0.2
  %v1851 = vmul.f32 %v1595, 0.2
  %v1852 = vmul.f32 %v1600, 0.2
  %v1853 = vmul.f32 %v1603, 0.2
  %v1854 = vmul.f32 %v1608, 0.2
  %v1855 = vmul.f32 %v1611, 0.2
  %v1856 = vmul.f32 %v1616, 0.2
  %v1857 = vmul.f32 %v1619, 0.2
  %v1858 = vmul.f32 %v1624, 0.2
  %v1859 = vmul.f32 %v1627, 0.2
  %v1860 = vmul.f32 %v1632, 0.2
  %v1861 = vmul.f32 %v1635, 0.2
  %v1862 = vmul.f32 %v1640, 0.2
  %v1863 = vmul.f32 %v1643, 0.2
  %v1864 = vmul.f32 %v1648, 0.2
  %v1865 = vmul.f32 %v1651, 0.2
  %v1866 = vmul.f32 %v1656, 0.2
  %v1867 = vmul.f32 %v1659, 0.2
  %v1868 = vmul.f32 %v1664, 0.2
  %v1869 = vmul.f32 %v1667, 0.2
  %v1870 = vmul.f32 %v1672, 0.2
  %v1871 = vmul.f32 %v1675, 0.2
  %v1872 = vmul.f32 %v1680, 0.2
  %v1873 = vmul.f32 %v1683, 0.2
  %v1874 = vmul.f32 %v1688, 0.2
  %v1875 = vmul.f32 %v1691, 0.2
  %v1876 = vmul.f32 %v1696, 0.2
  %v1877 = vmul.f32 %v1699, 0.2
  %v1878 = vmul.f32 %v1704, 0.2
  %v1879 = vmul.f32 %v1707, 0.2
  %v1880 = vmul.f32 %v1712, 0.2
  %v1881 = vmul.f32 %v1715, 0.2
  %v1882 = vmul.f32 %v1720, 0.2
  %v1883 = vmul.f32 %v1723, 0.2
  %v1884 = vmul.f32 %v1728, 0.2
  %v1885 = vmul.f32 %v1731, 0.2
  %v1886 = vmul.f32 %v1736, 0.2
  %v1887 = vmul.f32 %v1739, 0.2
  %v1888 = vmul.f32 %v1744, 0.2
  %v1889 = vmul.f32 %v1747, 0.2
  %v1890 = vmul.f32 %v1752, 0.2
  %v1891 = vmul.f32 %v1755, 0.2
  %v1892 = vmul.f32 %v1760, 0.2
  %v1893 = vmul.f32 %v1763, 0.2
  %v1894 = vsel %vm1766, %v1512, %v1830
  %v1895 = vsel %vm1767, %v1515, %v1831
  %v1896 = vsel %vm1768, %v1520, %v1832
  %v1897 = vsel %vm1769, %v1523, %v1833
  %v1898 = vsel %vm1770, %v1528, %v1834
  %v1899 = vsel %vm1771, %v1531, %v1835
  %v1900 = vsel %vm1772, %v1536, %v1836
  %v1901 = vsel %vm1773, %v1539, %v1837
  %v1902 = vsel %vm1774, %v1544, %v1838
  %v1903 = vsel %vm1775, %v1547, %v1839
  %v1904 = vsel %vm1776, %v1552, %v1840
  %v1905 = vsel %vm1777, %v1555, %v1841
  %v1906 = vsel %vm1778, %v1560, %v1842
  %v1907 = vsel %vm1779, %v1563, %v1843
  %v1908 = vsel %vm1780, %v1568, %v1844
  %v1909 = vsel %vm1781, %v1571, %v1845
  %v1910 = vsel %vm1782, %v1576, %v1846
  %v1911 = vsel %vm1783, %v1579, %v1847
  %v1912 = vsel %vm1784, %v1584, %v1848
  %v1913 = vsel %vm1785, %v1587, %v1849
  %v1914 = vsel %vm1786, %v1592, %v1850
  %v1915 = vsel %vm1787, %v1595, %v1851
  %v1916 = vsel %vm1788, %v1600, %v1852
  %v1917 = vsel %vm1789, %v1603, %v1853
  %v1918 = vsel %vm1790, %v1608, %v1854
  %v1919 = vsel %vm1791, %v1611, %v1855
  %v1920 = vsel %vm1792, %v1616, %v1856
  %v1921 = vsel %vm1793, %v1619, %v1857
  %v1922 = vsel %vm1794, %v1624, %v1858
  %v1923 = vsel %vm1795, %v1627, %v1859
  %v1924 = vsel %vm1796, %v1632, %v1860
  %v1925 = vsel %vm1797, %v1635, %v1861
  %v1926 = vsel %vm1798, %v1640, %v1862
  %v1927 = vsel %vm1799, %v1643, %v1863
  %v1928 = vsel %vm1800, %v1648, %v1864
  %v1929 = vsel %vm1801, %v1651, %v1865
  %v1930 = vsel %vm1802, %v1656, %v1866
  %v1931 = vsel %vm1803, %v1659, %v1867
  %v1932 = vsel %vm1804, %v1664, %v1868
  %v1933 = vsel %vm1805, %v1667, %v1869
  %v1934 = vsel %vm1806, %v1672, %v1870
  %v1935 = vsel %vm1807, %v1675, %v1871
  %v1936 = vsel %vm1808, %v1680, %v1872
  %v1937 = vsel %vm1809, %v1683, %v1873
  %v1938 = vsel %vm1810, %v1688, %v1874
  %v1939 = vsel %vm1811, %v1691, %v1875
  %v1940 = vsel %vm1812, %v1696, %v1876
  %v1941 = vsel %vm1813, %v1699, %v1877
  %v1942 = vsel %vm1814, %v1704, %v1878
  %v1943 = vsel %vm1815, %v1707, %v1879
  %v1944 = vsel %vm1816, %v1712, %v1880
  %v1945 = vsel %vm1817, %v1715, %v1881
  %v1946 = vsel %vm1818, %v1720, %v1882
  %v1947 = vsel %vm1819, %v1723, %v1883
  %v1948 = vsel %vm1820, %v1728, %v1884
  %v1949 = vsel %vm1821, %v1731, %v1885
  %v1950 = vsel %vm1822, %v1736, %v1886
  %v1951 = vsel %vm1823, %v1739, %v1887
  %v1952 = vsel %vm1824, %v1744, %v1888
  %v1953 = vsel %vm1825, %v1747, %v1889
  %v1954 = vsel %vm1826, %v1752, %v1890
  %v1955 = vsel %vm1827, %v1755, %v1891
  %v1956 = vsel %vm1828, %v1760, %v1892
  %v1957 = vsel %vm1829, %v1763, %v1893
  %2022 = vrot.lane.b32.xlu0 %v1894, 8
  %v2023 = vpop.permute.xlu0 %2022
  %2024 = vrot.lane.b32.xlu0 %v1895, 8
  %v2025 = vpop.permute.xlu0 %2024
  %2026 = vrot.lane.b32.xlu0 %v1896, 8
  %v2027 = vpop.permute.xlu0 %2026
  %2028 = vrot.lane.b32.xlu0 %v1897, 8
  %v2029 = vpop.permute.xlu0 %2028
  %2030 = vrot.lane.b32.xlu0 %v1898, 8
  %v2031 = vpop.permute.xlu0 %2030
  %2032 = vrot.lane.b32.xlu0 %v1899, 8
  %v2033 = vpop.permute.xlu0 %2032
  %2034 = vrot.lane.b32.xlu0 %v1900, 8
  %v2035 = vpop.permute.xlu0 %2034
  %2036 = vrot.lane.b32.xlu0 %v1901, 8
  %v2037 = vpop.permute.xlu0 %2036
  %2038 = vrot.lane.b32.xlu0 %v1902, 8
  %v2039 = vpop.permute.xlu0 %2038
  %2040 = vrot.lane.b32.xlu0 %v1903, 8
  %v2041 = vpop.permute.xlu0 %2040
  %2042 = vrot.lane.b32.xlu0 %v1904, 8
  %v2043 = vpop.permute.xlu0 %2042
  %2044 = vrot.lane.b32.xlu0 %v1905, 8
  %v2045 = vpop.permute.xlu0 %2044
  %2046 = vrot.lane.b32.xlu0 %v1906, 8
  %v2047 = vpop.permute.xlu0 %2046
  %2048 = vrot.lane.b32.xlu0 %v1907, 8
  %v2049 = vpop.permute.xlu0 %2048
  %2050 = vrot.lane.b32.xlu0 %v1908, 8
  %v2051 = vpop.permute.xlu0 %2050
  %2052 = vrot.lane.b32.xlu0 %v1909, 8
  %v2053 = vpop.permute.xlu0 %2052
  %2054 = vrot.lane.b32.xlu0 %v1910, 8
  %v2055 = vpop.permute.xlu0 %2054
  %2056 = vrot.lane.b32.xlu0 %v1911, 8
  %v2057 = vpop.permute.xlu0 %2056
  %2058 = vrot.lane.b32.xlu0 %v1912, 8
  %v2059 = vpop.permute.xlu0 %2058
  %2060 = vrot.lane.b32.xlu0 %v1913, 8
  %v2061 = vpop.permute.xlu0 %2060
  %2062 = vrot.lane.b32.xlu0 %v1914, 8
  %v2063 = vpop.permute.xlu0 %2062
  %2064 = vrot.lane.b32.xlu0 %v1915, 8
  %v2065 = vpop.permute.xlu0 %2064
  %2066 = vrot.lane.b32.xlu0 %v1916, 8
  %v2067 = vpop.permute.xlu0 %2066
  %2068 = vrot.lane.b32.xlu0 %v1917, 8
  %v2069 = vpop.permute.xlu0 %2068
  %2070 = vrot.lane.b32.xlu0 %v1918, 8
  %v2071 = vpop.permute.xlu0 %2070
  %2072 = vrot.lane.b32.xlu0 %v1919, 8
  %v2073 = vpop.permute.xlu0 %2072
  %2074 = vrot.lane.b32.xlu0 %v1920, 8
  %v2075 = vpop.permute.xlu0 %2074
  %2076 = vrot.lane.b32.xlu0 %v1921, 8
  %v2077 = vpop.permute.xlu0 %2076
  %2078 = vrot.lane.b32.xlu0 %v1922, 8
  %v2079 = vpop.permute.xlu0 %2078
  %2080 = vrot.lane.b32.xlu0 %v1923, 8
  %v2081 = vpop.permute.xlu0 %2080
  %2082 = vrot.lane.b32.xlu0 %v1924, 8
  %v2083 = vpop.permute.xlu0 %2082
  %2084 = vrot.lane.b32.xlu0 %v1925, 8
  %v2085 = vpop.permute.xlu0 %2084
  %2086 = vrot.lane.b32.xlu0 %v1926, 8
  %v2087 = vpop.permute.xlu0 %2086
  %2088 = vrot.lane.b32.xlu0 %v1927, 8
  %v2089 = vpop.permute.xlu0 %2088
  %2090 = vrot.lane.b32.xlu0 %v1928, 8
  %v2091 = vpop.permute.xlu0 %2090
  %2092 = vrot.lane.b32.xlu0 %v1929, 8
  %v2093 = vpop.permute.xlu0 %2092
  %2094 = vrot.lane.b32.xlu0 %v1930, 8
  %v2095 = vpop.permute.xlu0 %2094
  %2096 = vrot.lane.b32.xlu0 %v1931, 8
  %v2097 = vpop.permute.xlu0 %2096
  %2098 = vrot.lane.b32.xlu0 %v1932, 8
  %v2099 = vpop.permute.xlu0 %2098
  %2100 = vrot.lane.b32.xlu0 %v1933, 8
  %v2101 = vpop.permute.xlu0 %2100
  %2102 = vrot.lane.b32.xlu0 %v1934, 8
  %v2103 = vpop.permute.xlu0 %2102
  %2104 = vrot.lane.b32.xlu0 %v1935, 8
  %v2105 = vpop.permute.xlu0 %2104
  %2106 = vrot.lane.b32.xlu0 %v1936, 8
  %v2107 = vpop.permute.xlu0 %2106
  %2108 = vrot.lane.b32.xlu0 %v1937, 8
  %v2109 = vpop.permute.xlu0 %2108
  %2110 = vrot.lane.b32.xlu0 %v1938, 8
  %v2111 = vpop.permute.xlu0 %2110
  %2112 = vrot.lane.b32.xlu0 %v1939, 8
  %v2113 = vpop.permute.xlu0 %2112
  %2114 = vrot.lane.b32.xlu0 %v1940, 8
  %v2115 = vpop.permute.xlu0 %2114
  %2116 = vrot.lane.b32.xlu0 %v1941, 8
  %v2117 = vpop.permute.xlu0 %2116
  %2118 = vrot.lane.b32.xlu0 %v1942, 8
  %v2119 = vpop.permute.xlu0 %2118
  %2120 = vrot.lane.b32.xlu0 %v1943, 8
  %v2121 = vpop.permute.xlu0 %2120
  %2122 = vrot.lane.b32.xlu0 %v1944, 8
  %v2123 = vpop.permute.xlu0 %2122
  %2124 = vrot.lane.b32.xlu0 %v1945, 8
  %v2125 = vpop.permute.xlu0 %2124
  %2126 = vrot.lane.b32.xlu0 %v1946, 8
  %v2127 = vpop.permute.xlu0 %2126
  %2128 = vrot.lane.b32.xlu0 %v1947, 8
  %v2129 = vpop.permute.xlu0 %2128
  %2130 = vrot.lane.b32.xlu0 %v1948, 8
  %v2131 = vpop.permute.xlu0 %2130
  %2132 = vrot.lane.b32.xlu0 %v1949, 8
  %v2133 = vpop.permute.xlu0 %2132
  %2134 = vrot.lane.b32.xlu0 %v1950, 8
  %v2135 = vpop.permute.xlu0 %2134
  %2136 = vrot.lane.b32.xlu0 %v1951, 8
  %v2137 = vpop.permute.xlu0 %2136
  %2138 = vrot.lane.b32.xlu0 %v1952, 8
  %v2139 = vpop.permute.xlu0 %2138
  %2140 = vrot.lane.b32.xlu0 %v1953, 8
  %v2141 = vpop.permute.xlu0 %2140
  %2142 = vrot.lane.b32.xlu0 %v1954, 8
  %v2143 = vpop.permute.xlu0 %2142
  %2144 = vrot.lane.b32.xlu0 %v1955, 8
  %v2145 = vpop.permute.xlu0 %2144
  %2146 = vrot.lane.b32.xlu0 %v1956, 8
  %v2147 = vpop.permute.xlu0 %2146
  %2148 = vrot.lane.b32.xlu0 %v1957, 8
  %v2149 = vpop.permute.xlu0 %2148
  %s2214 = scalar_lea.vmem [#allocation2], 16
  %vm2215 = vcmask 130112
  %2216 = vst.msk [vmem:[%s2214] sm:$0xff] %vm2215, %v2023
  %2217 = vst.msk [vmem:[%s2214 + $0x10] sm:$0xff] %vm2215, %v2025
  %2218 = vst.msk [vmem:[%s2214 + $0x20] sm:$0xff] %vm2215, %v2027
  %2219 = vst.msk [vmem:[%s2214 + $0x30] sm:$0xff] %vm2215, %v2029
  %2220 = vst.msk [vmem:[%s2214 + $0x40] sm:$0xff] %vm2215, %v2031
  %2221 = vst.msk [vmem:[%s2214 + $0x50] sm:$0xff] %vm2215, %v2033
  %2222 = vst.msk [vmem:[%s2214 + $0x60] sm:$0xff] %vm2215, %v2035
  %2223 = vst.msk [vmem:[%s2214 + $0x70] sm:$0xff] %vm2215, %v2037
  %2224 = vst.msk [vmem:[%s2214 + $0x80] sm:$0xff] %vm2215, %v2039
  %2225 = vst.msk [vmem:[%s2214 + $0x90] sm:$0xff] %vm2215, %v2041
  %2226 = vst.msk [vmem:[%s2214 + $0xa0] sm:$0xff] %vm2215, %v2043
  %2227 = vst.msk [vmem:[%s2214 + $0xb0] sm:$0xff] %vm2215, %v2045
  %2228 = vst.msk [vmem:[%s2214 + $0xc0] sm:$0xff] %vm2215, %v2047
  %2229 = vst.msk [vmem:[%s2214 + $0xd0] sm:$0xff] %vm2215, %v2049
  %2230 = vst.msk [vmem:[%s2214 + $0xe0] sm:$0xff] %vm2215, %v2051
  %2231 = vst.msk [vmem:[%s2214 + $0xf0] sm:$0xff] %vm2215, %v2053
  %2232 = vst.msk [vmem:[%s2214 + $0x100] sm:$0xff] %vm2215, %v2055
  %2233 = vst.msk [vmem:[%s2214 + $0x110] sm:$0xff] %vm2215, %v2057
  %2234 = vst.msk [vmem:[%s2214 + $0x120] sm:$0xff] %vm2215, %v2059
  %2235 = vst.msk [vmem:[%s2214 + $0x130] sm:$0xff] %vm2215, %v2061
  %2236 = vst.msk [vmem:[%s2214 + $0x140] sm:$0xff] %vm2215, %v2063
  %2237 = vst.msk [vmem:[%s2214 + $0x150] sm:$0xff] %vm2215, %v2065
  %2238 = vst.msk [vmem:[%s2214 + $0x160] sm:$0xff] %vm2215, %v2067
  %2239 = vst.msk [vmem:[%s2214 + $0x170] sm:$0xff] %vm2215, %v2069
  %2240 = vst.msk [vmem:[%s2214 + $0x180] sm:$0xff] %vm2215, %v2071
  %2241 = vst.msk [vmem:[%s2214 + $0x190] sm:$0xff] %vm2215, %v2073
  %2242 = vst.msk [vmem:[%s2214 + $0x1a0] sm:$0xff] %vm2215, %v2075
  %2243 = vst.msk [vmem:[%s2214 + $0x1b0] sm:$0xff] %vm2215, %v2077
  %2244 = vst.msk [vmem:[%s2214 + $0x1c0] sm:$0xff] %vm2215, %v2079
  %2245 = vst.msk [vmem:[%s2214 + $0x1d0] sm:$0xff] %vm2215, %v2081
  %2246 = vst.msk [vmem:[%s2214 + $0x1e0] sm:$0xff] %vm2215, %v2083
  %2247 = vst.msk [vmem:[%s2214 + $0x1f0] sm:$0xff] %vm2215, %v2085
  %2248 = vst.msk [vmem:[%s2214 + $0x220] sm:$0xff] %vm2215, %v2087
  %2249 = vst.msk [vmem:[%s2214 + $0x230] sm:$0xff] %vm2215, %v2089
  %2250 = vst.msk [vmem:[%s2214 + $0x240] sm:$0xff] %vm2215, %v2091
  %2251 = vst.msk [vmem:[%s2214 + $0x250] sm:$0xff] %vm2215, %v2093
  %2252 = vst.msk [vmem:[%s2214 + $0x260] sm:$0xff] %vm2215, %v2095
  %2253 = vst.msk [vmem:[%s2214 + $0x270] sm:$0xff] %vm2215, %v2097
  %2254 = vst.msk [vmem:[%s2214 + $0x280] sm:$0xff] %vm2215, %v2099
  %2255 = vst.msk [vmem:[%s2214 + $0x290] sm:$0xff] %vm2215, %v2101
  %2256 = vst.msk [vmem:[%s2214 + $0x2a0] sm:$0xff] %vm2215, %v2103
  %2257 = vst.msk [vmem:[%s2214 + $0x2b0] sm:$0xff] %vm2215, %v2105
  %2258 = vst.msk [vmem:[%s2214 + $0x2c0] sm:$0xff] %vm2215, %v2107
  %2259 = vst.msk [vmem:[%s2214 + $0x2d0] sm:$0xff] %vm2215, %v2109
  %2260 = vst.msk [vmem:[%s2214 + $0x2e0] sm:$0xff] %vm2215, %v2111
  %2261 = vst.msk [vmem:[%s2214 + $0x2f0] sm:$0xff] %vm2215, %v2113
  %2262 = vst.msk [vmem:[%s2214 + $0x300] sm:$0xff] %vm2215, %v2115
  %2263 = vst.msk [vmem:[%s2214 + $0x310] sm:$0xff] %vm2215, %v2117
  %2264 = vst.msk [vmem:[%s2214 + $0x320] sm:$0xff] %vm2215, %v2119
  %2265 = vst.msk [vmem:[%s2214 + $0x330] sm:$0xff] %vm2215, %v2121
  %2266 = vst.msk [vmem:[%s2214 + $0x340] sm:$0xff] %vm2215, %v2123
  %2267 = vst.msk [vmem:[%s2214 + $0x350] sm:$0xff] %vm2215, %v2125
  %2268 = vst.msk [vmem:[%s2214 + $0x360] sm:$0xff] %vm2215, %v2127
  %2269 = vst.msk [vmem:[%s2214 + $0x370] sm:$0xff] %vm2215, %v2129
  %2270 = vst.msk [vmem:[%s2214 + $0x380] sm:$0xff] %vm2215, %v2131
  %2271 = vst.msk [vmem:[%s2214 + $0x390] sm:$0xff] %vm2215, %v2133
  %2272 = vst.msk [vmem:[%s2214 + $0x3a0] sm:$0xff] %vm2215, %v2135
  %2273 = vst.msk [vmem:[%s2214 + $0x3b0] sm:$0xff] %vm2215, %v2137
  %2274 = vst.msk [vmem:[%s2214 + $0x3c0] sm:$0xff] %vm2215, %v2139
  %2275 = vst.msk [vmem:[%s2214 + $0x3d0] sm:$0xff] %vm2215, %v2141
  %2276 = vst.msk [vmem:[%s2214 + $0x3e0] sm:$0xff] %vm2215, %v2143
  %2277 = vst.msk [vmem:[%s2214 + $0x3f0] sm:$0xff] %vm2215, %v2145
  %2278 = vst.msk [vmem:[%s2214 + $0x400] sm:$0xff] %vm2215, %v2147
  %2279 = vst.msk [vmem:[%s2214 + $0x410] sm:$0xff] %vm2215, %v2149
  %2282 = vrot.lane.b32.xlu0 %v159, 122
  %v2283 = vpop.permute.xlu0 %2282
  %2284 = vrot.lane.b32.xlu0 %v163, 122
  %v2285 = vpop.permute.xlu0 %2284
  %2286 = vrot.lane.b32.xlu0 %v167, 122
  %v2287 = vpop.permute.xlu0 %2286
  %2288 = vrot.lane.b32.xlu0 %v171, 122
  %v2289 = vpop.permute.xlu0 %2288
  %2290 = vrot.lane.b32.xlu0 %v175, 122
  %v2291 = vpop.permute.xlu0 %2290
  %2292 = vrot.lane.b32.xlu0 %v179, 122
  %v2293 = vpop.permute.xlu0 %2292
  %2294 = vrot.lane.b32.xlu0 %v183, 122
  %v2295 = vpop.permute.xlu0 %2294
  %2296 = vrot.lane.b32.xlu0 %v187, 122
  %v2297 = vpop.permute.xlu0 %2296
  %2298 = vrot.lane.b32.xlu0 %v191, 122
  %v2299 = vpop.permute.xlu0 %2298
  %2300 = vrot.lane.b32.xlu0 %v195, 122
  %v2301 = vpop.permute.xlu0 %2300
  %2302 = vrot.lane.b32.xlu0 %v199, 122
  %v2303 = vpop.permute.xlu0 %2302
  %2304 = vrot.lane.b32.xlu0 %v203, 122
  %v2305 = vpop.permute.xlu0 %2304
  %2306 = vrot.lane.b32.xlu0 %v207, 122
  %v2307 = vpop.permute.xlu0 %2306
  %2308 = vrot.lane.b32.xlu0 %v211, 122
  %v2309 = vpop.permute.xlu0 %2308
  %2310 = vrot.lane.b32.xlu0 %v215, 122
  %v2311 = vpop.permute.xlu0 %2310
  %2312 = vrot.lane.b32.xlu0 %v219, 122
  %v2313 = vpop.permute.xlu0 %2312
  %2314 = vrot.lane.b32.xlu0 %v223, 122
  %v2315 = vpop.permute.xlu0 %2314
  %2316 = vrot.lane.b32.xlu0 %v227, 122
  %v2317 = vpop.permute.xlu0 %2316
  %2318 = vrot.lane.b32.xlu0 %v231, 122
  %v2319 = vpop.permute.xlu0 %2318
  %2320 = vrot.lane.b32.xlu0 %v235, 122
  %v2321 = vpop.permute.xlu0 %2320
  %2322 = vrot.lane.b32.xlu0 %v239, 122
  %v2323 = vpop.permute.xlu0 %2322
  %2324 = vrot.lane.b32.xlu0 %v243, 122
  %v2325 = vpop.permute.xlu0 %2324
  %2326 = vrot.lane.b32.xlu0 %v247, 122
  %v2327 = vpop.permute.xlu0 %2326
  %2328 = vrot.lane.b32.xlu0 %v251, 122
  %v2329 = vpop.permute.xlu0 %2328
  %2330 = vrot.lane.b32.xlu0 %v255, 122
  %v2331 = vpop.permute.xlu0 %2330
  %2332 = vrot.lane.b32.xlu0 %v259, 122
  %v2333 = vpop.permute.xlu0 %2332
  %2334 = vrot.lane.b32.xlu0 %v263, 122
  %v2335 = vpop.permute.xlu0 %2334
  %2336 = vrot.lane.b32.xlu0 %v267, 122
  %v2337 = vpop.permute.xlu0 %2336
  %2338 = vrot.lane.b32.xlu0 %v271, 122
  %v2339 = vpop.permute.xlu0 %2338
  %2340 = vrot.lane.b32.xlu0 %v275, 122
  %v2341 = vpop.permute.xlu0 %2340
  %2342 = vrot.lane.b32.xlu0 %v279, 122
  %v2343 = vpop.permute.xlu0 %2342
  %2344 = vrot.lane.b32.xlu0 %v283, 122
  %v2345 = vpop.permute.xlu0 %2344
  %2346 = vrot.lane.b32.xlu0 %v291, 122
  %v2347 = vpop.permute.xlu0 %2346
  %2348 = vrot.lane.b32.xlu0 %v295, 122
  %v2349 = vpop.permute.xlu0 %2348
  %2350 = vrot.lane.b32.xlu0 %v299, 122
  %v2351 = vpop.permute.xlu0 %2350
  %2352 = vrot.lane.b32.xlu0 %v303, 122
  %v2353 = vpop.permute.xlu0 %2352
  %2354 = vrot.lane.b32.xlu0 %v307, 122
  %v2355 = vpop.permute.xlu0 %2354
  %2356 = vrot.lane.b32.xlu0 %v311, 122
  %v2357 = vpop.permute.xlu0 %2356
  %2358 = vrot.lane.b32.xlu0 %v315, 122
  %v2359 = vpop.permute.xlu0 %2358
  %2360 = vrot.lane.b32.xlu0 %v319, 122
  %v2361 = vpop.permute.xlu0 %2360
  %2362 = vrot.lane.b32.xlu0 %v323, 122
  %v2363 = vpop.permute.xlu0 %2362
  %2364 = vrot.lane.b32.xlu0 %v327, 122
  %v2365 = vpop.permute.xlu0 %2364
  %2366 = vrot.lane.b32.xlu0 %v331, 122
  %v2367 = vpop.permute.xlu0 %2366
  %2368 = vrot.lane.b32.xlu0 %v335, 122
  %v2369 = vpop.permute.xlu0 %2368
  %2370 = vrot.lane.b32.xlu0 %v339, 122
  %v2371 = vpop.permute.xlu0 %2370
  %2372 = vrot.lane.b32.xlu0 %v343, 122
  %v2373 = vpop.permute.xlu0 %2372
  %2374 = vrot.lane.b32.xlu0 %v347, 122
  %v2375 = vpop.permute.xlu0 %2374
  %2376 = vrot.lane.b32.xlu0 %v351, 122
  %v2377 = vpop.permute.xlu0 %2376
  %2378 = vrot.lane.b32.xlu0 %v355, 122
  %v2379 = vpop.permute.xlu0 %2378
  %2380 = vrot.lane.b32.xlu0 %v359, 122
  %v2381 = vpop.permute.xlu0 %2380
  %2382 = vrot.lane.b32.xlu0 %v363, 122
  %v2383 = vpop.permute.xlu0 %2382
  %2384 = vrot.lane.b32.xlu0 %v367, 122
  %v2385 = vpop.permute.xlu0 %2384
  %2386 = vrot.lane.b32.xlu0 %v371, 122
  %v2387 = vpop.permute.xlu0 %2386
  %2388 = vrot.lane.b32.xlu0 %v375, 122
  %v2389 = vpop.permute.xlu0 %2388
  %2390 = vrot.lane.b32.xlu0 %v379, 122
  %v2391 = vpop.permute.xlu0 %2390
  %2392 = vrot.lane.b32.xlu0 %v383, 122
  %v2393 = vpop.permute.xlu0 %2392
  %2394 = vrot.lane.b32.xlu0 %v387, 122
  %v2395 = vpop.permute.xlu0 %2394
  %2396 = vrot.lane.b32.xlu0 %v391, 122
  %v2397 = vpop.permute.xlu0 %2396
  %2398 = vrot.lane.b32.xlu0 %v395, 122
  %v2399 = vpop.permute.xlu0 %2398
  %2400 = vrot.lane.b32.xlu0 %v399, 122
  %v2401 = vpop.permute.xlu0 %2400
  %2402 = vrot.lane.b32.xlu0 %v403, 122
  %v2403 = vpop.permute.xlu0 %2402
  %2404 = vrot.lane.b32.xlu0 %v407, 122
  %v2405 = vpop.permute.xlu0 %2404
  %2406 = vrot.lane.b32.xlu0 %v411, 122
  %v2407 = vpop.permute.xlu0 %2406
  %2408 = vrot.lane.b32.xlu0 %v415, 122
  %v2409 = vpop.permute.xlu0 %2408
  %2474 = vrot.lane.b32.xlu0 %v161, 6
  %v2475 = vpop.permute.xlu0 %2474
  %2476 = vrot.lane.b32.xlu0 %v165, 6
  %v2477 = vpop.permute.xlu0 %2476
  %2478 = vrot.lane.b32.xlu0 %v169, 6
  %v2479 = vpop.permute.xlu0 %2478
  %2480 = vrot.lane.b32.xlu0 %v173, 6
  %v2481 = vpop.permute.xlu0 %2480
  %2482 = vrot.lane.b32.xlu0 %v177, 6
  %v2483 = vpop.permute.xlu0 %2482
  %2484 = vrot.lane.b32.xlu0 %v181, 6
  %v2485 = vpop.permute.xlu0 %2484
  %2486 = vrot.lane.b32.xlu0 %v185, 6
  %v2487 = vpop.permute.xlu0 %2486
  %2488 = vrot.lane.b32.xlu0 %v189, 6
  %v2489 = vpop.permute.xlu0 %2488
  %2490 = vrot.lane.b32.xlu0 %v193, 6
  %v2491 = vpop.permute.xlu0 %2490
  %2492 = vrot.lane.b32.xlu0 %v197, 6
  %v2493 = vpop.permute.xlu0 %2492
  %2494 = vrot.lane.b32.xlu0 %v201, 6
  %v2495 = vpop.permute.xlu0 %2494
  %2496 = vrot.lane.b32.xlu0 %v205, 6
  %v2497 = vpop.permute.xlu0 %2496
  %2498 = vrot.lane.b32.xlu0 %v209, 6
  %v2499 = vpop.permute.xlu0 %2498
  %2500 = vrot.lane.b32.xlu0 %v213, 6
  %v2501 = vpop.permute.xlu0 %2500
  %2502 = vrot.lane.b32.xlu0 %v217, 6
  %v2503 = vpop.permute.xlu0 %2502
  %2504 = vrot.lane.b32.xlu0 %v221, 6
  %v2505 = vpop.permute.xlu0 %2504
  %2506 = vrot.lane.b32.xlu0 %v225, 6
  %v2507 = vpop.permute.xlu0 %2506
  %2508 = vrot.lane.b32.xlu0 %v229, 6
  %v2509 = vpop.permute.xlu0 %2508
  %2510 = vrot.lane.b32.xlu0 %v233, 6
  %v2511 = vpop.permute.xlu0 %2510
  %2512 = vrot.lane.b32.xlu0 %v237, 6
  %v2513 = vpop.permute.xlu0 %2512
  %2514 = vrot.lane.b32.xlu0 %v241, 6
  %v2515 = vpop.permute.xlu0 %2514
  %2516 = vrot.lane.b32.xlu0 %v245, 6
  %v2517 = vpop.permute.xlu0 %2516
  %2518 = vrot.lane.b32.xlu0 %v249, 6
  %v2519 = vpop.permute.xlu0 %2518
  %2520 = vrot.lane.b32.xlu0 %v253, 6
  %v2521 = vpop.permute.xlu0 %2520
  %2522 = vrot.lane.b32.xlu0 %v257, 6
  %v2523 = vpop.permute.xlu0 %2522
  %2524 = vrot.lane.b32.xlu0 %v261, 6
  %v2525 = vpop.permute.xlu0 %2524
  %2526 = vrot.lane.b32.xlu0 %v265, 6
  %v2527 = vpop.permute.xlu0 %2526
  %2528 = vrot.lane.b32.xlu0 %v269, 6
  %v2529 = vpop.permute.xlu0 %2528
  %2530 = vrot.lane.b32.xlu0 %v273, 6
  %v2531 = vpop.permute.xlu0 %2530
  %2532 = vrot.lane.b32.xlu0 %v277, 6
  %v2533 = vpop.permute.xlu0 %2532
  %2534 = vrot.lane.b32.xlu0 %v281, 6
  %v2535 = vpop.permute.xlu0 %2534
  %2536 = vrot.lane.b32.xlu0 %v285, 6
  %v2537 = vpop.permute.xlu0 %2536
  %2538 = vrot.lane.b32.xlu0 %v293, 6
  %v2539 = vpop.permute.xlu0 %2538
  %2540 = vrot.lane.b32.xlu0 %v297, 6
  %v2541 = vpop.permute.xlu0 %2540
  %2542 = vrot.lane.b32.xlu0 %v301, 6
  %v2543 = vpop.permute.xlu0 %2542
  %2544 = vrot.lane.b32.xlu0 %v305, 6
  %v2545 = vpop.permute.xlu0 %2544
  %2546 = vrot.lane.b32.xlu0 %v309, 6
  %v2547 = vpop.permute.xlu0 %2546
  %2548 = vrot.lane.b32.xlu0 %v313, 6
  %v2549 = vpop.permute.xlu0 %2548
  %2550 = vrot.lane.b32.xlu0 %v317, 6
  %v2551 = vpop.permute.xlu0 %2550
  %2552 = vrot.lane.b32.xlu0 %v321, 6
  %v2553 = vpop.permute.xlu0 %2552
  %2554 = vrot.lane.b32.xlu0 %v325, 6
  %v2555 = vpop.permute.xlu0 %2554
  %2556 = vrot.lane.b32.xlu0 %v329, 6
  %v2557 = vpop.permute.xlu0 %2556
  %2558 = vrot.lane.b32.xlu0 %v333, 6
  %v2559 = vpop.permute.xlu0 %2558
  %2560 = vrot.lane.b32.xlu0 %v337, 6
  %v2561 = vpop.permute.xlu0 %2560
  %2562 = vrot.lane.b32.xlu0 %v341, 6
  %v2563 = vpop.permute.xlu0 %2562
  %2564 = vrot.lane.b32.xlu0 %v345, 6
  %v2565 = vpop.permute.xlu0 %2564
  %2566 = vrot.lane.b32.xlu0 %v349, 6
  %v2567 = vpop.permute.xlu0 %2566
  %2568 = vrot.lane.b32.xlu0 %v353, 6
  %v2569 = vpop.permute.xlu0 %2568
  %2570 = vrot.lane.b32.xlu0 %v357, 6
  %v2571 = vpop.permute.xlu0 %2570
  %2572 = vrot.lane.b32.xlu0 %v361, 6
  %v2573 = vpop.permute.xlu0 %2572
  %2574 = vrot.lane.b32.xlu0 %v365, 6
  %v2575 = vpop.permute.xlu0 %2574
  %2576 = vrot.lane.b32.xlu0 %v369, 6
  %v2577 = vpop.permute.xlu0 %2576
  %2578 = vrot.lane.b32.xlu0 %v373, 6
  %v2579 = vpop.permute.xlu0 %2578
  %2580 = vrot.lane.b32.xlu0 %v377, 6
  %v2581 = vpop.permute.xlu0 %2580
  %2582 = vrot.lane.b32.xlu0 %v381, 6
  %v2583 = vpop.permute.xlu0 %2582
  %2584 = vrot.lane.b32.xlu0 %v385, 6
  %v2585 = vpop.permute.xlu0 %2584
  %2586 = vrot.lane.b32.xlu0 %v389, 6
  %v2587 = vpop.permute.xlu0 %2586
  %2588 = vrot.lane.b32.xlu0 %v393, 6
  %v2589 = vpop.permute.xlu0 %2588
  %2590 = vrot.lane.b32.xlu0 %v397, 6
  %v2591 = vpop.permute.xlu0 %2590
  %2592 = vrot.lane.b32.xlu0 %v401, 6
  %v2593 = vpop.permute.xlu0 %2592
  %2594 = vrot.lane.b32.xlu0 %v405, 6
  %v2595 = vpop.permute.xlu0 %2594
  %2596 = vrot.lane.b32.xlu0 %v409, 6
  %v2597 = vpop.permute.xlu0 %2596
  %2598 = vrot.lane.b32.xlu0 %v413, 6
  %v2599 = vpop.permute.xlu0 %2598
  %2600 = vrot.lane.b32.xlu0 %v417, 6
  %v2601 = vpop.permute.xlu0 %2600
  %2666 = vrot.lane.b32.xlu0 %v163, 18
  %v2667 = vpop.permute.xlu0 %2666
  %2668 = vrot.lane.b32.xlu0 %v167, 18
  %v2669 = vpop.permute.xlu0 %2668
  %2670 = vrot.lane.b32.xlu0 %v171, 18
  %v2671 = vpop.permute.xlu0 %2670
  %2672 = vrot.lane.b32.xlu0 %v175, 18
  %v2673 = vpop.permute.xlu0 %2672
  %2674 = vrot.lane.b32.xlu0 %v179, 18
  %v2675 = vpop.permute.xlu0 %2674
  %2676 = vrot.lane.b32.xlu0 %v183, 18
  %v2677 = vpop.permute.xlu0 %2676
  %2678 = vrot.lane.b32.xlu0 %v187, 18
  %v2679 = vpop.permute.xlu0 %2678
  %2680 = vrot.lane.b32.xlu0 %v191, 18
  %v2681 = vpop.permute.xlu0 %2680
  %2682 = vrot.lane.b32.xlu0 %v195, 18
  %v2683 = vpop.permute.xlu0 %2682
  %2684 = vrot.lane.b32.xlu0 %v199, 18
  %v2685 = vpop.permute.xlu0 %2684
  %2686 = vrot.lane.b32.xlu0 %v203, 18
  %v2687 = vpop.permute.xlu0 %2686
  %2688 = vrot.lane.b32.xlu0 %v207, 18
  %v2689 = vpop.permute.xlu0 %2688
  %2690 = vrot.lane.b32.xlu0 %v211, 18
  %v2691 = vpop.permute.xlu0 %2690
  %2692 = vrot.lane.b32.xlu0 %v215, 18
  %v2693 = vpop.permute.xlu0 %2692
  %2694 = vrot.lane.b32.xlu0 %v219, 18
  %v2695 = vpop.permute.xlu0 %2694
  %2696 = vrot.lane.b32.xlu0 %v223, 18
  %v2697 = vpop.permute.xlu0 %2696
  %2698 = vrot.lane.b32.xlu0 %v227, 18
  %v2699 = vpop.permute.xlu0 %2698
  %2700 = vrot.lane.b32.xlu0 %v231, 18
  %v2701 = vpop.permute.xlu0 %2700
  %2702 = vrot.lane.b32.xlu0 %v235, 18
  %v2703 = vpop.permute.xlu0 %2702
  %2704 = vrot.lane.b32.xlu0 %v239, 18
  %v2705 = vpop.permute.xlu0 %2704
  %2706 = vrot.lane.b32.xlu0 %v243, 18
  %v2707 = vpop.permute.xlu0 %2706
  %2708 = vrot.lane.b32.xlu0 %v247, 18
  %v2709 = vpop.permute.xlu0 %2708
  %2710 = vrot.lane.b32.xlu0 %v251, 18
  %v2711 = vpop.permute.xlu0 %2710
  %2712 = vrot.lane.b32.xlu0 %v255, 18
  %v2713 = vpop.permute.xlu0 %2712
  %2714 = vrot.lane.b32.xlu0 %v259, 18
  %v2715 = vpop.permute.xlu0 %2714
  %2716 = vrot.lane.b32.xlu0 %v263, 18
  %v2717 = vpop.permute.xlu0 %2716
  %2718 = vrot.lane.b32.xlu0 %v267, 18
  %v2719 = vpop.permute.xlu0 %2718
  %2720 = vrot.lane.b32.xlu0 %v271, 18
  %v2721 = vpop.permute.xlu0 %2720
  %2722 = vrot.lane.b32.xlu0 %v275, 18
  %v2723 = vpop.permute.xlu0 %2722
  %2724 = vrot.lane.b32.xlu0 %v279, 18
  %v2725 = vpop.permute.xlu0 %2724
  %2726 = vrot.lane.b32.xlu0 %v283, 18
  %v2727 = vpop.permute.xlu0 %2726
  %2728 = vrot.lane.b32.xlu0 %v287, 18
  %v2729 = vpop.permute.xlu0 %2728
  %2730 = vrot.lane.b32.xlu0 %v295, 18
  %v2731 = vpop.permute.xlu0 %2730
  %2732 = vrot.lane.b32.xlu0 %v299, 18
  %v2733 = vpop.permute.xlu0 %2732
  %2734 = vrot.lane.b32.xlu0 %v303, 18
  %v2735 = vpop.permute.xlu0 %2734
  %2736 = vrot.lane.b32.xlu0 %v307, 18
  %v2737 = vpop.permute.xlu0 %2736
  %2738 = vrot.lane.b32.xlu0 %v311, 18
  %v2739 = vpop.permute.xlu0 %2738
  %2740 = vrot.lane.b32.xlu0 %v315, 18
  %v2741 = vpop.permute.xlu0 %2740
  %2742 = vrot.lane.b32.xlu0 %v319, 18
  %v2743 = vpop.permute.xlu0 %2742
  %2744 = vrot.lane.b32.xlu0 %v323, 18
  %v2745 = vpop.permute.xlu0 %2744
  %2746 = vrot.lane.b32.xlu0 %v327, 18
  %v2747 = vpop.permute.xlu0 %2746
  %2748 = vrot.lane.b32.xlu0 %v331, 18
  %v2749 = vpop.permute.xlu0 %2748
  %2750 = vrot.lane.b32.xlu0 %v335, 18
  %v2751 = vpop.permute.xlu0 %2750
  %2752 = vrot.lane.b32.xlu0 %v339, 18
  %v2753 = vpop.permute.xlu0 %2752
  %2754 = vrot.lane.b32.xlu0 %v343, 18
  %v2755 = vpop.permute.xlu0 %2754
  %2756 = vrot.lane.b32.xlu0 %v347, 18
  %v2757 = vpop.permute.xlu0 %2756
  %2758 = vrot.lane.b32.xlu0 %v351, 18
  %v2759 = vpop.permute.xlu0 %2758
  %2760 = vrot.lane.b32.xlu0 %v355, 18
  %v2761 = vpop.permute.xlu0 %2760
  %2762 = vrot.lane.b32.xlu0 %v359, 18
  %v2763 = vpop.permute.xlu0 %2762
  %2764 = vrot.lane.b32.xlu0 %v363, 18
  %v2765 = vpop.permute.xlu0 %2764
  %2766 = vrot.lane.b32.xlu0 %v367, 18
  %v2767 = vpop.permute.xlu0 %2766
  %2768 = vrot.lane.b32.xlu0 %v371, 18
  %v2769 = vpop.permute.xlu0 %2768
  %2770 = vrot.lane.b32.xlu0 %v375, 18
  %v2771 = vpop.permute.xlu0 %2770
  %2772 = vrot.lane.b32.xlu0 %v379, 18
  %v2773 = vpop.permute.xlu0 %2772
  %2774 = vrot.lane.b32.xlu0 %v383, 18
  %v2775 = vpop.permute.xlu0 %2774
  %2776 = vrot.lane.b32.xlu0 %v387, 18
  %v2777 = vpop.permute.xlu0 %2776
  %2778 = vrot.lane.b32.xlu0 %v391, 18
  %v2779 = vpop.permute.xlu0 %2778
  %2780 = vrot.lane.b32.xlu0 %v395, 18
  %v2781 = vpop.permute.xlu0 %2780
  %2782 = vrot.lane.b32.xlu0 %v399, 18
  %v2783 = vpop.permute.xlu0 %2782
  %2784 = vrot.lane.b32.xlu0 %v403, 18
  %v2785 = vpop.permute.xlu0 %2784
  %2786 = vrot.lane.b32.xlu0 %v407, 18
  %v2787 = vpop.permute.xlu0 %2786
  %2788 = vrot.lane.b32.xlu0 %v411, 18
  %v2789 = vpop.permute.xlu0 %2788
  %2790 = vrot.lane.b32.xlu0 %v415, 18
  %v2791 = vpop.permute.xlu0 %2790
  %2792 = vrot.lane.b32.xlu0 %v419, 18
  %v2793 = vpop.permute.xlu0 %2792
  %2858 = vrot.lane.b32.xlu0 %v165, 30
  %v2859 = vpop.permute.xlu0 %2858
  %2860 = vrot.lane.b32.xlu0 %v169, 30
  %v2861 = vpop.permute.xlu0 %2860
  %2862 = vrot.lane.b32.xlu0 %v173, 30
  %v2863 = vpop.permute.xlu0 %2862
  %2864 = vrot.lane.b32.xlu0 %v177, 30
  %v2865 = vpop.permute.xlu0 %2864
  %2866 = vrot.lane.b32.xlu0 %v181, 30
  %v2867 = vpop.permute.xlu0 %2866
  %2868 = vrot.lane.b32.xlu0 %v185, 30
  %v2869 = vpop.permute.xlu0 %2868
  %2870 = vrot.lane.b32.xlu0 %v189, 30
  %v2871 = vpop.permute.xlu0 %2870
  %2872 = vrot.lane.b32.xlu0 %v193, 30
  %v2873 = vpop.permute.xlu0 %2872
  %2874 = vrot.lane.b32.xlu0 %v197, 30
  %v2875 = vpop.permute.xlu0 %2874
  %2876 = vrot.lane.b32.xlu0 %v201, 30
  %v2877 = vpop.permute.xlu0 %2876
  %2878 = vrot.lane.b32.xlu0 %v205, 30
  %v2879 = vpop.permute.xlu0 %2878
  %2880 = vrot.lane.b32.xlu0 %v209, 30
  %v2881 = vpop.permute.xlu0 %2880
  %2882 = vrot.lane.b32.xlu0 %v213, 30
  %v2883 = vpop.permute.xlu0 %2882
  %2884 = vrot.lane.b32.xlu0 %v217, 30
  %v2885 = vpop.permute.xlu0 %2884
  %2886 = vrot.lane.b32.xlu0 %v221, 30
  %v2887 = vpop.permute.xlu0 %2886
  %2888 = vrot.lane.b32.xlu0 %v225, 30
  %v2889 = vpop.permute.xlu0 %2888
  %2890 = vrot.lane.b32.xlu0 %v229, 30
  %v2891 = vpop.permute.xlu0 %2890
  %2892 = vrot.lane.b32.xlu0 %v233, 30
  %v2893 = vpop.permute.xlu0 %2892
  %2894 = vrot.lane.b32.xlu0 %v237, 30
  %v2895 = vpop.permute.xlu0 %2894
  %2896 = vrot.lane.b32.xlu0 %v241, 30
  %v2897 = vpop.permute.xlu0 %2896
  %2898 = vrot.lane.b32.xlu0 %v245, 30
  %v2899 = vpop.permute.xlu0 %2898
  %2900 = vrot.lane.b32.xlu0 %v249, 30
  %v2901 = vpop.permute.xlu0 %2900
  %2902 = vrot.lane.b32.xlu0 %v253, 30
  %v2903 = vpop.permute.xlu0 %2902
  %2904 = vrot.lane.b32.xlu0 %v257, 30
  %v2905 = vpop.permute.xlu0 %2904
  %2906 = vrot.lane.b32.xlu0 %v261, 30
  %v2907 = vpop.permute.xlu0 %2906
  %2908 = vrot.lane.b32.xlu0 %v265, 30
  %v2909 = vpop.permute.xlu0 %2908
  %2910 = vrot.lane.b32.xlu0 %v269, 30
  %v2911 = vpop.permute.xlu0 %2910
  %2912 = vrot.lane.b32.xlu0 %v273, 30
  %v2913 = vpop.permute.xlu0 %2912
  %2914 = vrot.lane.b32.xlu0 %v277, 30
  %v2915 = vpop.permute.xlu0 %2914
  %2916 = vrot.lane.b32.xlu0 %v281, 30
  %v2917 = vpop.permute.xlu0 %2916
  %2918 = vrot.lane.b32.xlu0 %v285, 30
  %v2919 = vpop.permute.xlu0 %2918
  %2920 = vrot.lane.b32.xlu0 %v289, 30
  %v2921 = vpop.permute.xlu0 %2920
  %2922 = vrot.lane.b32.xlu0 %v297, 30
  %v2923 = vpop.permute.xlu0 %2922
  %2924 = vrot.lane.b32.xlu0 %v301, 30
  %v2925 = vpop.permute.xlu0 %2924
  %2926 = vrot.lane.b32.xlu0 %v305, 30
  %v2927 = vpop.permute.xlu0 %2926
  %2928 = vrot.lane.b32.xlu0 %v309, 30
  %v2929 = vpop.permute.xlu0 %2928
  %2930 = vrot.lane.b32.xlu0 %v313, 30
  %v2931 = vpop.permute.xlu0 %2930
  %2932 = vrot.lane.b32.xlu0 %v317, 30
  %v2933 = vpop.permute.xlu0 %2932
  %2934 = vrot.lane.b32.xlu0 %v321, 30
  %v2935 = vpop.permute.xlu0 %2934
  %2936 = vrot.lane.b32.xlu0 %v325, 30
  %v2937 = vpop.permute.xlu0 %2936
  %2938 = vrot.lane.b32.xlu0 %v329, 30
  %v2939 = vpop.permute.xlu0 %2938
  %2940 = vrot.lane.b32.xlu0 %v333, 30
  %v2941 = vpop.permute.xlu0 %2940
  %2942 = vrot.lane.b32.xlu0 %v337, 30
  %v2943 = vpop.permute.xlu0 %2942
  %2944 = vrot.lane.b32.xlu0 %v341, 30
  %v2945 = vpop.permute.xlu0 %2944
  %2946 = vrot.lane.b32.xlu0 %v345, 30
  %v2947 = vpop.permute.xlu0 %2946
  %2948 = vrot.lane.b32.xlu0 %v349, 30
  %v2949 = vpop.permute.xlu0 %2948
  %2950 = vrot.lane.b32.xlu0 %v353, 30
  %v2951 = vpop.permute.xlu0 %2950
  %2952 = vrot.lane.b32.xlu0 %v357, 30
  %v2953 = vpop.permute.xlu0 %2952
  %2954 = vrot.lane.b32.xlu0 %v361, 30
  %v2955 = vpop.permute.xlu0 %2954
  %2956 = vrot.lane.b32.xlu0 %v365, 30
  %v2957 = vpop.permute.xlu0 %2956
  %2958 = vrot.lane.b32.xlu0 %v369, 30
  %v2959 = vpop.permute.xlu0 %2958
  %2960 = vrot.lane.b32.xlu0 %v373, 30
  %v2961 = vpop.permute.xlu0 %2960
  %2962 = vrot.lane.b32.xlu0 %v377, 30
  %v2963 = vpop.permute.xlu0 %2962
  %2964 = vrot.lane.b32.xlu0 %v381, 30
  %v2965 = vpop.permute.xlu0 %2964
  %2966 = vrot.lane.b32.xlu0 %v385, 30
  %v2967 = vpop.permute.xlu0 %2966
  %2968 = vrot.lane.b32.xlu0 %v389, 30
  %v2969 = vpop.permute.xlu0 %2968
  %2970 = vrot.lane.b32.xlu0 %v393, 30
  %v2971 = vpop.permute.xlu0 %2970
  %2972 = vrot.lane.b32.xlu0 %v397, 30
  %v2973 = vpop.permute.xlu0 %2972
  %2974 = vrot.lane.b32.xlu0 %v401, 30
  %v2975 = vpop.permute.xlu0 %2974
  %2976 = vrot.lane.b32.xlu0 %v405, 30
  %v2977 = vpop.permute.xlu0 %2976
  %2978 = vrot.lane.b32.xlu0 %v409, 30
  %v2979 = vpop.permute.xlu0 %2978
  %2980 = vrot.lane.b32.xlu0 %v413, 30
  %v2981 = vpop.permute.xlu0 %2980
  %2982 = vrot.lane.b32.xlu0 %v417, 30
  %v2983 = vpop.permute.xlu0 %2982
  %2984 = vrot.lane.b32.xlu0 %v421, 30
  %v2985 = vpop.permute.xlu0 %2984
  %v3050 = vsel %vm1129, %v2283, %v2475
  %v3051 = vsel %vm1129, %v2285, %v2477
  %v3052 = vsel %vm1129, %v2287, %v2479
  %v3053 = vsel %vm1129, %v2289, %v2481
  %v3054 = vsel %vm1129, %v2291, %v2483
  %v3055 = vsel %vm1129, %v2293, %v2485
  %v3056 = vsel %vm1129, %v2295, %v2487
  %v3057 = vsel %vm1129, %v2297, %v2489
  %v3058 = vsel %vm1129, %v2299, %v2491
  %v3059 = vsel %vm1129, %v2301, %v2493
  %v3060 = vsel %vm1129, %v2303, %v2495
  %v3061 = vsel %vm1129, %v2305, %v2497
  %v3062 = vsel %vm1129, %v2307, %v2499
  %v3063 = vsel %vm1129, %v2309, %v2501
  %v3064 = vsel %vm1129, %v2311, %v2503
  %v3065 = vsel %vm1129, %v2313, %v2505
  %v3066 = vsel %vm1129, %v2315, %v2507
  %v3067 = vsel %vm1129, %v2317, %v2509
  %v3068 = vsel %vm1129, %v2319, %v2511
  %v3069 = vsel %vm1129, %v2321, %v2513
  %v3070 = vsel %vm1129, %v2323, %v2515
  %v3071 = vsel %vm1129, %v2325, %v2517
  %v3072 = vsel %vm1129, %v2327, %v2519
  %v3073 = vsel %vm1129, %v2329, %v2521
  %v3074 = vsel %vm1129, %v2331, %v2523
  %v3075 = vsel %vm1129, %v2333, %v2525
  %v3076 = vsel %vm1129, %v2335, %v2527
  %v3077 = vsel %vm1129, %v2337, %v2529
  %v3078 = vsel %vm1129, %v2339, %v2531
  %v3079 = vsel %vm1129, %v2341, %v2533
  %v3080 = vsel %vm1129, %v2343, %v2535
  %v3081 = vsel %vm1129, %v2345, %v2537
  %v3082 = vsel %vm1129, %v2347, %v2539
  %v3083 = vsel %vm1129, %v2349, %v2541
  %v3084 = vsel %vm1129, %v2351, %v2543
  %v3085 = vsel %vm1129, %v2353, %v2545
  %v3086 = vsel %vm1129, %v2355, %v2547
  %v3087 = vsel %vm1129, %v2357, %v2549
  %v3088 = vsel %vm1129, %v2359, %v2551
  %v3089 = vsel %vm1129, %v2361, %v2553
  %v3090 = vsel %vm1129, %v2363, %v2555
  %v3091 = vsel %vm1129, %v2365, %v2557
  %v3092 = vsel %vm1129, %v2367, %v2559
  %v3093 = vsel %vm1129, %v2369, %v2561
  %v3094 = vsel %vm1129, %v2371, %v2563
  %v3095 = vsel %vm1129, %v2373, %v2565
  %v3096 = vsel %vm1129, %v2375, %v2567
  %v3097 = vsel %vm1129, %v2377, %v2569
  %v3098 = vsel %vm1129, %v2379, %v2571
  %v3099 = vsel %vm1129, %v2381, %v2573
  %v3100 = vsel %vm1129, %v2383, %v2575
  %v3101 = vsel %vm1129, %v2385, %v2577
  %v3102 = vsel %vm1129, %v2387, %v2579
  %v3103 = vsel %vm1129, %v2389, %v2581
  %v3104 = vsel %vm1129, %v2391, %v2583
  %v3105 = vsel %vm1129, %v2393, %v2585
  %v3106 = vsel %vm1129, %v2395, %v2587
  %v3107 = vsel %vm1129, %v2397, %v2589
  %v3108 = vsel %vm1129, %v2399, %v2591
  %v3109 = vsel %vm1129, %v2401, %v2593
  %v3110 = vsel %vm1129, %v2403, %v2595
  %v3111 = vsel %vm1129, %v2405, %v2597
  %v3112 = vsel %vm1129, %v2407, %v2599
  %v3113 = vsel %vm1129, %v2409, %v2601
  %v3114 = vsel %vm1194, %v3050, %v2667
  %v3115 = vsel %vm1194, %v3051, %v2669
  %v3116 = vsel %vm1194, %v3052, %v2671
  %v3117 = vsel %vm1194, %v3053, %v2673
  %v3118 = vsel %vm1194, %v3054, %v2675
  %v3119 = vsel %vm1194, %v3055, %v2677
  %v3120 = vsel %vm1194, %v3056, %v2679
  %v3121 = vsel %vm1194, %v3057, %v2681
  %v3122 = vsel %vm1194, %v3058, %v2683
  %v3123 = vsel %vm1194, %v3059, %v2685
  %v3124 = vsel %vm1194, %v3060, %v2687
  %v3125 = vsel %vm1194, %v3061, %v2689
  %v3126 = vsel %vm1194, %v3062, %v2691
  %v3127 = vsel %vm1194, %v3063, %v2693
  %v3128 = vsel %vm1194, %v3064, %v2695
  %v3129 = vsel %vm1194, %v3065, %v2697
  %v3130 = vsel %vm1194, %v3066, %v2699
  %v3131 = vsel %vm1194, %v3067, %v2701
  %v3132 = vsel %vm1194, %v3068, %v2703
  %v3133 = vsel %vm1194, %v3069, %v2705
  %v3134 = vsel %vm1194, %v3070, %v2707
  %v3135 = vsel %vm1194, %v3071, %v2709
  %v3136 = vsel %vm1194, %v3072, %v2711
  %v3137 = vsel %vm1194, %v3073, %v2713
  %v3138 = vsel %vm1194, %v3074, %v2715
  %v3139 = vsel %vm1194, %v3075, %v2717
  %v3140 = vsel %vm1194, %v3076, %v2719
  %v3141 = vsel %vm1194, %v3077, %v2721
  %v3142 = vsel %vm1194, %v3078, %v2723
  %v3143 = vsel %vm1194, %v3079, %v2725
  %v3144 = vsel %vm1194, %v3080, %v2727
  %v3145 = vsel %vm1194, %v3081, %v2729
  %v3146 = vsel %vm1194, %v3082, %v2731
  %v3147 = vsel %vm1194, %v3083, %v2733
  %v3148 = vsel %vm1194, %v3084, %v2735
  %v3149 = vsel %vm1194, %v3085, %v2737
  %v3150 = vsel %vm1194, %v3086, %v2739
  %v3151 = vsel %vm1194, %v3087, %v2741
  %v3152 = vsel %vm1194, %v3088, %v2743
  %v3153 = vsel %vm1194, %v3089, %v2745
  %v3154 = vsel %vm1194, %v3090, %v2747
  %v3155 = vsel %vm1194, %v3091, %v2749
  %v3156 = vsel %vm1194, %v3092, %v2751
  %v3157 = vsel %vm1194, %v3093, %v2753
  %v3158 = vsel %vm1194, %v3094, %v2755
  %v3159 = vsel %vm1194, %v3095, %v2757
  %v3160 = vsel %vm1194, %v3096, %v2759
  %v3161 = vsel %vm1194, %v3097, %v2761
  %v3162 = vsel %vm1194, %v3098, %v2763
  %v3163 = vsel %vm1194, %v3099, %v2765
  %v3164 = vsel %vm1194, %v3100, %v2767
  %v3165 = vsel %vm1194, %v3101, %v2769
  %v3166 = vsel %vm1194, %v3102, %v2771
  %v3167 = vsel %vm1194, %v3103, %v2773
  %v3168 = vsel %vm1194, %v3104, %v2775
  %v3169 = vsel %vm1194, %v3105, %v2777
  %v3170 = vsel %vm1194, %v3106, %v2779
  %v3171 = vsel %vm1194, %v3107, %v2781
  %v3172 = vsel %vm1194, %v3108, %v2783
  %v3173 = vsel %vm1194, %v3109, %v2785
  %v3174 = vsel %vm1194, %v3110, %v2787
  %v3175 = vsel %vm1194, %v3111, %v2789
  %v3176 = vsel %vm1194, %v3112, %v2791
  %v3177 = vsel %vm1194, %v3113, %v2793
  %v3178 = vsel %vm1259, %v3114, %v2859
  %v3179 = vsel %vm1259, %v3115, %v2861
  %v3180 = vsel %vm1259, %v3116, %v2863
  %v3181 = vsel %vm1259, %v3117, %v2865
  %v3182 = vsel %vm1259, %v3118, %v2867
  %v3183 = vsel %vm1259, %v3119, %v2869
  %v3184 = vsel %vm1259, %v3120, %v2871
  %v3185 = vsel %vm1259, %v3121, %v2873
  %v3186 = vsel %vm1259, %v3122, %v2875
  %v3187 = vsel %vm1259, %v3123, %v2877
  %v3188 = vsel %vm1259, %v3124, %v2879
  %v3189 = vsel %vm1259, %v3125, %v2881
  %v3190 = vsel %vm1259, %v3126, %v2883
  %v3191 = vsel %vm1259, %v3127, %v2885
  %v3192 = vsel %vm1259, %v3128, %v2887
  %v3193 = vsel %vm1259, %v3129, %v2889
  %v3194 = vsel %vm1259, %v3130, %v2891
  %v3195 = vsel %vm1259, %v3131, %v2893
  %v3196 = vsel %vm1259, %v3132, %v2895
  %v3197 = vsel %vm1259, %v3133, %v2897
  %v3198 = vsel %vm1259, %v3134, %v2899
  %v3199 = vsel %vm1259, %v3135, %v2901
  %v3200 = vsel %vm1259, %v3136, %v2903
  %v3201 = vsel %vm1259, %v3137, %v2905
  %v3202 = vsel %vm1259, %v3138, %v2907
  %v3203 = vsel %vm1259, %v3139, %v2909
  %v3204 = vsel %vm1259, %v3140, %v2911
  %v3205 = vsel %vm1259, %v3141, %v2913
  %v3206 = vsel %vm1259, %v3142, %v2915
  %v3207 = vsel %vm1259, %v3143, %v2917
  %v3208 = vsel %vm1259, %v3144, %v2919
  %v3209 = vsel %vm1259, %v3145, %v2921
  %v3210 = vsel %vm1259, %v3146, %v2923
  %v3211 = vsel %vm1259, %v3147, %v2925
  %v3212 = vsel %vm1259, %v3148, %v2927
  %v3213 = vsel %vm1259, %v3149, %v2929
  %v3214 = vsel %vm1259, %v3150, %v2931
  %v3215 = vsel %vm1259, %v3151, %v2933
  %v3216 = vsel %vm1259, %v3152, %v2935
  %v3217 = vsel %vm1259, %v3153, %v2937
  %v3218 = vsel %vm1259, %v3154, %v2939
  %v3219 = vsel %vm1259, %v3155, %v2941
  %v3220 = vsel %vm1259, %v3156, %v2943
  %v3221 = vsel %vm1259, %v3157, %v2945
  %v3222 = vsel %vm1259, %v3158, %v2947
  %v3223 = vsel %vm1259, %v3159, %v2949
  %v3224 = vsel %vm1259, %v3160, %v2951
  %v3225 = vsel %vm1259, %v3161, %v2953
  %v3226 = vsel %vm1259, %v3162, %v2955
  %v3227 = vsel %vm1259, %v3163, %v2957
  %v3228 = vsel %vm1259, %v3164, %v2959
  %v3229 = vsel %vm1259, %v3165, %v2961
  %v3230 = vsel %vm1259, %v3166, %v2963
  %v3231 = vsel %vm1259, %v3167, %v2965
  %v3232 = vsel %vm1259, %v3168, %v2967
  %v3233 = vsel %vm1259, %v3169, %v2969
  %v3234 = vsel %vm1259, %v3170, %v2971
  %v3235 = vsel %vm1259, %v3171, %v2973
  %v3236 = vsel %vm1259, %v3172, %v2975
  %v3237 = vsel %vm1259, %v3173, %v2977
  %v3238 = vsel %vm1259, %v3174, %v2979
  %v3239 = vsel %vm1259, %v3175, %v2981
  %v3240 = vsel %vm1259, %v3176, %v2983
  %v3241 = vsel %vm1259, %v3177, %v2985
  %v3242 = vpack.c.bf16 %v3179, %v3178
  %v3243 = vpack.c.bf16 %v3181, %v3180
  %v3244 = vpack.c.bf16 %v3183, %v3182
  %v3245 = vpack.c.bf16 %v3185, %v3184
  %v3246 = vpack.c.bf16 %v3187, %v3186
  %v3247 = vpack.c.bf16 %v3189, %v3188
  %v3248 = vpack.c.bf16 %v3191, %v3190
  %v3249 = vpack.c.bf16 %v3193, %v3192
  %v3250 = vpack.c.bf16 %v3195, %v3194
  %v3251 = vpack.c.bf16 %v3197, %v3196
  %v3252 = vpack.c.bf16 %v3199, %v3198
  %v3253 = vpack.c.bf16 %v3201, %v3200
  %v3254 = vpack.c.bf16 %v3203, %v3202
  %v3255 = vpack.c.bf16 %v3205, %v3204
  %v3256 = vpack.c.bf16 %v3207, %v3206
  %v3257 = vpack.c.bf16 %v3209, %v3208
  %v3258 = vpack.c.bf16 %v3211, %v3210
  %v3259 = vpack.c.bf16 %v3213, %v3212
  %v3260 = vpack.c.bf16 %v3215, %v3214
  %v3261 = vpack.c.bf16 %v3217, %v3216
  %v3262 = vpack.c.bf16 %v3219, %v3218
  %v3263 = vpack.c.bf16 %v3221, %v3220
  %v3264 = vpack.c.bf16 %v3223, %v3222
  %v3265 = vpack.c.bf16 %v3225, %v3224
  %v3266 = vpack.c.bf16 %v3227, %v3226
  %v3267 = vpack.c.bf16 %v3229, %v3228
  %v3268 = vpack.c.bf16 %v3231, %v3230
  %v3269 = vpack.c.bf16 %v3233, %v3232
  %v3270 = vpack.c.bf16 %v3235, %v3234
  %v3271 = vpack.c.bf16 %v3237, %v3236
  %v3272 = vpack.c.bf16 %v3239, %v3238
  %v3273 = vpack.c.bf16 %v3241, %v3240
  %v3274 = vld [vmem:[%s1] sm:$0xf]
  %v3275 = vld [vmem:[%s1 + $0x4] sm:$0xf]
  %v3276 = vld [vmem:[%s1 + $0x8] sm:$0xf]
  %v3277 = vld [vmem:[%s1 + $0xc] sm:$0xf]
  %v3278 = vld [vmem:[%s1 + $0x10] sm:$0xf]
  %v3279 = vld [vmem:[%s1 + $0x14] sm:$0xf]
  %v3286 = vunpack.c.l.b16 %v3274
  %v3287 = vunpack.c.l.b16 %v3275
  %v3288 = vunpack.c.l.b16 %v3276
  %v3289 = vunpack.c.l.b16 %v3277
  %v3290 = vunpack.c.l.b16 %v3278
  %v3291 = vunpack.c.l.b16 %v3279
  %v3292 = vpack.c.b16 %v3287, %v3286
  %v3293 = vpack.c.b16 %v3289, %v3288
  %v3294 = vpack.c.b16 %v3291, %v3290
  %v3299 = vsel %vm1380, %v3242, 0
  %v3302 = vsel %vm1380, %v3243, 0
  %v3305 = vsel %vm1380, %v3244, 0
  %v3308 = vsel %vm1380, %v3245, 0
  %v3311 = vsel %vm1380, %v3246, 0
  %v3314 = vsel %vm1380, %v3247, 0
  %v3317 = vsel %vm1380, %v3248, 0
  %v3320 = vsel %vm1380, %v3249, 0
  %v3323 = vsel %vm1380, %v3250, 0
  %v3326 = vsel %vm1380, %v3251, 0
  %v3329 = vsel %vm1380, %v3252, 0
  %v3332 = vsel %vm1380, %v3253, 0
  %v3335 = vsel %vm1380, %v3254, 0
  %v3338 = vsel %vm1380, %v3255, 0
  %v3341 = vsel %vm1380, %v3256, 0
  %v3344 = vsel %vm1380, %v3257, 0
  %v3347 = vsel %vm1380, %v3258, 0
  %v3350 = vsel %vm1380, %v3259, 0
  %v3353 = vsel %vm1380, %v3260, 0
  %v3356 = vsel %vm1380, %v3261, 0
  %v3359 = vsel %vm1380, %v3262, 0
  %v3362 = vsel %vm1380, %v3263, 0
  %v3365 = vsel %vm1380, %v3264, 0
  %v3368 = vsel %vm1380, %v3265, 0
  %v3371 = vsel %vm1380, %v3266, 0
  %v3374 = vsel %vm1380, %v3267, 0
  %v3377 = vsel %vm1380, %v3268, 0
  %v3380 = vsel %vm1380, %v3269, 0
  %v3383 = vsel %vm1380, %v3270, 0
  %v3386 = vsel %vm1380, %v3271, 0
  %v3389 = vsel %vm1380, %v3272, 0
  %v3392 = vsel %vm1380, %v3273, 0
  %3394 = vmatprep.subr.bf16.mxu0 0
  %3395 = vmatpush1.bf16.msra.mxu0 0
  %3396 = vmatprep.subr.bf16.mxu0 0
  %3397 = vmatpush1.bf16.msra.mxu0 0
  %3398 = vmatprep.subr.bf16.mxu0 0
  %3399 = vmatpush1.bf16.msra.mxu0 0
  %3400 = vmatprep.subr.bf16.mxu0 0
  %3401 = vmatpush1.bf16.msra.mxu0 0
  %3402 = vmatprep.subr.bf16.mxu0 0
  %3403 = vmatpush1.bf16.msra.mxu0 0
  %3404 = vmatprep.subr.bf16.mxu0 0
  %3405 = vmatpush1.bf16.msra.mxu0 %v3294
  %3406 = vmatprep.subr.bf16.mxu0 0
  %3407 = vmatpush1.bf16.msra.mxu0 %v3293
  %3408 = vmatprep.subr.bf16.mxu0 0
  %3409 = vmatpush1.bf16.msra.mxu0 %v3292
  %3410 = vmatprep.subr.bf16.mxu0 0
  %3411 = vmatpush2.bf16.msra.mxu0 0
  %3412 = vmatprep.subr.bf16.mxu0 0
  %3413 = vmatpush2.bf16.msra.mxu0 0
  %3414 = vmatprep.subr.bf16.mxu0 0
  %3415 = vmatpush2.bf16.msra.mxu0 0
  %3416 = vmatprep.subr.bf16.mxu0 0
  %3417 = vmatpush2.bf16.msra.mxu0 0
  %3418 = vmatprep.subr.bf16.mxu0 0
  %3419 = vmatpush2.bf16.msra.mxu0 0
  %3420 = vmatprep.subr.bf16.mxu0 0
  %3421 = vmatpush2.bf16.msra.mxu0 0
  %3422 = vmatprep.subr.bf16.mxu0 0
  %3423 = vmatpush2.bf16.msra.mxu0 0
  %3424 = vmatprep.subr.bf16.mxu0 0
  %3425 = vmatpush2.bf16.msra.mxu0 0
  %3426 = vmatprep.mubr.bf16.mxu0 0
  %3427 = vmatmul.mubr.bf16.gmra.mxu0 %v3299
  %v3428 = vpop.f32.mrf.mxu0
  %v3429 = vadd.f32 0.0, %v3428
  %v3430 = vpop.f32.mrf.mxu0
  %v3431 = vpop.f32.mrf.mxu0
  %v3432 = vadd.f32 0.0, %v3431
  %v3433 = vpop.f32.mrf.mxu0
  %3434 = vmatprep.mubr.bf16.mxu0 0
  %3435 = vmatmul.mubr.bf16.gmra.mxu0 %v3302
  %v3436 = vpop.f32.mrf.mxu0
  %v3437 = vadd.f32 0.0, %v3436
  %v3438 = vpop.f32.mrf.mxu0
  %v3439 = vpop.f32.mrf.mxu0
  %v3440 = vadd.f32 0.0, %v3439
  %v3441 = vpop.f32.mrf.mxu0
  %3442 = vmatprep.mubr.bf16.mxu0 0
  %3443 = vmatmul.mubr.bf16.gmra.mxu0 %v3305
  %v3444 = vpop.f32.mrf.mxu0
  %v3445 = vadd.f32 0.0, %v3444
  %v3446 = vpop.f32.mrf.mxu0
  %v3447 = vpop.f32.mrf.mxu0
  %v3448 = vadd.f32 0.0, %v3447
  %v3449 = vpop.f32.mrf.mxu0
  %3450 = vmatprep.mubr.bf16.mxu0 0
  %3451 = vmatmul.mubr.bf16.gmra.mxu0 %v3308
  %v3452 = vpop.f32.mrf.mxu0
  %v3453 = vadd.f32 0.0, %v3452
  %v3454 = vpop.f32.mrf.mxu0
  %v3455 = vpop.f32.mrf.mxu0
  %v3456 = vadd.f32 0.0, %v3455
  %v3457 = vpop.f32.mrf.mxu0
  %3458 = vmatprep.mubr.bf16.mxu0 0
  %3459 = vmatmul.mubr.bf16.gmra.mxu0 %v3311
  %v3460 = vpop.f32.mrf.mxu0
  %v3461 = vadd.f32 0.0, %v3460
  %v3462 = vpop.f32.mrf.mxu0
  %v3463 = vpop.f32.mrf.mxu0
  %v3464 = vadd.f32 0.0, %v3463
  %v3465 = vpop.f32.mrf.mxu0
  %3466 = vmatprep.mubr.bf16.mxu0 0
  %3467 = vmatmul.mubr.bf16.gmra.mxu0 %v3314
  %v3468 = vpop.f32.mrf.mxu0
  %v3469 = vadd.f32 0.0, %v3468
  %v3470 = vpop.f32.mrf.mxu0
  %v3471 = vpop.f32.mrf.mxu0
  %v3472 = vadd.f32 0.0, %v3471
  %v3473 = vpop.f32.mrf.mxu0
  %3474 = vmatprep.mubr.bf16.mxu0 0
  %3475 = vmatmul.mubr.bf16.gmra.mxu0 %v3317
  %v3476 = vpop.f32.mrf.mxu0
  %v3477 = vadd.f32 0.0, %v3476
  %v3478 = vpop.f32.mrf.mxu0
  %v3479 = vpop.f32.mrf.mxu0
  %v3480 = vadd.f32 0.0, %v3479
  %v3481 = vpop.f32.mrf.mxu0
  %3482 = vmatprep.mubr.bf16.mxu0 0
  %3483 = vmatmul.mubr.bf16.gmra.mxu0 %v3320
  %v3484 = vpop.f32.mrf.mxu0
  %v3485 = vadd.f32 0.0, %v3484
  %v3486 = vpop.f32.mrf.mxu0
  %v3487 = vpop.f32.mrf.mxu0
  %v3488 = vadd.f32 0.0, %v3487
  %v3489 = vpop.f32.mrf.mxu0
  %3490 = vmatprep.mubr.bf16.mxu0 0
  %3491 = vmatmul.mubr.bf16.gmra.mxu0 %v3323
  %v3492 = vpop.f32.mrf.mxu0
  %v3493 = vadd.f32 0.0, %v3492
  %v3494 = vpop.f32.mrf.mxu0
  %v3495 = vpop.f32.mrf.mxu0
  %v3496 = vadd.f32 0.0, %v3495
  %v3497 = vpop.f32.mrf.mxu0
  %3498 = vmatprep.mubr.bf16.mxu0 0
  %3499 = vmatmul.mubr.bf16.gmra.mxu0 %v3326
  %v3500 = vpop.f32.mrf.mxu0
  %v3501 = vadd.f32 0.0, %v3500
  %v3502 = vpop.f32.mrf.mxu0
  %v3503 = vpop.f32.mrf.mxu0
  %v3504 = vadd.f32 0.0, %v3503
  %v3505 = vpop.f32.mrf.mxu0
  %3506 = vmatprep.mubr.bf16.mxu0 0
  %3507 = vmatmul.mubr.bf16.gmra.mxu0 %v3329
  %v3508 = vpop.f32.mrf.mxu0
  %v3509 = vadd.f32 0.0, %v3508
  %v3510 = vpop.f32.mrf.mxu0
  %v3511 = vpop.f32.mrf.mxu0
  %v3512 = vadd.f32 0.0, %v3511
  %v3513 = vpop.f32.mrf.mxu0
  %3514 = vmatprep.mubr.bf16.mxu0 0
  %3515 = vmatmul.mubr.bf16.gmra.mxu0 %v3332
  %v3516 = vpop.f32.mrf.mxu0
  %v3517 = vadd.f32 0.0, %v3516
  %v3518 = vpop.f32.mrf.mxu0
  %v3519 = vpop.f32.mrf.mxu0
  %v3520 = vadd.f32 0.0, %v3519
  %v3521 = vpop.f32.mrf.mxu0
  %3522 = vmatprep.mubr.bf16.mxu0 0
  %3523 = vmatmul.mubr.bf16.gmra.mxu0 %v3335
  %v3524 = vpop.f32.mrf.mxu0
  %v3525 = vadd.f32 0.0, %v3524
  %v3526 = vpop.f32.mrf.mxu0
  %v3527 = vpop.f32.mrf.mxu0
  %v3528 = vadd.f32 0.0, %v3527
  %v3529 = vpop.f32.mrf.mxu0
  %3530 = vmatprep.mubr.bf16.mxu0 0
  %3531 = vmatmul.mubr.bf16.gmra.mxu0 %v3338
  %v3532 = vpop.f32.mrf.mxu0
  %v3533 = vadd.f32 0.0, %v3532
  %v3534 = vpop.f32.mrf.mxu0
  %v3535 = vpop.f32.mrf.mxu0
  %v3536 = vadd.f32 0.0, %v3535
  %v3537 = vpop.f32.mrf.mxu0
  %3538 = vmatprep.mubr.bf16.mxu0 0
  %3539 = vmatmul.mubr.bf16.gmra.mxu0 %v3341
  %v3540 = vpop.f32.mrf.mxu0
  %v3541 = vadd.f32 0.0, %v3540
  %v3542 = vpop.f32.mrf.mxu0
  %v3543 = vpop.f32.mrf.mxu0
  %v3544 = vadd.f32 0.0, %v3543
  %v3545 = vpop.f32.mrf.mxu0
  %3546 = vmatprep.mubr.bf16.mxu0 0
  %3547 = vmatmul.mubr.bf16.gmra.mxu0 %v3344
  %v3548 = vpop.f32.mrf.mxu0
  %v3549 = vadd.f32 0.0, %v3548
  %v3550 = vpop.f32.mrf.mxu0
  %v3551 = vpop.f32.mrf.mxu0
  %v3552 = vadd.f32 0.0, %v3551
  %v3553 = vpop.f32.mrf.mxu0
  %3554 = vmatprep.mubr.bf16.mxu0 0
  %3555 = vmatmul.mubr.bf16.gmra.mxu0 %v3347
  %v3556 = vpop.f32.mrf.mxu0
  %v3557 = vadd.f32 0.0, %v3556
  %v3558 = vpop.f32.mrf.mxu0
  %v3559 = vpop.f32.mrf.mxu0
  %v3560 = vadd.f32 0.0, %v3559
  %v3561 = vpop.f32.mrf.mxu0
  %3562 = vmatprep.mubr.bf16.mxu0 0
  %3563 = vmatmul.mubr.bf16.gmra.mxu0 %v3350
  %v3564 = vpop.f32.mrf.mxu0
  %v3565 = vadd.f32 0.0, %v3564
  %v3566 = vpop.f32.mrf.mxu0
  %v3567 = vpop.f32.mrf.mxu0
  %v3568 = vadd.f32 0.0, %v3567
  %v3569 = vpop.f32.mrf.mxu0
  %3570 = vmatprep.mubr.bf16.mxu0 0
  %3571 = vmatmul.mubr.bf16.gmra.mxu0 %v3353
  %v3572 = vpop.f32.mrf.mxu0
  %v3573 = vadd.f32 0.0, %v3572
  %v3574 = vpop.f32.mrf.mxu0
  %v3575 = vpop.f32.mrf.mxu0
  %v3576 = vadd.f32 0.0, %v3575
  %v3577 = vpop.f32.mrf.mxu0
  %3578 = vmatprep.mubr.bf16.mxu0 0
  %3579 = vmatmul.mubr.bf16.gmra.mxu0 %v3356
  %v3580 = vpop.f32.mrf.mxu0
  %v3581 = vadd.f32 0.0, %v3580
  %v3582 = vpop.f32.mrf.mxu0
  %v3583 = vpop.f32.mrf.mxu0
  %v3584 = vadd.f32 0.0, %v3583
  %v3585 = vpop.f32.mrf.mxu0
  %3586 = vmatprep.mubr.bf16.mxu0 0
  %3587 = vmatmul.mubr.bf16.gmra.mxu0 %v3359
  %v3588 = vpop.f32.mrf.mxu0
  %v3589 = vadd.f32 0.0, %v3588
  %v3590 = vpop.f32.mrf.mxu0
  %v3591 = vpop.f32.mrf.mxu0
  %v3592 = vadd.f32 0.0, %v3591
  %v3593 = vpop.f32.mrf.mxu0
  %3594 = vmatprep.mubr.bf16.mxu0 0
  %3595 = vmatmul.mubr.bf16.gmra.mxu0 %v3362
  %v3596 = vpop.f32.mrf.mxu0
  %v3597 = vadd.f32 0.0, %v3596
  %v3598 = vpop.f32.mrf.mxu0
  %v3599 = vpop.f32.mrf.mxu0
  %v3600 = vadd.f32 0.0, %v3599
  %v3601 = vpop.f32.mrf.mxu0
  %3602 = vmatprep.mubr.bf16.mxu0 0
  %3603 = vmatmul.mubr.bf16.gmra.mxu0 %v3365
  %v3604 = vpop.f32.mrf.mxu0
  %v3605 = vadd.f32 0.0, %v3604
  %v3606 = vpop.f32.mrf.mxu0
  %v3607 = vpop.f32.mrf.mxu0
  %v3608 = vadd.f32 0.0, %v3607
  %v3609 = vpop.f32.mrf.mxu0
  %3610 = vmatprep.mubr.bf16.mxu0 0
  %3611 = vmatmul.mubr.bf16.gmra.mxu0 %v3368
  %v3612 = vpop.f32.mrf.mxu0
  %v3613 = vadd.f32 0.0, %v3612
  %v3614 = vpop.f32.mrf.mxu0
  %v3615 = vpop.f32.mrf.mxu0
  %v3616 = vadd.f32 0.0, %v3615
  %v3617 = vpop.f32.mrf.mxu0
  %3618 = vmatprep.mubr.bf16.mxu0 0
  %3619 = vmatmul.mubr.bf16.gmra.mxu0 %v3371
  %v3620 = vpop.f32.mrf.mxu0
  %v3621 = vadd.f32 0.0, %v3620
  %v3622 = vpop.f32.mrf.mxu0
  %v3623 = vpop.f32.mrf.mxu0
  %v3624 = vadd.f32 0.0, %v3623
  %v3625 = vpop.f32.mrf.mxu0
  %3626 = vmatprep.mubr.bf16.mxu0 0
  %3627 = vmatmul.mubr.bf16.gmra.mxu0 %v3374
  %v3628 = vpop.f32.mrf.mxu0
  %v3629 = vadd.f32 0.0, %v3628
  %v3630 = vpop.f32.mrf.mxu0
  %v3631 = vpop.f32.mrf.mxu0
  %v3632 = vadd.f32 0.0, %v3631
  %v3633 = vpop.f32.mrf.mxu0
  %3634 = vmatprep.mubr.bf16.mxu0 0
  %3635 = vmatmul.mubr.bf16.gmra.mxu0 %v3377
  %v3636 = vpop.f32.mrf.mxu0
  %v3637 = vadd.f32 0.0, %v3636
  %v3638 = vpop.f32.mrf.mxu0
  %v3639 = vpop.f32.mrf.mxu0
  %v3640 = vadd.f32 0.0, %v3639
  %v3641 = vpop.f32.mrf.mxu0
  %3642 = vmatprep.mubr.bf16.mxu0 0
  %3643 = vmatmul.mubr.bf16.gmra.mxu0 %v3380
  %v3644 = vpop.f32.mrf.mxu0
  %v3645 = vadd.f32 0.0, %v3644
  %v3646 = vpop.f32.mrf.mxu0
  %v3647 = vpop.f32.mrf.mxu0
  %v3648 = vadd.f32 0.0, %v3647
  %v3649 = vpop.f32.mrf.mxu0
  %3650 = vmatprep.mubr.bf16.mxu0 0
  %3651 = vmatmul.mubr.bf16.gmra.mxu0 %v3383
  %v3652 = vpop.f32.mrf.mxu0
  %v3653 = vadd.f32 0.0, %v3652
  %v3654 = vpop.f32.mrf.mxu0
  %v3655 = vpop.f32.mrf.mxu0
  %v3656 = vadd.f32 0.0, %v3655
  %v3657 = vpop.f32.mrf.mxu0
  %3658 = vmatprep.mubr.bf16.mxu0 0
  %3659 = vmatmul.mubr.bf16.gmra.mxu0 %v3386
  %v3660 = vpop.f32.mrf.mxu0
  %v3661 = vadd.f32 0.0, %v3660
  %v3662 = vpop.f32.mrf.mxu0
  %v3663 = vpop.f32.mrf.mxu0
  %v3664 = vadd.f32 0.0, %v3663
  %v3665 = vpop.f32.mrf.mxu0
  %3666 = vmatprep.mubr.bf16.mxu0 0
  %3667 = vmatmul.mubr.bf16.gmra.mxu0 %v3389
  %v3668 = vpop.f32.mrf.mxu0
  %v3669 = vadd.f32 0.0, %v3668
  %v3670 = vpop.f32.mrf.mxu0
  %v3671 = vpop.f32.mrf.mxu0
  %v3672 = vadd.f32 0.0, %v3671
  %v3673 = vpop.f32.mrf.mxu0
  %3674 = vmatprep.mubr.bf16.mxu0 0
  %3675 = vmatmul.mubr.bf16.gmra.mxu0 %v3392
  %v3676 = vpop.f32.mrf.mxu0
  %v3677 = vadd.f32 0.0, %v3676
  %v3678 = vpop.f32.mrf.mxu0
  %v3679 = vpop.f32.mrf.mxu0
  %v3680 = vadd.f32 0.0, %v3679
  %v3681 = vpop.f32.mrf.mxu0
  %3682 = vdwg.mxu0
  %vm3683 = vcmp.gt.f32.partialorder %v3429, 0.0
  %vm3684 = vcmp.gt.f32.partialorder %v3432, 0.0
  %vm3685 = vcmp.gt.f32.partialorder %v3437, 0.0
  %vm3686 = vcmp.gt.f32.partialorder %v3440, 0.0
  %vm3687 = vcmp.gt.f32.partialorder %v3445, 0.0
  %vm3688 = vcmp.gt.f32.partialorder %v3448, 0.0
  %vm3689 = vcmp.gt.f32.partialorder %v3453, 0.0
  %vm3690 = vcmp.gt.f32.partialorder %v3456, 0.0
  %vm3691 = vcmp.gt.f32.partialorder %v3461, 0.0
  %vm3692 = vcmp.gt.f32.partialorder %v3464, 0.0
  %vm3693 = vcmp.gt.f32.partialorder %v3469, 0.0
  %vm3694 = vcmp.gt.f32.partialorder %v3472, 0.0
  %vm3695 = vcmp.gt.f32.partialorder %v3477, 0.0
  %vm3696 = vcmp.gt.f32.partialorder %v3480, 0.0
  %vm3697 = vcmp.gt.f32.partialorder %v3485, 0.0
  %vm3698 = vcmp.gt.f32.partialorder %v3488, 0.0
  %vm3699 = vcmp.gt.f32.partialorder %v3493, 0.0
  %vm3700 = vcmp.gt.f32.partialorder %v3496, 0.0
  %vm3701 = vcmp.gt.f32.partialorder %v3501, 0.0
  %vm3702 = vcmp.gt.f32.partialorder %v3504, 0.0
  %vm3703 = vcmp.gt.f32.partialorder %v3509, 0.0
  %vm3704 = vcmp.gt.f32.partialorder %v3512, 0.0
  %vm3705 = vcmp.gt.f32.partialorder %v3517, 0.0
  %vm3706 = vcmp.gt.f32.partialorder %v3520, 0.0
  %vm3707 = vcmp.gt.f32.partialorder %v3525, 0.0
  %vm3708 = vcmp.gt.f32.partialorder %v3528, 0.0
  %vm3709 = vcmp.gt.f32.partialorder %v3533, 0.0
  %vm3710 = vcmp.gt.f32.partialorder %v3536, 0.0
  %vm3711 = vcmp.gt.f32.partialorder %v3541, 0.0
  %vm3712 = vcmp.gt.f32.partialorder %v3544, 0.0
  %vm3713 = vcmp.gt.f32.partialorder %v3549, 0.0
  %vm3714 = vcmp.gt.f32.partialorder %v3552, 0.0
  %vm3715 = vcmp.gt.f32.partialorder %v3557, 0.0
  %vm3716 = vcmp.gt.f32.partialorder %v3560, 0.0
  %vm3717 = vcmp.gt.f32.partialorder %v3565, 0.0
  %vm3718 = vcmp.gt.f32.partialorder %v3568, 0.0
  %vm3719 = vcmp.gt.f32.partialorder %v3573, 0.0
  %vm3720 = vcmp.gt.f32.partialorder %v3576, 0.0
  %vm3721 = vcmp.gt.f32.partialorder %v3581, 0.0
  %vm3722 = vcmp.gt.f32.partialorder %v3584, 0.0
  %vm3723 = vcmp.gt.f32.partialorder %v3589, 0.0
  %vm3724 = vcmp.gt.f32.partialorder %v3592, 0.0
  %vm3725 = vcmp.gt.f32.partialorder %v3597, 0.0
  %vm3726 = vcmp.gt.f32.partialorder %v3600, 0.0
  %vm3727 = vcmp.gt.f32.partialorder %v3605, 0.0
  %vm3728 = vcmp.gt.f32.partialorder %v3608, 0.0
  %vm3729 = vcmp.gt.f32.partialorder %v3613, 0.0
  %vm3730 = vcmp.gt.f32.partialorder %v3616, 0.0
  %vm3731 = vcmp.gt.f32.partialorder %v3621, 0.0
  %vm3732 = vcmp.gt.f32.partialorder %v3624, 0.0
  %vm3733 = vcmp.gt.f32.partialorder %v3629, 0.0
  %vm3734 = vcmp.gt.f32.partialorder %v3632, 0.0
  %vm3735 = vcmp.gt.f32.partialorder %v3637, 0.0
  %vm3736 = vcmp.gt.f32.partialorder %v3640, 0.0
  %vm3737 = vcmp.gt.f32.partialorder %v3645, 0.0
  %vm3738 = vcmp.gt.f32.partialorder %v3648, 0.0
  %vm3739 = vcmp.gt.f32.partialorder %v3653, 0.0
  %vm3740 = vcmp.gt.f32.partialorder %v3656, 0.0
  %vm3741 = vcmp.gt.f32.partialorder %v3661, 0.0
  %vm3742 = vcmp.gt.f32.partialorder %v3664, 0.0
  %vm3743 = vcmp.gt.f32.partialorder %v3669, 0.0
  %vm3744 = vcmp.gt.f32.partialorder %v3672, 0.0
  %vm3745 = vcmp.gt.f32.partialorder %v3677, 0.0
  %vm3746 = vcmp.gt.f32.partialorder %v3680, 0.0
  %v3747 = vmul.f32 %v3429, 0.2
  %v3748 = vmul.f32 %v3432, 0.2
  %v3749 = vmul.f32 %v3437, 0.2
  %v3750 = vmul.f32 %v3440, 0.2
  %v3751 = vmul.f32 %v3445, 0.2
  %v3752 = vmul.f32 %v3448, 0.2
  %v3753 = vmul.f32 %v3453, 0.2
  %v3754 = vmul.f32 %v3456, 0.2
  %v3755 = vmul.f32 %v3461, 0.2
  %v3756 = vmul.f32 %v3464, 0.2
  %v3757 = vmul.f32 %v3469, 0.2
  %v3758 = vmul.f32 %v3472, 0.2
  %v3759 = vmul.f32 %v3477, 0.2
  %v3760 = vmul.f32 %v3480, 0.2
  %v3761 = vmul.f32 %v3485, 0.2
  %v3762 = vmul.f32 %v3488, 0.2
  %v3763 = vmul.f32 %v3493, 0.2
  %v3764 = vmul.f32 %v3496, 0.2
  %v3765 = vmul.f32 %v3501, 0.2
  %v3766 = vmul.f32 %v3504, 0.2
  %v3767 = vmul.f32 %v3509, 0.2
  %v3768 = vmul.f32 %v3512, 0.2
  %v3769 = vmul.f32 %v3517, 0.2
  %v3770 = vmul.f32 %v3520, 0.2
  %v3771 = vmul.f32 %v3525, 0.2
  %v3772 = vmul.f32 %v3528, 0.2
  %v3773 = vmul.f32 %v3533, 0.2
  %v3774 = vmul.f32 %v3536, 0.2
  %v3775 = vmul.f32 %v3541, 0.2
  %v3776 = vmul.f32 %v3544, 0.2
  %v3777 = vmul.f32 %v3549, 0.2
  %v3778 = vmul.f32 %v3552, 0.2
  %v3779 = vmul.f32 %v3557, 0.2
  %v3780 = vmul.f32 %v3560, 0.2
  %v3781 = vmul.f32 %v3565, 0.2
  %v3782 = vmul.f32 %v3568, 0.2
  %v3783 = vmul.f32 %v3573, 0.2
  %v3784 = vmul.f32 %v3576, 0.2
  %v3785 = vmul.f32 %v3581, 0.2
  %v3786 = vmul.f32 %v3584, 0.2
  %v3787 = vmul.f32 %v3589, 0.2
  %v3788 = vmul.f32 %v3592, 0.2
  %v3789 = vmul.f32 %v3597, 0.2
  %v3790 = vmul.f32 %v3600, 0.2
  %v3791 = vmul.f32 %v3605, 0.2
  %v3792 = vmul.f32 %v3608, 0.2
  %v3793 = vmul.f32 %v3613, 0.2
  %v3794 = vmul.f32 %v3616, 0.2
  %v3795 = vmul.f32 %v3621, 0.2
  %v3796 = vmul.f32 %v3624, 0.2
  %v3797 = vmul.f32 %v3629, 0.2
  %v3798 = vmul.f32 %v3632, 0.2
  %v3799 = vmul.f32 %v3637, 0.2
  %v3800 = vmul.f32 %v3640, 0.2
  %v3801 = vmul.f32 %v3645, 0.2
  %v3802 = vmul.f32 %v3648, 0.2
  %v3803 = vmul.f32 %v3653, 0.2
  %v3804 = vmul.f32 %v3656, 0.2
  %v3805 = vmul.f32 %v3661, 0.2
  %v3806 = vmul.f32 %v3664, 0.2
  %v3807 = vmul.f32 %v3669, 0.2
  %v3808 = vmul.f32 %v3672, 0.2
  %v3809 = vmul.f32 %v3677, 0.2
  %v3810 = vmul.f32 %v3680, 0.2
  %v3811 = vsel %vm3683, %v3429, %v3747
  %v3812 = vsel %vm3684, %v3432, %v3748
  %v3813 = vsel %vm3685, %v3437, %v3749
  %v3814 = vsel %vm3686, %v3440, %v3750
  %v3815 = vsel %vm3687, %v3445, %v3751
  %v3816 = vsel %vm3688, %v3448, %v3752
  %v3817 = vsel %vm3689, %v3453, %v3753
  %v3818 = vsel %vm3690, %v3456, %v3754
  %v3819 = vsel %vm3691, %v3461, %v3755
  %v3820 = vsel %vm3692, %v3464, %v3756
  %v3821 = vsel %vm3693, %v3469, %v3757
  %v3822 = vsel %vm3694, %v3472, %v3758
  %v3823 = vsel %vm3695, %v3477, %v3759
  %v3824 = vsel %vm3696, %v3480, %v3760
  %v3825 = vsel %vm3697, %v3485, %v3761
  %v3826 = vsel %vm3698, %v3488, %v3762
  %v3827 = vsel %vm3699, %v3493, %v3763
  %v3828 = vsel %vm3700, %v3496, %v3764
  %v3829 = vsel %vm3701, %v3501, %v3765
  %v3830 = vsel %vm3702, %v3504, %v3766
  %v3831 = vsel %vm3703, %v3509, %v3767
  %v3832 = vsel %vm3704, %v3512, %v3768
  %v3833 = vsel %vm3705, %v3517, %v3769
  %v3834 = vsel %vm3706, %v3520, %v3770
  %v3835 = vsel %vm3707, %v3525, %v3771
  %v3836 = vsel %vm3708, %v3528, %v3772
  %v3837 = vsel %vm3709, %v3533, %v3773
  %v3838 = vsel %vm3710, %v3536, %v3774
  %v3839 = vsel %vm3711, %v3541, %v3775
  %v3840 = vsel %vm3712, %v3544, %v3776
  %v3841 = vsel %vm3713, %v3549, %v3777
  %v3842 = vsel %vm3714, %v3552, %v3778
  %v3843 = vsel %vm3715, %v3557, %v3779
  %v3844 = vsel %vm3716, %v3560, %v3780
  %v3845 = vsel %vm3717, %v3565, %v3781
  %v3846 = vsel %vm3718, %v3568, %v3782
  %v3847 = vsel %vm3719, %v3573, %v3783
  %v3848 = vsel %vm3720, %v3576, %v3784
  %v3849 = vsel %vm3721, %v3581, %v3785
  %v3850 = vsel %vm3722, %v3584, %v3786
  %v3851 = vsel %vm3723, %v3589, %v3787
  %v3852 = vsel %vm3724, %v3592, %v3788
  %v3853 = vsel %vm3725, %v3597, %v3789
  %v3854 = vsel %vm3726, %v3600, %v3790
  %v3855 = vsel %vm3727, %v3605, %v3791
  %v3856 = vsel %vm3728, %v3608, %v3792
  %v3857 = vsel %vm3729, %v3613, %v3793
  %v3858 = vsel %vm3730, %v3616, %v3794
  %v3859 = vsel %vm3731, %v3621, %v3795
  %v3860 = vsel %vm3732, %v3624, %v3796
  %v3861 = vsel %vm3733, %v3629, %v3797
  %v3862 = vsel %vm3734, %v3632, %v3798
  %v3863 = vsel %vm3735, %v3637, %v3799
  %v3864 = vsel %vm3736, %v3640, %v3800
  %v3865 = vsel %vm3737, %v3645, %v3801
  %v3866 = vsel %vm3738, %v3648, %v3802
  %v3867 = vsel %vm3739, %v3653, %v3803
  %v3868 = vsel %vm3740, %v3656, %v3804
  %v3869 = vsel %vm3741, %v3661, %v3805
  %v3870 = vsel %vm3742, %v3664, %v3806
  %v3871 = vsel %vm3743, %v3669, %v3807
  %v3872 = vsel %vm3744, %v3672, %v3808
  %v3873 = vsel %vm3745, %v3677, %v3809
  %v3874 = vsel %vm3746, %v3680, %v3810
  %3939 = vrot.lane.b32.xlu0 %v3811, 16
  %v3940 = vpop.permute.xlu0 %3939
  %3941 = vrot.lane.b32.xlu0 %v3812, 16
  %v3942 = vpop.permute.xlu0 %3941
  %3943 = vrot.lane.b32.xlu0 %v3813, 16
  %v3944 = vpop.permute.xlu0 %3943
  %3945 = vrot.lane.b32.xlu0 %v3814, 16
  %v3946 = vpop.permute.xlu0 %3945
  %3947 = vrot.lane.b32.xlu0 %v3815, 16
  %v3948 = vpop.permute.xlu0 %3947
  %3949 = vrot.lane.b32.xlu0 %v3816, 16
  %v3950 = vpop.permute.xlu0 %3949
  %3951 = vrot.lane.b32.xlu0 %v3817, 16
  %v3952 = vpop.permute.xlu0 %3951
  %3953 = vrot.lane.b32.xlu0 %v3818, 16
  %v3954 = vpop.permute.xlu0 %3953
  %3955 = vrot.lane.b32.xlu0 %v3819, 16
  %v3956 = vpop.permute.xlu0 %3955
  %3957 = vrot.lane.b32.xlu0 %v3820, 16
  %v3958 = vpop.permute.xlu0 %3957
  %3959 = vrot.lane.b32.xlu0 %v3821, 16
  %v3960 = vpop.permute.xlu0 %3959
  %3961 = vrot.lane.b32.xlu0 %v3822, 16
  %v3962 = vpop.permute.xlu0 %3961
  %3963 = vrot.lane.b32.xlu0 %v3823, 16
  %v3964 = vpop.permute.xlu0 %3963
  %3965 = vrot.lane.b32.xlu0 %v3824, 16
  %v3966 = vpop.permute.xlu0 %3965
  %3967 = vrot.lane.b32.xlu0 %v3825, 16
  %v3968 = vpop.permute.xlu0 %3967
  %3969 = vrot.lane.b32.xlu0 %v3826, 16
  %v3970 = vpop.permute.xlu0 %3969
  %3971 = vrot.lane.b32.xlu0 %v3827, 16
  %v3972 = vpop.permute.xlu0 %3971
  %3973 = vrot.lane.b32.xlu0 %v3828, 16
  %v3974 = vpop.permute.xlu0 %3973
  %3975 = vrot.lane.b32.xlu0 %v3829, 16
  %v3976 = vpop.permute.xlu0 %3975
  %3977 = vrot.lane.b32.xlu0 %v3830, 16
  %v3978 = vpop.permute.xlu0 %3977
  %3979 = vrot.lane.b32.xlu0 %v3831, 16
  %v3980 = vpop.permute.xlu0 %3979
  %3981 = vrot.lane.b32.xlu0 %v3832, 16
  %v3982 = vpop.permute.xlu0 %3981
  %3983 = vrot.lane.b32.xlu0 %v3833, 16
  %v3984 = vpop.permute.xlu0 %3983
  %3985 = vrot.lane.b32.xlu0 %v3834, 16
  %v3986 = vpop.permute.xlu0 %3985
  %3987 = vrot.lane.b32.xlu0 %v3835, 16
  %v3988 = vpop.permute.xlu0 %3987
  %3989 = vrot.lane.b32.xlu0 %v3836, 16
  %v3990 = vpop.permute.xlu0 %3989
  %3991 = vrot.lane.b32.xlu0 %v3837, 16
  %v3992 = vpop.permute.xlu0 %3991
  %3993 = vrot.lane.b32.xlu0 %v3838, 16
  %v3994 = vpop.permute.xlu0 %3993
  %3995 = vrot.lane.b32.xlu0 %v3839, 16
  %v3996 = vpop.permute.xlu0 %3995
  %3997 = vrot.lane.b32.xlu0 %v3840, 16
  %v3998 = vpop.permute.xlu0 %3997
  %3999 = vrot.lane.b32.xlu0 %v3841, 16
  %v4000 = vpop.permute.xlu0 %3999
  %4001 = vrot.lane.b32.xlu0 %v3842, 16
  %v4002 = vpop.permute.xlu0 %4001
  %4003 = vrot.lane.b32.xlu0 %v3843, 16
  %v4004 = vpop.permute.xlu0 %4003
  %4005 = vrot.lane.b32.xlu0 %v3844, 16
  %v4006 = vpop.permute.xlu0 %4005
  %4007 = vrot.lane.b32.xlu0 %v3845, 16
  %v4008 = vpop.permute.xlu0 %4007
  %4009 = vrot.lane.b32.xlu0 %v3846, 16
  %v4010 = vpop.permute.xlu0 %4009
  %4011 = vrot.lane.b32.xlu0 %v3847, 16
  %v4012 = vpop.permute.xlu0 %4011
  %4013 = vrot.lane.b32.xlu0 %v3848, 16
  %v4014 = vpop.permute.xlu0 %4013
  %4015 = vrot.lane.b32.xlu0 %v3849, 16
  %v4016 = vpop.permute.xlu0 %4015
  %4017 = vrot.lane.b32.xlu0 %v3850, 16
  %v4018 = vpop.permute.xlu0 %4017
  %4019 = vrot.lane.b32.xlu0 %v3851, 16
  %v4020 = vpop.permute.xlu0 %4019
  %4021 = vrot.lane.b32.xlu0 %v3852, 16
  %v4022 = vpop.permute.xlu0 %4021
  %4023 = vrot.lane.b32.xlu0 %v3853, 16
  %v4024 = vpop.permute.xlu0 %4023
  %4025 = vrot.lane.b32.xlu0 %v3854, 16
  %v4026 = vpop.permute.xlu0 %4025
  %4027 = vrot.lane.b32.xlu0 %v3855, 16
  %v4028 = vpop.permute.xlu0 %4027
  %4029 = vrot.lane.b32.xlu0 %v3856, 16
  %v4030 = vpop.permute.xlu0 %4029
  %4031 = vrot.lane.b32.xlu0 %v3857, 16
  %v4032 = vpop.permute.xlu0 %4031
  %4033 = vrot.lane.b32.xlu0 %v3858, 16
  %v4034 = vpop.permute.xlu0 %4033
  %4035 = vrot.lane.b32.xlu0 %v3859, 16
  %v4036 = vpop.permute.xlu0 %4035
  %4037 = vrot.lane.b32.xlu0 %v3860, 16
  %v4038 = vpop.permute.xlu0 %4037
  %4039 = vrot.lane.b32.xlu0 %v3861, 16
  %v4040 = vpop.permute.xlu0 %4039
  %4041 = vrot.lane.b32.xlu0 %v3862, 16
  %v4042 = vpop.permute.xlu0 %4041
  %4043 = vrot.lane.b32.xlu0 %v3863, 16
  %v4044 = vpop.permute.xlu0 %4043
  %4045 = vrot.lane.b32.xlu0 %v3864, 16
  %v4046 = vpop.permute.xlu0 %4045
  %4047 = vrot.lane.b32.xlu0 %v3865, 16
  %v4048 = vpop.permute.xlu0 %4047
  %4049 = vrot.lane.b32.xlu0 %v3866, 16
  %v4050 = vpop.permute.xlu0 %4049
  %4051 = vrot.lane.b32.xlu0 %v3867, 16
  %v4052 = vpop.permute.xlu0 %4051
  %4053 = vrot.lane.b32.xlu0 %v3868, 16
  %v4054 = vpop.permute.xlu0 %4053
  %4055 = vrot.lane.b32.xlu0 %v3869, 16
  %v4056 = vpop.permute.xlu0 %4055
  %4057 = vrot.lane.b32.xlu0 %v3870, 16
  %v4058 = vpop.permute.xlu0 %4057
  %4059 = vrot.lane.b32.xlu0 %v3871, 16
  %v4060 = vpop.permute.xlu0 %4059
  %4061 = vrot.lane.b32.xlu0 %v3872, 16
  %v4062 = vpop.permute.xlu0 %4061
  %4063 = vrot.lane.b32.xlu0 %v3873, 16
  %v4064 = vpop.permute.xlu0 %4063
  %4065 = vrot.lane.b32.xlu0 %v3874, 16
  %v4066 = vpop.permute.xlu0 %4065
  %vm4131 = vcmask 195712
  %4132 = vst.msk [vmem:[%s2214] sm:$0xff] %vm4131, %v3940
  %4133 = vst.msk [vmem:[%s2214 + $0x10] sm:$0xff] %vm4131, %v3942
  %4134 = vst.msk [vmem:[%s2214 + $0x20] sm:$0xff] %vm4131, %v3944
  %4135 = vst.msk [vmem:[%s2214 + $0x30] sm:$0xff] %vm4131, %v3946
  %4136 = vst.msk [vmem:[%s2214 + $0x40] sm:$0xff] %vm4131, %v3948
  %4137 = vst.msk [vmem:[%s2214 + $0x50] sm:$0xff] %vm4131, %v3950
  %4138 = vst.msk [vmem:[%s2214 + $0x60] sm:$0xff] %vm4131, %v3952
  %4139 = vst.msk [vmem:[%s2214 + $0x70] sm:$0xff] %vm4131, %v3954
  %4140 = vst.msk [vmem:[%s2214 + $0x80] sm:$0xff] %vm4131, %v3956
  %4141 = vst.msk [vmem:[%s2214 + $0x90] sm:$0xff] %vm4131, %v3958
  %4142 = vst.msk [vmem:[%s2214 + $0xa0] sm:$0xff] %vm4131, %v3960
  %4143 = vst.msk [vmem:[%s2214 + $0xb0] sm:$0xff] %vm4131, %v3962
  %4144 = vst.msk [vmem:[%s2214 + $0xc0] sm:$0xff] %vm4131, %v3964
  %4145 = vst.msk [vmem:[%s2214 + $0xd0] sm:$0xff] %vm4131, %v3966
  %4146 = vst.msk [vmem:[%s2214 + $0xe0] sm:$0xff] %vm4131, %v3968
  %4147 = vst.msk [vmem:[%s2214 + $0xf0] sm:$0xff] %vm4131, %v3970
  %4148 = vst.msk [vmem:[%s2214 + $0x100] sm:$0xff] %vm4131, %v3972
  %4149 = vst.msk [vmem:[%s2214 + $0x110] sm:$0xff] %vm4131, %v3974
  %4150 = vst.msk [vmem:[%s2214 + $0x120] sm:$0xff] %vm4131, %v3976
  %4151 = vst.msk [vmem:[%s2214 + $0x130] sm:$0xff] %vm4131, %v3978
  %4152 = vst.msk [vmem:[%s2214 + $0x140] sm:$0xff] %vm4131, %v3980
  %4153 = vst.msk [vmem:[%s2214 + $0x150] sm:$0xff] %vm4131, %v3982
  %4154 = vst.msk [vmem:[%s2214 + $0x160] sm:$0xff] %vm4131, %v3984
  %4155 = vst.msk [vmem:[%s2214 + $0x170] sm:$0xff] %vm4131, %v3986
  %4156 = vst.msk [vmem:[%s2214 + $0x180] sm:$0xff] %vm4131, %v3988
  %4157 = vst.msk [vmem:[%s2214 + $0x190] sm:$0xff] %vm4131, %v3990
  %4158 = vst.msk [vmem:[%s2214 + $0x1a0] sm:$0xff] %vm4131, %v3992
  %4159 = vst.msk [vmem:[%s2214 + $0x1b0] sm:$0xff] %vm4131, %v3994
  %4160 = vst.msk [vmem:[%s2214 + $0x1c0] sm:$0xff] %vm4131, %v3996
  %4161 = vst.msk [vmem:[%s2214 + $0x1d0] sm:$0xff] %vm4131, %v3998
  %4162 = vst.msk [vmem:[%s2214 + $0x1e0] sm:$0xff] %vm4131, %v4000
  %4163 = vst.msk [vmem:[%s2214 + $0x1f0] sm:$0xff] %vm4131, %v4002
  %4164 = vst.msk [vmem:[%s2214 + $0x220] sm:$0xff] %vm4131, %v4004
  %4165 = vst.msk [vmem:[%s2214 + $0x230] sm:$0xff] %vm4131, %v4006
  %4166 = vst.msk [vmem:[%s2214 + $0x240] sm:$0xff] %vm4131, %v4008
  %4167 = vst.msk [vmem:[%s2214 + $0x250] sm:$0xff] %vm4131, %v4010
  %4168 = vst.msk [vmem:[%s2214 + $0x260] sm:$0xff] %vm4131, %v4012
  %4169 = vst.msk [vmem:[%s2214 + $0x270] sm:$0xff] %vm4131, %v4014
  %4170 = vst.msk [vmem:[%s2214 + $0x280] sm:$0xff] %vm4131, %v4016
  %4171 = vst.msk [vmem:[%s2214 + $0x290] sm:$0xff] %vm4131, %v4018
  %4172 = vst.msk [vmem:[%s2214 + $0x2a0] sm:$0xff] %vm4131, %v4020
  %4173 = vst.msk [vmem:[%s2214 + $0x2b0] sm:$0xff] %vm4131, %v4022
  %4174 = vst.msk [vmem:[%s2214 + $0x2c0] sm:$0xff] %vm4131, %v4024
  %4175 = vst.msk [vmem:[%s2214 + $0x2d0] sm:$0xff] %vm4131, %v4026
  %4176 = vst.msk [vmem:[%s2214 + $0x2e0] sm:$0xff] %vm4131, %v4028
  %4177 = vst.msk [vmem:[%s2214 + $0x2f0] sm:$0xff] %vm4131, %v4030
  %4178 = vst.msk [vmem:[%s2214 + $0x300] sm:$0xff] %vm4131, %v4032
  %4179 = vst.msk [vmem:[%s2214 + $0x310] sm:$0xff] %vm4131, %v4034
  %4180 = vst.msk [vmem:[%s2214 + $0x320] sm:$0xff] %vm4131, %v4036
  %4181 = vst.msk [vmem:[%s2214 + $0x330] sm:$0xff] %vm4131, %v4038
  %4182 = vst.msk [vmem:[%s2214 + $0x340] sm:$0xff] %vm4131, %v4040
  %4183 = vst.msk [vmem:[%s2214 + $0x350] sm:$0xff] %vm4131, %v4042
  %4184 = vst.msk [vmem:[%s2214 + $0x360] sm:$0xff] %vm4131, %v4044
  %4185 = vst.msk [vmem:[%s2214 + $0x370] sm:$0xff] %vm4131, %v4046
  %4186 = vst.msk [vmem:[%s2214 + $0x380] sm:$0xff] %vm4131, %v4048
  %4187 = vst.msk [vmem:[%s2214 + $0x390] sm:$0xff] %vm4131, %v4050
  %4188 = vst.msk [vmem:[%s2214 + $0x3a0] sm:$0xff] %vm4131, %v4052
  %4189 = vst.msk [vmem:[%s2214 + $0x3b0] sm:$0xff] %vm4131, %v4054
  %4190 = vst.msk [vmem:[%s2214 + $0x3c0] sm:$0xff] %vm4131, %v4056
  %4191 = vst.msk [vmem:[%s2214 + $0x3d0] sm:$0xff] %vm4131, %v4058
  %4192 = vst.msk [vmem:[%s2214 + $0x3e0] sm:$0xff] %vm4131, %v4060
  %4193 = vst.msk [vmem:[%s2214 + $0x3f0] sm:$0xff] %vm4131, %v4062
  %4194 = vst.msk [vmem:[%s2214 + $0x400] sm:$0xff] %vm4131, %v4064
  %4195 = vst.msk [vmem:[%s2214 + $0x410] sm:$0xff] %vm4131, %v4066
  %4196 = vrot.lane.b32.xlu0 %v159, 116
  %v4197 = vpop.permute.xlu0 %4196
  %4198 = vrot.lane.b32.xlu0 %v163, 116
  %v4199 = vpop.permute.xlu0 %4198
  %4200 = vrot.lane.b32.xlu0 %v167, 116
  %v4201 = vpop.permute.xlu0 %4200
  %4202 = vrot.lane.b32.xlu0 %v171, 116
  %v4203 = vpop.permute.xlu0 %4202
  %4204 = vrot.lane.b32.xlu0 %v175, 116
  %v4205 = vpop.permute.xlu0 %4204
  %4206 = vrot.lane.b32.xlu0 %v179, 116
  %v4207 = vpop.permute.xlu0 %4206
  %4208 = vrot.lane.b32.xlu0 %v183, 116
  %v4209 = vpop.permute.xlu0 %4208
  %4210 = vrot.lane.b32.xlu0 %v187, 116
  %v4211 = vpop.permute.xlu0 %4210
  %4212 = vrot.lane.b32.xlu0 %v191, 116
  %v4213 = vpop.permute.xlu0 %4212
  %4214 = vrot.lane.b32.xlu0 %v195, 116
  %v4215 = vpop.permute.xlu0 %4214
  %4216 = vrot.lane.b32.xlu0 %v199, 116
  %v4217 = vpop.permute.xlu0 %4216
  %4218 = vrot.lane.b32.xlu0 %v203, 116
  %v4219 = vpop.permute.xlu0 %4218
  %4220 = vrot.lane.b32.xlu0 %v207, 116
  %v4221 = vpop.permute.xlu0 %4220
  %4222 = vrot.lane.b32.xlu0 %v211, 116
  %v4223 = vpop.permute.xlu0 %4222
  %4224 = vrot.lane.b32.xlu0 %v215, 116
  %v4225 = vpop.permute.xlu0 %4224
  %4226 = vrot.lane.b32.xlu0 %v219, 116
  %v4227 = vpop.permute.xlu0 %4226
  %4228 = vrot.lane.b32.xlu0 %v223, 116
  %v4229 = vpop.permute.xlu0 %4228
  %4230 = vrot.lane.b32.xlu0 %v227, 116
  %v4231 = vpop.permute.xlu0 %4230
  %4232 = vrot.lane.b32.xlu0 %v231, 116
  %v4233 = vpop.permute.xlu0 %4232
  %4234 = vrot.lane.b32.xlu0 %v235, 116
  %v4235 = vpop.permute.xlu0 %4234
  %4236 = vrot.lane.b32.xlu0 %v239, 116
  %v4237 = vpop.permute.xlu0 %4236
  %4238 = vrot.lane.b32.xlu0 %v243, 116
  %v4239 = vpop.permute.xlu0 %4238
  %4240 = vrot.lane.b32.xlu0 %v247, 116
  %v4241 = vpop.permute.xlu0 %4240
  %4242 = vrot.lane.b32.xlu0 %v251, 116
  %v4243 = vpop.permute.xlu0 %4242
  %4244 = vrot.lane.b32.xlu0 %v255, 116
  %v4245 = vpop.permute.xlu0 %4244
  %4246 = vrot.lane.b32.xlu0 %v259, 116
  %v4247 = vpop.permute.xlu0 %4246
  %4248 = vrot.lane.b32.xlu0 %v263, 116
  %v4249 = vpop.permute.xlu0 %4248
  %4250 = vrot.lane.b32.xlu0 %v267, 116
  %v4251 = vpop.permute.xlu0 %4250
  %4252 = vrot.lane.b32.xlu0 %v271, 116
  %v4253 = vpop.permute.xlu0 %4252
  %4254 = vrot.lane.b32.xlu0 %v275, 116
  %v4255 = vpop.permute.xlu0 %4254
  %4256 = vrot.lane.b32.xlu0 %v279, 116
  %v4257 = vpop.permute.xlu0 %4256
  %4258 = vrot.lane.b32.xlu0 %v283, 116
  %v4259 = vpop.permute.xlu0 %4258
  %4260 = vrot.lane.b32.xlu0 %v291, 116
  %v4261 = vpop.permute.xlu0 %4260
  %4262 = vrot.lane.b32.xlu0 %v295, 116
  %v4263 = vpop.permute.xlu0 %4262
  %4264 = vrot.lane.b32.xlu0 %v299, 116
  %v4265 = vpop.permute.xlu0 %4264
  %4266 = vrot.lane.b32.xlu0 %v303, 116
  %v4267 = vpop.permute.xlu0 %4266
  %4268 = vrot.lane.b32.xlu0 %v307, 116
  %v4269 = vpop.permute.xlu0 %4268
  %4270 = vrot.lane.b32.xlu0 %v311, 116
  %v4271 = vpop.permute.xlu0 %4270
  %4272 = vrot.lane.b32.xlu0 %v315, 116
  %v4273 = vpop.permute.xlu0 %4272
  %4274 = vrot.lane.b32.xlu0 %v319, 116
  %v4275 = vpop.permute.xlu0 %4274
  %4276 = vrot.lane.b32.xlu0 %v323, 116
  %v4277 = vpop.permute.xlu0 %4276
  %4278 = vrot.lane.b32.xlu0 %v327, 116
  %v4279 = vpop.permute.xlu0 %4278
  %4280 = vrot.lane.b32.xlu0 %v331, 116
  %v4281 = vpop.permute.xlu0 %4280
  %4282 = vrot.lane.b32.xlu0 %v335, 116
  %v4283 = vpop.permute.xlu0 %4282
  %4284 = vrot.lane.b32.xlu0 %v339, 116
  %v4285 = vpop.permute.xlu0 %4284
  %4286 = vrot.lane.b32.xlu0 %v343, 116
  %v4287 = vpop.permute.xlu0 %4286
  %4288 = vrot.lane.b32.xlu0 %v347, 116
  %v4289 = vpop.permute.xlu0 %4288
  %4290 = vrot.lane.b32.xlu0 %v351, 116
  %v4291 = vpop.permute.xlu0 %4290
  %4292 = vrot.lane.b32.xlu0 %v355, 116
  %v4293 = vpop.permute.xlu0 %4292
  %4294 = vrot.lane.b32.xlu0 %v359, 116
  %v4295 = vpop.permute.xlu0 %4294
  %4296 = vrot.lane.b32.xlu0 %v363, 116
  %v4297 = vpop.permute.xlu0 %4296
  %4298 = vrot.lane.b32.xlu0 %v367, 116
  %v4299 = vpop.permute.xlu0 %4298
  %4300 = vrot.lane.b32.xlu0 %v371, 116
  %v4301 = vpop.permute.xlu0 %4300
  %4302 = vrot.lane.b32.xlu0 %v375, 116
  %v4303 = vpop.permute.xlu0 %4302
  %4304 = vrot.lane.b32.xlu0 %v379, 116
  %v4305 = vpop.permute.xlu0 %4304
  %4306 = vrot.lane.b32.xlu0 %v383, 116
  %v4307 = vpop.permute.xlu0 %4306
  %4308 = vrot.lane.b32.xlu0 %v387, 116
  %v4309 = vpop.permute.xlu0 %4308
  %4310 = vrot.lane.b32.xlu0 %v391, 116
  %v4311 = vpop.permute.xlu0 %4310
  %4312 = vrot.lane.b32.xlu0 %v395, 116
  %v4313 = vpop.permute.xlu0 %4312
  %4314 = vrot.lane.b32.xlu0 %v399, 116
  %v4315 = vpop.permute.xlu0 %4314
  %4316 = vrot.lane.b32.xlu0 %v403, 116
  %v4317 = vpop.permute.xlu0 %4316
  %4318 = vrot.lane.b32.xlu0 %v407, 116
  %v4319 = vpop.permute.xlu0 %4318
  %4320 = vrot.lane.b32.xlu0 %v411, 116
  %v4321 = vpop.permute.xlu0 %4320
  %4322 = vrot.lane.b32.xlu0 %v415, 116
  %v4323 = vpop.permute.xlu0 %4322
  %4388 = vrot.lane.b32.xlu0 %v163, 12
  %v4389 = vpop.permute.xlu0 %4388
  %4390 = vrot.lane.b32.xlu0 %v167, 12
  %v4391 = vpop.permute.xlu0 %4390
  %4392 = vrot.lane.b32.xlu0 %v171, 12
  %v4393 = vpop.permute.xlu0 %4392
  %4394 = vrot.lane.b32.xlu0 %v175, 12
  %v4395 = vpop.permute.xlu0 %4394
  %4396 = vrot.lane.b32.xlu0 %v179, 12
  %v4397 = vpop.permute.xlu0 %4396
  %4398 = vrot.lane.b32.xlu0 %v183, 12
  %v4399 = vpop.permute.xlu0 %4398
  %4400 = vrot.lane.b32.xlu0 %v187, 12
  %v4401 = vpop.permute.xlu0 %4400
  %4402 = vrot.lane.b32.xlu0 %v191, 12
  %v4403 = vpop.permute.xlu0 %4402
  %4404 = vrot.lane.b32.xlu0 %v195, 12
  %v4405 = vpop.permute.xlu0 %4404
  %4406 = vrot.lane.b32.xlu0 %v199, 12
  %v4407 = vpop.permute.xlu0 %4406
  %4408 = vrot.lane.b32.xlu0 %v203, 12
  %v4409 = vpop.permute.xlu0 %4408
  %4410 = vrot.lane.b32.xlu0 %v207, 12
  %v4411 = vpop.permute.xlu0 %4410
  %4412 = vrot.lane.b32.xlu0 %v211, 12
  %v4413 = vpop.permute.xlu0 %4412
  %4414 = vrot.lane.b32.xlu0 %v215, 12
  %v4415 = vpop.permute.xlu0 %4414
  %4416 = vrot.lane.b32.xlu0 %v219, 12
  %v4417 = vpop.permute.xlu0 %4416
  %4418 = vrot.lane.b32.xlu0 %v223, 12
  %v4419 = vpop.permute.xlu0 %4418
  %4420 = vrot.lane.b32.xlu0 %v227, 12
  %v4421 = vpop.permute.xlu0 %4420
  %4422 = vrot.lane.b32.xlu0 %v231, 12
  %v4423 = vpop.permute.xlu0 %4422
  %4424 = vrot.lane.b32.xlu0 %v235, 12
  %v4425 = vpop.permute.xlu0 %4424
  %4426 = vrot.lane.b32.xlu0 %v239, 12
  %v4427 = vpop.permute.xlu0 %4426
  %4428 = vrot.lane.b32.xlu0 %v243, 12
  %v4429 = vpop.permute.xlu0 %4428
  %4430 = vrot.lane.b32.xlu0 %v247, 12
  %v4431 = vpop.permute.xlu0 %4430
  %4432 = vrot.lane.b32.xlu0 %v251, 12
  %v4433 = vpop.permute.xlu0 %4432
  %4434 = vrot.lane.b32.xlu0 %v255, 12
  %v4435 = vpop.permute.xlu0 %4434
  %4436 = vrot.lane.b32.xlu0 %v259, 12
  %v4437 = vpop.permute.xlu0 %4436
  %4438 = vrot.lane.b32.xlu0 %v263, 12
  %v4439 = vpop.permute.xlu0 %4438
  %4440 = vrot.lane.b32.xlu0 %v267, 12
  %v4441 = vpop.permute.xlu0 %4440
  %4442 = vrot.lane.b32.xlu0 %v271, 12
  %v4443 = vpop.permute.xlu0 %4442
  %4444 = vrot.lane.b32.xlu0 %v275, 12
  %v4445 = vpop.permute.xlu0 %4444
  %4446 = vrot.lane.b32.xlu0 %v279, 12
  %v4447 = vpop.permute.xlu0 %4446
  %4448 = vrot.lane.b32.xlu0 %v283, 12
  %v4449 = vpop.permute.xlu0 %4448
  %4450 = vrot.lane.b32.xlu0 %v287, 12
  %v4451 = vpop.permute.xlu0 %4450
  %4452 = vrot.lane.b32.xlu0 %v295, 12
  %v4453 = vpop.permute.xlu0 %4452
  %4454 = vrot.lane.b32.xlu0 %v299, 12
  %v4455 = vpop.permute.xlu0 %4454
  %4456 = vrot.lane.b32.xlu0 %v303, 12
  %v4457 = vpop.permute.xlu0 %4456
  %4458 = vrot.lane.b32.xlu0 %v307, 12
  %v4459 = vpop.permute.xlu0 %4458
  %4460 = vrot.lane.b32.xlu0 %v311, 12
  %v4461 = vpop.permute.xlu0 %4460
  %4462 = vrot.lane.b32.xlu0 %v315, 12
  %v4463 = vpop.permute.xlu0 %4462
  %4464 = vrot.lane.b32.xlu0 %v319, 12
  %v4465 = vpop.permute.xlu0 %4464
  %4466 = vrot.lane.b32.xlu0 %v323, 12
  %v4467 = vpop.permute.xlu0 %4466
  %4468 = vrot.lane.b32.xlu0 %v327, 12
  %v4469 = vpop.permute.xlu0 %4468
  %4470 = vrot.lane.b32.xlu0 %v331, 12
  %v4471 = vpop.permute.xlu0 %4470
  %4472 = vrot.lane.b32.xlu0 %v335, 12
  %v4473 = vpop.permute.xlu0 %4472
  %4474 = vrot.lane.b32.xlu0 %v339, 12
  %v4475 = vpop.permute.xlu0 %4474
  %4476 = vrot.lane.b32.xlu0 %v343, 12
  %v4477 = vpop.permute.xlu0 %4476
  %4478 = vrot.lane.b32.xlu0 %v347, 12
  %v4479 = vpop.permute.xlu0 %4478
  %4480 = vrot.lane.b32.xlu0 %v351, 12
  %v4481 = vpop.permute.xlu0 %4480
  %4482 = vrot.lane.b32.xlu0 %v355, 12
  %v4483 = vpop.permute.xlu0 %4482
  %4484 = vrot.lane.b32.xlu0 %v359, 12
  %v4485 = vpop.permute.xlu0 %4484
  %4486 = vrot.lane.b32.xlu0 %v363, 12
  %v4487 = vpop.permute.xlu0 %4486
  %4488 = vrot.lane.b32.xlu0 %v367, 12
  %v4489 = vpop.permute.xlu0 %4488
  %4490 = vrot.lane.b32.xlu0 %v371, 12
  %v4491 = vpop.permute.xlu0 %4490
  %4492 = vrot.lane.b32.xlu0 %v375, 12
  %v4493 = vpop.permute.xlu0 %4492
  %4494 = vrot.lane.b32.xlu0 %v379, 12
  %v4495 = vpop.permute.xlu0 %4494
  %4496 = vrot.lane.b32.xlu0 %v383, 12
  %v4497 = vpop.permute.xlu0 %4496
  %4498 = vrot.lane.b32.xlu0 %v387, 12
  %v4499 = vpop.permute.xlu0 %4498
  %4500 = vrot.lane.b32.xlu0 %v391, 12
  %v4501 = vpop.permute.xlu0 %4500
  %4502 = vrot.lane.b32.xlu0 %v395, 12
  %v4503 = vpop.permute.xlu0 %4502
  %4504 = vrot.lane.b32.xlu0 %v399, 12
  %v4505 = vpop.permute.xlu0 %4504
  %4506 = vrot.lane.b32.xlu0 %v403, 12
  %v4507 = vpop.permute.xlu0 %4506
  %4508 = vrot.lane.b32.xlu0 %v407, 12
  %v4509 = vpop.permute.xlu0 %4508
  %4510 = vrot.lane.b32.xlu0 %v411, 12
  %v4511 = vpop.permute.xlu0 %4510
  %4512 = vrot.lane.b32.xlu0 %v415, 12
  %v4513 = vpop.permute.xlu0 %4512
  %4514 = vrot.lane.b32.xlu0 %v419, 12
  %v4515 = vpop.permute.xlu0 %4514
  %4580 = vrot.lane.b32.xlu0 %v165, 24
  %v4581 = vpop.permute.xlu0 %4580
  %4582 = vrot.lane.b32.xlu0 %v169, 24
  %v4583 = vpop.permute.xlu0 %4582
  %4584 = vrot.lane.b32.xlu0 %v173, 24
  %v4585 = vpop.permute.xlu0 %4584
  %4586 = vrot.lane.b32.xlu0 %v177, 24
  %v4587 = vpop.permute.xlu0 %4586
  %4588 = vrot.lane.b32.xlu0 %v181, 24
  %v4589 = vpop.permute.xlu0 %4588
  %4590 = vrot.lane.b32.xlu0 %v185, 24
  %v4591 = vpop.permute.xlu0 %4590
  %4592 = vrot.lane.b32.xlu0 %v189, 24
  %v4593 = vpop.permute.xlu0 %4592
  %4594 = vrot.lane.b32.xlu0 %v193, 24
  %v4595 = vpop.permute.xlu0 %4594
  %4596 = vrot.lane.b32.xlu0 %v197, 24
  %v4597 = vpop.permute.xlu0 %4596
  %4598 = vrot.lane.b32.xlu0 %v201, 24
  %v4599 = vpop.permute.xlu0 %4598
  %4600 = vrot.lane.b32.xlu0 %v205, 24
  %v4601 = vpop.permute.xlu0 %4600
  %4602 = vrot.lane.b32.xlu0 %v209, 24
  %v4603 = vpop.permute.xlu0 %4602
  %4604 = vrot.lane.b32.xlu0 %v213, 24
  %v4605 = vpop.permute.xlu0 %4604
  %4606 = vrot.lane.b32.xlu0 %v217, 24
  %v4607 = vpop.permute.xlu0 %4606
  %4608 = vrot.lane.b32.xlu0 %v221, 24
  %v4609 = vpop.permute.xlu0 %4608
  %4610 = vrot.lane.b32.xlu0 %v225, 24
  %v4611 = vpop.permute.xlu0 %4610
  %4612 = vrot.lane.b32.xlu0 %v229, 24
  %v4613 = vpop.permute.xlu0 %4612
  %4614 = vrot.lane.b32.xlu0 %v233, 24
  %v4615 = vpop.permute.xlu0 %4614
  %4616 = vrot.lane.b32.xlu0 %v237, 24
  %v4617 = vpop.permute.xlu0 %4616
  %4618 = vrot.lane.b32.xlu0 %v241, 24
  %v4619 = vpop.permute.xlu0 %4618
  %4620 = vrot.lane.b32.xlu0 %v245, 24
  %v4621 = vpop.permute.xlu0 %4620
  %4622 = vrot.lane.b32.xlu0 %v249, 24
  %v4623 = vpop.permute.xlu0 %4622
  %4624 = vrot.lane.b32.xlu0 %v253, 24
  %v4625 = vpop.permute.xlu0 %4624
  %4626 = vrot.lane.b32.xlu0 %v257, 24
  %v4627 = vpop.permute.xlu0 %4626
  %4628 = vrot.lane.b32.xlu0 %v261, 24
  %v4629 = vpop.permute.xlu0 %4628
  %4630 = vrot.lane.b32.xlu0 %v265, 24
  %v4631 = vpop.permute.xlu0 %4630
  %4632 = vrot.lane.b32.xlu0 %v269, 24
  %v4633 = vpop.permute.xlu0 %4632
  %4634 = vrot.lane.b32.xlu0 %v273, 24
  %v4635 = vpop.permute.xlu0 %4634
  %4636 = vrot.lane.b32.xlu0 %v277, 24
  %v4637 = vpop.permute.xlu0 %4636
  %4638 = vrot.lane.b32.xlu0 %v281, 24
  %v4639 = vpop.permute.xlu0 %4638
  %4640 = vrot.lane.b32.xlu0 %v285, 24
  %v4641 = vpop.permute.xlu0 %4640
  %4642 = vrot.lane.b32.xlu0 %v289, 24
  %v4643 = vpop.permute.xlu0 %4642
  %4644 = vrot.lane.b32.xlu0 %v297, 24
  %v4645 = vpop.permute.xlu0 %4644
  %4646 = vrot.lane.b32.xlu0 %v301, 24
  %v4647 = vpop.permute.xlu0 %4646
  %4648 = vrot.lane.b32.xlu0 %v305, 24
  %v4649 = vpop.permute.xlu0 %4648
  %4650 = vrot.lane.b32.xlu0 %v309, 24
  %v4651 = vpop.permute.xlu0 %4650
  %4652 = vrot.lane.b32.xlu0 %v313, 24
  %v4653 = vpop.permute.xlu0 %4652
  %4654 = vrot.lane.b32.xlu0 %v317, 24
  %v4655 = vpop.permute.xlu0 %4654
  %4656 = vrot.lane.b32.xlu0 %v321, 24
  %v4657 = vpop.permute.xlu0 %4656
  %4658 = vrot.lane.b32.xlu0 %v325, 24
  %v4659 = vpop.permute.xlu0 %4658
  %4660 = vrot.lane.b32.xlu0 %v329, 24
  %v4661 = vpop.permute.xlu0 %4660
  %4662 = vrot.lane.b32.xlu0 %v333, 24
  %v4663 = vpop.permute.xlu0 %4662
  %4664 = vrot.lane.b32.xlu0 %v337, 24
  %v4665 = vpop.permute.xlu0 %4664
  %4666 = vrot.lane.b32.xlu0 %v341, 24
  %v4667 = vpop.permute.xlu0 %4666
  %4668 = vrot.lane.b32.xlu0 %v345, 24
  %v4669 = vpop.permute.xlu0 %4668
  %4670 = vrot.lane.b32.xlu0 %v349, 24
  %v4671 = vpop.permute.xlu0 %4670
  %4672 = vrot.lane.b32.xlu0 %v353, 24
  %v4673 = vpop.permute.xlu0 %4672
  %4674 = vrot.lane.b32.xlu0 %v357, 24
  %v4675 = vpop.permute.xlu0 %4674
  %4676 = vrot.lane.b32.xlu0 %v361, 24
  %v4677 = vpop.permute.xlu0 %4676
  %4678 = vrot.lane.b32.xlu0 %v365, 24
  %v4679 = vpop.permute.xlu0 %4678
  %4680 = vrot.lane.b32.xlu0 %v369, 24
  %v4681 = vpop.permute.xlu0 %4680
  %4682 = vrot.lane.b32.xlu0 %v373, 24
  %v4683 = vpop.permute.xlu0 %4682
  %4684 = vrot.lane.b32.xlu0 %v377, 24
  %v4685 = vpop.permute.xlu0 %4684
  %4686 = vrot.lane.b32.xlu0 %v381, 24
  %v4687 = vpop.permute.xlu0 %4686
  %4688 = vrot.lane.b32.xlu0 %v385, 24
  %v4689 = vpop.permute.xlu0 %4688
  %4690 = vrot.lane.b32.xlu0 %v389, 24
  %v4691 = vpop.permute.xlu0 %4690
  %4692 = vrot.lane.b32.xlu0 %v393, 24
  %v4693 = vpop.permute.xlu0 %4692
  %4694 = vrot.lane.b32.xlu0 %v397, 24
  %v4695 = vpop.permute.xlu0 %4694
  %4696 = vrot.lane.b32.xlu0 %v401, 24
  %v4697 = vpop.permute.xlu0 %4696
  %4698 = vrot.lane.b32.xlu0 %v405, 24
  %v4699 = vpop.permute.xlu0 %4698
  %4700 = vrot.lane.b32.xlu0 %v409, 24
  %v4701 = vpop.permute.xlu0 %4700
  %4702 = vrot.lane.b32.xlu0 %v413, 24
  %v4703 = vpop.permute.xlu0 %4702
  %4704 = vrot.lane.b32.xlu0 %v417, 24
  %v4705 = vpop.permute.xlu0 %4704
  %4706 = vrot.lane.b32.xlu0 %v421, 24
  %v4707 = vpop.permute.xlu0 %4706
  %v4772 = vsel %vm1129, %v4197, %v161
  %v4773 = vsel %vm1129, %v4199, %v165
  %v4774 = vsel %vm1129, %v4201, %v169
  %v4775 = vsel %vm1129, %v4203, %v173
  %v4776 = vsel %vm1129, %v4205, %v177
  %v4777 = vsel %vm1129, %v4207, %v181
  %v4778 = vsel %vm1129, %v4209, %v185
  %v4779 = vsel %vm1129, %v4211, %v189
  %v4780 = vsel %vm1129, %v4213, %v193
  %v4781 = vsel %vm1129, %v4215, %v197
  %v4782 = vsel %vm1129, %v4217, %v201
  %v4783 = vsel %vm1129, %v4219, %v205
  %v4784 = vsel %vm1129, %v4221, %v209
  %v4785 = vsel %vm1129, %v4223, %v213
  %v4786 = vsel %vm1129, %v4225, %v217
  %v4787 = vsel %vm1129, %v4227, %v221
  %v4788 = vsel %vm1129, %v4229, %v225
  %v4789 = vsel %vm1129, %v4231, %v229
  %v4790 = vsel %vm1129, %v4233, %v233
  %v4791 = vsel %vm1129, %v4235, %v237
  %v4792 = vsel %vm1129, %v4237, %v241
  %v4793 = vsel %vm1129, %v4239, %v245
  %v4794 = vsel %vm1129, %v4241, %v249
  %v4795 = vsel %vm1129, %v4243, %v253
  %v4796 = vsel %vm1129, %v4245, %v257
  %v4797 = vsel %vm1129, %v4247, %v261
  %v4798 = vsel %vm1129, %v4249, %v265
  %v4799 = vsel %vm1129, %v4251, %v269
  %v4800 = vsel %vm1129, %v4253, %v273
  %v4801 = vsel %vm1129, %v4255, %v277
  %v4802 = vsel %vm1129, %v4257, %v281
  %v4803 = vsel %vm1129, %v4259, %v285
  %v4804 = vsel %vm1129, %v4261, %v293
  %v4805 = vsel %vm1129, %v4263, %v297
  %v4806 = vsel %vm1129, %v4265, %v301
  %v4807 = vsel %vm1129, %v4267, %v305
  %v4808 = vsel %vm1129, %v4269, %v309
  %v4809 = vsel %vm1129, %v4271, %v313
  %v4810 = vsel %vm1129, %v4273, %v317
  %v4811 = vsel %vm1129, %v4275, %v321
  %v4812 = vsel %vm1129, %v4277, %v325
  %v4813 = vsel %vm1129, %v4279, %v329
  %v4814 = vsel %vm1129, %v4281, %v333
  %v4815 = vsel %vm1129, %v4283, %v337
  %v4816 = vsel %vm1129, %v4285, %v341
  %v4817 = vsel %vm1129, %v4287, %v345
  %v4818 = vsel %vm1129, %v4289, %v349
  %v4819 = vsel %vm1129, %v4291, %v353
  %v4820 = vsel %vm1129, %v4293, %v357
  %v4821 = vsel %vm1129, %v4295, %v361
  %v4822 = vsel %vm1129, %v4297, %v365
  %v4823 = vsel %vm1129, %v4299, %v369
  %v4824 = vsel %vm1129, %v4301, %v373
  %v4825 = vsel %vm1129, %v4303, %v377
  %v4826 = vsel %vm1129, %v4305, %v381
  %v4827 = vsel %vm1129, %v4307, %v385
  %v4828 = vsel %vm1129, %v4309, %v389
  %v4829 = vsel %vm1129, %v4311, %v393
  %v4830 = vsel %vm1129, %v4313, %v397
  %v4831 = vsel %vm1129, %v4315, %v401
  %v4832 = vsel %vm1129, %v4317, %v405
  %v4833 = vsel %vm1129, %v4319, %v409
  %v4834 = vsel %vm1129, %v4321, %v413
  %v4835 = vsel %vm1129, %v4323, %v417
  %v4836 = vsel %vm1194, %v4772, %v4389
  %v4837 = vsel %vm1194, %v4773, %v4391
  %v4838 = vsel %vm1194, %v4774, %v4393
  %v4839 = vsel %vm1194, %v4775, %v4395
  %v4840 = vsel %vm1194, %v4776, %v4397
  %v4841 = vsel %vm1194, %v4777, %v4399
  %v4842 = vsel %vm1194, %v4778, %v4401
  %v4843 = vsel %vm1194, %v4779, %v4403
  %v4844 = vsel %vm1194, %v4780, %v4405
  %v4845 = vsel %vm1194, %v4781, %v4407
  %v4846 = vsel %vm1194, %v4782, %v4409
  %v4847 = vsel %vm1194, %v4783, %v4411
  %v4848 = vsel %vm1194, %v4784, %v4413
  %v4849 = vsel %vm1194, %v4785, %v4415
  %v4850 = vsel %vm1194, %v4786, %v4417
  %v4851 = vsel %vm1194, %v4787, %v4419
  %v4852 = vsel %vm1194, %v4788, %v4421
  %v4853 = vsel %vm1194, %v4789, %v4423
  %v4854 = vsel %vm1194, %v4790, %v4425
  %v4855 = vsel %vm1194, %v4791, %v4427
  %v4856 = vsel %vm1194, %v4792, %v4429
  %v4857 = vsel %vm1194, %v4793, %v4431
  %v4858 = vsel %vm1194, %v4794, %v4433
  %v4859 = vsel %vm1194, %v4795, %v4435
  %v4860 = vsel %vm1194, %v4796, %v4437
  %v4861 = vsel %vm1194, %v4797, %v4439
  %v4862 = vsel %vm1194, %v4798, %v4441
  %v4863 = vsel %vm1194, %v4799, %v4443
  %v4864 = vsel %vm1194, %v4800, %v4445
  %v4865 = vsel %vm1194, %v4801, %v4447
  %v4866 = vsel %vm1194, %v4802, %v4449
  %v4867 = vsel %vm1194, %v4803, %v4451
  %v4868 = vsel %vm1194, %v4804, %v4453
  %v4869 = vsel %vm1194, %v4805, %v4455
  %v4870 = vsel %vm1194, %v4806, %v4457
  %v4871 = vsel %vm1194, %v4807, %v4459
  %v4872 = vsel %vm1194, %v4808, %v4461
  %v4873 = vsel %vm1194, %v4809, %v4463
  %v4874 = vsel %vm1194, %v4810, %v4465
  %v4875 = vsel %vm1194, %v4811, %v4467
  %v4876 = vsel %vm1194, %v4812, %v4469
  %v4877 = vsel %vm1194, %v4813, %v4471
  %v4878 = vsel %vm1194, %v4814, %v4473
  %v4879 = vsel %vm1194, %v4815, %v4475
  %v4880 = vsel %vm1194, %v4816, %v4477
  %v4881 = vsel %vm1194, %v4817, %v4479
  %v4882 = vsel %vm1194, %v4818, %v4481
  %v4883 = vsel %vm1194, %v4819, %v4483
  %v4884 = vsel %vm1194, %v4820, %v4485
  %v4885 = vsel %vm1194, %v4821, %v4487
  %v4886 = vsel %vm1194, %v4822, %v4489
  %v4887 = vsel %vm1194, %v4823, %v4491
  %v4888 = vsel %vm1194, %v4824, %v4493
  %v4889 = vsel %vm1194, %v4825, %v4495
  %v4890 = vsel %vm1194, %v4826, %v4497
  %v4891 = vsel %vm1194, %v4827, %v4499
  %v4892 = vsel %vm1194, %v4828, %v4501
  %v4893 = vsel %vm1194, %v4829, %v4503
  %v4894 = vsel %vm1194, %v4830, %v4505
  %v4895 = vsel %vm1194, %v4831, %v4507
  %v4896 = vsel %vm1194, %v4832, %v4509
  %v4897 = vsel %vm1194, %v4833, %v4511
  %v4898 = vsel %vm1194, %v4834, %v4513
  %v4899 = vsel %vm1194, %v4835, %v4515
  %v4900 = vsel %vm1259, %v4836, %v4581
  %v4901 = vsel %vm1259, %v4837, %v4583
  %v4902 = vsel %vm1259, %v4838, %v4585
  %v4903 = vsel %vm1259, %v4839, %v4587
  %v4904 = vsel %vm1259, %v4840, %v4589
  %v4905 = vsel %vm1259, %v4841, %v4591
  %v4906 = vsel %vm1259, %v4842, %v4593
  %v4907 = vsel %vm1259, %v4843, %v4595
  %v4908 = vsel %vm1259, %v4844, %v4597
  %v4909 = vsel %vm1259, %v4845, %v4599
  %v4910 = vsel %vm1259, %v4846, %v4601
  %v4911 = vsel %vm1259, %v4847, %v4603
  %v4912 = vsel %vm1259, %v4848, %v4605
  %v4913 = vsel %vm1259, %v4849, %v4607
  %v4914 = vsel %vm1259, %v4850, %v4609
  %v4915 = vsel %vm1259, %v4851, %v4611
  %v4916 = vsel %vm1259, %v4852, %v4613
  %v4917 = vsel %vm1259, %v4853, %v4615
  %v4918 = vsel %vm1259, %v4854, %v4617
  %v4919 = vsel %vm1259, %v4855, %v4619
  %v4920 = vsel %vm1259, %v4856, %v4621
  %v4921 = vsel %vm1259, %v4857, %v4623
  %v4922 = vsel %vm1259, %v4858, %v4625
  %v4923 = vsel %vm1259, %v4859, %v4627
  %v4924 = vsel %vm1259, %v4860, %v4629
  %v4925 = vsel %vm1259, %v4861, %v4631
  %v4926 = vsel %vm1259, %v4862, %v4633
  %v4927 = vsel %vm1259, %v4863, %v4635
  %v4928 = vsel %vm1259, %v4864, %v4637
  %v4929 = vsel %vm1259, %v4865, %v4639
  %v4930 = vsel %vm1259, %v4866, %v4641
  %v4931 = vsel %vm1259, %v4867, %v4643
  %v4932 = vsel %vm1259, %v4868, %v4645
  %v4933 = vsel %vm1259, %v4869, %v4647
  %v4934 = vsel %vm1259, %v4870, %v4649
  %v4935 = vsel %vm1259, %v4871, %v4651
  %v4936 = vsel %vm1259, %v4872, %v4653
  %v4937 = vsel %vm1259, %v4873, %v4655
  %v4938 = vsel %vm1259, %v4874, %v4657
  %v4939 = vsel %vm1259, %v4875, %v4659
  %v4940 = vsel %vm1259, %v4876, %v4661
  %v4941 = vsel %vm1259, %v4877, %v4663
  %v4942 = vsel %vm1259, %v4878, %v4665
  %v4943 = vsel %vm1259, %v4879, %v4667
  %v4944 = vsel %vm1259, %v4880, %v4669
  %v4945 = vsel %vm1259, %v4881, %v4671
  %v4946 = vsel %vm1259, %v4882, %v4673
  %v4947 = vsel %vm1259, %v4883, %v4675
  %v4948 = vsel %vm1259, %v4884, %v4677
  %v4949 = vsel %vm1259, %v4885, %v4679
  %v4950 = vsel %vm1259, %v4886, %v4681
  %v4951 = vsel %vm1259, %v4887, %v4683
  %v4952 = vsel %vm1259, %v4888, %v4685
  %v4953 = vsel %vm1259, %v4889, %v4687
  %v4954 = vsel %vm1259, %v4890, %v4689
  %v4955 = vsel %vm1259, %v4891, %v4691
  %v4956 = vsel %vm1259, %v4892, %v4693
  %v4957 = vsel %vm1259, %v4893, %v4695
  %v4958 = vsel %vm1259, %v4894, %v4697
  %v4959 = vsel %vm1259, %v4895, %v4699
  %v4960 = vsel %vm1259, %v4896, %v4701
  %v4961 = vsel %vm1259, %v4897, %v4703
  %v4962 = vsel %vm1259, %v4898, %v4705
  %v4963 = vsel %vm1259, %v4899, %v4707
  %v4964 = vpack.c.bf16 %v4901, %v4900
  %v4965 = vpack.c.bf16 %v4903, %v4902
  %v4966 = vpack.c.bf16 %v4905, %v4904
  %v4967 = vpack.c.bf16 %v4907, %v4906
  %v4968 = vpack.c.bf16 %v4909, %v4908
  %v4969 = vpack.c.bf16 %v4911, %v4910
  %v4970 = vpack.c.bf16 %v4913, %v4912
  %v4971 = vpack.c.bf16 %v4915, %v4914
  %v4972 = vpack.c.bf16 %v4917, %v4916
  %v4973 = vpack.c.bf16 %v4919, %v4918
  %v4974 = vpack.c.bf16 %v4921, %v4920
  %v4975 = vpack.c.bf16 %v4923, %v4922
  %v4976 = vpack.c.bf16 %v4925, %v4924
  %v4977 = vpack.c.bf16 %v4927, %v4926
  %v4978 = vpack.c.bf16 %v4929, %v4928
  %v4979 = vpack.c.bf16 %v4931, %v4930
  %v4980 = vpack.c.bf16 %v4933, %v4932
  %v4981 = vpack.c.bf16 %v4935, %v4934
  %v4982 = vpack.c.bf16 %v4937, %v4936
  %v4983 = vpack.c.bf16 %v4939, %v4938
  %v4984 = vpack.c.bf16 %v4941, %v4940
  %v4985 = vpack.c.bf16 %v4943, %v4942
  %v4986 = vpack.c.bf16 %v4945, %v4944
  %v4987 = vpack.c.bf16 %v4947, %v4946
  %v4988 = vpack.c.bf16 %v4949, %v4948
  %v4989 = vpack.c.bf16 %v4951, %v4950
  %v4990 = vpack.c.bf16 %v4953, %v4952
  %v4991 = vpack.c.bf16 %v4955, %v4954
  %v4992 = vpack.c.bf16 %v4957, %v4956
  %v4993 = vpack.c.bf16 %v4959, %v4958
  %v4994 = vpack.c.bf16 %v4961, %v4960
  %v4995 = vpack.c.bf16 %v4963, %v4962
  %v4996 = vld [vmem:[%s1] sm:$0xf]
  %v4997 = vld [vmem:[%s1 + $0x4] sm:$0xf]
  %v4998 = vld [vmem:[%s1 + $0x8] sm:$0xf]
  %v4999 = vld [vmem:[%s1 + $0xc] sm:$0xf]
  %v5000 = vld [vmem:[%s1 + $0x10] sm:$0xf]
  %v5001 = vld [vmem:[%s1 + $0x14] sm:$0xf]
  %v5008 = vunpack.c.l.b16 %v4996
  %v5009 = vunpack.c.l.b16 %v4997
  %v5010 = vunpack.c.l.b16 %v4998
  %v5011 = vunpack.c.l.b16 %v4999
  %v5012 = vunpack.c.l.b16 %v5000
  %v5013 = vunpack.c.l.b16 %v5001
  %v5014 = vpack.c.b16 %v5009, %v5008
  %v5015 = vpack.c.b16 %v5011, %v5010
  %v5016 = vpack.c.b16 %v5013, %v5012
  %v5021 = vsel %vm1380, %v4964, 0
  %v5024 = vsel %vm1380, %v4965, 0
  %v5027 = vsel %vm1380, %v4966, 0
  %v5030 = vsel %vm1380, %v4967, 0
  %v5033 = vsel %vm1380, %v4968, 0
  %v5036 = vsel %vm1380, %v4969, 0
  %v5039 = vsel %vm1380, %v4970, 0
  %v5042 = vsel %vm1380, %v4971, 0
  %v5045 = vsel %vm1380, %v4972, 0
  %v5048 = vsel %vm1380, %v4973, 0
  %v5051 = vsel %vm1380, %v4974, 0
  %v5054 = vsel %vm1380, %v4975, 0
  %v5057 = vsel %vm1380, %v4976, 0
  %v5060 = vsel %vm1380, %v4977, 0
  %v5063 = vsel %vm1380, %v4978, 0
  %v5066 = vsel %vm1380, %v4979, 0
  %v5069 = vsel %vm1380, %v4980, 0
  %v5072 = vsel %vm1380, %v4981, 0
  %v5075 = vsel %vm1380, %v4982, 0
  %v5078 = vsel %vm1380, %v4983, 0
  %v5081 = vsel %vm1380, %v4984, 0
  %v5084 = vsel %vm1380, %v4985, 0
  %v5087 = vsel %vm1380, %v4986, 0
  %v5090 = vsel %vm1380, %v4987, 0
  %v5093 = vsel %vm1380, %v4988, 0
  %v5096 = vsel %vm1380, %v4989, 0
  %v5099 = vsel %vm1380, %v4990, 0
  %v5102 = vsel %vm1380, %v4991, 0
  %v5105 = vsel %vm1380, %v4992, 0
  %v5108 = vsel %vm1380, %v4993, 0
  %v5111 = vsel %vm1380, %v4994, 0
  %v5114 = vsel %vm1380, %v4995, 0
  %5116 = vmatprep.subr.bf16.mxu0 0
  %5117 = vmatpush1.bf16.msra.mxu0 0
  %5118 = vmatprep.subr.bf16.mxu0 0
  %5119 = vmatpush1.bf16.msra.mxu0 0
  %5120 = vmatprep.subr.bf16.mxu0 0
  %5121 = vmatpush1.bf16.msra.mxu0 0
  %5122 = vmatprep.subr.bf16.mxu0 0
  %5123 = vmatpush1.bf16.msra.mxu0 0
  %5124 = vmatprep.subr.bf16.mxu0 0
  %5125 = vmatpush1.bf16.msra.mxu0 0
  %5126 = vmatprep.subr.bf16.mxu0 0
  %5127 = vmatpush1.bf16.msra.mxu0 %v5016
  %5128 = vmatprep.subr.bf16.mxu0 0
  %5129 = vmatpush1.bf16.msra.mxu0 %v5015
  %5130 = vmatprep.subr.bf16.mxu0 0
  %5131 = vmatpush1.bf16.msra.mxu0 %v5014
  %5132 = vmatprep.subr.bf16.mxu0 0
  %5133 = vmatpush2.bf16.msra.mxu0 0
  %5134 = vmatprep.subr.bf16.mxu0 0
  %5135 = vmatpush2.bf16.msra.mxu0 0
  %5136 = vmatprep.subr.bf16.mxu0 0
  %5137 = vmatpush2.bf16.msra.mxu0 0
  %5138 = vmatprep.subr.bf16.mxu0 0
  %5139 = vmatpush2.bf16.msra.mxu0 0
  %5140 = vmatprep.subr.bf16.mxu0 0
  %5141 = vmatpush2.bf16.msra.mxu0 0
  %5142 = vmatprep.subr.bf16.mxu0 0
  %5143 = vmatpush2.bf16.msra.mxu0 0
  %5144 = vmatprep.subr.bf16.mxu0 0
  %5145 = vmatpush2.bf16.msra.mxu0 0
  %5146 = vmatprep.subr.bf16.mxu0 0
  %5147 = vmatpush2.bf16.msra.mxu0 0
  %5148 = vmatprep.mubr.bf16.mxu0 0
  %5149 = vmatmul.mubr.bf16.gmra.mxu0 %v5021
  %v5150 = vpop.f32.mrf.mxu0
  %v5151 = vadd.f32 0.0, %v5150
  %v5152 = vpop.f32.mrf.mxu0
  %v5153 = vpop.f32.mrf.mxu0
  %v5154 = vadd.f32 0.0, %v5153
  %v5155 = vpop.f32.mrf.mxu0
  %5156 = vmatprep.mubr.bf16.mxu0 0
  %5157 = vmatmul.mubr.bf16.gmra.mxu0 %v5024
  %v5158 = vpop.f32.mrf.mxu0
  %v5159 = vadd.f32 0.0, %v5158
  %v5160 = vpop.f32.mrf.mxu0
  %v5161 = vpop.f32.mrf.mxu0
  %v5162 = vadd.f32 0.0, %v5161
  %v5163 = vpop.f32.mrf.mxu0
  %5164 = vmatprep.mubr.bf16.mxu0 0
  %5165 = vmatmul.mubr.bf16.gmra.mxu0 %v5027
  %v5166 = vpop.f32.mrf.mxu0
  %v5167 = vadd.f32 0.0, %v5166
  %v5168 = vpop.f32.mrf.mxu0
  %v5169 = vpop.f32.mrf.mxu0
  %v5170 = vadd.f32 0.0, %v5169
  %v5171 = vpop.f32.mrf.mxu0
  %5172 = vmatprep.mubr.bf16.mxu0 0
  %5173 = vmatmul.mubr.bf16.gmra.mxu0 %v5030
  %v5174 = vpop.f32.mrf.mxu0
  %v5175 = vadd.f32 0.0, %v5174
  %v5176 = vpop.f32.mrf.mxu0
  %v5177 = vpop.f32.mrf.mxu0
  %v5178 = vadd.f32 0.0, %v5177
  %v5179 = vpop.f32.mrf.mxu0
  %5180 = vmatprep.mubr.bf16.mxu0 0
  %5181 = vmatmul.mubr.bf16.gmra.mxu0 %v5033
  %v5182 = vpop.f32.mrf.mxu0
  %v5183 = vadd.f32 0.0, %v5182
  %v5184 = vpop.f32.mrf.mxu0
  %v5185 = vpop.f32.mrf.mxu0
  %v5186 = vadd.f32 0.0, %v5185
  %v5187 = vpop.f32.mrf.mxu0
  %5188 = vmatprep.mubr.bf16.mxu0 0
  %5189 = vmatmul.mubr.bf16.gmra.mxu0 %v5036
  %v5190 = vpop.f32.mrf.mxu0
  %v5191 = vadd.f32 0.0, %v5190
  %v5192 = vpop.f32.mrf.mxu0
  %v5193 = vpop.f32.mrf.mxu0
  %v5194 = vadd.f32 0.0, %v5193
  %v5195 = vpop.f32.mrf.mxu0
  %5196 = vmatprep.mubr.bf16.mxu0 0
  %5197 = vmatmul.mubr.bf16.gmra.mxu0 %v5039
  %v5198 = vpop.f32.mrf.mxu0
  %v5199 = vadd.f32 0.0, %v5198
  %v5200 = vpop.f32.mrf.mxu0
  %v5201 = vpop.f32.mrf.mxu0
  %v5202 = vadd.f32 0.0, %v5201
  %v5203 = vpop.f32.mrf.mxu0
  %5204 = vmatprep.mubr.bf16.mxu0 0
  %5205 = vmatmul.mubr.bf16.gmra.mxu0 %v5042
  %v5206 = vpop.f32.mrf.mxu0
  %v5207 = vadd.f32 0.0, %v5206
  %v5208 = vpop.f32.mrf.mxu0
  %v5209 = vpop.f32.mrf.mxu0
  %v5210 = vadd.f32 0.0, %v5209
  %v5211 = vpop.f32.mrf.mxu0
  %5212 = vmatprep.mubr.bf16.mxu0 0
  %5213 = vmatmul.mubr.bf16.gmra.mxu0 %v5045
  %v5214 = vpop.f32.mrf.mxu0
  %v5215 = vadd.f32 0.0, %v5214
  %v5216 = vpop.f32.mrf.mxu0
  %v5217 = vpop.f32.mrf.mxu0
  %v5218 = vadd.f32 0.0, %v5217
  %v5219 = vpop.f32.mrf.mxu0
  %5220 = vmatprep.mubr.bf16.mxu0 0
  %5221 = vmatmul.mubr.bf16.gmra.mxu0 %v5048
  %v5222 = vpop.f32.mrf.mxu0
  %v5223 = vadd.f32 0.0, %v5222
  %v5224 = vpop.f32.mrf.mxu0
  %v5225 = vpop.f32.mrf.mxu0
  %v5226 = vadd.f32 0.0, %v5225
  %v5227 = vpop.f32.mrf.mxu0
  %5228 = vmatprep.mubr.bf16.mxu0 0
  %5229 = vmatmul.mubr.bf16.gmra.mxu0 %v5051
  %v5230 = vpop.f32.mrf.mxu0
  %v5231 = vadd.f32 0.0, %v5230
  %v5232 = vpop.f32.mrf.mxu0
  %v5233 = vpop.f32.mrf.mxu0
  %v5234 = vadd.f32 0.0, %v5233
  %v5235 = vpop.f32.mrf.mxu0
  %5236 = vmatprep.mubr.bf16.mxu0 0
  %5237 = vmatmul.mubr.bf16.gmra.mxu0 %v5054
  %v5238 = vpop.f32.mrf.mxu0
  %v5239 = vadd.f32 0.0, %v5238
  %v5240 = vpop.f32.mrf.mxu0
  %v5241 = vpop.f32.mrf.mxu0
  %v5242 = vadd.f32 0.0, %v5241
  %v5243 = vpop.f32.mrf.mxu0
  %5244 = vmatprep.mubr.bf16.mxu0 0
  %5245 = vmatmul.mubr.bf16.gmra.mxu0 %v5057
  %v5246 = vpop.f32.mrf.mxu0
  %v5247 = vadd.f32 0.0, %v5246
  %v5248 = vpop.f32.mrf.mxu0
  %v5249 = vpop.f32.mrf.mxu0
  %v5250 = vadd.f32 0.0, %v5249
  %v5251 = vpop.f32.mrf.mxu0
  %5252 = vmatprep.mubr.bf16.mxu0 0
  %5253 = vmatmul.mubr.bf16.gmra.mxu0 %v5060
  %v5254 = vpop.f32.mrf.mxu0
  %v5255 = vadd.f32 0.0, %v5254
  %v5256 = vpop.f32.mrf.mxu0
  %v5257 = vpop.f32.mrf.mxu0
  %v5258 = vadd.f32 0.0, %v5257
  %v5259 = vpop.f32.mrf.mxu0
  %5260 = vmatprep.mubr.bf16.mxu0 0
  %5261 = vmatmul.mubr.bf16.gmra.mxu0 %v5063
  %v5262 = vpop.f32.mrf.mxu0
  %v5263 = vadd.f32 0.0, %v5262
  %v5264 = vpop.f32.mrf.mxu0
  %v5265 = vpop.f32.mrf.mxu0
  %v5266 = vadd.f32 0.0, %v5265
  %v5267 = vpop.f32.mrf.mxu0
  %5268 = vmatprep.mubr.bf16.mxu0 0
  %5269 = vmatmul.mubr.bf16.gmra.mxu0 %v5066
  %v5270 = vpop.f32.mrf.mxu0
  %v5271 = vadd.f32 0.0, %v5270
  %v5272 = vpop.f32.mrf.mxu0
  %v5273 = vpop.f32.mrf.mxu0
  %v5274 = vadd.f32 0.0, %v5273
  %v5275 = vpop.f32.mrf.mxu0
  %5276 = vmatprep.mubr.bf16.mxu0 0
  %5277 = vmatmul.mubr.bf16.gmra.mxu0 %v5069
  %v5278 = vpop.f32.mrf.mxu0
  %v5279 = vadd.f32 0.0, %v5278
  %v5280 = vpop.f32.mrf.mxu0
  %v5281 = vpop.f32.mrf.mxu0
  %v5282 = vadd.f32 0.0, %v5281
  %v5283 = vpop.f32.mrf.mxu0
  %5284 = vmatprep.mubr.bf16.mxu0 0
  %5285 = vmatmul.mubr.bf16.gmra.mxu0 %v5072
  %v5286 = vpop.f32.mrf.mxu0
  %v5287 = vadd.f32 0.0, %v5286
  %v5288 = vpop.f32.mrf.mxu0
  %v5289 = vpop.f32.mrf.mxu0
  %v5290 = vadd.f32 0.0, %v5289
  %v5291 = vpop.f32.mrf.mxu0
  %5292 = vmatprep.mubr.bf16.mxu0 0
  %5293 = vmatmul.mubr.bf16.gmra.mxu0 %v5075
  %v5294 = vpop.f32.mrf.mxu0
  %v5295 = vadd.f32 0.0, %v5294
  %v5296 = vpop.f32.mrf.mxu0
  %v5297 = vpop.f32.mrf.mxu0
  %v5298 = vadd.f32 0.0, %v5297
  %v5299 = vpop.f32.mrf.mxu0
  %5300 = vmatprep.mubr.bf16.mxu0 0
  %5301 = vmatmul.mubr.bf16.gmra.mxu0 %v5078
  %v5302 = vpop.f32.mrf.mxu0
  %v5303 = vadd.f32 0.0, %v5302
  %v5304 = vpop.f32.mrf.mxu0
  %v5305 = vpop.f32.mrf.mxu0
  %v5306 = vadd.f32 0.0, %v5305
  %v5307 = vpop.f32.mrf.mxu0
  %5308 = vmatprep.mubr.bf16.mxu0 0
  %5309 = vmatmul.mubr.bf16.gmra.mxu0 %v5081
  %v5310 = vpop.f32.mrf.mxu0
  %v5311 = vadd.f32 0.0, %v5310
  %v5312 = vpop.f32.mrf.mxu0
  %v5313 = vpop.f32.mrf.mxu0
  %v5314 = vadd.f32 0.0, %v5313
  %v5315 = vpop.f32.mrf.mxu0
  %5316 = vmatprep.mubr.bf16.mxu0 0
  %5317 = vmatmul.mubr.bf16.gmra.mxu0 %v5084
  %v5318 = vpop.f32.mrf.mxu0
  %v5319 = vadd.f32 0.0, %v5318
  %v5320 = vpop.f32.mrf.mxu0
  %v5321 = vpop.f32.mrf.mxu0
  %v5322 = vadd.f32 0.0, %v5321
  %v5323 = vpop.f32.mrf.mxu0
  %5324 = vmatprep.mubr.bf16.mxu0 0
  %5325 = vmatmul.mubr.bf16.gmra.mxu0 %v5087
  %v5326 = vpop.f32.mrf.mxu0
  %v5327 = vadd.f32 0.0, %v5326
  %v5328 = vpop.f32.mrf.mxu0
  %v5329 = vpop.f32.mrf.mxu0
  %v5330 = vadd.f32 0.0, %v5329
  %v5331 = vpop.f32.mrf.mxu0
  %5332 = vmatprep.mubr.bf16.mxu0 0
  %5333 = vmatmul.mubr.bf16.gmra.mxu0 %v5090
  %v5334 = vpop.f32.mrf.mxu0
  %v5335 = vadd.f32 0.0, %v5334
  %v5336 = vpop.f32.mrf.mxu0
  %v5337 = vpop.f32.mrf.mxu0
  %v5338 = vadd.f32 0.0, %v5337
  %v5339 = vpop.f32.mrf.mxu0
  %5340 = vmatprep.mubr.bf16.mxu0 0
  %5341 = vmatmul.mubr.bf16.gmra.mxu0 %v5093
  %v5342 = vpop.f32.mrf.mxu0
  %v5343 = vadd.f32 0.0, %v5342
  %v5344 = vpop.f32.mrf.mxu0
  %v5345 = vpop.f32.mrf.mxu0
  %v5346 = vadd.f32 0.0, %v5345
  %v5347 = vpop.f32.mrf.mxu0
  %5348 = vmatprep.mubr.bf16.mxu0 0
  %5349 = vmatmul.mubr.bf16.gmra.mxu0 %v5096
  %v5350 = vpop.f32.mrf.mxu0
  %v5351 = vadd.f32 0.0, %v5350
  %v5352 = vpop.f32.mrf.mxu0
  %v5353 = vpop.f32.mrf.mxu0
  %v5354 = vadd.f32 0.0, %v5353
  %v5355 = vpop.f32.mrf.mxu0
  %5356 = vmatprep.mubr.bf16.mxu0 0
  %5357 = vmatmul.mubr.bf16.gmra.mxu0 %v5099
  %v5358 = vpop.f32.mrf.mxu0
  %v5359 = vadd.f32 0.0, %v5358
  %v5360 = vpop.f32.mrf.mxu0
  %v5361 = vpop.f32.mrf.mxu0
  %v5362 = vadd.f32 0.0, %v5361
  %v5363 = vpop.f32.mrf.mxu0
  %5364 = vmatprep.mubr.bf16.mxu0 0
  %5365 = vmatmul.mubr.bf16.gmra.mxu0 %v5102
  %v5366 = vpop.f32.mrf.mxu0
  %v5367 = vadd.f32 0.0, %v5366
  %v5368 = vpop.f32.mrf.mxu0
  %v5369 = vpop.f32.mrf.mxu0
  %v5370 = vadd.f32 0.0, %v5369
  %v5371 = vpop.f32.mrf.mxu0
  %5372 = vmatprep.mubr.bf16.mxu0 0
  %5373 = vmatmul.mubr.bf16.gmra.mxu0 %v5105
  %v5374 = vpop.f32.mrf.mxu0
  %v5375 = vadd.f32 0.0, %v5374
  %v5376 = vpop.f32.mrf.mxu0
  %v5377 = vpop.f32.mrf.mxu0
  %v5378 = vadd.f32 0.0, %v5377
  %v5379 = vpop.f32.mrf.mxu0
  %5380 = vmatprep.mubr.bf16.mxu0 0
  %5381 = vmatmul.mubr.bf16.gmra.mxu0 %v5108
  %v5382 = vpop.f32.mrf.mxu0
  %v5383 = vadd.f32 0.0, %v5382
  %v5384 = vpop.f32.mrf.mxu0
  %v5385 = vpop.f32.mrf.mxu0
  %v5386 = vadd.f32 0.0, %v5385
  %v5387 = vpop.f32.mrf.mxu0
  %5388 = vmatprep.mubr.bf16.mxu0 0
  %5389 = vmatmul.mubr.bf16.gmra.mxu0 %v5111
  %v5390 = vpop.f32.mrf.mxu0
  %v5391 = vadd.f32 0.0, %v5390
  %v5392 = vpop.f32.mrf.mxu0
  %v5393 = vpop.f32.mrf.mxu0
  %v5394 = vadd.f32 0.0, %v5393
  %v5395 = vpop.f32.mrf.mxu0
  %5396 = vmatprep.mubr.bf16.mxu0 0
  %5397 = vmatmul.mubr.bf16.gmra.mxu0 %v5114
  %v5398 = vpop.f32.mrf.mxu0
  %v5399 = vadd.f32 0.0, %v5398
  %v5400 = vpop.f32.mrf.mxu0
  %v5401 = vpop.f32.mrf.mxu0
  %v5402 = vadd.f32 0.0, %v5401
  %v5403 = vpop.f32.mrf.mxu0
  %5404 = vdwg.mxu0
  %vm5405 = vcmp.gt.f32.partialorder %v5151, 0.0
  %vm5406 = vcmp.gt.f32.partialorder %v5154, 0.0
  %vm5407 = vcmp.gt.f32.partialorder %v5159, 0.0
  %vm5408 = vcmp.gt.f32.partialorder %v5162, 0.0
  %vm5409 = vcmp.gt.f32.partialorder %v5167, 0.0
  %vm5410 = vcmp.gt.f32.partialorder %v5170, 0.0
  %vm5411 = vcmp.gt.f32.partialorder %v5175, 0.0
  %vm5412 = vcmp.gt.f32.partialorder %v5178, 0.0
  %vm5413 = vcmp.gt.f32.partialorder %v5183, 0.0
  %vm5414 = vcmp.gt.f32.partialorder %v5186, 0.0
  %vm5415 = vcmp.gt.f32.partialorder %v5191, 0.0
  %vm5416 = vcmp.gt.f32.partialorder %v5194, 0.0
  %vm5417 = vcmp.gt.f32.partialorder %v5199, 0.0
  %vm5418 = vcmp.gt.f32.partialorder %v5202, 0.0
  %vm5419 = vcmp.gt.f32.partialorder %v5207, 0.0
  %vm5420 = vcmp.gt.f32.partialorder %v5210, 0.0
  %vm5421 = vcmp.gt.f32.partialorder %v5215, 0.0
  %vm5422 = vcmp.gt.f32.partialorder %v5218, 0.0
  %vm5423 = vcmp.gt.f32.partialorder %v5223, 0.0
  %vm5424 = vcmp.gt.f32.partialorder %v5226, 0.0
  %vm5425 = vcmp.gt.f32.partialorder %v5231, 0.0
  %vm5426 = vcmp.gt.f32.partialorder %v5234, 0.0
  %vm5427 = vcmp.gt.f32.partialorder %v5239, 0.0
  %vm5428 = vcmp.gt.f32.partialorder %v5242, 0.0
  %vm5429 = vcmp.gt.f32.partialorder %v5247, 0.0
  %vm5430 = vcmp.gt.f32.partialorder %v5250, 0.0
  %vm5431 = vcmp.gt.f32.partialorder %v5255, 0.0
  %vm5432 = vcmp.gt.f32.partialorder %v5258, 0.0
  %vm5433 = vcmp.gt.f32.partialorder %v5263, 0.0
  %vm5434 = vcmp.gt.f32.partialorder %v5266, 0.0
  %vm5435 = vcmp.gt.f32.partialorder %v5271, 0.0
  %vm5436 = vcmp.gt.f32.partialorder %v5274, 0.0
  %vm5437 = vcmp.gt.f32.partialorder %v5279, 0.0
  %vm5438 = vcmp.gt.f32.partialorder %v5282, 0.0
  %vm5439 = vcmp.gt.f32.partialorder %v5287, 0.0
  %vm5440 = vcmp.gt.f32.partialorder %v5290, 0.0
  %vm5441 = vcmp.gt.f32.partialorder %v5295, 0.0
  %vm5442 = vcmp.gt.f32.partialorder %v5298, 0.0
  %vm5443 = vcmp.gt.f32.partialorder %v5303, 0.0
  %vm5444 = vcmp.gt.f32.partialorder %v5306, 0.0
  %vm5445 = vcmp.gt.f32.partialorder %v5311, 0.0
  %vm5446 = vcmp.gt.f32.partialorder %v5314, 0.0
  %vm5447 = vcmp.gt.f32.partialorder %v5319, 0.0
  %vm5448 = vcmp.gt.f32.partialorder %v5322, 0.0
  %vm5449 = vcmp.gt.f32.partialorder %v5327, 0.0
  %vm5450 = vcmp.gt.f32.partialorder %v5330, 0.0
  %vm5451 = vcmp.gt.f32.partialorder %v5335, 0.0
  %vm5452 = vcmp.gt.f32.partialorder %v5338, 0.0
  %vm5453 = vcmp.gt.f32.partialorder %v5343, 0.0
  %vm5454 = vcmp.gt.f32.partialorder %v5346, 0.0
  %vm5455 = vcmp.gt.f32.partialorder %v5351, 0.0
  %vm5456 = vcmp.gt.f32.partialorder %v5354, 0.0
  %vm5457 = vcmp.gt.f32.partialorder %v5359, 0.0
  %vm5458 = vcmp.gt.f32.partialorder %v5362, 0.0
  %vm5459 = vcmp.gt.f32.partialorder %v5367, 0.0
  %vm5460 = vcmp.gt.f32.partialorder %v5370, 0.0
  %vm5461 = vcmp.gt.f32.partialorder %v5375, 0.0
  %vm5462 = vcmp.gt.f32.partialorder %v5378, 0.0
  %vm5463 = vcmp.gt.f32.partialorder %v5383, 0.0
  %vm5464 = vcmp.gt.f32.partialorder %v5386, 0.0
  %vm5465 = vcmp.gt.f32.partialorder %v5391, 0.0
  %vm5466 = vcmp.gt.f32.partialorder %v5394, 0.0
  %vm5467 = vcmp.gt.f32.partialorder %v5399, 0.0
  %vm5468 = vcmp.gt.f32.partialorder %v5402, 0.0
  %v5469 = vmul.f32 %v5151, 0.2
  %v5470 = vmul.f32 %v5154, 0.2
  %v5471 = vmul.f32 %v5159, 0.2
  %v5472 = vmul.f32 %v5162, 0.2
  %v5473 = vmul.f32 %v5167, 0.2
  %v5474 = vmul.f32 %v5170, 0.2
  %v5475 = vmul.f32 %v5175, 0.2
  %v5476 = vmul.f32 %v5178, 0.2
  %v5477 = vmul.f32 %v5183, 0.2
  %v5478 = vmul.f32 %v5186, 0.2
  %v5479 = vmul.f32 %v5191, 0.2
  %v5480 = vmul.f32 %v5194, 0.2
  %v5481 = vmul.f32 %v5199, 0.2
  %v5482 = vmul.f32 %v5202, 0.2
  %v5483 = vmul.f32 %v5207, 0.2
  %v5484 = vmul.f32 %v5210, 0.2
  %v5485 = vmul.f32 %v5215, 0.2
  %v5486 = vmul.f32 %v5218, 0.2
  %v5487 = vmul.f32 %v5223, 0.2
  %v5488 = vmul.f32 %v5226, 0.2
  %v5489 = vmul.f32 %v5231, 0.2
  %v5490 = vmul.f32 %v5234, 0.2
  %v5491 = vmul.f32 %v5239, 0.2
  %v5492 = vmul.f32 %v5242, 0.2
  %v5493 = vmul.f32 %v5247, 0.2
  %v5494 = vmul.f32 %v5250, 0.2
  %v5495 = vmul.f32 %v5255, 0.2
  %v5496 = vmul.f32 %v5258, 0.2
  %v5497 = vmul.f32 %v5263, 0.2
  %v5498 = vmul.f32 %v5266, 0.2
  %v5499 = vmul.f32 %v5271, 0.2
  %v5500 = vmul.f32 %v5274, 0.2
  %v5501 = vmul.f32 %v5279, 0.2
  %v5502 = vmul.f32 %v5282, 0.2
  %v5503 = vmul.f32 %v5287, 0.2
  %v5504 = vmul.f32 %v5290, 0.2
  %v5505 = vmul.f32 %v5295, 0.2
  %v5506 = vmul.f32 %v5298, 0.2
  %v5507 = vmul.f32 %v5303, 0.2
  %v5508 = vmul.f32 %v5306, 0.2
  %v5509 = vmul.f32 %v5311, 0.2
  %v5510 = vmul.f32 %v5314, 0.2
  %v5511 = vmul.f32 %v5319, 0.2
  %v5512 = vmul.f32 %v5322, 0.2
  %v5513 = vmul.f32 %v5327, 0.2
  %v5514 = vmul.f32 %v5330, 0.2
  %v5515 = vmul.f32 %v5335, 0.2
  %v5516 = vmul.f32 %v5338, 0.2
  %v5517 = vmul.f32 %v5343, 0.2
  %v5518 = vmul.f32 %v5346, 0.2
  %v5519 = vmul.f32 %v5351, 0.2
  %v5520 = vmul.f32 %v5354, 0.2
  %v5521 = vmul.f32 %v5359, 0.2
  %v5522 = vmul.f32 %v5362, 0.2
  %v5523 = vmul.f32 %v5367, 0.2
  %v5524 = vmul.f32 %v5370, 0.2
  %v5525 = vmul.f32 %v5375, 0.2
  %v5526 = vmul.f32 %v5378, 0.2
  %v5527 = vmul.f32 %v5383, 0.2
  %v5528 = vmul.f32 %v5386, 0.2
  %v5529 = vmul.f32 %v5391, 0.2
  %v5530 = vmul.f32 %v5394, 0.2
  %v5531 = vmul.f32 %v5399, 0.2
  %v5532 = vmul.f32 %v5402, 0.2
  %v5533 = vsel %vm5405, %v5151, %v5469
  %v5534 = vsel %vm5406, %v5154, %v5470
  %v5535 = vsel %vm5407, %v5159, %v5471
  %v5536 = vsel %vm5408, %v5162, %v5472
  %v5537 = vsel %vm5409, %v5167, %v5473
  %v5538 = vsel %vm5410, %v5170, %v5474
  %v5539 = vsel %vm5411, %v5175, %v5475
  %v5540 = vsel %vm5412, %v5178, %v5476
  %v5541 = vsel %vm5413, %v5183, %v5477
  %v5542 = vsel %vm5414, %v5186, %v5478
  %v5543 = vsel %vm5415, %v5191, %v5479
  %v5544 = vsel %vm5416, %v5194, %v5480
  %v5545 = vsel %vm5417, %v5199, %v5481
  %v5546 = vsel %vm5418, %v5202, %v5482
  %v5547 = vsel %vm5419, %v5207, %v5483
  %v5548 = vsel %vm5420, %v5210, %v5484
  %v5549 = vsel %vm5421, %v5215, %v5485
  %v5550 = vsel %vm5422, %v5218, %v5486
  %v5551 = vsel %vm5423, %v5223, %v5487
  %v5552 = vsel %vm5424, %v5226, %v5488
  %v5553 = vsel %vm5425, %v5231, %v5489
  %v5554 = vsel %vm5426, %v5234, %v5490
  %v5555 = vsel %vm5427, %v5239, %v5491
  %v5556 = vsel %vm5428, %v5242, %v5492
  %v5557 = vsel %vm5429, %v5247, %v5493
  %v5558 = vsel %vm5430, %v5250, %v5494
  %v5559 = vsel %vm5431, %v5255, %v5495
  %v5560 = vsel %vm5432, %v5258, %v5496
  %v5561 = vsel %vm5433, %v5263, %v5497
  %v5562 = vsel %vm5434, %v5266, %v5498
  %v5563 = vsel %vm5435, %v5271, %v5499
  %v5564 = vsel %vm5436, %v5274, %v5500
  %v5565 = vsel %vm5437, %v5279, %v5501
  %v5566 = vsel %vm5438, %v5282, %v5502
  %v5567 = vsel %vm5439, %v5287, %v5503
  %v5568 = vsel %vm5440, %v5290, %v5504
  %v5569 = vsel %vm5441, %v5295, %v5505
  %v5570 = vsel %vm5442, %v5298, %v5506
  %v5571 = vsel %vm5443, %v5303, %v5507
  %v5572 = vsel %vm5444, %v5306, %v5508
  %v5573 = vsel %vm5445, %v5311, %v5509
  %v5574 = vsel %vm5446, %v5314, %v5510
  %v5575 = vsel %vm5447, %v5319, %v5511
  %v5576 = vsel %vm5448, %v5322, %v5512
  %v5577 = vsel %vm5449, %v5327, %v5513
  %v5578 = vsel %vm5450, %v5330, %v5514
  %v5579 = vsel %vm5451, %v5335, %v5515
  %v5580 = vsel %vm5452, %v5338, %v5516
  %v5581 = vsel %vm5453, %v5343, %v5517
  %v5582 = vsel %vm5454, %v5346, %v5518
  %v5583 = vsel %vm5455, %v5351, %v5519
  %v5584 = vsel %vm5456, %v5354, %v5520
  %v5585 = vsel %vm5457, %v5359, %v5521
  %v5586 = vsel %vm5458, %v5362, %v5522
  %v5587 = vsel %vm5459, %v5367, %v5523
  %v5588 = vsel %vm5460, %v5370, %v5524
  %v5589 = vsel %vm5461, %v5375, %v5525
  %v5590 = vsel %vm5462, %v5378, %v5526
  %v5591 = vsel %vm5463, %v5383, %v5527
  %v5592 = vsel %vm5464, %v5386, %v5528
  %v5593 = vsel %vm5465, %v5391, %v5529
  %v5594 = vsel %vm5466, %v5394, %v5530
  %v5595 = vsel %vm5467, %v5399, %v5531
  %v5596 = vsel %vm5468, %v5402, %v5532
  %5661 = vrot.lane.b32.xlu0 %v5533, 24
  %v5662 = vpop.permute.xlu0 %5661
  %5663 = vrot.lane.b32.xlu0 %v5534, 24
  %v5664 = vpop.permute.xlu0 %5663
  %5665 = vrot.lane.b32.xlu0 %v5535, 24
  %v5666 = vpop.permute.xlu0 %5665
  %5667 = vrot.lane.b32.xlu0 %v5536, 24
  %v5668 = vpop.permute.xlu0 %5667
  %5669 = vrot.lane.b32.xlu0 %v5537, 24
  %v5670 = vpop.permute.xlu0 %5669
  %5671 = vrot.lane.b32.xlu0 %v5538, 24
  %v5672 = vpop.permute.xlu0 %5671
  %5673 = vrot.lane.b32.xlu0 %v5539, 24
  %v5674 = vpop.permute.xlu0 %5673
  %5675 = vrot.lane.b32.xlu0 %v5540, 24
  %v5676 = vpop.permute.xlu0 %5675
  %5677 = vrot.lane.b32.xlu0 %v5541, 24
  %v5678 = vpop.permute.xlu0 %5677
  %5679 = vrot.lane.b32.xlu0 %v5542, 24
  %v5680 = vpop.permute.xlu0 %5679
  %5681 = vrot.lane.b32.xlu0 %v5543, 24
  %v5682 = vpop.permute.xlu0 %5681
  %5683 = vrot.lane.b32.xlu0 %v5544, 24
  %v5684 = vpop.permute.xlu0 %5683
  %5685 = vrot.lane.b32.xlu0 %v5545, 24
  %v5686 = vpop.permute.xlu0 %5685
  %5687 = vrot.lane.b32.xlu0 %v5546, 24
  %v5688 = vpop.permute.xlu0 %5687
  %5689 = vrot.lane.b32.xlu0 %v5547, 24
  %v5690 = vpop.permute.xlu0 %5689
  %5691 = vrot.lane.b32.xlu0 %v5548, 24
  %v5692 = vpop.permute.xlu0 %5691
  %5693 = vrot.lane.b32.xlu0 %v5549, 24
  %v5694 = vpop.permute.xlu0 %5693
  %5695 = vrot.lane.b32.xlu0 %v5550, 24
  %v5696 = vpop.permute.xlu0 %5695
  %5697 = vrot.lane.b32.xlu0 %v5551, 24
  %v5698 = vpop.permute.xlu0 %5697
  %5699 = vrot.lane.b32.xlu0 %v5552, 24
  %v5700 = vpop.permute.xlu0 %5699
  %5701 = vrot.lane.b32.xlu0 %v5553, 24
  %v5702 = vpop.permute.xlu0 %5701
  %5703 = vrot.lane.b32.xlu0 %v5554, 24
  %v5704 = vpop.permute.xlu0 %5703
  %5705 = vrot.lane.b32.xlu0 %v5555, 24
  %v5706 = vpop.permute.xlu0 %5705
  %5707 = vrot.lane.b32.xlu0 %v5556, 24
  %v5708 = vpop.permute.xlu0 %5707
  %5709 = vrot.lane.b32.xlu0 %v5557, 24
  %v5710 = vpop.permute.xlu0 %5709
  %5711 = vrot.lane.b32.xlu0 %v5558, 24
  %v5712 = vpop.permute.xlu0 %5711
  %5713 = vrot.lane.b32.xlu0 %v5559, 24
  %v5714 = vpop.permute.xlu0 %5713
  %5715 = vrot.lane.b32.xlu0 %v5560, 24
  %v5716 = vpop.permute.xlu0 %5715
  %5717 = vrot.lane.b32.xlu0 %v5561, 24
  %v5718 = vpop.permute.xlu0 %5717
  %5719 = vrot.lane.b32.xlu0 %v5562, 24
  %v5720 = vpop.permute.xlu0 %5719
  %5721 = vrot.lane.b32.xlu0 %v5563, 24
  %v5722 = vpop.permute.xlu0 %5721
  %5723 = vrot.lane.b32.xlu0 %v5564, 24
  %v5724 = vpop.permute.xlu0 %5723
  %5725 = vrot.lane.b32.xlu0 %v5565, 24
  %v5726 = vpop.permute.xlu0 %5725
  %5727 = vrot.lane.b32.xlu0 %v5566, 24
  %v5728 = vpop.permute.xlu0 %5727
  %5729 = vrot.lane.b32.xlu0 %v5567, 24
  %v5730 = vpop.permute.xlu0 %5729
  %5731 = vrot.lane.b32.xlu0 %v5568, 24
  %v5732 = vpop.permute.xlu0 %5731
  %5733 = vrot.lane.b32.xlu0 %v5569, 24
  %v5734 = vpop.permute.xlu0 %5733
  %5735 = vrot.lane.b32.xlu0 %v5570, 24
  %v5736 = vpop.permute.xlu0 %5735
  %5737 = vrot.lane.b32.xlu0 %v5571, 24
  %v5738 = vpop.permute.xlu0 %5737
  %5739 = vrot.lane.b32.xlu0 %v5572, 24
  %v5740 = vpop.permute.xlu0 %5739
  %5741 = vrot.lane.b32.xlu0 %v5573, 24
  %v5742 = vpop.permute.xlu0 %5741
  %5743 = vrot.lane.b32.xlu0 %v5574, 24
  %v5744 = vpop.permute.xlu0 %5743
  %5745 = vrot.lane.b32.xlu0 %v5575, 24
  %v5746 = vpop.permute.xlu0 %5745
  %5747 = vrot.lane.b32.xlu0 %v5576, 24
  %v5748 = vpop.permute.xlu0 %5747
  %5749 = vrot.lane.b32.xlu0 %v5577, 24
  %v5750 = vpop.permute.xlu0 %5749
  %5751 = vrot.lane.b32.xlu0 %v5578, 24
  %v5752 = vpop.permute.xlu0 %5751
  %5753 = vrot.lane.b32.xlu0 %v5579, 24
  %v5754 = vpop.permute.xlu0 %5753
  %5755 = vrot.lane.b32.xlu0 %v5580, 24
  %v5756 = vpop.permute.xlu0 %5755
  %5757 = vrot.lane.b32.xlu0 %v5581, 24
  %v5758 = vpop.permute.xlu0 %5757
  %5759 = vrot.lane.b32.xlu0 %v5582, 24
  %v5760 = vpop.permute.xlu0 %5759
  %5761 = vrot.lane.b32.xlu0 %v5583, 24
  %v5762 = vpop.permute.xlu0 %5761
  %5763 = vrot.lane.b32.xlu0 %v5584, 24
  %v5764 = vpop.permute.xlu0 %5763
  %5765 = vrot.lane.b32.xlu0 %v5585, 24
  %v5766 = vpop.permute.xlu0 %5765
  %5767 = vrot.lane.b32.xlu0 %v5586, 24
  %v5768 = vpop.permute.xlu0 %5767
  %5769 = vrot.lane.b32.xlu0 %v5587, 24
  %v5770 = vpop.permute.xlu0 %5769
  %5771 = vrot.lane.b32.xlu0 %v5588, 24
  %v5772 = vpop.permute.xlu0 %5771
  %5773 = vrot.lane.b32.xlu0 %v5589, 24
  %v5774 = vpop.permute.xlu0 %5773
  %5775 = vrot.lane.b32.xlu0 %v5590, 24
  %v5776 = vpop.permute.xlu0 %5775
  %5777 = vrot.lane.b32.xlu0 %v5591, 24
  %v5778 = vpop.permute.xlu0 %5777
  %5779 = vrot.lane.b32.xlu0 %v5592, 24
  %v5780 = vpop.permute.xlu0 %5779
  %5781 = vrot.lane.b32.xlu0 %v5593, 24
  %v5782 = vpop.permute.xlu0 %5781
  %5783 = vrot.lane.b32.xlu0 %v5594, 24
  %v5784 = vpop.permute.xlu0 %5783
  %5785 = vrot.lane.b32.xlu0 %v5595, 24
  %v5786 = vpop.permute.xlu0 %5785
  %5787 = vrot.lane.b32.xlu0 %v5596, 24
  %v5788 = vpop.permute.xlu0 %5787
  %vm5853 = vcmask 261312
  %5854 = vst.msk [vmem:[%s2214] sm:$0xff] %vm5853, %v5662
  %5855 = vst.msk [vmem:[%s2214 + $0x10] sm:$0xff] %vm5853, %v5664
  %5856 = vst.msk [vmem:[%s2214 + $0x20] sm:$0xff] %vm5853, %v5666
  %5857 = vst.msk [vmem:[%s2214 + $0x30] sm:$0xff] %vm5853, %v5668
  %5858 = vst.msk [vmem:[%s2214 + $0x40] sm:$0xff] %vm5853, %v5670
  %5859 = vst.msk [vmem:[%s2214 + $0x50] sm:$0xff] %vm5853, %v5672
  %5860 = vst.msk [vmem:[%s2214 + $0x60] sm:$0xff] %vm5853, %v5674
  %5861 = vst.msk [vmem:[%s2214 + $0x70] sm:$0xff] %vm5853, %v5676
  %5862 = vst.msk [vmem:[%s2214 + $0x80] sm:$0xff] %vm5853, %v5678
  %5863 = vst.msk [vmem:[%s2214 + $0x90] sm:$0xff] %vm5853, %v5680
  %5864 = vst.msk [vmem:[%s2214 + $0xa0] sm:$0xff] %vm5853, %v5682
  %5865 = vst.msk [vmem:[%s2214 + $0xb0] sm:$0xff] %vm5853, %v5684
  %5866 = vst.msk [vmem:[%s2214 + $0xc0] sm:$0xff] %vm5853, %v5686
  %5867 = vst.msk [vmem:[%s2214 + $0xd0] sm:$0xff] %vm5853, %v5688
  %5868 = vst.msk [vmem:[%s2214 + $0xe0] sm:$0xff] %vm5853, %v5690
  %5869 = vst.msk [vmem:[%s2214 + $0xf0] sm:$0xff] %vm5853, %v5692
  %5870 = vst.msk [vmem:[%s2214 + $0x100] sm:$0xff] %vm5853, %v5694
  %5871 = vst.msk [vmem:[%s2214 + $0x110] sm:$0xff] %vm5853, %v5696
  %5872 = vst.msk [vmem:[%s2214 + $0x120] sm:$0xff] %vm5853, %v5698
  %5873 = vst.msk [vmem:[%s2214 + $0x130] sm:$0xff] %vm5853, %v5700
  %5874 = vst.msk [vmem:[%s2214 + $0x140] sm:$0xff] %vm5853, %v5702
  %5875 = vst.msk [vmem:[%s2214 + $0x150] sm:$0xff] %vm5853, %v5704
  %5876 = vst.msk [vmem:[%s2214 + $0x160] sm:$0xff] %vm5853, %v5706
  %5877 = vst.msk [vmem:[%s2214 + $0x170] sm:$0xff] %vm5853, %v5708
  %5878 = vst.msk [vmem:[%s2214 + $0x180] sm:$0xff] %vm5853, %v5710
  %5879 = vst.msk [vmem:[%s2214 + $0x190] sm:$0xff] %vm5853, %v5712
  %5880 = vst.msk [vmem:[%s2214 + $0x1a0] sm:$0xff] %vm5853, %v5714
  %5881 = vst.msk [vmem:[%s2214 + $0x1b0] sm:$0xff] %vm5853, %v5716
  %5882 = vst.msk [vmem:[%s2214 + $0x1c0] sm:$0xff] %vm5853, %v5718
  %5883 = vst.msk [vmem:[%s2214 + $0x1d0] sm:$0xff] %vm5853, %v5720
  %5884 = vst.msk [vmem:[%s2214 + $0x1e0] sm:$0xff] %vm5853, %v5722
  %5885 = vst.msk [vmem:[%s2214 + $0x1f0] sm:$0xff] %vm5853, %v5724
  %5886 = vst.msk [vmem:[%s2214 + $0x220] sm:$0xff] %vm5853, %v5726
  %5887 = vst.msk [vmem:[%s2214 + $0x230] sm:$0xff] %vm5853, %v5728
  %5888 = vst.msk [vmem:[%s2214 + $0x240] sm:$0xff] %vm5853, %v5730
  %5889 = vst.msk [vmem:[%s2214 + $0x250] sm:$0xff] %vm5853, %v5732
  %5890 = vst.msk [vmem:[%s2214 + $0x260] sm:$0xff] %vm5853, %v5734
  %5891 = vst.msk [vmem:[%s2214 + $0x270] sm:$0xff] %vm5853, %v5736
  %5892 = vst.msk [vmem:[%s2214 + $0x280] sm:$0xff] %vm5853, %v5738
  %5893 = vst.msk [vmem:[%s2214 + $0x290] sm:$0xff] %vm5853, %v5740
  %5894 = vst.msk [vmem:[%s2214 + $0x2a0] sm:$0xff] %vm5853, %v5742
  %5895 = vst.msk [vmem:[%s2214 + $0x2b0] sm:$0xff] %vm5853, %v5744
  %5896 = vst.msk [vmem:[%s2214 + $0x2c0] sm:$0xff] %vm5853, %v5746
  %5897 = vst.msk [vmem:[%s2214 + $0x2d0] sm:$0xff] %vm5853, %v5748
  %5898 = vst.msk [vmem:[%s2214 + $0x2e0] sm:$0xff] %vm5853, %v5750
  %5899 = vst.msk [vmem:[%s2214 + $0x2f0] sm:$0xff] %vm5853, %v5752
  %5900 = vst.msk [vmem:[%s2214 + $0x300] sm:$0xff] %vm5853, %v5754
  %5901 = vst.msk [vmem:[%s2214 + $0x310] sm:$0xff] %vm5853, %v5756
  %5902 = vst.msk [vmem:[%s2214 + $0x320] sm:$0xff] %vm5853, %v5758
  %5903 = vst.msk [vmem:[%s2214 + $0x330] sm:$0xff] %vm5853, %v5760
  %5904 = vst.msk [vmem:[%s2214 + $0x340] sm:$0xff] %vm5853, %v5762
  %5905 = vst.msk [vmem:[%s2214 + $0x350] sm:$0xff] %vm5853, %v5764
  %5906 = vst.msk [vmem:[%s2214 + $0x360] sm:$0xff] %vm5853, %v5766
  %5907 = vst.msk [vmem:[%s2214 + $0x370] sm:$0xff] %vm5853, %v5768
  %5908 = vst.msk [vmem:[%s2214 + $0x380] sm:$0xff] %vm5853, %v5770
  %5909 = vst.msk [vmem:[%s2214 + $0x390] sm:$0xff] %vm5853, %v5772
  %5910 = vst.msk [vmem:[%s2214 + $0x3a0] sm:$0xff] %vm5853, %v5774
  %5911 = vst.msk [vmem:[%s2214 + $0x3b0] sm:$0xff] %vm5853, %v5776
  %5912 = vst.msk [vmem:[%s2214 + $0x3c0] sm:$0xff] %vm5853, %v5778
  %5913 = vst.msk [vmem:[%s2214 + $0x3d0] sm:$0xff] %vm5853, %v5780
  %5914 = vst.msk [vmem:[%s2214 + $0x3e0] sm:$0xff] %vm5853, %v5782
  %5915 = vst.msk [vmem:[%s2214 + $0x3f0] sm:$0xff] %vm5853, %v5784
  %5916 = vst.msk [vmem:[%s2214 + $0x400] sm:$0xff] %vm5853, %v5786
  %5917 = vst.msk [vmem:[%s2214 + $0x410] sm:$0xff] %vm5853, %v5788
  %5918 = vrot.lane.b32.xlu0 %v159, 110
  %v5919 = vpop.permute.xlu0 %5918
  %5920 = vrot.lane.b32.xlu0 %v163, 110
  %v5921 = vpop.permute.xlu0 %5920
  %5922 = vrot.lane.b32.xlu0 %v167, 110
  %v5923 = vpop.permute.xlu0 %5922
  %5924 = vrot.lane.b32.xlu0 %v171, 110
  %v5925 = vpop.permute.xlu0 %5924
  %5926 = vrot.lane.b32.xlu0 %v175, 110
  %v5927 = vpop.permute.xlu0 %5926
  %5928 = vrot.lane.b32.xlu0 %v179, 110
  %v5929 = vpop.permute.xlu0 %5928
  %5930 = vrot.lane.b32.xlu0 %v183, 110
  %v5931 = vpop.permute.xlu0 %5930
  %5932 = vrot.lane.b32.xlu0 %v187, 110
  %v5933 = vpop.permute.xlu0 %5932
  %5934 = vrot.lane.b32.xlu0 %v191, 110
  %v5935 = vpop.permute.xlu0 %5934
  %5936 = vrot.lane.b32.xlu0 %v195, 110
  %v5937 = vpop.permute.xlu0 %5936
  %5938 = vrot.lane.b32.xlu0 %v199, 110
  %v5939 = vpop.permute.xlu0 %5938
  %5940 = vrot.lane.b32.xlu0 %v203, 110
  %v5941 = vpop.permute.xlu0 %5940
  %5942 = vrot.lane.b32.xlu0 %v207, 110
  %v5943 = vpop.permute.xlu0 %5942
  %5944 = vrot.lane.b32.xlu0 %v211, 110
  %v5945 = vpop.permute.xlu0 %5944
  %5946 = vrot.lane.b32.xlu0 %v215, 110
  %v5947 = vpop.permute.xlu0 %5946
  %5948 = vrot.lane.b32.xlu0 %v219, 110
  %v5949 = vpop.permute.xlu0 %5948
  %5950 = vrot.lane.b32.xlu0 %v223, 110
  %v5951 = vpop.permute.xlu0 %5950
  %5952 = vrot.lane.b32.xlu0 %v227, 110
  %v5953 = vpop.permute.xlu0 %5952
  %5954 = vrot.lane.b32.xlu0 %v231, 110
  %v5955 = vpop.permute.xlu0 %5954
  %5956 = vrot.lane.b32.xlu0 %v235, 110
  %v5957 = vpop.permute.xlu0 %5956
  %5958 = vrot.lane.b32.xlu0 %v239, 110
  %v5959 = vpop.permute.xlu0 %5958
  %5960 = vrot.lane.b32.xlu0 %v243, 110
  %v5961 = vpop.permute.xlu0 %5960
  %5962 = vrot.lane.b32.xlu0 %v247, 110
  %v5963 = vpop.permute.xlu0 %5962
  %5964 = vrot.lane.b32.xlu0 %v251, 110
  %v5965 = vpop.permute.xlu0 %5964
  %5966 = vrot.lane.b32.xlu0 %v255, 110
  %v5967 = vpop.permute.xlu0 %5966
  %5968 = vrot.lane.b32.xlu0 %v259, 110
  %v5969 = vpop.permute.xlu0 %5968
  %5970 = vrot.lane.b32.xlu0 %v263, 110
  %v5971 = vpop.permute.xlu0 %5970
  %5972 = vrot.lane.b32.xlu0 %v267, 110
  %v5973 = vpop.permute.xlu0 %5972
  %5974 = vrot.lane.b32.xlu0 %v271, 110
  %v5975 = vpop.permute.xlu0 %5974
  %5976 = vrot.lane.b32.xlu0 %v275, 110
  %v5977 = vpop.permute.xlu0 %5976
  %5978 = vrot.lane.b32.xlu0 %v279, 110
  %v5979 = vpop.permute.xlu0 %5978
  %5980 = vrot.lane.b32.xlu0 %v283, 110
  %v5981 = vpop.permute.xlu0 %5980
  %5982 = vrot.lane.b32.xlu0 %v291, 110
  %v5983 = vpop.permute.xlu0 %5982
  %5984 = vrot.lane.b32.xlu0 %v295, 110
  %v5985 = vpop.permute.xlu0 %5984
  %5986 = vrot.lane.b32.xlu0 %v299, 110
  %v5987 = vpop.permute.xlu0 %5986
  %5988 = vrot.lane.b32.xlu0 %v303, 110
  %v5989 = vpop.permute.xlu0 %5988
  %5990 = vrot.lane.b32.xlu0 %v307, 110
  %v5991 = vpop.permute.xlu0 %5990
  %5992 = vrot.lane.b32.xlu0 %v311, 110
  %v5993 = vpop.permute.xlu0 %5992
  %5994 = vrot.lane.b32.xlu0 %v315, 110
  %v5995 = vpop.permute.xlu0 %5994
  %5996 = vrot.lane.b32.xlu0 %v319, 110
  %v5997 = vpop.permute.xlu0 %5996
  %5998 = vrot.lane.b32.xlu0 %v323, 110
  %v5999 = vpop.permute.xlu0 %5998
  %6000 = vrot.lane.b32.xlu0 %v327, 110
  %v6001 = vpop.permute.xlu0 %6000
  %6002 = vrot.lane.b32.xlu0 %v331, 110
  %v6003 = vpop.permute.xlu0 %6002
  %6004 = vrot.lane.b32.xlu0 %v335, 110
  %v6005 = vpop.permute.xlu0 %6004
  %6006 = vrot.lane.b32.xlu0 %v339, 110
  %v6007 = vpop.permute.xlu0 %6006
  %6008 = vrot.lane.b32.xlu0 %v343, 110
  %v6009 = vpop.permute.xlu0 %6008
  %6010 = vrot.lane.b32.xlu0 %v347, 110
  %v6011 = vpop.permute.xlu0 %6010
  %6012 = vrot.lane.b32.xlu0 %v351, 110
  %v6013 = vpop.permute.xlu0 %6012
  %6014 = vrot.lane.b32.xlu0 %v355, 110
  %v6015 = vpop.permute.xlu0 %6014
  %6016 = vrot.lane.b32.xlu0 %v359, 110
  %v6017 = vpop.permute.xlu0 %6016
  %6018 = vrot.lane.b32.xlu0 %v363, 110
  %v6019 = vpop.permute.xlu0 %6018
  %6020 = vrot.lane.b32.xlu0 %v367, 110
  %v6021 = vpop.permute.xlu0 %6020
  %6022 = vrot.lane.b32.xlu0 %v371, 110
  %v6023 = vpop.permute.xlu0 %6022
  %6024 = vrot.lane.b32.xlu0 %v375, 110
  %v6025 = vpop.permute.xlu0 %6024
  %6026 = vrot.lane.b32.xlu0 %v379, 110
  %v6027 = vpop.permute.xlu0 %6026
  %6028 = vrot.lane.b32.xlu0 %v383, 110
  %v6029 = vpop.permute.xlu0 %6028
  %6030 = vrot.lane.b32.xlu0 %v387, 110
  %v6031 = vpop.permute.xlu0 %6030
  %6032 = vrot.lane.b32.xlu0 %v391, 110
  %v6033 = vpop.permute.xlu0 %6032
  %6034 = vrot.lane.b32.xlu0 %v395, 110
  %v6035 = vpop.permute.xlu0 %6034
  %6036 = vrot.lane.b32.xlu0 %v399, 110
  %v6037 = vpop.permute.xlu0 %6036
  %6038 = vrot.lane.b32.xlu0 %v403, 110
  %v6039 = vpop.permute.xlu0 %6038
  %6040 = vrot.lane.b32.xlu0 %v407, 110
  %v6041 = vpop.permute.xlu0 %6040
  %6042 = vrot.lane.b32.xlu0 %v411, 110
  %v6043 = vpop.permute.xlu0 %6042
  %6044 = vrot.lane.b32.xlu0 %v415, 110
  %v6045 = vpop.permute.xlu0 %6044
  %vm6174 = vcmask 1046528
  %v6175 = vrot.slane %v159, 1
  %v6176 = vrot.slane %v160, 1
  %v6177 = vsel %vm6174, %v6175, %v6176
  %v6178 = vrot.slane %v163, 1
  %v6179 = vrot.slane %v164, 1
  %v6180 = vsel %vm6174, %v6178, %v6179
  %v6181 = vrot.slane %v167, 1
  %v6182 = vrot.slane %v168, 1
  %v6183 = vsel %vm6174, %v6181, %v6182
  %v6184 = vrot.slane %v171, 1
  %v6185 = vrot.slane %v172, 1
  %v6186 = vsel %vm6174, %v6184, %v6185
  %v6187 = vrot.slane %v175, 1
  %v6188 = vrot.slane %v176, 1
  %v6189 = vsel %vm6174, %v6187, %v6188
  %v6190 = vrot.slane %v179, 1
  %v6191 = vrot.slane %v180, 1
  %v6192 = vsel %vm6174, %v6190, %v6191
  %v6193 = vrot.slane %v183, 1
  %v6194 = vrot.slane %v184, 1
  %v6195 = vsel %vm6174, %v6193, %v6194
  %v6196 = vrot.slane %v187, 1
  %v6197 = vrot.slane %v188, 1
  %v6198 = vsel %vm6174, %v6196, %v6197
  %v6199 = vrot.slane %v191, 1
  %v6200 = vrot.slane %v192, 1
  %v6201 = vsel %vm6174, %v6199, %v6200
  %v6202 = vrot.slane %v195, 1
  %v6203 = vrot.slane %v196, 1
  %v6204 = vsel %vm6174, %v6202, %v6203
  %v6205 = vrot.slane %v199, 1
  %v6206 = vrot.slane %v200, 1
  %v6207 = vsel %vm6174, %v6205, %v6206
  %v6208 = vrot.slane %v203, 1
  %v6209 = vrot.slane %v204, 1
  %v6210 = vsel %vm6174, %v6208, %v6209
  %v6211 = vrot.slane %v207, 1
  %v6212 = vrot.slane %v208, 1
  %v6213 = vsel %vm6174, %v6211, %v6212
  %v6214 = vrot.slane %v211, 1
  %v6215 = vrot.slane %v212, 1
  %v6216 = vsel %vm6174, %v6214, %v6215
  %v6217 = vrot.slane %v215, 1
  %v6218 = vrot.slane %v216, 1
  %v6219 = vsel %vm6174, %v6217, %v6218
  %v6220 = vrot.slane %v219, 1
  %v6221 = vrot.slane %v220, 1
  %v6222 = vsel %vm6174, %v6220, %v6221
  %v6223 = vrot.slane %v223, 1
  %v6224 = vrot.slane %v224, 1
  %v6225 = vsel %vm6174, %v6223, %v6224
  %v6226 = vrot.slane %v227, 1
  %v6227 = vrot.slane %v228, 1
  %v6228 = vsel %vm6174, %v6226, %v6227
  %v6229 = vrot.slane %v231, 1
  %v6230 = vrot.slane %v232, 1
  %v6231 = vsel %vm6174, %v6229, %v6230
  %v6232 = vrot.slane %v235, 1
  %v6233 = vrot.slane %v236, 1
  %v6234 = vsel %vm6174, %v6232, %v6233
  %v6235 = vrot.slane %v239, 1
  %v6236 = vrot.slane %v240, 1
  %v6237 = vsel %vm6174, %v6235, %v6236
  %v6238 = vrot.slane %v243, 1
  %v6239 = vrot.slane %v244, 1
  %v6240 = vsel %vm6174, %v6238, %v6239
  %v6241 = vrot.slane %v247, 1
  %v6242 = vrot.slane %v248, 1
  %v6243 = vsel %vm6174, %v6241, %v6242
  %v6244 = vrot.slane %v251, 1
  %v6245 = vrot.slane %v252, 1
  %v6246 = vsel %vm6174, %v6244, %v6245
  %v6247 = vrot.slane %v255, 1
  %v6248 = vrot.slane %v256, 1
  %v6249 = vsel %vm6174, %v6247, %v6248
  %v6250 = vrot.slane %v259, 1
  %v6251 = vrot.slane %v260, 1
  %v6252 = vsel %vm6174, %v6250, %v6251
  %v6253 = vrot.slane %v263, 1
  %v6254 = vrot.slane %v264, 1
  %v6255 = vsel %vm6174, %v6253, %v6254
  %v6256 = vrot.slane %v267, 1
  %v6257 = vrot.slane %v268, 1
  %v6258 = vsel %vm6174, %v6256, %v6257
  %v6259 = vrot.slane %v271, 1
  %v6260 = vrot.slane %v272, 1
  %v6261 = vsel %vm6174, %v6259, %v6260
  %v6262 = vrot.slane %v275, 1
  %v6263 = vrot.slane %v276, 1
  %v6264 = vsel %vm6174, %v6262, %v6263
  %v6265 = vrot.slane %v279, 1
  %v6266 = vrot.slane %v280, 1
  %v6267 = vsel %vm6174, %v6265, %v6266
  %v6268 = vrot.slane %v283, 1
  %v6269 = vrot.slane %v284, 1
  %v6270 = vsel %vm6174, %v6268, %v6269
  %v6271 = vrot.slane %v291, 1
  %v6272 = vrot.slane %v292, 1
  %v6273 = vsel %vm6174, %v6271, %v6272
  %v6274 = vrot.slane %v295, 1
  %v6275 = vrot.slane %v296, 1
  %v6276 = vsel %vm6174, %v6274, %v6275
  %v6277 = vrot.slane %v299, 1
  %v6278 = vrot.slane %v300, 1
  %v6279 = vsel %vm6174, %v6277, %v6278
  %v6280 = vrot.slane %v303, 1
  %v6281 = vrot.slane %v304, 1
  %v6282 = vsel %vm6174, %v6280, %v6281
  %v6283 = vrot.slane %v307, 1
  %v6284 = vrot.slane %v308, 1
  %v6285 = vsel %vm6174, %v6283, %v6284
  %v6286 = vrot.slane %v311, 1
  %v6287 = vrot.slane %v312, 1
  %v6288 = vsel %vm6174, %v6286, %v6287
  %v6289 = vrot.slane %v315, 1
  %v6290 = vrot.slane %v316, 1
  %v6291 = vsel %vm6174, %v6289, %v6290
  %v6292 = vrot.slane %v319, 1
  %v6293 = vrot.slane %v320, 1
  %v6294 = vsel %vm6174, %v6292, %v6293
  %v6295 = vrot.slane %v323, 1
  %v6296 = vrot.slane %v324, 1
  %v6297 = vsel %vm6174, %v6295, %v6296
  %v6298 = vrot.slane %v327, 1
  %v6299 = vrot.slane %v328, 1
  %v6300 = vsel %vm6174, %v6298, %v6299
  %v6301 = vrot.slane %v331, 1
  %v6302 = vrot.slane %v332, 1
  %v6303 = vsel %vm6174, %v6301, %v6302
  %v6304 = vrot.slane %v335, 1
  %v6305 = vrot.slane %v336, 1
  %v6306 = vsel %vm6174, %v6304, %v6305
  %v6307 = vrot.slane %v339, 1
  %v6308 = vrot.slane %v340, 1
  %v6309 = vsel %vm6174, %v6307, %v6308
  %v6310 = vrot.slane %v343, 1
  %v6311 = vrot.slane %v344, 1
  %v6312 = vsel %vm6174, %v6310, %v6311
  %v6313 = vrot.slane %v347, 1
  %v6314 = vrot.slane %v348, 1
  %v6315 = vsel %vm6174, %v6313, %v6314
  %v6316 = vrot.slane %v351, 1
  %v6317 = vrot.slane %v352, 1
  %v6318 = vsel %vm6174, %v6316, %v6317
  %v6319 = vrot.slane %v355, 1
  %v6320 = vrot.slane %v356, 1
  %v6321 = vsel %vm6174, %v6319, %v6320
  %v6322 = vrot.slane %v359, 1
  %v6323 = vrot.slane %v360, 1
  %v6324 = vsel %vm6174, %v6322, %v6323
  %v6325 = vrot.slane %v363, 1
  %v6326 = vrot.slane %v364, 1
  %v6327 = vsel %vm6174, %v6325, %v6326
  %v6328 = vrot.slane %v367, 1
  %v6329 = vrot.slane %v368, 1
  %v6330 = vsel %vm6174, %v6328, %v6329
  %v6331 = vrot.slane %v371, 1
  %v6332 = vrot.slane %v372, 1
  %v6333 = vsel %vm6174, %v6331, %v6332
  %v6334 = vrot.slane %v375, 1
  %v6335 = vrot.slane %v376, 1
  %v6336 = vsel %vm6174, %v6334, %v6335
  %v6337 = vrot.slane %v379, 1
  %v6338 = vrot.slane %v380, 1
  %v6339 = vsel %vm6174, %v6337, %v6338
  %v6340 = vrot.slane %v383, 1
  %v6341 = vrot.slane %v384, 1
  %v6342 = vsel %vm6174, %v6340, %v6341
  %v6343 = vrot.slane %v387, 1
  %v6344 = vrot.slane %v388, 1
  %v6345 = vsel %vm6174, %v6343, %v6344
  %v6346 = vrot.slane %v391, 1
  %v6347 = vrot.slane %v392, 1
  %v6348 = vsel %vm6174, %v6346, %v6347
  %v6349 = vrot.slane %v395, 1
  %v6350 = vrot.slane %v396, 1
  %v6351 = vsel %vm6174, %v6349, %v6350
  %v6352 = vrot.slane %v399, 1
  %v6353 = vrot.slane %v400, 1
  %v6354 = vsel %vm6174, %v6352, %v6353
  %v6355 = vrot.slane %v403, 1
  %v6356 = vrot.slane %v404, 1
  %v6357 = vsel %vm6174, %v6355, %v6356
  %v6358 = vrot.slane %v407, 1
  %v6359 = vrot.slane %v408, 1
  %v6360 = vsel %vm6174, %v6358, %v6359
  %v6361 = vrot.slane %v411, 1
  %v6362 = vrot.slane %v412, 1
  %v6363 = vsel %vm6174, %v6361, %v6362
  %v6364 = vrot.slane %v415, 1
  %v6365 = vrot.slane %v416, 1
  %v6366 = vsel %vm6174, %v6364, %v6365
  %6367 = vrot.lane.b32.xlu0 %v6177, 6
  %v6368 = vpop.permute.xlu0 %6367
  %6369 = vrot.lane.b32.xlu0 %v6180, 6
  %v6370 = vpop.permute.xlu0 %6369
  %6371 = vrot.lane.b32.xlu0 %v6183, 6
  %v6372 = vpop.permute.xlu0 %6371
  %6373 = vrot.lane.b32.xlu0 %v6186, 6
  %v6374 = vpop.permute.xlu0 %6373
  %6375 = vrot.lane.b32.xlu0 %v6189, 6
  %v6376 = vpop.permute.xlu0 %6375
  %6377 = vrot.lane.b32.xlu0 %v6192, 6
  %v6378 = vpop.permute.xlu0 %6377
  %6379 = vrot.lane.b32.xlu0 %v6195, 6
  %v6380 = vpop.permute.xlu0 %6379
  %6381 = vrot.lane.b32.xlu0 %v6198, 6
  %v6382 = vpop.permute.xlu0 %6381
  %6383 = vrot.lane.b32.xlu0 %v6201, 6
  %v6384 = vpop.permute.xlu0 %6383
  %6385 = vrot.lane.b32.xlu0 %v6204, 6
  %v6386 = vpop.permute.xlu0 %6385
  %6387 = vrot.lane.b32.xlu0 %v6207, 6
  %v6388 = vpop.permute.xlu0 %6387
  %6389 = vrot.lane.b32.xlu0 %v6210, 6
  %v6390 = vpop.permute.xlu0 %6389
  %6391 = vrot.lane.b32.xlu0 %v6213, 6
  %v6392 = vpop.permute.xlu0 %6391
  %6393 = vrot.lane.b32.xlu0 %v6216, 6
  %v6394 = vpop.permute.xlu0 %6393
  %6395 = vrot.lane.b32.xlu0 %v6219, 6
  %v6396 = vpop.permute.xlu0 %6395
  %6397 = vrot.lane.b32.xlu0 %v6222, 6
  %v6398 = vpop.permute.xlu0 %6397
  %6399 = vrot.lane.b32.xlu0 %v6225, 6
  %v6400 = vpop.permute.xlu0 %6399
  %6401 = vrot.lane.b32.xlu0 %v6228, 6
  %v6402 = vpop.permute.xlu0 %6401
  %6403 = vrot.lane.b32.xlu0 %v6231, 6
  %v6404 = vpop.permute.xlu0 %6403
  %6405 = vrot.lane.b32.xlu0 %v6234, 6
  %v6406 = vpop.permute.xlu0 %6405
  %6407 = vrot.lane.b32.xlu0 %v6237, 6
  %v6408 = vpop.permute.xlu0 %6407
  %6409 = vrot.lane.b32.xlu0 %v6240, 6
  %v6410 = vpop.permute.xlu0 %6409
  %6411 = vrot.lane.b32.xlu0 %v6243, 6
  %v6412 = vpop.permute.xlu0 %6411
  %6413 = vrot.lane.b32.xlu0 %v6246, 6
  %v6414 = vpop.permute.xlu0 %6413
  %6415 = vrot.lane.b32.xlu0 %v6249, 6
  %v6416 = vpop.permute.xlu0 %6415
  %6417 = vrot.lane.b32.xlu0 %v6252, 6
  %v6418 = vpop.permute.xlu0 %6417
  %6419 = vrot.lane.b32.xlu0 %v6255, 6
  %v6420 = vpop.permute.xlu0 %6419
  %6421 = vrot.lane.b32.xlu0 %v6258, 6
  %v6422 = vpop.permute.xlu0 %6421
  %6423 = vrot.lane.b32.xlu0 %v6261, 6
  %v6424 = vpop.permute.xlu0 %6423
  %6425 = vrot.lane.b32.xlu0 %v6264, 6
  %v6426 = vpop.permute.xlu0 %6425
  %6427 = vrot.lane.b32.xlu0 %v6267, 6
  %v6428 = vpop.permute.xlu0 %6427
  %6429 = vrot.lane.b32.xlu0 %v6270, 6
  %v6430 = vpop.permute.xlu0 %6429
  %6431 = vrot.lane.b32.xlu0 %v6273, 6
  %v6432 = vpop.permute.xlu0 %6431
  %6433 = vrot.lane.b32.xlu0 %v6276, 6
  %v6434 = vpop.permute.xlu0 %6433
  %6435 = vrot.lane.b32.xlu0 %v6279, 6
  %v6436 = vpop.permute.xlu0 %6435
  %6437 = vrot.lane.b32.xlu0 %v6282, 6
  %v6438 = vpop.permute.xlu0 %6437
  %6439 = vrot.lane.b32.xlu0 %v6285, 6
  %v6440 = vpop.permute.xlu0 %6439
  %6441 = vrot.lane.b32.xlu0 %v6288, 6
  %v6442 = vpop.permute.xlu0 %6441
  %6443 = vrot.lane.b32.xlu0 %v6291, 6
  %v6444 = vpop.permute.xlu0 %6443
  %6445 = vrot.lane.b32.xlu0 %v6294, 6
  %v6446 = vpop.permute.xlu0 %6445
  %6447 = vrot.lane.b32.xlu0 %v6297, 6
  %v6448 = vpop.permute.xlu0 %6447
  %6449 = vrot.lane.b32.xlu0 %v6300, 6
  %v6450 = vpop.permute.xlu0 %6449
  %6451 = vrot.lane.b32.xlu0 %v6303, 6
  %v6452 = vpop.permute.xlu0 %6451
  %6453 = vrot.lane.b32.xlu0 %v6306, 6
  %v6454 = vpop.permute.xlu0 %6453
  %6455 = vrot.lane.b32.xlu0 %v6309, 6
  %v6456 = vpop.permute.xlu0 %6455
  %6457 = vrot.lane.b32.xlu0 %v6312, 6
  %v6458 = vpop.permute.xlu0 %6457
  %6459 = vrot.lane.b32.xlu0 %v6315, 6
  %v6460 = vpop.permute.xlu0 %6459
  %6461 = vrot.lane.b32.xlu0 %v6318, 6
  %v6462 = vpop.permute.xlu0 %6461
  %6463 = vrot.lane.b32.xlu0 %v6321, 6
  %v6464 = vpop.permute.xlu0 %6463
  %6465 = vrot.lane.b32.xlu0 %v6324, 6
  %v6466 = vpop.permute.xlu0 %6465
  %6467 = vrot.lane.b32.xlu0 %v6327, 6
  %v6468 = vpop.permute.xlu0 %6467
  %6469 = vrot.lane.b32.xlu0 %v6330, 6
  %v6470 = vpop.permute.xlu0 %6469
  %6471 = vrot.lane.b32.xlu0 %v6333, 6
  %v6472 = vpop.permute.xlu0 %6471
  %6473 = vrot.lane.b32.xlu0 %v6336, 6
  %v6474 = vpop.permute.xlu0 %6473
  %6475 = vrot.lane.b32.xlu0 %v6339, 6
  %v6476 = vpop.permute.xlu0 %6475
  %6477 = vrot.lane.b32.xlu0 %v6342, 6
  %v6478 = vpop.permute.xlu0 %6477
  %6479 = vrot.lane.b32.xlu0 %v6345, 6
  %v6480 = vpop.permute.xlu0 %6479
  %6481 = vrot.lane.b32.xlu0 %v6348, 6
  %v6482 = vpop.permute.xlu0 %6481
  %6483 = vrot.lane.b32.xlu0 %v6351, 6
  %v6484 = vpop.permute.xlu0 %6483
  %6485 = vrot.lane.b32.xlu0 %v6354, 6
  %v6486 = vpop.permute.xlu0 %6485
  %6487 = vrot.lane.b32.xlu0 %v6357, 6
  %v6488 = vpop.permute.xlu0 %6487
  %6489 = vrot.lane.b32.xlu0 %v6360, 6
  %v6490 = vpop.permute.xlu0 %6489
  %6491 = vrot.lane.b32.xlu0 %v6363, 6
  %v6492 = vpop.permute.xlu0 %6491
  %6493 = vrot.lane.b32.xlu0 %v6366, 6
  %v6494 = vpop.permute.xlu0 %6493
  %6559 = vrot.lane.b32.xlu0 %v161, 122
  %v6560 = vpop.permute.xlu0 %6559
  %6561 = vrot.lane.b32.xlu0 %v165, 122
  %v6562 = vpop.permute.xlu0 %6561
  %6563 = vrot.lane.b32.xlu0 %v169, 122
  %v6564 = vpop.permute.xlu0 %6563
  %6565 = vrot.lane.b32.xlu0 %v173, 122
  %v6566 = vpop.permute.xlu0 %6565
  %6567 = vrot.lane.b32.xlu0 %v177, 122
  %v6568 = vpop.permute.xlu0 %6567
  %6569 = vrot.lane.b32.xlu0 %v181, 122
  %v6570 = vpop.permute.xlu0 %6569
  %6571 = vrot.lane.b32.xlu0 %v185, 122
  %v6572 = vpop.permute.xlu0 %6571
  %6573 = vrot.lane.b32.xlu0 %v189, 122
  %v6574 = vpop.permute.xlu0 %6573
  %6575 = vrot.lane.b32.xlu0 %v193, 122
  %v6576 = vpop.permute.xlu0 %6575
  %6577 = vrot.lane.b32.xlu0 %v197, 122
  %v6578 = vpop.permute.xlu0 %6577
  %6579 = vrot.lane.b32.xlu0 %v201, 122
  %v6580 = vpop.permute.xlu0 %6579
  %6581 = vrot.lane.b32.xlu0 %v205, 122
  %v6582 = vpop.permute.xlu0 %6581
  %6583 = vrot.lane.b32.xlu0 %v209, 122
  %v6584 = vpop.permute.xlu0 %6583
  %6585 = vrot.lane.b32.xlu0 %v213, 122
  %v6586 = vpop.permute.xlu0 %6585
  %6587 = vrot.lane.b32.xlu0 %v217, 122
  %v6588 = vpop.permute.xlu0 %6587
  %6589 = vrot.lane.b32.xlu0 %v221, 122
  %v6590 = vpop.permute.xlu0 %6589
  %6591 = vrot.lane.b32.xlu0 %v225, 122
  %v6592 = vpop.permute.xlu0 %6591
  %6593 = vrot.lane.b32.xlu0 %v229, 122
  %v6594 = vpop.permute.xlu0 %6593
  %6595 = vrot.lane.b32.xlu0 %v233, 122
  %v6596 = vpop.permute.xlu0 %6595
  %6597 = vrot.lane.b32.xlu0 %v237, 122
  %v6598 = vpop.permute.xlu0 %6597
  %6599 = vrot.lane.b32.xlu0 %v241, 122
  %v6600 = vpop.permute.xlu0 %6599
  %6601 = vrot.lane.b32.xlu0 %v245, 122
  %v6602 = vpop.permute.xlu0 %6601
  %6603 = vrot.lane.b32.xlu0 %v249, 122
  %v6604 = vpop.permute.xlu0 %6603
  %6605 = vrot.lane.b32.xlu0 %v253, 122
  %v6606 = vpop.permute.xlu0 %6605
  %6607 = vrot.lane.b32.xlu0 %v257, 122
  %v6608 = vpop.permute.xlu0 %6607
  %6609 = vrot.lane.b32.xlu0 %v261, 122
  %v6610 = vpop.permute.xlu0 %6609
  %6611 = vrot.lane.b32.xlu0 %v265, 122
  %v6612 = vpop.permute.xlu0 %6611
  %6613 = vrot.lane.b32.xlu0 %v269, 122
  %v6614 = vpop.permute.xlu0 %6613
  %6615 = vrot.lane.b32.xlu0 %v273, 122
  %v6616 = vpop.permute.xlu0 %6615
  %6617 = vrot.lane.b32.xlu0 %v277, 122
  %v6618 = vpop.permute.xlu0 %6617
  %6619 = vrot.lane.b32.xlu0 %v281, 122
  %v6620 = vpop.permute.xlu0 %6619
  %6621 = vrot.lane.b32.xlu0 %v285, 122
  %v6622 = vpop.permute.xlu0 %6621
  %6623 = vrot.lane.b32.xlu0 %v293, 122
  %v6624 = vpop.permute.xlu0 %6623
  %6625 = vrot.lane.b32.xlu0 %v297, 122
  %v6626 = vpop.permute.xlu0 %6625
  %6627 = vrot.lane.b32.xlu0 %v301, 122
  %v6628 = vpop.permute.xlu0 %6627
  %6629 = vrot.lane.b32.xlu0 %v305, 122
  %v6630 = vpop.permute.xlu0 %6629
  %6631 = vrot.lane.b32.xlu0 %v309, 122
  %v6632 = vpop.permute.xlu0 %6631
  %6633 = vrot.lane.b32.xlu0 %v313, 122
  %v6634 = vpop.permute.xlu0 %6633
  %6635 = vrot.lane.b32.xlu0 %v317, 122
  %v6636 = vpop.permute.xlu0 %6635
  %6637 = vrot.lane.b32.xlu0 %v321, 122
  %v6638 = vpop.permute.xlu0 %6637
  %6639 = vrot.lane.b32.xlu0 %v325, 122
  %v6640 = vpop.permute.xlu0 %6639
  %6641 = vrot.lane.b32.xlu0 %v329, 122
  %v6642 = vpop.permute.xlu0 %6641
  %6643 = vrot.lane.b32.xlu0 %v333, 122
  %v6644 = vpop.permute.xlu0 %6643
  %6645 = vrot.lane.b32.xlu0 %v337, 122
  %v6646 = vpop.permute.xlu0 %6645
  %6647 = vrot.lane.b32.xlu0 %v341, 122
  %v6648 = vpop.permute.xlu0 %6647
  %6649 = vrot.lane.b32.xlu0 %v345, 122
  %v6650 = vpop.permute.xlu0 %6649
  %6651 = vrot.lane.b32.xlu0 %v349, 122
  %v6652 = vpop.permute.xlu0 %6651
  %6653 = vrot.lane.b32.xlu0 %v353, 122
  %v6654 = vpop.permute.xlu0 %6653
  %6655 = vrot.lane.b32.xlu0 %v357, 122
  %v6656 = vpop.permute.xlu0 %6655
  %6657 = vrot.lane.b32.xlu0 %v361, 122
  %v6658 = vpop.permute.xlu0 %6657
  %6659 = vrot.lane.b32.xlu0 %v365, 122
  %v6660 = vpop.permute.xlu0 %6659
  %6661 = vrot.lane.b32.xlu0 %v369, 122
  %v6662 = vpop.permute.xlu0 %6661
  %6663 = vrot.lane.b32.xlu0 %v373, 122
  %v6664 = vpop.permute.xlu0 %6663
  %6665 = vrot.lane.b32.xlu0 %v377, 122
  %v6666 = vpop.permute.xlu0 %6665
  %6667 = vrot.lane.b32.xlu0 %v381, 122
  %v6668 = vpop.permute.xlu0 %6667
  %6669 = vrot.lane.b32.xlu0 %v385, 122
  %v6670 = vpop.permute.xlu0 %6669
  %6671 = vrot.lane.b32.xlu0 %v389, 122
  %v6672 = vpop.permute.xlu0 %6671
  %6673 = vrot.lane.b32.xlu0 %v393, 122
  %v6674 = vpop.permute.xlu0 %6673
  %6675 = vrot.lane.b32.xlu0 %v397, 122
  %v6676 = vpop.permute.xlu0 %6675
  %6677 = vrot.lane.b32.xlu0 %v401, 122
  %v6678 = vpop.permute.xlu0 %6677
  %6679 = vrot.lane.b32.xlu0 %v405, 122
  %v6680 = vpop.permute.xlu0 %6679
  %6681 = vrot.lane.b32.xlu0 %v409, 122
  %v6682 = vpop.permute.xlu0 %6681
  %6683 = vrot.lane.b32.xlu0 %v413, 122
  %v6684 = vpop.permute.xlu0 %6683
  %6685 = vrot.lane.b32.xlu0 %v417, 122
  %v6686 = vpop.permute.xlu0 %6685
  %v6815 = vrot.slane %v161, 1
  %v6816 = vrot.slane %v162, 1
  %v6817 = vsel %vm6174, %v6815, %v6816
  %v6818 = vrot.slane %v165, 1
  %v6819 = vrot.slane %v166, 1
  %v6820 = vsel %vm6174, %v6818, %v6819
  %v6821 = vrot.slane %v169, 1
  %v6822 = vrot.slane %v170, 1
  %v6823 = vsel %vm6174, %v6821, %v6822
  %v6824 = vrot.slane %v173, 1
  %v6825 = vrot.slane %v174, 1
  %v6826 = vsel %vm6174, %v6824, %v6825
  %v6827 = vrot.slane %v177, 1
  %v6828 = vrot.slane %v178, 1
  %v6829 = vsel %vm6174, %v6827, %v6828
  %v6830 = vrot.slane %v181, 1
  %v6831 = vrot.slane %v182, 1
  %v6832 = vsel %vm6174, %v6830, %v6831
  %v6833 = vrot.slane %v185, 1
  %v6834 = vrot.slane %v186, 1
  %v6835 = vsel %vm6174, %v6833, %v6834
  %v6836 = vrot.slane %v189, 1
  %v6837 = vrot.slane %v190, 1
  %v6838 = vsel %vm6174, %v6836, %v6837
  %v6839 = vrot.slane %v193, 1
  %v6840 = vrot.slane %v194, 1
  %v6841 = vsel %vm6174, %v6839, %v6840
  %v6842 = vrot.slane %v197, 1
  %v6843 = vrot.slane %v198, 1
  %v6844 = vsel %vm6174, %v6842, %v6843
  %v6845 = vrot.slane %v201, 1
  %v6846 = vrot.slane %v202, 1
  %v6847 = vsel %vm6174, %v6845, %v6846
  %v6848 = vrot.slane %v205, 1
  %v6849 = vrot.slane %v206, 1
  %v6850 = vsel %vm6174, %v6848, %v6849
  %v6851 = vrot.slane %v209, 1
  %v6852 = vrot.slane %v210, 1
  %v6853 = vsel %vm6174, %v6851, %v6852
  %v6854 = vrot.slane %v213, 1
  %v6855 = vrot.slane %v214, 1
  %v6856 = vsel %vm6174, %v6854, %v6855
  %v6857 = vrot.slane %v217, 1
  %v6858 = vrot.slane %v218, 1
  %v6859 = vsel %vm6174, %v6857, %v6858
  %v6860 = vrot.slane %v221, 1
  %v6861 = vrot.slane %v222, 1
  %v6862 = vsel %vm6174, %v6860, %v6861
  %v6863 = vrot.slane %v225, 1
  %v6864 = vrot.slane %v226, 1
  %v6865 = vsel %vm6174, %v6863, %v6864
  %v6866 = vrot.slane %v229, 1
  %v6867 = vrot.slane %v230, 1
  %v6868 = vsel %vm6174, %v6866, %v6867
  %v6869 = vrot.slane %v233, 1
  %v6870 = vrot.slane %v234, 1
  %v6871 = vsel %vm6174, %v6869, %v6870
  %v6872 = vrot.slane %v237, 1
  %v6873 = vrot.slane %v238, 1
  %v6874 = vsel %vm6174, %v6872, %v6873
  %v6875 = vrot.slane %v241, 1
  %v6876 = vrot.slane %v242, 1
  %v6877 = vsel %vm6174, %v6875, %v6876
  %v6878 = vrot.slane %v245, 1
  %v6879 = vrot.slane %v246, 1
  %v6880 = vsel %vm6174, %v6878, %v6879
  %v6881 = vrot.slane %v249, 1
  %v6882 = vrot.slane %v250, 1
  %v6883 = vsel %vm6174, %v6881, %v6882
  %v6884 = vrot.slane %v253, 1
  %v6885 = vrot.slane %v254, 1
  %v6886 = vsel %vm6174, %v6884, %v6885
  %v6887 = vrot.slane %v257, 1
  %v6888 = vrot.slane %v258, 1
  %v6889 = vsel %vm6174, %v6887, %v6888
  %v6890 = vrot.slane %v261, 1
  %v6891 = vrot.slane %v262, 1
  %v6892 = vsel %vm6174, %v6890, %v6891
  %v6893 = vrot.slane %v265, 1
  %v6894 = vrot.slane %v266, 1
  %v6895 = vsel %vm6174, %v6893, %v6894
  %v6896 = vrot.slane %v269, 1
  %v6897 = vrot.slane %v270, 1
  %v6898 = vsel %vm6174, %v6896, %v6897
  %v6899 = vrot.slane %v273, 1
  %v6900 = vrot.slane %v274, 1
  %v6901 = vsel %vm6174, %v6899, %v6900
  %v6902 = vrot.slane %v277, 1
  %v6903 = vrot.slane %v278, 1
  %v6904 = vsel %vm6174, %v6902, %v6903
  %v6905 = vrot.slane %v281, 1
  %v6906 = vrot.slane %v282, 1
  %v6907 = vsel %vm6174, %v6905, %v6906
  %v6908 = vrot.slane %v285, 1
  %v6909 = vrot.slane %v286, 1
  %v6910 = vsel %vm6174, %v6908, %v6909
  %v6911 = vrot.slane %v293, 1
  %v6912 = vrot.slane %v294, 1
  %v6913 = vsel %vm6174, %v6911, %v6912
  %v6914 = vrot.slane %v297, 1
  %v6915 = vrot.slane %v298, 1
  %v6916 = vsel %vm6174, %v6914, %v6915
  %v6917 = vrot.slane %v301, 1
  %v6918 = vrot.slane %v302, 1
  %v6919 = vsel %vm6174, %v6917, %v6918
  %v6920 = vrot.slane %v305, 1
  %v6921 = vrot.slane %v306, 1
  %v6922 = vsel %vm6174, %v6920, %v6921
  %v6923 = vrot.slane %v309, 1
  %v6924 = vrot.slane %v310, 1
  %v6925 = vsel %vm6174, %v6923, %v6924
  %v6926 = vrot.slane %v313, 1
  %v6927 = vrot.slane %v314, 1
  %v6928 = vsel %vm6174, %v6926, %v6927
  %v6929 = vrot.slane %v317, 1
  %v6930 = vrot.slane %v318, 1
  %v6931 = vsel %vm6174, %v6929, %v6930
  %v6932 = vrot.slane %v321, 1
  %v6933 = vrot.slane %v322, 1
  %v6934 = vsel %vm6174, %v6932, %v6933
  %v6935 = vrot.slane %v325, 1
  %v6936 = vrot.slane %v326, 1
  %v6937 = vsel %vm6174, %v6935, %v6936
  %v6938 = vrot.slane %v329, 1
  %v6939 = vrot.slane %v330, 1
  %v6940 = vsel %vm6174, %v6938, %v6939
  %v6941 = vrot.slane %v333, 1
  %v6942 = vrot.slane %v334, 1
  %v6943 = vsel %vm6174, %v6941, %v6942
  %v6944 = vrot.slane %v337, 1
  %v6945 = vrot.slane %v338, 1
  %v6946 = vsel %vm6174, %v6944, %v6945
  %v6947 = vrot.slane %v341, 1
  %v6948 = vrot.slane %v342, 1
  %v6949 = vsel %vm6174, %v6947, %v6948
  %v6950 = vrot.slane %v345, 1
  %v6951 = vrot.slane %v346, 1
  %v6952 = vsel %vm6174, %v6950, %v6951
  %v6953 = vrot.slane %v349, 1
  %v6954 = vrot.slane %v350, 1
  %v6955 = vsel %vm6174, %v6953, %v6954
  %v6956 = vrot.slane %v353, 1
  %v6957 = vrot.slane %v354, 1
  %v6958 = vsel %vm6174, %v6956, %v6957
  %v6959 = vrot.slane %v357, 1
  %v6960 = vrot.slane %v358, 1
  %v6961 = vsel %vm6174, %v6959, %v6960
  %v6962 = vrot.slane %v361, 1
  %v6963 = vrot.slane %v362, 1
  %v6964 = vsel %vm6174, %v6962, %v6963
  %v6965 = vrot.slane %v365, 1
  %v6966 = vrot.slane %v366, 1
  %v6967 = vsel %vm6174, %v6965, %v6966
  %v6968 = vrot.slane %v369, 1
  %v6969 = vrot.slane %v370, 1
  %v6970 = vsel %vm6174, %v6968, %v6969
  %v6971 = vrot.slane %v373, 1
  %v6972 = vrot.slane %v374, 1
  %v6973 = vsel %vm6174, %v6971, %v6972
  %v6974 = vrot.slane %v377, 1
  %v6975 = vrot.slane %v378, 1
  %v6976 = vsel %vm6174, %v6974, %v6975
  %v6977 = vrot.slane %v381, 1
  %v6978 = vrot.slane %v382, 1
  %v6979 = vsel %vm6174, %v6977, %v6978
  %v6980 = vrot.slane %v385, 1
  %v6981 = vrot.slane %v386, 1
  %v6982 = vsel %vm6174, %v6980, %v6981
  %v6983 = vrot.slane %v389, 1
  %v6984 = vrot.slane %v390, 1
  %v6985 = vsel %vm6174, %v6983, %v6984
  %v6986 = vrot.slane %v393, 1
  %v6987 = vrot.slane %v394, 1
  %v6988 = vsel %vm6174, %v6986, %v6987
  %v6989 = vrot.slane %v397, 1
  %v6990 = vrot.slane %v398, 1
  %v6991 = vsel %vm6174, %v6989, %v6990
  %v6992 = vrot.slane %v401, 1
  %v6993 = vrot.slane %v402, 1
  %v6994 = vsel %vm6174, %v6992, %v6993
  %v6995 = vrot.slane %v405, 1
  %v6996 = vrot.slane %v406, 1
  %v6997 = vsel %vm6174, %v6995, %v6996
  %v6998 = vrot.slane %v409, 1
  %v6999 = vrot.slane %v410, 1
  %v7000 = vsel %vm6174, %v6998, %v6999
  %v7001 = vrot.slane %v413, 1
  %v7002 = vrot.slane %v414, 1
  %v7003 = vsel %vm6174, %v7001, %v7002
  %v7004 = vrot.slane %v417, 1
  %v7005 = vrot.slane %v418, 1
  %v7006 = vsel %vm6174, %v7004, %v7005
  %7007 = vrot.lane.b32.xlu0 %v6817, 18
  %v7008 = vpop.permute.xlu0 %7007
  %7009 = vrot.lane.b32.xlu0 %v6820, 18
  %v7010 = vpop.permute.xlu0 %7009
  %7011 = vrot.lane.b32.xlu0 %v6823, 18
  %v7012 = vpop.permute.xlu0 %7011
  %7013 = vrot.lane.b32.xlu0 %v6826, 18
  %v7014 = vpop.permute.xlu0 %7013
  %7015 = vrot.lane.b32.xlu0 %v6829, 18
  %v7016 = vpop.permute.xlu0 %7015
  %7017 = vrot.lane.b32.xlu0 %v6832, 18
  %v7018 = vpop.permute.xlu0 %7017
  %7019 = vrot.lane.b32.xlu0 %v6835, 18
  %v7020 = vpop.permute.xlu0 %7019
  %7021 = vrot.lane.b32.xlu0 %v6838, 18
  %v7022 = vpop.permute.xlu0 %7021
  %7023 = vrot.lane.b32.xlu0 %v6841, 18
  %v7024 = vpop.permute.xlu0 %7023
  %7025 = vrot.lane.b32.xlu0 %v6844, 18
  %v7026 = vpop.permute.xlu0 %7025
  %7027 = vrot.lane.b32.xlu0 %v6847, 18
  %v7028 = vpop.permute.xlu0 %7027
  %7029 = vrot.lane.b32.xlu0 %v6850, 18
  %v7030 = vpop.permute.xlu0 %7029
  %7031 = vrot.lane.b32.xlu0 %v6853, 18
  %v7032 = vpop.permute.xlu0 %7031
  %7033 = vrot.lane.b32.xlu0 %v6856, 18
  %v7034 = vpop.permute.xlu0 %7033
  %7035 = vrot.lane.b32.xlu0 %v6859, 18
  %v7036 = vpop.permute.xlu0 %7035
  %7037 = vrot.lane.b32.xlu0 %v6862, 18
  %v7038 = vpop.permute.xlu0 %7037
  %7039 = vrot.lane.b32.xlu0 %v6865, 18
  %v7040 = vpop.permute.xlu0 %7039
  %7041 = vrot.lane.b32.xlu0 %v6868, 18
  %v7042 = vpop.permute.xlu0 %7041
  %7043 = vrot.lane.b32.xlu0 %v6871, 18
  %v7044 = vpop.permute.xlu0 %7043
  %7045 = vrot.lane.b32.xlu0 %v6874, 18
  %v7046 = vpop.permute.xlu0 %7045
  %7047 = vrot.lane.b32.xlu0 %v6877, 18
  %v7048 = vpop.permute.xlu0 %7047
  %7049 = vrot.lane.b32.xlu0 %v6880, 18
  %v7050 = vpop.permute.xlu0 %7049
  %7051 = vrot.lane.b32.xlu0 %v6883, 18
  %v7052 = vpop.permute.xlu0 %7051
  %7053 = vrot.lane.b32.xlu0 %v6886, 18
  %v7054 = vpop.permute.xlu0 %7053
  %7055 = vrot.lane.b32.xlu0 %v6889, 18
  %v7056 = vpop.permute.xlu0 %7055
  %7057 = vrot.lane.b32.xlu0 %v6892, 18
  %v7058 = vpop.permute.xlu0 %7057
  %7059 = vrot.lane.b32.xlu0 %v6895, 18
  %v7060 = vpop.permute.xlu0 %7059
  %7061 = vrot.lane.b32.xlu0 %v6898, 18
  %v7062 = vpop.permute.xlu0 %7061
  %7063 = vrot.lane.b32.xlu0 %v6901, 18
  %v7064 = vpop.permute.xlu0 %7063
  %7065 = vrot.lane.b32.xlu0 %v6904, 18
  %v7066 = vpop.permute.xlu0 %7065
  %7067 = vrot.lane.b32.xlu0 %v6907, 18
  %v7068 = vpop.permute.xlu0 %7067
  %7069 = vrot.lane.b32.xlu0 %v6910, 18
  %v7070 = vpop.permute.xlu0 %7069
  %7071 = vrot.lane.b32.xlu0 %v6913, 18
  %v7072 = vpop.permute.xlu0 %7071
  %7073 = vrot.lane.b32.xlu0 %v6916, 18
  %v7074 = vpop.permute.xlu0 %7073
  %7075 = vrot.lane.b32.xlu0 %v6919, 18
  %v7076 = vpop.permute.xlu0 %7075
  %7077 = vrot.lane.b32.xlu0 %v6922, 18
  %v7078 = vpop.permute.xlu0 %7077
  %7079 = vrot.lane.b32.xlu0 %v6925, 18
  %v7080 = vpop.permute.xlu0 %7079
  %7081 = vrot.lane.b32.xlu0 %v6928, 18
  %v7082 = vpop.permute.xlu0 %7081
  %7083 = vrot.lane.b32.xlu0 %v6931, 18
  %v7084 = vpop.permute.xlu0 %7083
  %7085 = vrot.lane.b32.xlu0 %v6934, 18
  %v7086 = vpop.permute.xlu0 %7085
  %7087 = vrot.lane.b32.xlu0 %v6937, 18
  %v7088 = vpop.permute.xlu0 %7087
  %7089 = vrot.lane.b32.xlu0 %v6940, 18
  %v7090 = vpop.permute.xlu0 %7089
  %7091 = vrot.lane.b32.xlu0 %v6943, 18
  %v7092 = vpop.permute.xlu0 %7091
  %7093 = vrot.lane.b32.xlu0 %v6946, 18
  %v7094 = vpop.permute.xlu0 %7093
  %7095 = vrot.lane.b32.xlu0 %v6949, 18
  %v7096 = vpop.permute.xlu0 %7095
  %7097 = vrot.lane.b32.xlu0 %v6952, 18
  %v7098 = vpop.permute.xlu0 %7097
  %7099 = vrot.lane.b32.xlu0 %v6955, 18
  %v7100 = vpop.permute.xlu0 %7099
  %7101 = vrot.lane.b32.xlu0 %v6958, 18
  %v7102 = vpop.permute.xlu0 %7101
  %7103 = vrot.lane.b32.xlu0 %v6961, 18
  %v7104 = vpop.permute.xlu0 %7103
  %7105 = vrot.lane.b32.xlu0 %v6964, 18
  %v7106 = vpop.permute.xlu0 %7105
  %7107 = vrot.lane.b32.xlu0 %v6967, 18
  %v7108 = vpop.permute.xlu0 %7107
  %7109 = vrot.lane.b32.xlu0 %v6970, 18
  %v7110 = vpop.permute.xlu0 %7109
  %7111 = vrot.lane.b32.xlu0 %v6973, 18
  %v7112 = vpop.permute.xlu0 %7111
  %7113 = vrot.lane.b32.xlu0 %v6976, 18
  %v7114 = vpop.permute.xlu0 %7113
  %7115 = vrot.lane.b32.xlu0 %v6979, 18
  %v7116 = vpop.permute.xlu0 %7115
  %7117 = vrot.lane.b32.xlu0 %v6982, 18
  %v7118 = vpop.permute.xlu0 %7117
  %7119 = vrot.lane.b32.xlu0 %v6985, 18
  %v7120 = vpop.permute.xlu0 %7119
  %7121 = vrot.lane.b32.xlu0 %v6988, 18
  %v7122 = vpop.permute.xlu0 %7121
  %7123 = vrot.lane.b32.xlu0 %v6991, 18
  %v7124 = vpop.permute.xlu0 %7123
  %7125 = vrot.lane.b32.xlu0 %v6994, 18
  %v7126 = vpop.permute.xlu0 %7125
  %7127 = vrot.lane.b32.xlu0 %v6997, 18
  %v7128 = vpop.permute.xlu0 %7127
  %7129 = vrot.lane.b32.xlu0 %v7000, 18
  %v7130 = vpop.permute.xlu0 %7129
  %7131 = vrot.lane.b32.xlu0 %v7003, 18
  %v7132 = vpop.permute.xlu0 %7131
  %7133 = vrot.lane.b32.xlu0 %v7006, 18
  %v7134 = vpop.permute.xlu0 %7133
  %7199 = vrot.lane.b32.xlu0 %v163, 6
  %v7200 = vpop.permute.xlu0 %7199
  %7201 = vrot.lane.b32.xlu0 %v167, 6
  %v7202 = vpop.permute.xlu0 %7201
  %7203 = vrot.lane.b32.xlu0 %v171, 6
  %v7204 = vpop.permute.xlu0 %7203
  %7205 = vrot.lane.b32.xlu0 %v175, 6
  %v7206 = vpop.permute.xlu0 %7205
  %7207 = vrot.lane.b32.xlu0 %v179, 6
  %v7208 = vpop.permute.xlu0 %7207
  %7209 = vrot.lane.b32.xlu0 %v183, 6
  %v7210 = vpop.permute.xlu0 %7209
  %7211 = vrot.lane.b32.xlu0 %v187, 6
  %v7212 = vpop.permute.xlu0 %7211
  %7213 = vrot.lane.b32.xlu0 %v191, 6
  %v7214 = vpop.permute.xlu0 %7213
  %7215 = vrot.lane.b32.xlu0 %v195, 6
  %v7216 = vpop.permute.xlu0 %7215
  %7217 = vrot.lane.b32.xlu0 %v199, 6
  %v7218 = vpop.permute.xlu0 %7217
  %7219 = vrot.lane.b32.xlu0 %v203, 6
  %v7220 = vpop.permute.xlu0 %7219
  %7221 = vrot.lane.b32.xlu0 %v207, 6
  %v7222 = vpop.permute.xlu0 %7221
  %7223 = vrot.lane.b32.xlu0 %v211, 6
  %v7224 = vpop.permute.xlu0 %7223
  %7225 = vrot.lane.b32.xlu0 %v215, 6
  %v7226 = vpop.permute.xlu0 %7225
  %7227 = vrot.lane.b32.xlu0 %v219, 6
  %v7228 = vpop.permute.xlu0 %7227
  %7229 = vrot.lane.b32.xlu0 %v223, 6
  %v7230 = vpop.permute.xlu0 %7229
  %7231 = vrot.lane.b32.xlu0 %v227, 6
  %v7232 = vpop.permute.xlu0 %7231
  %7233 = vrot.lane.b32.xlu0 %v231, 6
  %v7234 = vpop.permute.xlu0 %7233
  %7235 = vrot.lane.b32.xlu0 %v235, 6
  %v7236 = vpop.permute.xlu0 %7235
  %7237 = vrot.lane.b32.xlu0 %v239, 6
  %v7238 = vpop.permute.xlu0 %7237
  %7239 = vrot.lane.b32.xlu0 %v243, 6
  %v7240 = vpop.permute.xlu0 %7239
  %7241 = vrot.lane.b32.xlu0 %v247, 6
  %v7242 = vpop.permute.xlu0 %7241
  %7243 = vrot.lane.b32.xlu0 %v251, 6
  %v7244 = vpop.permute.xlu0 %7243
  %7245 = vrot.lane.b32.xlu0 %v255, 6
  %v7246 = vpop.permute.xlu0 %7245
  %7247 = vrot.lane.b32.xlu0 %v259, 6
  %v7248 = vpop.permute.xlu0 %7247
  %7249 = vrot.lane.b32.xlu0 %v263, 6
  %v7250 = vpop.permute.xlu0 %7249
  %7251 = vrot.lane.b32.xlu0 %v267, 6
  %v7252 = vpop.permute.xlu0 %7251
  %7253 = vrot.lane.b32.xlu0 %v271, 6
  %v7254 = vpop.permute.xlu0 %7253
  %7255 = vrot.lane.b32.xlu0 %v275, 6
  %v7256 = vpop.permute.xlu0 %7255
  %7257 = vrot.lane.b32.xlu0 %v279, 6
  %v7258 = vpop.permute.xlu0 %7257
  %7259 = vrot.lane.b32.xlu0 %v283, 6
  %v7260 = vpop.permute.xlu0 %7259
  %7261 = vrot.lane.b32.xlu0 %v287, 6
  %v7262 = vpop.permute.xlu0 %7261
  %7263 = vrot.lane.b32.xlu0 %v295, 6
  %v7264 = vpop.permute.xlu0 %7263
  %7265 = vrot.lane.b32.xlu0 %v299, 6
  %v7266 = vpop.permute.xlu0 %7265
  %7267 = vrot.lane.b32.xlu0 %v303, 6
  %v7268 = vpop.permute.xlu0 %7267
  %7269 = vrot.lane.b32.xlu0 %v307, 6
  %v7270 = vpop.permute.xlu0 %7269
  %7271 = vrot.lane.b32.xlu0 %v311, 6
  %v7272 = vpop.permute.xlu0 %7271
  %7273 = vrot.lane.b32.xlu0 %v315, 6
  %v7274 = vpop.permute.xlu0 %7273
  %7275 = vrot.lane.b32.xlu0 %v319, 6
  %v7276 = vpop.permute.xlu0 %7275
  %7277 = vrot.lane.b32.xlu0 %v323, 6
  %v7278 = vpop.permute.xlu0 %7277
  %7279 = vrot.lane.b32.xlu0 %v327, 6
  %v7280 = vpop.permute.xlu0 %7279
  %7281 = vrot.lane.b32.xlu0 %v331, 6
  %v7282 = vpop.permute.xlu0 %7281
  %7283 = vrot.lane.b32.xlu0 %v335, 6
  %v7284 = vpop.permute.xlu0 %7283
  %7285 = vrot.lane.b32.xlu0 %v339, 6
  %v7286 = vpop.permute.xlu0 %7285
  %7287 = vrot.lane.b32.xlu0 %v343, 6
  %v7288 = vpop.permute.xlu0 %7287
  %7289 = vrot.lane.b32.xlu0 %v347, 6
  %v7290 = vpop.permute.xlu0 %7289
  %7291 = vrot.lane.b32.xlu0 %v351, 6
  %v7292 = vpop.permute.xlu0 %7291
  %7293 = vrot.lane.b32.xlu0 %v355, 6
  %v7294 = vpop.permute.xlu0 %7293
  %7295 = vrot.lane.b32.xlu0 %v359, 6
  %v7296 = vpop.permute.xlu0 %7295
  %7297 = vrot.lane.b32.xlu0 %v363, 6
  %v7298 = vpop.permute.xlu0 %7297
  %7299 = vrot.lane.b32.xlu0 %v367, 6
  %v7300 = vpop.permute.xlu0 %7299
  %7301 = vrot.lane.b32.xlu0 %v371, 6
  %v7302 = vpop.permute.xlu0 %7301
  %7303 = vrot.lane.b32.xlu0 %v375, 6
  %v7304 = vpop.permute.xlu0 %7303
  %7305 = vrot.lane.b32.xlu0 %v379, 6
  %v7306 = vpop.permute.xlu0 %7305
  %7307 = vrot.lane.b32.xlu0 %v383, 6
  %v7308 = vpop.permute.xlu0 %7307
  %7309 = vrot.lane.b32.xlu0 %v387, 6
  %v7310 = vpop.permute.xlu0 %7309
  %7311 = vrot.lane.b32.xlu0 %v391, 6
  %v7312 = vpop.permute.xlu0 %7311
  %7313 = vrot.lane.b32.xlu0 %v395, 6
  %v7314 = vpop.permute.xlu0 %7313
  %7315 = vrot.lane.b32.xlu0 %v399, 6
  %v7316 = vpop.permute.xlu0 %7315
  %7317 = vrot.lane.b32.xlu0 %v403, 6
  %v7318 = vpop.permute.xlu0 %7317
  %7319 = vrot.lane.b32.xlu0 %v407, 6
  %v7320 = vpop.permute.xlu0 %7319
  %7321 = vrot.lane.b32.xlu0 %v411, 6
  %v7322 = vpop.permute.xlu0 %7321
  %7323 = vrot.lane.b32.xlu0 %v415, 6
  %v7324 = vpop.permute.xlu0 %7323
  %7325 = vrot.lane.b32.xlu0 %v419, 6
  %v7326 = vpop.permute.xlu0 %7325
  %v7393 = vrot.slane %v287, 1
  %v7394 = vrot.slane %v288, 1
  %v7395 = vsel %vm6174, %v7393, %v7394
  %v7396 = vrot.slane %v419, 1
  %v7397 = vrot.slane %v420, 1
  %v7398 = vsel %vm6174, %v7396, %v7397
  %7399 = vrot.lane.b32.xlu0 %v6180, 30
  %v7400 = vpop.permute.xlu0 %7399
  %7401 = vrot.lane.b32.xlu0 %v6183, 30
  %v7402 = vpop.permute.xlu0 %7401
  %7403 = vrot.lane.b32.xlu0 %v6186, 30
  %v7404 = vpop.permute.xlu0 %7403
  %7405 = vrot.lane.b32.xlu0 %v6189, 30
  %v7406 = vpop.permute.xlu0 %7405
  %7407 = vrot.lane.b32.xlu0 %v6192, 30
  %v7408 = vpop.permute.xlu0 %7407
  %7409 = vrot.lane.b32.xlu0 %v6195, 30
  %v7410 = vpop.permute.xlu0 %7409
  %7411 = vrot.lane.b32.xlu0 %v6198, 30
  %v7412 = vpop.permute.xlu0 %7411
  %7413 = vrot.lane.b32.xlu0 %v6201, 30
  %v7414 = vpop.permute.xlu0 %7413
  %7415 = vrot.lane.b32.xlu0 %v6204, 30
  %v7416 = vpop.permute.xlu0 %7415
  %7417 = vrot.lane.b32.xlu0 %v6207, 30
  %v7418 = vpop.permute.xlu0 %7417
  %7419 = vrot.lane.b32.xlu0 %v6210, 30
  %v7420 = vpop.permute.xlu0 %7419
  %7421 = vrot.lane.b32.xlu0 %v6213, 30
  %v7422 = vpop.permute.xlu0 %7421
  %7423 = vrot.lane.b32.xlu0 %v6216, 30
  %v7424 = vpop.permute.xlu0 %7423
  %7425 = vrot.lane.b32.xlu0 %v6219, 30
  %v7426 = vpop.permute.xlu0 %7425
  %7427 = vrot.lane.b32.xlu0 %v6222, 30
  %v7428 = vpop.permute.xlu0 %7427
  %7429 = vrot.lane.b32.xlu0 %v6225, 30
  %v7430 = vpop.permute.xlu0 %7429
  %7431 = vrot.lane.b32.xlu0 %v6228, 30
  %v7432 = vpop.permute.xlu0 %7431
  %7433 = vrot.lane.b32.xlu0 %v6231, 30
  %v7434 = vpop.permute.xlu0 %7433
  %7435 = vrot.lane.b32.xlu0 %v6234, 30
  %v7436 = vpop.permute.xlu0 %7435
  %7437 = vrot.lane.b32.xlu0 %v6237, 30
  %v7438 = vpop.permute.xlu0 %7437
  %7439 = vrot.lane.b32.xlu0 %v6240, 30
  %v7440 = vpop.permute.xlu0 %7439
  %7441 = vrot.lane.b32.xlu0 %v6243, 30
  %v7442 = vpop.permute.xlu0 %7441
  %7443 = vrot.lane.b32.xlu0 %v6246, 30
  %v7444 = vpop.permute.xlu0 %7443
  %7445 = vrot.lane.b32.xlu0 %v6249, 30
  %v7446 = vpop.permute.xlu0 %7445
  %7447 = vrot.lane.b32.xlu0 %v6252, 30
  %v7448 = vpop.permute.xlu0 %7447
  %7449 = vrot.lane.b32.xlu0 %v6255, 30
  %v7450 = vpop.permute.xlu0 %7449
  %7451 = vrot.lane.b32.xlu0 %v6258, 30
  %v7452 = vpop.permute.xlu0 %7451
  %7453 = vrot.lane.b32.xlu0 %v6261, 30
  %v7454 = vpop.permute.xlu0 %7453
  %7455 = vrot.lane.b32.xlu0 %v6264, 30
  %v7456 = vpop.permute.xlu0 %7455
  %7457 = vrot.lane.b32.xlu0 %v6267, 30
  %v7458 = vpop.permute.xlu0 %7457
  %7459 = vrot.lane.b32.xlu0 %v6270, 30
  %v7460 = vpop.permute.xlu0 %7459
  %7461 = vrot.lane.b32.xlu0 %v7395, 30
  %v7462 = vpop.permute.xlu0 %7461
  %7463 = vrot.lane.b32.xlu0 %v6276, 30
  %v7464 = vpop.permute.xlu0 %7463
  %7465 = vrot.lane.b32.xlu0 %v6279, 30
  %v7466 = vpop.permute.xlu0 %7465
  %7467 = vrot.lane.b32.xlu0 %v6282, 30
  %v7468 = vpop.permute.xlu0 %7467
  %7469 = vrot.lane.b32.xlu0 %v6285, 30
  %v7470 = vpop.permute.xlu0 %7469
  %7471 = vrot.lane.b32.xlu0 %v6288, 30
  %v7472 = vpop.permute.xlu0 %7471
  %7473 = vrot.lane.b32.xlu0 %v6291, 30
  %v7474 = vpop.permute.xlu0 %7473
  %7475 = vrot.lane.b32.xlu0 %v6294, 30
  %v7476 = vpop.permute.xlu0 %7475
  %7477 = vrot.lane.b32.xlu0 %v6297, 30
  %v7478 = vpop.permute.xlu0 %7477
  %7479 = vrot.lane.b32.xlu0 %v6300, 30
  %v7480 = vpop.permute.xlu0 %7479
  %7481 = vrot.lane.b32.xlu0 %v6303, 30
  %v7482 = vpop.permute.xlu0 %7481
  %7483 = vrot.lane.b32.xlu0 %v6306, 30
  %v7484 = vpop.permute.xlu0 %7483
  %7485 = vrot.lane.b32.xlu0 %v6309, 30
  %v7486 = vpop.permute.xlu0 %7485
  %7487 = vrot.lane.b32.xlu0 %v6312, 30
  %v7488 = vpop.permute.xlu0 %7487
  %7489 = vrot.lane.b32.xlu0 %v6315, 30
  %v7490 = vpop.permute.xlu0 %7489
  %7491 = vrot.lane.b32.xlu0 %v6318, 30
  %v7492 = vpop.permute.xlu0 %7491
  %7493 = vrot.lane.b32.xlu0 %v6321, 30
  %v7494 = vpop.permute.xlu0 %7493
  %7495 = vrot.lane.b32.xlu0 %v6324, 30
  %v7496 = vpop.permute.xlu0 %7495
  %7497 = vrot.lane.b32.xlu0 %v6327, 30
  %v7498 = vpop.permute.xlu0 %7497
  %7499 = vrot.lane.b32.xlu0 %v6330, 30
  %v7500 = vpop.permute.xlu0 %7499
  %7501 = vrot.lane.b32.xlu0 %v6333, 30
  %v7502 = vpop.permute.xlu0 %7501
  %7503 = vrot.lane.b32.xlu0 %v6336, 30
  %v7504 = vpop.permute.xlu0 %7503
  %7505 = vrot.lane.b32.xlu0 %v6339, 30
  %v7506 = vpop.permute.xlu0 %7505
  %7507 = vrot.lane.b32.xlu0 %v6342, 30
  %v7508 = vpop.permute.xlu0 %7507
  %7509 = vrot.lane.b32.xlu0 %v6345, 30
  %v7510 = vpop.permute.xlu0 %7509
  %7511 = vrot.lane.b32.xlu0 %v6348, 30
  %v7512 = vpop.permute.xlu0 %7511
  %7513 = vrot.lane.b32.xlu0 %v6351, 30
  %v7514 = vpop.permute.xlu0 %7513
  %7515 = vrot.lane.b32.xlu0 %v6354, 30
  %v7516 = vpop.permute.xlu0 %7515
  %7517 = vrot.lane.b32.xlu0 %v6357, 30
  %v7518 = vpop.permute.xlu0 %7517
  %7519 = vrot.lane.b32.xlu0 %v6360, 30
  %v7520 = vpop.permute.xlu0 %7519
  %7521 = vrot.lane.b32.xlu0 %v6363, 30
  %v7522 = vpop.permute.xlu0 %7521
  %7523 = vrot.lane.b32.xlu0 %v6366, 30
  %v7524 = vpop.permute.xlu0 %7523
  %7525 = vrot.lane.b32.xlu0 %v7398, 30
  %v7526 = vpop.permute.xlu0 %7525
  %7591 = vrot.lane.b32.xlu0 %v165, 18
  %v7592 = vpop.permute.xlu0 %7591
  %7593 = vrot.lane.b32.xlu0 %v169, 18
  %v7594 = vpop.permute.xlu0 %7593
  %7595 = vrot.lane.b32.xlu0 %v173, 18
  %v7596 = vpop.permute.xlu0 %7595
  %7597 = vrot.lane.b32.xlu0 %v177, 18
  %v7598 = vpop.permute.xlu0 %7597
  %7599 = vrot.lane.b32.xlu0 %v181, 18
  %v7600 = vpop.permute.xlu0 %7599
  %7601 = vrot.lane.b32.xlu0 %v185, 18
  %v7602 = vpop.permute.xlu0 %7601
  %7603 = vrot.lane.b32.xlu0 %v189, 18
  %v7604 = vpop.permute.xlu0 %7603
  %7605 = vrot.lane.b32.xlu0 %v193, 18
  %v7606 = vpop.permute.xlu0 %7605
  %7607 = vrot.lane.b32.xlu0 %v197, 18
  %v7608 = vpop.permute.xlu0 %7607
  %7609 = vrot.lane.b32.xlu0 %v201, 18
  %v7610 = vpop.permute.xlu0 %7609
  %7611 = vrot.lane.b32.xlu0 %v205, 18
  %v7612 = vpop.permute.xlu0 %7611
  %7613 = vrot.lane.b32.xlu0 %v209, 18
  %v7614 = vpop.permute.xlu0 %7613
  %7615 = vrot.lane.b32.xlu0 %v213, 18
  %v7616 = vpop.permute.xlu0 %7615
  %7617 = vrot.lane.b32.xlu0 %v217, 18
  %v7618 = vpop.permute.xlu0 %7617
  %7619 = vrot.lane.b32.xlu0 %v221, 18
  %v7620 = vpop.permute.xlu0 %7619
  %7621 = vrot.lane.b32.xlu0 %v225, 18
  %v7622 = vpop.permute.xlu0 %7621
  %7623 = vrot.lane.b32.xlu0 %v229, 18
  %v7624 = vpop.permute.xlu0 %7623
  %7625 = vrot.lane.b32.xlu0 %v233, 18
  %v7626 = vpop.permute.xlu0 %7625
  %7627 = vrot.lane.b32.xlu0 %v237, 18
  %v7628 = vpop.permute.xlu0 %7627
  %7629 = vrot.lane.b32.xlu0 %v241, 18
  %v7630 = vpop.permute.xlu0 %7629
  %7631 = vrot.lane.b32.xlu0 %v245, 18
  %v7632 = vpop.permute.xlu0 %7631
  %7633 = vrot.lane.b32.xlu0 %v249, 18
  %v7634 = vpop.permute.xlu0 %7633
  %7635 = vrot.lane.b32.xlu0 %v253, 18
  %v7636 = vpop.permute.xlu0 %7635
  %7637 = vrot.lane.b32.xlu0 %v257, 18
  %v7638 = vpop.permute.xlu0 %7637
  %7639 = vrot.lane.b32.xlu0 %v261, 18
  %v7640 = vpop.permute.xlu0 %7639
  %7641 = vrot.lane.b32.xlu0 %v265, 18
  %v7642 = vpop.permute.xlu0 %7641
  %7643 = vrot.lane.b32.xlu0 %v269, 18
  %v7644 = vpop.permute.xlu0 %7643
  %7645 = vrot.lane.b32.xlu0 %v273, 18
  %v7646 = vpop.permute.xlu0 %7645
  %7647 = vrot.lane.b32.xlu0 %v277, 18
  %v7648 = vpop.permute.xlu0 %7647
  %7649 = vrot.lane.b32.xlu0 %v281, 18
  %v7650 = vpop.permute.xlu0 %7649
  %7651 = vrot.lane.b32.xlu0 %v285, 18
  %v7652 = vpop.permute.xlu0 %7651
  %7653 = vrot.lane.b32.xlu0 %v289, 18
  %v7654 = vpop.permute.xlu0 %7653
  %7655 = vrot.lane.b32.xlu0 %v297, 18
  %v7656 = vpop.permute.xlu0 %7655
  %7657 = vrot.lane.b32.xlu0 %v301, 18
  %v7658 = vpop.permute.xlu0 %7657
  %7659 = vrot.lane.b32.xlu0 %v305, 18
  %v7660 = vpop.permute.xlu0 %7659
  %7661 = vrot.lane.b32.xlu0 %v309, 18
  %v7662 = vpop.permute.xlu0 %7661
  %7663 = vrot.lane.b32.xlu0 %v313, 18
  %v7664 = vpop.permute.xlu0 %7663
  %7665 = vrot.lane.b32.xlu0 %v317, 18
  %v7666 = vpop.permute.xlu0 %7665
  %7667 = vrot.lane.b32.xlu0 %v321, 18
  %v7668 = vpop.permute.xlu0 %7667
  %7669 = vrot.lane.b32.xlu0 %v325, 18
  %v7670 = vpop.permute.xlu0 %7669
  %7671 = vrot.lane.b32.xlu0 %v329, 18
  %v7672 = vpop.permute.xlu0 %7671
  %7673 = vrot.lane.b32.xlu0 %v333, 18
  %v7674 = vpop.permute.xlu0 %7673
  %7675 = vrot.lane.b32.xlu0 %v337, 18
  %v7676 = vpop.permute.xlu0 %7675
  %7677 = vrot.lane.b32.xlu0 %v341, 18
  %v7678 = vpop.permute.xlu0 %7677
  %7679 = vrot.lane.b32.xlu0 %v345, 18
  %v7680 = vpop.permute.xlu0 %7679
  %7681 = vrot.lane.b32.xlu0 %v349, 18
  %v7682 = vpop.permute.xlu0 %7681
  %7683 = vrot.lane.b32.xlu0 %v353, 18
  %v7684 = vpop.permute.xlu0 %7683
  %7685 = vrot.lane.b32.xlu0 %v357, 18
  %v7686 = vpop.permute.xlu0 %7685
  %7687 = vrot.lane.b32.xlu0 %v361, 18
  %v7688 = vpop.permute.xlu0 %7687
  %7689 = vrot.lane.b32.xlu0 %v365, 18
  %v7690 = vpop.permute.xlu0 %7689
  %7691 = vrot.lane.b32.xlu0 %v369, 18
  %v7692 = vpop.permute.xlu0 %7691
  %7693 = vrot.lane.b32.xlu0 %v373, 18
  %v7694 = vpop.permute.xlu0 %7693
  %7695 = vrot.lane.b32.xlu0 %v377, 18
  %v7696 = vpop.permute.xlu0 %7695
  %7697 = vrot.lane.b32.xlu0 %v381, 18
  %v7698 = vpop.permute.xlu0 %7697
  %7699 = vrot.lane.b32.xlu0 %v385, 18
  %v7700 = vpop.permute.xlu0 %7699
  %7701 = vrot.lane.b32.xlu0 %v389, 18
  %v7702 = vpop.permute.xlu0 %7701
  %7703 = vrot.lane.b32.xlu0 %v393, 18
  %v7704 = vpop.permute.xlu0 %7703
  %7705 = vrot.lane.b32.xlu0 %v397, 18
  %v7706 = vpop.permute.xlu0 %7705
  %7707 = vrot.lane.b32.xlu0 %v401, 18
  %v7708 = vpop.permute.xlu0 %7707
  %7709 = vrot.lane.b32.xlu0 %v405, 18
  %v7710 = vpop.permute.xlu0 %7709
  %7711 = vrot.lane.b32.xlu0 %v409, 18
  %v7712 = vpop.permute.xlu0 %7711
  %7713 = vrot.lane.b32.xlu0 %v413, 18
  %v7714 = vpop.permute.xlu0 %7713
  %7715 = vrot.lane.b32.xlu0 %v417, 18
  %v7716 = vpop.permute.xlu0 %7715
  %7717 = vrot.lane.b32.xlu0 %v421, 18
  %v7718 = vpop.permute.xlu0 %7717
  %v7785 = vrot.slane %v289, 1
  %v7786 = vrot.slane %v290, 1
  %v7787 = vsel %vm6174, %v7785, %v7786
  %v7788 = vrot.slane %v421, 1
  %v7789 = vrot.slane %v422, 1
  %v7790 = vsel %vm6174, %v7788, %v7789
  %7791 = vrot.lane.b32.xlu0 %v6820, 42
  %v7792 = vpop.permute.xlu0 %7791
  %7793 = vrot.lane.b32.xlu0 %v6823, 42
  %v7794 = vpop.permute.xlu0 %7793
  %7795 = vrot.lane.b32.xlu0 %v6826, 42
  %v7796 = vpop.permute.xlu0 %7795
  %7797 = vrot.lane.b32.xlu0 %v6829, 42
  %v7798 = vpop.permute.xlu0 %7797
  %7799 = vrot.lane.b32.xlu0 %v6832, 42
  %v7800 = vpop.permute.xlu0 %7799
  %7801 = vrot.lane.b32.xlu0 %v6835, 42
  %v7802 = vpop.permute.xlu0 %7801
  %7803 = vrot.lane.b32.xlu0 %v6838, 42
  %v7804 = vpop.permute.xlu0 %7803
  %7805 = vrot.lane.b32.xlu0 %v6841, 42
  %v7806 = vpop.permute.xlu0 %7805
  %7807 = vrot.lane.b32.xlu0 %v6844, 42
  %v7808 = vpop.permute.xlu0 %7807
  %7809 = vrot.lane.b32.xlu0 %v6847, 42
  %v7810 = vpop.permute.xlu0 %7809
  %7811 = vrot.lane.b32.xlu0 %v6850, 42
  %v7812 = vpop.permute.xlu0 %7811
  %7813 = vrot.lane.b32.xlu0 %v6853, 42
  %v7814 = vpop.permute.xlu0 %7813
  %7815 = vrot.lane.b32.xlu0 %v6856, 42
  %v7816 = vpop.permute.xlu0 %7815
  %7817 = vrot.lane.b32.xlu0 %v6859, 42
  %v7818 = vpop.permute.xlu0 %7817
  %7819 = vrot.lane.b32.xlu0 %v6862, 42
  %v7820 = vpop.permute.xlu0 %7819
  %7821 = vrot.lane.b32.xlu0 %v6865, 42
  %v7822 = vpop.permute.xlu0 %7821
  %7823 = vrot.lane.b32.xlu0 %v6868, 42
  %v7824 = vpop.permute.xlu0 %7823
  %7825 = vrot.lane.b32.xlu0 %v6871, 42
  %v7826 = vpop.permute.xlu0 %7825
  %7827 = vrot.lane.b32.xlu0 %v6874, 42
  %v7828 = vpop.permute.xlu0 %7827
  %7829 = vrot.lane.b32.xlu0 %v6877, 42
  %v7830 = vpop.permute.xlu0 %7829
  %7831 = vrot.lane.b32.xlu0 %v6880, 42
  %v7832 = vpop.permute.xlu0 %7831
  %7833 = vrot.lane.b32.xlu0 %v6883, 42
  %v7834 = vpop.permute.xlu0 %7833
  %7835 = vrot.lane.b32.xlu0 %v6886, 42
  %v7836 = vpop.permute.xlu0 %7835
  %7837 = vrot.lane.b32.xlu0 %v6889, 42
  %v7838 = vpop.permute.xlu0 %7837
  %7839 = vrot.lane.b32.xlu0 %v6892, 42
  %v7840 = vpop.permute.xlu0 %7839
  %7841 = vrot.lane.b32.xlu0 %v6895, 42
  %v7842 = vpop.permute.xlu0 %7841
  %7843 = vrot.lane.b32.xlu0 %v6898, 42
  %v7844 = vpop.permute.xlu0 %7843
  %7845 = vrot.lane.b32.xlu0 %v6901, 42
  %v7846 = vpop.permute.xlu0 %7845
  %7847 = vrot.lane.b32.xlu0 %v6904, 42
  %v7848 = vpop.permute.xlu0 %7847
  %7849 = vrot.lane.b32.xlu0 %v6907, 42
  %v7850 = vpop.permute.xlu0 %7849
  %7851 = vrot.lane.b32.xlu0 %v6910, 42
  %v7852 = vpop.permute.xlu0 %7851
  %7853 = vrot.lane.b32.xlu0 %v7787, 42
  %v7854 = vpop.permute.xlu0 %7853
  %7855 = vrot.lane.b32.xlu0 %v6916, 42
  %v7856 = vpop.permute.xlu0 %7855
  %7857 = vrot.lane.b32.xlu0 %v6919, 42
  %v7858 = vpop.permute.xlu0 %7857
  %7859 = vrot.lane.b32.xlu0 %v6922, 42
  %v7860 = vpop.permute.xlu0 %7859
  %7861 = vrot.lane.b32.xlu0 %v6925, 42
  %v7862 = vpop.permute.xlu0 %7861
  %7863 = vrot.lane.b32.xlu0 %v6928, 42
  %v7864 = vpop.permute.xlu0 %7863
  %7865 = vrot.lane.b32.xlu0 %v6931, 42
  %v7866 = vpop.permute.xlu0 %7865
  %7867 = vrot.lane.b32.xlu0 %v6934, 42
  %v7868 = vpop.permute.xlu0 %7867
  %7869 = vrot.lane.b32.xlu0 %v6937, 42
  %v7870 = vpop.permute.xlu0 %7869
  %7871 = vrot.lane.b32.xlu0 %v6940, 42
  %v7872 = vpop.permute.xlu0 %7871
  %7873 = vrot.lane.b32.xlu0 %v6943, 42
  %v7874 = vpop.permute.xlu0 %7873
  %7875 = vrot.lane.b32.xlu0 %v6946, 42
  %v7876 = vpop.permute.xlu0 %7875
  %7877 = vrot.lane.b32.xlu0 %v6949, 42
  %v7878 = vpop.permute.xlu0 %7877
  %7879 = vrot.lane.b32.xlu0 %v6952, 42
  %v7880 = vpop.permute.xlu0 %7879
  %7881 = vrot.lane.b32.xlu0 %v6955, 42
  %v7882 = vpop.permute.xlu0 %7881
  %7883 = vrot.lane.b32.xlu0 %v6958, 42
  %v7884 = vpop.permute.xlu0 %7883
  %7885 = vrot.lane.b32.xlu0 %v6961, 42
  %v7886 = vpop.permute.xlu0 %7885
  %7887 = vrot.lane.b32.xlu0 %v6964, 42
  %v7888 = vpop.permute.xlu0 %7887
  %7889 = vrot.lane.b32.xlu0 %v6967, 42
  %v7890 = vpop.permute.xlu0 %7889
  %7891 = vrot.lane.b32.xlu0 %v6970, 42
  %v7892 = vpop.permute.xlu0 %7891
  %7893 = vrot.lane.b32.xlu0 %v6973, 42
  %v7894 = vpop.permute.xlu0 %7893
  %7895 = vrot.lane.b32.xlu0 %v6976, 42
  %v7896 = vpop.permute.xlu0 %7895
  %7897 = vrot.lane.b32.xlu0 %v6979, 42
  %v7898 = vpop.permute.xlu0 %7897
  %7899 = vrot.lane.b32.xlu0 %v6982, 42
  %v7900 = vpop.permute.xlu0 %7899
  %7901 = vrot.lane.b32.xlu0 %v6985, 42
  %v7902 = vpop.permute.xlu0 %7901
  %7903 = vrot.lane.b32.xlu0 %v6988, 42
  %v7904 = vpop.permute.xlu0 %7903
  %7905 = vrot.lane.b32.xlu0 %v6991, 42
  %v7906 = vpop.permute.xlu0 %7905
  %7907 = vrot.lane.b32.xlu0 %v6994, 42
  %v7908 = vpop.permute.xlu0 %7907
  %7909 = vrot.lane.b32.xlu0 %v6997, 42
  %v7910 = vpop.permute.xlu0 %7909
  %7911 = vrot.lane.b32.xlu0 %v7000, 42
  %v7912 = vpop.permute.xlu0 %7911
  %7913 = vrot.lane.b32.xlu0 %v7003, 42
  %v7914 = vpop.permute.xlu0 %7913
  %7915 = vrot.lane.b32.xlu0 %v7006, 42
  %v7916 = vpop.permute.xlu0 %7915
  %7917 = vrot.lane.b32.xlu0 %v7790, 42
  %v7918 = vpop.permute.xlu0 %7917
  %vm7983 = vcmask 48128
  %v7984 = vsel %vm7983, %v5919, %v6368
  %v7985 = vsel %vm7983, %v5921, %v6370
  %v7986 = vsel %vm7983, %v5923, %v6372
  %v7987 = vsel %vm7983, %v5925, %v6374
  %v7988 = vsel %vm7983, %v5927, %v6376
  %v7989 = vsel %vm7983, %v5929, %v6378
  %v7990 = vsel %vm7983, %v5931, %v6380
  %v7991 = vsel %vm7983, %v5933, %v6382
  %v7992 = vsel %vm7983, %v5935, %v6384
  %v7993 = vsel %vm7983, %v5937, %v6386
  %v7994 = vsel %vm7983, %v5939, %v6388
  %v7995 = vsel %vm7983, %v5941, %v6390
  %v7996 = vsel %vm7983, %v5943, %v6392
  %v7997 = vsel %vm7983, %v5945, %v6394
  %v7998 = vsel %vm7983, %v5947, %v6396
  %v7999 = vsel %vm7983, %v5949, %v6398
  %v8000 = vsel %vm7983, %v5951, %v6400
  %v8001 = vsel %vm7983, %v5953, %v6402
  %v8002 = vsel %vm7983, %v5955, %v6404
  %v8003 = vsel %vm7983, %v5957, %v6406
  %v8004 = vsel %vm7983, %v5959, %v6408
  %v8005 = vsel %vm7983, %v5961, %v6410
  %v8006 = vsel %vm7983, %v5963, %v6412
  %v8007 = vsel %vm7983, %v5965, %v6414
  %v8008 = vsel %vm7983, %v5967, %v6416
  %v8009 = vsel %vm7983, %v5969, %v6418
  %v8010 = vsel %vm7983, %v5971, %v6420
  %v8011 = vsel %vm7983, %v5973, %v6422
  %v8012 = vsel %vm7983, %v5975, %v6424
  %v8013 = vsel %vm7983, %v5977, %v6426
  %v8014 = vsel %vm7983, %v5979, %v6428
  %v8015 = vsel %vm7983, %v5981, %v6430
  %v8016 = vsel %vm7983, %v5983, %v6432
  %v8017 = vsel %vm7983, %v5985, %v6434
  %v8018 = vsel %vm7983, %v5987, %v6436
  %v8019 = vsel %vm7983, %v5989, %v6438
  %v8020 = vsel %vm7983, %v5991, %v6440
  %v8021 = vsel %vm7983, %v5993, %v6442
  %v8022 = vsel %vm7983, %v5995, %v6444
  %v8023 = vsel %vm7983, %v5997, %v6446
  %v8024 = vsel %vm7983, %v5999, %v6448
  %v8025 = vsel %vm7983, %v6001, %v6450
  %v8026 = vsel %vm7983, %v6003, %v6452
  %v8027 = vsel %vm7983, %v6005, %v6454
  %v8028 = vsel %vm7983, %v6007, %v6456
  %v8029 = vsel %vm7983, %v6009, %v6458
  %v8030 = vsel %vm7983, %v6011, %v6460
  %v8031 = vsel %vm7983, %v6013, %v6462
  %v8032 = vsel %vm7983, %v6015, %v6464
  %v8033 = vsel %vm7983, %v6017, %v6466
  %v8034 = vsel %vm7983, %v6019, %v6468
  %v8035 = vsel %vm7983, %v6021, %v6470
  %v8036 = vsel %vm7983, %v6023, %v6472
  %v8037 = vsel %vm7983, %v6025, %v6474
  %v8038 = vsel %vm7983, %v6027, %v6476
  %v8039 = vsel %vm7983, %v6029, %v6478
  %v8040 = vsel %vm7983, %v6031, %v6480
  %v8041 = vsel %vm7983, %v6033, %v6482
  %v8042 = vsel %vm7983, %v6035, %v6484
  %v8043 = vsel %vm7983, %v6037, %v6486
  %v8044 = vsel %vm7983, %v6039, %v6488
  %v8045 = vsel %vm7983, %v6041, %v6490
  %v8046 = vsel %vm7983, %v6043, %v6492
  %v8047 = vsel %vm7983, %v6045, %v6494
  %v8048 = vsel %vm1129, %v7984, %v6560
  %v8049 = vsel %vm1129, %v7985, %v6562
  %v8050 = vsel %vm1129, %v7986, %v6564
  %v8051 = vsel %vm1129, %v7987, %v6566
  %v8052 = vsel %vm1129, %v7988, %v6568
  %v8053 = vsel %vm1129, %v7989, %v6570
  %v8054 = vsel %vm1129, %v7990, %v6572
  %v8055 = vsel %vm1129, %v7991, %v6574
  %v8056 = vsel %vm1129, %v7992, %v6576
  %v8057 = vsel %vm1129, %v7993, %v6578
  %v8058 = vsel %vm1129, %v7994, %v6580
  %v8059 = vsel %vm1129, %v7995, %v6582
  %v8060 = vsel %vm1129, %v7996, %v6584
  %v8061 = vsel %vm1129, %v7997, %v6586
  %v8062 = vsel %vm1129, %v7998, %v6588
  %v8063 = vsel %vm1129, %v7999, %v6590
  %v8064 = vsel %vm1129, %v8000, %v6592
  %v8065 = vsel %vm1129, %v8001, %v6594
  %v8066 = vsel %vm1129, %v8002, %v6596
  %v8067 = vsel %vm1129, %v8003, %v6598
  %v8068 = vsel %vm1129, %v8004, %v6600
  %v8069 = vsel %vm1129, %v8005, %v6602
  %v8070 = vsel %vm1129, %v8006, %v6604
  %v8071 = vsel %vm1129, %v8007, %v6606
  %v8072 = vsel %vm1129, %v8008, %v6608
  %v8073 = vsel %vm1129, %v8009, %v6610
  %v8074 = vsel %vm1129, %v8010, %v6612
  %v8075 = vsel %vm1129, %v8011, %v6614
  %v8076 = vsel %vm1129, %v8012, %v6616
  %v8077 = vsel %vm1129, %v8013, %v6618
  %v8078 = vsel %vm1129, %v8014, %v6620
  %v8079 = vsel %vm1129, %v8015, %v6622
  %v8080 = vsel %vm1129, %v8016, %v6624
  %v8081 = vsel %vm1129, %v8017, %v6626
  %v8082 = vsel %vm1129, %v8018, %v6628
  %v8083 = vsel %vm1129, %v8019, %v6630
  %v8084 = vsel %vm1129, %v8020, %v6632
  %v8085 = vsel %vm1129, %v8021, %v6634
  %v8086 = vsel %vm1129, %v8022, %v6636
  %v8087 = vsel %vm1129, %v8023, %v6638
  %v8088 = vsel %vm1129, %v8024, %v6640
  %v8089 = vsel %vm1129, %v8025, %v6642
  %v8090 = vsel %vm1129, %v8026, %v6644
  %v8091 = vsel %vm1129, %v8027, %v6646
  %v8092 = vsel %vm1129, %v8028, %v6648
  %v8093 = vsel %vm1129, %v8029, %v6650
  %v8094 = vsel %vm1129, %v8030, %v6652
  %v8095 = vsel %vm1129, %v8031, %v6654
  %v8096 = vsel %vm1129, %v8032, %v6656
  %v8097 = vsel %vm1129, %v8033, %v6658
  %v8098 = vsel %vm1129, %v8034, %v6660
  %v8099 = vsel %vm1129, %v8035, %v6662
  %v8100 = vsel %vm1129, %v8036, %v6664
  %v8101 = vsel %vm1129, %v8037, %v6666
  %v8102 = vsel %vm1129, %v8038, %v6668
  %v8103 = vsel %vm1129, %v8039, %v6670
  %v8104 = vsel %vm1129, %v8040, %v6672
  %v8105 = vsel %vm1129, %v8041, %v6674
  %v8106 = vsel %vm1129, %v8042, %v6676
  %v8107 = vsel %vm1129, %v8043, %v6678
  %v8108 = vsel %vm1129, %v8044, %v6680
  %v8109 = vsel %vm1129, %v8045, %v6682
  %v8110 = vsel %vm1129, %v8046, %v6684
  %v8111 = vsel %vm1129, %v8047, %v6686
  %vm8112 = vcmask 146432
  %v8113 = vsel %vm8112, %v8048, %v7008
  %v8114 = vsel %vm8112, %v8049, %v7010
  %v8115 = vsel %vm8112, %v8050, %v7012
  %v8116 = vsel %vm8112, %v8051, %v7014
  %v8117 = vsel %vm8112, %v8052, %v7016
  %v8118 = vsel %vm8112, %v8053, %v7018
  %v8119 = vsel %vm8112, %v8054, %v7020
  %v8120 = vsel %vm8112, %v8055, %v7022
  %v8121 = vsel %vm8112, %v8056, %v7024
  %v8122 = vsel %vm8112, %v8057, %v7026
  %v8123 = vsel %vm8112, %v8058, %v7028
  %v8124 = vsel %vm8112, %v8059, %v7030
  %v8125 = vsel %vm8112, %v8060, %v7032
  %v8126 = vsel %vm8112, %v8061, %v7034
  %v8127 = vsel %vm8112, %v8062, %v7036
  %v8128 = vsel %vm8112, %v8063, %v7038
  %v8129 = vsel %vm8112, %v8064, %v7040
  %v8130 = vsel %vm8112, %v8065, %v7042
  %v8131 = vsel %vm8112, %v8066, %v7044
  %v8132 = vsel %vm8112, %v8067, %v7046
  %v8133 = vsel %vm8112, %v8068, %v7048
  %v8134 = vsel %vm8112, %v8069, %v7050
  %v8135 = vsel %vm8112, %v8070, %v7052
  %v8136 = vsel %vm8112, %v8071, %v7054
  %v8137 = vsel %vm8112, %v8072, %v7056
  %v8138 = vsel %vm8112, %v8073, %v7058
  %v8139 = vsel %vm8112, %v8074, %v7060
  %v8140 = vsel %vm8112, %v8075, %v7062
  %v8141 = vsel %vm8112, %v8076, %v7064
  %v8142 = vsel %vm8112, %v8077, %v7066
  %v8143 = vsel %vm8112, %v8078, %v7068
  %v8144 = vsel %vm8112, %v8079, %v7070
  %v8145 = vsel %vm8112, %v8080, %v7072
  %v8146 = vsel %vm8112, %v8081, %v7074
  %v8147 = vsel %vm8112, %v8082, %v7076
  %v8148 = vsel %vm8112, %v8083, %v7078
  %v8149 = vsel %vm8112, %v8084, %v7080
  %v8150 = vsel %vm8112, %v8085, %v7082
  %v8151 = vsel %vm8112, %v8086, %v7084
  %v8152 = vsel %vm8112, %v8087, %v7086
  %v8153 = vsel %vm8112, %v8088, %v7088
  %v8154 = vsel %vm8112, %v8089, %v7090
  %v8155 = vsel %vm8112, %v8090, %v7092
  %v8156 = vsel %vm8112, %v8091, %v7094
  %v8157 = vsel %vm8112, %v8092, %v7096
  %v8158 = vsel %vm8112, %v8093, %v7098
  %v8159 = vsel %vm8112, %v8094, %v7100
  %v8160 = vsel %vm8112, %v8095, %v7102
  %v8161 = vsel %vm8112, %v8096, %v7104
  %v8162 = vsel %vm8112, %v8097, %v7106
  %v8163 = vsel %vm8112, %v8098, %v7108
  %v8164 = vsel %vm8112, %v8099, %v7110
  %v8165 = vsel %vm8112, %v8100, %v7112
  %v8166 = vsel %vm8112, %v8101, %v7114
  %v8167 = vsel %vm8112, %v8102, %v7116
  %v8168 = vsel %vm8112, %v8103, %v7118
  %v8169 = vsel %vm8112, %v8104, %v7120
  %v8170 = vsel %vm8112, %v8105, %v7122
  %v8171 = vsel %vm8112, %v8106, %v7124
  %v8172 = vsel %vm8112, %v8107, %v7126
  %v8173 = vsel %vm8112, %v8108, %v7128
  %v8174 = vsel %vm8112, %v8109, %v7130
  %v8175 = vsel %vm8112, %v8110, %v7132
  %v8176 = vsel %vm8112, %v8111, %v7134
  %v8177 = vsel %vm1194, %v8113, %v7200
  %v8178 = vsel %vm1194, %v8114, %v7202
  %v8179 = vsel %vm1194, %v8115, %v7204
  %v8180 = vsel %vm1194, %v8116, %v7206
  %v8181 = vsel %vm1194, %v8117, %v7208
  %v8182 = vsel %vm1194, %v8118, %v7210
  %v8183 = vsel %vm1194, %v8119, %v7212
  %v8184 = vsel %vm1194, %v8120, %v7214
  %v8185 = vsel %vm1194, %v8121, %v7216
  %v8186 = vsel %vm1194, %v8122, %v7218
  %v8187 = vsel %vm1194, %v8123, %v7220
  %v8188 = vsel %vm1194, %v8124, %v7222
  %v8189 = vsel %vm1194, %v8125, %v7224
  %v8190 = vsel %vm1194, %v8126, %v7226
  %v8191 = vsel %vm1194, %v8127, %v7228
  %v8192 = vsel %vm1194, %v8128, %v7230
  %v8193 = vsel %vm1194, %v8129, %v7232
  %v8194 = vsel %vm1194, %v8130, %v7234
  %v8195 = vsel %vm1194, %v8131, %v7236
  %v8196 = vsel %vm1194, %v8132, %v7238
  %v8197 = vsel %vm1194, %v8133, %v7240
  %v8198 = vsel %vm1194, %v8134, %v7242
  %v8199 = vsel %vm1194, %v8135, %v7244
  %v8200 = vsel %vm1194, %v8136, %v7246
  %v8201 = vsel %vm1194, %v8137, %v7248
  %v8202 = vsel %vm1194, %v8138, %v7250
  %v8203 = vsel %vm1194, %v8139, %v7252
  %v8204 = vsel %vm1194, %v8140, %v7254
  %v8205 = vsel %vm1194, %v8141, %v7256
  %v8206 = vsel %vm1194, %v8142, %v7258
  %v8207 = vsel %vm1194, %v8143, %v7260
  %v8208 = vsel %vm1194, %v8144, %v7262
  %v8209 = vsel %vm1194, %v8145, %v7264
  %v8210 = vsel %vm1194, %v8146, %v7266
  %v8211 = vsel %vm1194, %v8147, %v7268
  %v8212 = vsel %vm1194, %v8148, %v7270
  %v8213 = vsel %vm1194, %v8149, %v7272
  %v8214 = vsel %vm1194, %v8150, %v7274
  %v8215 = vsel %vm1194, %v8151, %v7276
  %v8216 = vsel %vm1194, %v8152, %v7278
  %v8217 = vsel %vm1194, %v8153, %v7280
  %v8218 = vsel %vm1194, %v8154, %v7282
  %v8219 = vsel %vm1194, %v8155, %v7284
  %v8220 = vsel %vm1194, %v8156, %v7286
  %v8221 = vsel %vm1194, %v8157, %v7288
  %v8222 = vsel %vm1194, %v8158, %v7290
  %v8223 = vsel %vm1194, %v8159, %v7292
  %v8224 = vsel %vm1194, %v8160, %v7294
  %v8225 = vsel %vm1194, %v8161, %v7296
  %v8226 = vsel %vm1194, %v8162, %v7298
  %v8227 = vsel %vm1194, %v8163, %v7300
  %v8228 = vsel %vm1194, %v8164, %v7302
  %v8229 = vsel %vm1194, %v8165, %v7304
  %v8230 = vsel %vm1194, %v8166, %v7306
  %v8231 = vsel %vm1194, %v8167, %v7308
  %v8232 = vsel %vm1194, %v8168, %v7310
  %v8233 = vsel %vm1194, %v8169, %v7312
  %v8234 = vsel %vm1194, %v8170, %v7314
  %v8235 = vsel %vm1194, %v8171, %v7316
  %v8236 = vsel %vm1194, %v8172, %v7318
  %v8237 = vsel %vm1194, %v8173, %v7320
  %v8238 = vsel %vm1194, %v8174, %v7322
  %v8239 = vsel %vm1194, %v8175, %v7324
  %v8240 = vsel %vm1194, %v8176, %v7326
  %vm8241 = vcmask 244736
  %v8242 = vsel %vm8241, %v8177, %v7400
  %v8243 = vsel %vm8241, %v8178, %v7402
  %v8244 = vsel %vm8241, %v8179, %v7404
  %v8245 = vsel %vm8241, %v8180, %v7406
  %v8246 = vsel %vm8241, %v8181, %v7408
  %v8247 = vsel %vm8241, %v8182, %v7410
  %v8248 = vsel %vm8241, %v8183, %v7412
  %v8249 = vsel %vm8241, %v8184, %v7414
  %v8250 = vsel %vm8241, %v8185, %v7416
  %v8251 = vsel %vm8241, %v8186, %v7418
  %v8252 = vsel %vm8241, %v8187, %v7420
  %v8253 = vsel %vm8241, %v8188, %v7422
  %v8254 = vsel %vm8241, %v8189, %v7424
  %v8255 = vsel %vm8241, %v8190, %v7426
  %v8256 = vsel %vm8241, %v8191, %v7428
  %v8257 = vsel %vm8241, %v8192, %v7430
  %v8258 = vsel %vm8241, %v8193, %v7432
  %v8259 = vsel %vm8241, %v8194, %v7434
  %v8260 = vsel %vm8241, %v8195, %v7436
  %v8261 = vsel %vm8241, %v8196, %v7438
  %v8262 = vsel %vm8241, %v8197, %v7440
  %v8263 = vsel %vm8241, %v8198, %v7442
  %v8264 = vsel %vm8241, %v8199, %v7444
  %v8265 = vsel %vm8241, %v8200, %v7446
  %v8266 = vsel %vm8241, %v8201, %v7448
  %v8267 = vsel %vm8241, %v8202, %v7450
  %v8268 = vsel %vm8241, %v8203, %v7452
  %v8269 = vsel %vm8241, %v8204, %v7454
  %v8270 = vsel %vm8241, %v8205, %v7456
  %v8271 = vsel %vm8241, %v8206, %v7458
  %v8272 = vsel %vm8241, %v8207, %v7460
  %v8273 = vsel %vm8241, %v8208, %v7462
  %v8274 = vsel %vm8241, %v8209, %v7464
  %v8275 = vsel %vm8241, %v8210, %v7466
  %v8276 = vsel %vm8241, %v8211, %v7468
  %v8277 = vsel %vm8241, %v8212, %v7470
  %v8278 = vsel %vm8241, %v8213, %v7472
  %v8279 = vsel %vm8241, %v8214, %v7474
  %v8280 = vsel %vm8241, %v8215, %v7476
  %v8281 = vsel %vm8241, %v8216, %v7478
  %v8282 = vsel %vm8241, %v8217, %v7480
  %v8283 = vsel %vm8241, %v8218, %v7482
  %v8284 = vsel %vm8241, %v8219, %v7484
  %v8285 = vsel %vm8241, %v8220, %v7486
  %v8286 = vsel %vm8241, %v8221, %v7488
  %v8287 = vsel %vm8241, %v8222, %v7490
  %v8288 = vsel %vm8241, %v8223, %v7492
  %v8289 = vsel %vm8241, %v8224, %v7494
  %v8290 = vsel %vm8241, %v8225, %v7496
  %v8291 = vsel %vm8241, %v8226, %v7498
  %v8292 = vsel %vm8241, %v8227, %v7500
  %v8293 = vsel %vm8241, %v8228, %v7502
  %v8294 = vsel %vm8241, %v8229, %v7504
  %v8295 = vsel %vm8241, %v8230, %v7506
  %v8296 = vsel %vm8241, %v8231, %v7508
  %v8297 = vsel %vm8241, %v8232, %v7510
  %v8298 = vsel %vm8241, %v8233, %v7512
  %v8299 = vsel %vm8241, %v8234, %v7514
  %v8300 = vsel %vm8241, %v8235, %v7516
  %v8301 = vsel %vm8241, %v8236, %v7518
  %v8302 = vsel %vm8241, %v8237, %v7520
  %v8303 = vsel %vm8241, %v8238, %v7522
  %v8304 = vsel %vm8241, %v8239, %v7524
  %v8305 = vsel %vm8241, %v8240, %v7526
  %v8306 = vsel %vm1259, %v8242, %v7592
  %v8307 = vsel %vm1259, %v8243, %v7594
  %v8308 = vsel %vm1259, %v8244, %v7596
  %v8309 = vsel %vm1259, %v8245, %v7598
  %v8310 = vsel %vm1259, %v8246, %v7600
  %v8311 = vsel %vm1259, %v8247, %v7602
  %v8312 = vsel %vm1259, %v8248, %v7604
  %v8313 = vsel %vm1259, %v8249, %v7606
  %v8314 = vsel %vm1259, %v8250, %v7608
  %v8315 = vsel %vm1259, %v8251, %v7610
  %v8316 = vsel %vm1259, %v8252, %v7612
  %v8317 = vsel %vm1259, %v8253, %v7614
  %v8318 = vsel %vm1259, %v8254, %v7616
  %v8319 = vsel %vm1259, %v8255, %v7618
  %v8320 = vsel %vm1259, %v8256, %v7620
  %v8321 = vsel %vm1259, %v8257, %v7622
  %v8322 = vsel %vm1259, %v8258, %v7624
  %v8323 = vsel %vm1259, %v8259, %v7626
  %v8324 = vsel %vm1259, %v8260, %v7628
  %v8325 = vsel %vm1259, %v8261, %v7630
  %v8326 = vsel %vm1259, %v8262, %v7632
  %v8327 = vsel %vm1259, %v8263, %v7634
  %v8328 = vsel %vm1259, %v8264, %v7636
  %v8329 = vsel %vm1259, %v8265, %v7638
  %v8330 = vsel %vm1259, %v8266, %v7640
  %v8331 = vsel %vm1259, %v8267, %v7642
  %v8332 = vsel %vm1259, %v8268, %v7644
  %v8333 = vsel %vm1259, %v8269, %v7646
  %v8334 = vsel %vm1259, %v8270, %v7648
  %v8335 = vsel %vm1259, %v8271, %v7650
  %v8336 = vsel %vm1259, %v8272, %v7652
  %v8337 = vsel %vm1259, %v8273, %v7654
  %v8338 = vsel %vm1259, %v8274, %v7656
  %v8339 = vsel %vm1259, %v8275, %v7658
  %v8340 = vsel %vm1259, %v8276, %v7660
  %v8341 = vsel %vm1259, %v8277, %v7662
  %v8342 = vsel %vm1259, %v8278, %v7664
  %v8343 = vsel %vm1259, %v8279, %v7666
  %v8344 = vsel %vm1259, %v8280, %v7668
  %v8345 = vsel %vm1259, %v8281, %v7670
  %v8346 = vsel %vm1259, %v8282, %v7672
  %v8347 = vsel %vm1259, %v8283, %v7674
  %v8348 = vsel %vm1259, %v8284, %v7676
  %v8349 = vsel %vm1259, %v8285, %v7678
  %v8350 = vsel %vm1259, %v8286, %v7680
  %v8351 = vsel %vm1259, %v8287, %v7682
  %v8352 = vsel %vm1259, %v8288, %v7684
  %v8353 = vsel %vm1259, %v8289, %v7686
  %v8354 = vsel %vm1259, %v8290, %v7688
  %v8355 = vsel %vm1259, %v8291, %v7690
  %v8356 = vsel %vm1259, %v8292, %v7692
  %v8357 = vsel %vm1259, %v8293, %v7694
  %v8358 = vsel %vm1259, %v8294, %v7696
  %v8359 = vsel %vm1259, %v8295, %v7698
  %v8360 = vsel %vm1259, %v8296, %v7700
  %v8361 = vsel %vm1259, %v8297, %v7702
  %v8362 = vsel %vm1259, %v8298, %v7704
  %v8363 = vsel %vm1259, %v8299, %v7706
  %v8364 = vsel %vm1259, %v8300, %v7708
  %v8365 = vsel %vm1259, %v8301, %v7710
  %v8366 = vsel %vm1259, %v8302, %v7712
  %v8367 = vsel %vm1259, %v8303, %v7714
  %v8368 = vsel %vm1259, %v8304, %v7716
  %v8369 = vsel %vm1259, %v8305, %v7718
  %vm8370 = vcmask 343040
  %v8371 = vsel %vm8370, %v8306, %v7792
  %v8372 = vsel %vm8370, %v8307, %v7794
  %v8373 = vsel %vm8370, %v8308, %v7796
  %v8374 = vsel %vm8370, %v8309, %v7798
  %v8375 = vsel %vm8370, %v8310, %v7800
  %v8376 = vsel %vm8370, %v8311, %v7802
  %v8377 = vsel %vm8370, %v8312, %v7804
  %v8378 = vsel %vm8370, %v8313, %v7806
  %v8379 = vsel %vm8370, %v8314, %v7808
  %v8380 = vsel %vm8370, %v8315, %v7810
  %v8381 = vsel %vm8370, %v8316, %v7812
  %v8382 = vsel %vm8370, %v8317, %v7814
  %v8383 = vsel %vm8370, %v8318, %v7816
  %v8384 = vsel %vm8370, %v8319, %v7818
  %v8385 = vsel %vm8370, %v8320, %v7820
  %v8386 = vsel %vm8370, %v8321, %v7822
  %v8387 = vsel %vm8370, %v8322, %v7824
  %v8388 = vsel %vm8370, %v8323, %v7826
  %v8389 = vsel %vm8370, %v8324, %v7828
  %v8390 = vsel %vm8370, %v8325, %v7830
  %v8391 = vsel %vm8370, %v8326, %v7832
  %v8392 = vsel %vm8370, %v8327, %v7834
  %v8393 = vsel %vm8370, %v8328, %v7836
  %v8394 = vsel %vm8370, %v8329, %v7838
  %v8395 = vsel %vm8370, %v8330, %v7840
  %v8396 = vsel %vm8370, %v8331, %v7842
  %v8397 = vsel %vm8370, %v8332, %v7844
  %v8398 = vsel %vm8370, %v8333, %v7846
  %v8399 = vsel %vm8370, %v8334, %v7848
  %v8400 = vsel %vm8370, %v8335, %v7850
  %v8401 = vsel %vm8370, %v8336, %v7852
  %v8402 = vsel %vm8370, %v8337, %v7854
  %v8403 = vsel %vm8370, %v8338, %v7856
  %v8404 = vsel %vm8370, %v8339, %v7858
  %v8405 = vsel %vm8370, %v8340, %v7860
  %v8406 = vsel %vm8370, %v8341, %v7862
  %v8407 = vsel %vm8370, %v8342, %v7864
  %v8408 = vsel %vm8370, %v8343, %v7866
  %v8409 = vsel %vm8370, %v8344, %v7868
  %v8410 = vsel %vm8370, %v8345, %v7870
  %v8411 = vsel %vm8370, %v8346, %v7872
  %v8412 = vsel %vm8370, %v8347, %v7874
  %v8413 = vsel %vm8370, %v8348, %v7876
  %v8414 = vsel %vm8370, %v8349, %v7878
  %v8415 = vsel %vm8370, %v8350, %v7880
  %v8416 = vsel %vm8370, %v8351, %v7882
  %v8417 = vsel %vm8370, %v8352, %v7884
  %v8418 = vsel %vm8370, %v8353, %v7886
  %v8419 = vsel %vm8370, %v8354, %v7888
  %v8420 = vsel %vm8370, %v8355, %v7890
  %v8421 = vsel %vm8370, %v8356, %v7892
  %v8422 = vsel %vm8370, %v8357, %v7894
  %v8423 = vsel %vm8370, %v8358, %v7896
  %v8424 = vsel %vm8370, %v8359, %v7898
  %v8425 = vsel %vm8370, %v8360, %v7900
  %v8426 = vsel %vm8370, %v8361, %v7902
  %v8427 = vsel %vm8370, %v8362, %v7904
  %v8428 = vsel %vm8370, %v8363, %v7906
  %v8429 = vsel %vm8370, %v8364, %v7908
  %v8430 = vsel %vm8370, %v8365, %v7910
  %v8431 = vsel %vm8370, %v8366, %v7912
  %v8432 = vsel %vm8370, %v8367, %v7914
  %v8433 = vsel %vm8370, %v8368, %v7916
  %v8434 = vsel %vm8370, %v8369, %v7918
  %v8435 = vpack.c.bf16 %v8372, %v8371
  %v8436 = vpack.c.bf16 %v8374, %v8373
  %v8437 = vpack.c.bf16 %v8376, %v8375
  %v8438 = vpack.c.bf16 %v8378, %v8377
  %v8439 = vpack.c.bf16 %v8380, %v8379
  %v8440 = vpack.c.bf16 %v8382, %v8381
  %v8441 = vpack.c.bf16 %v8384, %v8383
  %v8442 = vpack.c.bf16 %v8386, %v8385
  %v8443 = vpack.c.bf16 %v8388, %v8387
  %v8444 = vpack.c.bf16 %v8390, %v8389
  %v8445 = vpack.c.bf16 %v8392, %v8391
  %v8446 = vpack.c.bf16 %v8394, %v8393
  %v8447 = vpack.c.bf16 %v8396, %v8395
  %v8448 = vpack.c.bf16 %v8398, %v8397
  %v8449 = vpack.c.bf16 %v8400, %v8399
  %v8450 = vpack.c.bf16 %v8402, %v8401
  %v8451 = vpack.c.bf16 %v8404, %v8403
  %v8452 = vpack.c.bf16 %v8406, %v8405
  %v8453 = vpack.c.bf16 %v8408, %v8407
  %v8454 = vpack.c.bf16 %v8410, %v8409
  %v8455 = vpack.c.bf16 %v8412, %v8411
  %v8456 = vpack.c.bf16 %v8414, %v8413
  %v8457 = vpack.c.bf16 %v8416, %v8415
  %v8458 = vpack.c.bf16 %v8418, %v8417
  %v8459 = vpack.c.bf16 %v8420, %v8419
  %v8460 = vpack.c.bf16 %v8422, %v8421
  %v8461 = vpack.c.bf16 %v8424, %v8423
  %v8462 = vpack.c.bf16 %v8426, %v8425
  %v8463 = vpack.c.bf16 %v8428, %v8427
  %v8464 = vpack.c.bf16 %v8430, %v8429
  %v8465 = vpack.c.bf16 %v8432, %v8431
  %v8466 = vpack.c.bf16 %v8434, %v8433
  %v8467 = vld [vmem:[%s1] sm:$0xf]
  %v8468 = vld [vmem:[%s1 + $0x4] sm:$0xf]
  %v8469 = vld [vmem:[%s1 + $0x8] sm:$0xf]
  %v8470 = vld [vmem:[%s1 + $0xc] sm:$0xf]
  %v8471 = vld [vmem:[%s1 + $0x10] sm:$0xf]
  %v8472 = vld [vmem:[%s1 + $0x14] sm:$0xf]
  %v8479 = vunpack.c.l.b16 %v8467
  %v8480 = vunpack.c.l.b16 %v8468
  %v8481 = vunpack.c.l.b16 %v8469
  %v8482 = vunpack.c.l.b16 %v8470
  %v8483 = vunpack.c.l.b16 %v8471
  %v8484 = vunpack.c.l.b16 %v8472
  %v8485 = vpack.c.b16 %v8480, %v8479
  %v8486 = vpack.c.b16 %v8482, %v8481
  %v8487 = vpack.c.b16 %v8484, %v8483
  %v8492 = vsel %vm1380, %v8435, 0
  %v8495 = vsel %vm1380, %v8436, 0
  %v8498 = vsel %vm1380, %v8437, 0
  %v8501 = vsel %vm1380, %v8438, 0
  %v8504 = vsel %vm1380, %v8439, 0
  %v8507 = vsel %vm1380, %v8440, 0
  %v8510 = vsel %vm1380, %v8441, 0
  %v8513 = vsel %vm1380, %v8442, 0
  %v8516 = vsel %vm1380, %v8443, 0
  %v8519 = vsel %vm1380, %v8444, 0
  %v8522 = vsel %vm1380, %v8445, 0
  %v8525 = vsel %vm1380, %v8446, 0
  %v8528 = vsel %vm1380, %v8447, 0
  %v8531 = vsel %vm1380, %v8448, 0
  %v8534 = vsel %vm1380, %v8449, 0
  %v8537 = vsel %vm1380, %v8450, 0
  %v8540 = vsel %vm1380, %v8451, 0
  %v8543 = vsel %vm1380, %v8452, 0
  %v8546 = vsel %vm1380, %v8453, 0
  %v8549 = vsel %vm1380, %v8454, 0
  %v8552 = vsel %vm1380, %v8455, 0
  %v8555 = vsel %vm1380, %v8456, 0
  %v8558 = vsel %vm1380, %v8457, 0
  %v8561 = vsel %vm1380, %v8458, 0
  %v8564 = vsel %vm1380, %v8459, 0
  %v8567 = vsel %vm1380, %v8460, 0
  %v8570 = vsel %vm1380, %v8461, 0
  %v8573 = vsel %vm1380, %v8462, 0
  %v8576 = vsel %vm1380, %v8463, 0
  %v8579 = vsel %vm1380, %v8464, 0
  %v8582 = vsel %vm1380, %v8465, 0
  %v8585 = vsel %vm1380, %v8466, 0
  %8587 = vmatprep.subr.bf16.mxu0 0
  %8588 = vmatpush1.bf16.msra.mxu0 0
  %8589 = vmatprep.subr.bf16.mxu0 0
  %8590 = vmatpush1.bf16.msra.mxu0 0
  %8591 = vmatprep.subr.bf16.mxu0 0
  %8592 = vmatpush1.bf16.msra.mxu0 0
  %8593 = vmatprep.subr.bf16.mxu0 0
  %8594 = vmatpush1.bf16.msra.mxu0 0
  %8595 = vmatprep.subr.bf16.mxu0 0
  %8596 = vmatpush1.bf16.msra.mxu0 0
  %8597 = vmatprep.subr.bf16.mxu0 0
  %8598 = vmatpush1.bf16.msra.mxu0 %v8487
  %8599 = vmatprep.subr.bf16.mxu0 0
  %8600 = vmatpush1.bf16.msra.mxu0 %v8486
  %8601 = vmatprep.subr.bf16.mxu0 0
  %8602 = vmatpush1.bf16.msra.mxu0 %v8485
  %8603 = vmatprep.subr.bf16.mxu0 0
  %8604 = vmatpush2.bf16.msra.mxu0 0
  %8605 = vmatprep.subr.bf16.mxu0 0
  %8606 = vmatpush2.bf16.msra.mxu0 0
  %8607 = vmatprep.subr.bf16.mxu0 0
  %8608 = vmatpush2.bf16.msra.mxu0 0
  %8609 = vmatprep.subr.bf16.mxu0 0
  %8610 = vmatpush2.bf16.msra.mxu0 0
  %8611 = vmatprep.subr.bf16.mxu0 0
  %8612 = vmatpush2.bf16.msra.mxu0 0
  %8613 = vmatprep.subr.bf16.mxu0 0
  %8614 = vmatpush2.bf16.msra.mxu0 0
  %8615 = vmatprep.subr.bf16.mxu0 0
  %8616 = vmatpush2.bf16.msra.mxu0 0
  %8617 = vmatprep.subr.bf16.mxu0 0
  %8618 = vmatpush2.bf16.msra.mxu0 0
  %8619 = vmatprep.mubr.bf16.mxu0 0
  %8620 = vmatmul.mubr.bf16.gmra.mxu0 %v8492
  %v8621 = vpop.f32.mrf.mxu0
  %v8622 = vadd.f32 0.0, %v8621
  %v8623 = vpop.f32.mrf.mxu0
  %v8624 = vpop.f32.mrf.mxu0
  %v8625 = vadd.f32 0.0, %v8624
  %v8626 = vpop.f32.mrf.mxu0
  %8627 = vmatprep.mubr.bf16.mxu0 0
  %8628 = vmatmul.mubr.bf16.gmra.mxu0 %v8495
  %v8629 = vpop.f32.mrf.mxu0
  %v8630 = vadd.f32 0.0, %v8629
  %v8631 = vpop.f32.mrf.mxu0
  %v8632 = vpop.f32.mrf.mxu0
  %v8633 = vadd.f32 0.0, %v8632
  %v8634 = vpop.f32.mrf.mxu0
  %8635 = vmatprep.mubr.bf16.mxu0 0
  %8636 = vmatmul.mubr.bf16.gmra.mxu0 %v8498
  %v8637 = vpop.f32.mrf.mxu0
  %v8638 = vadd.f32 0.0, %v8637
  %v8639 = vpop.f32.mrf.mxu0
  %v8640 = vpop.f32.mrf.mxu0
  %v8641 = vadd.f32 0.0, %v8640
  %v8642 = vpop.f32.mrf.mxu0
  %8643 = vmatprep.mubr.bf16.mxu0 0
  %8644 = vmatmul.mubr.bf16.gmra.mxu0 %v8501
  %v8645 = vpop.f32.mrf.mxu0
  %v8646 = vadd.f32 0.0, %v8645
  %v8647 = vpop.f32.mrf.mxu0
  %v8648 = vpop.f32.mrf.mxu0
  %v8649 = vadd.f32 0.0, %v8648
  %v8650 = vpop.f32.mrf.mxu0
  %8651 = vmatprep.mubr.bf16.mxu0 0
  %8652 = vmatmul.mubr.bf16.gmra.mxu0 %v8504
  %v8653 = vpop.f32.mrf.mxu0
  %v8654 = vadd.f32 0.0, %v8653
  %v8655 = vpop.f32.mrf.mxu0
  %v8656 = vpop.f32.mrf.mxu0
  %v8657 = vadd.f32 0.0, %v8656
  %v8658 = vpop.f32.mrf.mxu0
  %8659 = vmatprep.mubr.bf16.mxu0 0
  %8660 = vmatmul.mubr.bf16.gmra.mxu0 %v8507
  %v8661 = vpop.f32.mrf.mxu0
  %v8662 = vadd.f32 0.0, %v8661
  %v8663 = vpop.f32.mrf.mxu0
  %v8664 = vpop.f32.mrf.mxu0
  %v8665 = vadd.f32 0.0, %v8664
  %v8666 = vpop.f32.mrf.mxu0
  %8667 = vmatprep.mubr.bf16.mxu0 0
  %8668 = vmatmul.mubr.bf16.gmra.mxu0 %v8510
  %v8669 = vpop.f32.mrf.mxu0
  %v8670 = vadd.f32 0.0, %v8669
  %v8671 = vpop.f32.mrf.mxu0
  %v8672 = vpop.f32.mrf.mxu0
  %v8673 = vadd.f32 0.0, %v8672
  %v8674 = vpop.f32.mrf.mxu0
  %8675 = vmatprep.mubr.bf16.mxu0 0
  %8676 = vmatmul.mubr.bf16.gmra.mxu0 %v8513
  %v8677 = vpop.f32.mrf.mxu0
  %v8678 = vadd.f32 0.0, %v8677
  %v8679 = vpop.f32.mrf.mxu0
  %v8680 = vpop.f32.mrf.mxu0
  %v8681 = vadd.f32 0.0, %v8680
  %v8682 = vpop.f32.mrf.mxu0
  %8683 = vmatprep.mubr.bf16.mxu0 0
  %8684 = vmatmul.mubr.bf16.gmra.mxu0 %v8516
  %v8685 = vpop.f32.mrf.mxu0
  %v8686 = vadd.f32 0.0, %v8685
  %v8687 = vpop.f32.mrf.mxu0
  %v8688 = vpop.f32.mrf.mxu0
  %v8689 = vadd.f32 0.0, %v8688
  %v8690 = vpop.f32.mrf.mxu0
  %8691 = vmatprep.mubr.bf16.mxu0 0
  %8692 = vmatmul.mubr.bf16.gmra.mxu0 %v8519
  %v8693 = vpop.f32.mrf.mxu0
  %v8694 = vadd.f32 0.0, %v8693
  %v8695 = vpop.f32.mrf.mxu0
  %v8696 = vpop.f32.mrf.mxu0
  %v8697 = vadd.f32 0.0, %v8696
  %v8698 = vpop.f32.mrf.mxu0
  %8699 = vmatprep.mubr.bf16.mxu0 0
  %8700 = vmatmul.mubr.bf16.gmra.mxu0 %v8522
  %v8701 = vpop.f32.mrf.mxu0
  %v8702 = vadd.f32 0.0, %v8701
  %v8703 = vpop.f32.mrf.mxu0
  %v8704 = vpop.f32.mrf.mxu0
  %v8705 = vadd.f32 0.0, %v8704
  %v8706 = vpop.f32.mrf.mxu0
  %8707 = vmatprep.mubr.bf16.mxu0 0
  %8708 = vmatmul.mubr.bf16.gmra.mxu0 %v8525
  %v8709 = vpop.f32.mrf.mxu0
  %v8710 = vadd.f32 0.0, %v8709
  %v8711 = vpop.f32.mrf.mxu0
  %v8712 = vpop.f32.mrf.mxu0
  %v8713 = vadd.f32 0.0, %v8712
  %v8714 = vpop.f32.mrf.mxu0
  %8715 = vmatprep.mubr.bf16.mxu0 0
  %8716 = vmatmul.mubr.bf16.gmra.mxu0 %v8528
  %v8717 = vpop.f32.mrf.mxu0
  %v8718 = vadd.f32 0.0, %v8717
  %v8719 = vpop.f32.mrf.mxu0
  %v8720 = vpop.f32.mrf.mxu0
  %v8721 = vadd.f32 0.0, %v8720
  %v8722 = vpop.f32.mrf.mxu0
  %8723 = vmatprep.mubr.bf16.mxu0 0
  %8724 = vmatmul.mubr.bf16.gmra.mxu0 %v8531
  %v8725 = vpop.f32.mrf.mxu0
  %v8726 = vadd.f32 0.0, %v8725
  %v8727 = vpop.f32.mrf.mxu0
  %v8728 = vpop.f32.mrf.mxu0
  %v8729 = vadd.f32 0.0, %v8728
  %v8730 = vpop.f32.mrf.mxu0
  %8731 = vmatprep.mubr.bf16.mxu0 0
  %8732 = vmatmul.mubr.bf16.gmra.mxu0 %v8534
  %v8733 = vpop.f32.mrf.mxu0
  %v8734 = vadd.f32 0.0, %v8733
  %v8735 = vpop.f32.mrf.mxu0
  %v8736 = vpop.f32.mrf.mxu0
  %v8737 = vadd.f32 0.0, %v8736
  %v8738 = vpop.f32.mrf.mxu0
  %8739 = vmatprep.mubr.bf16.mxu0 0
  %8740 = vmatmul.mubr.bf16.gmra.mxu0 %v8537
  %v8741 = vpop.f32.mrf.mxu0
  %v8742 = vadd.f32 0.0, %v8741
  %v8743 = vpop.f32.mrf.mxu0
  %v8744 = vpop.f32.mrf.mxu0
  %v8745 = vadd.f32 0.0, %v8744
  %v8746 = vpop.f32.mrf.mxu0
  %8747 = vmatprep.mubr.bf16.mxu0 0
  %8748 = vmatmul.mubr.bf16.gmra.mxu0 %v8540
  %v8749 = vpop.f32.mrf.mxu0
  %v8750 = vadd.f32 0.0, %v8749
  %v8751 = vpop.f32.mrf.mxu0
  %v8752 = vpop.f32.mrf.mxu0
  %v8753 = vadd.f32 0.0, %v8752
  %v8754 = vpop.f32.mrf.mxu0
  %8755 = vmatprep.mubr.bf16.mxu0 0
  %8756 = vmatmul.mubr.bf16.gmra.mxu0 %v8543
  %v8757 = vpop.f32.mrf.mxu0
  %v8758 = vadd.f32 0.0, %v8757
  %v8759 = vpop.f32.mrf.mxu0
  %v8760 = vpop.f32.mrf.mxu0
  %v8761 = vadd.f32 0.0, %v8760
  %v8762 = vpop.f32.mrf.mxu0
  %8763 = vmatprep.mubr.bf16.mxu0 0
  %8764 = vmatmul.mubr.bf16.gmra.mxu0 %v8546
  %v8765 = vpop.f32.mrf.mxu0
  %v8766 = vadd.f32 0.0, %v8765
  %v8767 = vpop.f32.mrf.mxu0
  %v8768 = vpop.f32.mrf.mxu0
  %v8769 = vadd.f32 0.0, %v8768
  %v8770 = vpop.f32.mrf.mxu0
  %8771 = vmatprep.mubr.bf16.mxu0 0
  %8772 = vmatmul.mubr.bf16.gmra.mxu0 %v8549
  %v8773 = vpop.f32.mrf.mxu0
  %v8774 = vadd.f32 0.0, %v8773
  %v8775 = vpop.f32.mrf.mxu0
  %v8776 = vpop.f32.mrf.mxu0
  %v8777 = vadd.f32 0.0, %v8776
  %v8778 = vpop.f32.mrf.mxu0
  %8779 = vmatprep.mubr.bf16.mxu0 0
  %8780 = vmatmul.mubr.bf16.gmra.mxu0 %v8552
  %v8781 = vpop.f32.mrf.mxu0
  %v8782 = vadd.f32 0.0, %v8781
  %v8783 = vpop.f32.mrf.mxu0
  %v8784 = vpop.f32.mrf.mxu0
  %v8785 = vadd.f32 0.0, %v8784
  %v8786 = vpop.f32.mrf.mxu0
  %8787 = vmatprep.mubr.bf16.mxu0 0
  %8788 = vmatmul.mubr.bf16.gmra.mxu0 %v8555
  %v8789 = vpop.f32.mrf.mxu0
  %v8790 = vadd.f32 0.0, %v8789
  %v8791 = vpop.f32.mrf.mxu0
  %v8792 = vpop.f32.mrf.mxu0
  %v8793 = vadd.f32 0.0, %v8792
  %v8794 = vpop.f32.mrf.mxu0
  %8795 = vmatprep.mubr.bf16.mxu0 0
  %8796 = vmatmul.mubr.bf16.gmra.mxu0 %v8558
  %v8797 = vpop.f32.mrf.mxu0
  %v8798 = vadd.f32 0.0, %v8797
  %v8799 = vpop.f32.mrf.mxu0
  %v8800 = vpop.f32.mrf.mxu0
  %v8801 = vadd.f32 0.0, %v8800
  %v8802 = vpop.f32.mrf.mxu0
  %8803 = vmatprep.mubr.bf16.mxu0 0
  %8804 = vmatmul.mubr.bf16.gmra.mxu0 %v8561
  %v8805 = vpop.f32.mrf.mxu0
  %v8806 = vadd.f32 0.0, %v8805
  %v8807 = vpop.f32.mrf.mxu0
  %v8808 = vpop.f32.mrf.mxu0
  %v8809 = vadd.f32 0.0, %v8808
  %v8810 = vpop.f32.mrf.mxu0
  %8811 = vmatprep.mubr.bf16.mxu0 0
  %8812 = vmatmul.mubr.bf16.gmra.mxu0 %v8564
  %v8813 = vpop.f32.mrf.mxu0
  %v8814 = vadd.f32 0.0, %v8813
  %v8815 = vpop.f32.mrf.mxu0
  %v8816 = vpop.f32.mrf.mxu0
  %v8817 = vadd.f32 0.0, %v8816
  %v8818 = vpop.f32.mrf.mxu0
  %8819 = vmatprep.mubr.bf16.mxu0 0
  %8820 = vmatmul.mubr.bf16.gmra.mxu0 %v8567
  %v8821 = vpop.f32.mrf.mxu0
  %v8822 = vadd.f32 0.0, %v8821
  %v8823 = vpop.f32.mrf.mxu0
  %v8824 = vpop.f32.mrf.mxu0
  %v8825 = vadd.f32 0.0, %v8824
  %v8826 = vpop.f32.mrf.mxu0
  %8827 = vmatprep.mubr.bf16.mxu0 0
  %8828 = vmatmul.mubr.bf16.gmra.mxu0 %v8570
  %v8829 = vpop.f32.mrf.mxu0
  %v8830 = vadd.f32 0.0, %v8829
  %v8831 = vpop.f32.mrf.mxu0
  %v8832 = vpop.f32.mrf.mxu0
  %v8833 = vadd.f32 0.0, %v8832
  %v8834 = vpop.f32.mrf.mxu0
  %8835 = vmatprep.mubr.bf16.mxu0 0
  %8836 = vmatmul.mubr.bf16.gmra.mxu0 %v8573
  %v8837 = vpop.f32.mrf.mxu0
  %v8838 = vadd.f32 0.0, %v8837
  %v8839 = vpop.f32.mrf.mxu0
  %v8840 = vpop.f32.mrf.mxu0
  %v8841 = vadd.f32 0.0, %v8840
  %v8842 = vpop.f32.mrf.mxu0
  %8843 = vmatprep.mubr.bf16.mxu0 0
  %8844 = vmatmul.mubr.bf16.gmra.mxu0 %v8576
  %v8845 = vpop.f32.mrf.mxu0
  %v8846 = vadd.f32 0.0, %v8845
  %v8847 = vpop.f32.mrf.mxu0
  %v8848 = vpop.f32.mrf.mxu0
  %v8849 = vadd.f32 0.0, %v8848
  %v8850 = vpop.f32.mrf.mxu0
  %8851 = vmatprep.mubr.bf16.mxu0 0
  %8852 = vmatmul.mubr.bf16.gmra.mxu0 %v8579
  %v8853 = vpop.f32.mrf.mxu0
  %v8854 = vadd.f32 0.0, %v8853
  %v8855 = vpop.f32.mrf.mxu0
  %v8856 = vpop.f32.mrf.mxu0
  %v8857 = vadd.f32 0.0, %v8856
  %v8858 = vpop.f32.mrf.mxu0
  %8859 = vmatprep.mubr.bf16.mxu0 0
  %8860 = vmatmul.mubr.bf16.gmra.mxu0 %v8582
  %v8861 = vpop.f32.mrf.mxu0
  %v8862 = vadd.f32 0.0, %v8861
  %v8863 = vpop.f32.mrf.mxu0
  %v8864 = vpop.f32.mrf.mxu0
  %v8865 = vadd.f32 0.0, %v8864
  %v8866 = vpop.f32.mrf.mxu0
  %8867 = vmatprep.mubr.bf16.mxu0 0
  %8868 = vmatmul.mubr.bf16.gmra.mxu0 %v8585
  %v8869 = vpop.f32.mrf.mxu0
  %v8870 = vadd.f32 0.0, %v8869
  %v8871 = vpop.f32.mrf.mxu0
  %v8872 = vpop.f32.mrf.mxu0
  %v8873 = vadd.f32 0.0, %v8872
  %v8874 = vpop.f32.mrf.mxu0
  %8875 = vdwg.mxu0
  %vm8876 = vcmp.gt.f32.partialorder %v8622, 0.0
  %vm8877 = vcmp.gt.f32.partialorder %v8625, 0.0
  %vm8878 = vcmp.gt.f32.partialorder %v8630, 0.0
  %vm8879 = vcmp.gt.f32.partialorder %v8633, 0.0
  %vm8880 = vcmp.gt.f32.partialorder %v8638, 0.0
  %vm8881 = vcmp.gt.f32.partialorder %v8641, 0.0
  %vm8882 = vcmp.gt.f32.partialorder %v8646, 0.0
  %vm8883 = vcmp.gt.f32.partialorder %v8649, 0.0
  %vm8884 = vcmp.gt.f32.partialorder %v8654, 0.0
  %vm8885 = vcmp.gt.f32.partialorder %v8657, 0.0
  %vm8886 = vcmp.gt.f32.partialorder %v8662, 0.0
  %vm8887 = vcmp.gt.f32.partialorder %v8665, 0.0
  %vm8888 = vcmp.gt.f32.partialorder %v8670, 0.0
  %vm8889 = vcmp.gt.f32.partialorder %v8673, 0.0
  %vm8890 = vcmp.gt.f32.partialorder %v8678, 0.0
  %vm8891 = vcmp.gt.f32.partialorder %v8681, 0.0
  %vm8892 = vcmp.gt.f32.partialorder %v8686, 0.0
  %vm8893 = vcmp.gt.f32.partialorder %v8689, 0.0
  %vm8894 = vcmp.gt.f32.partialorder %v8694, 0.0
  %vm8895 = vcmp.gt.f32.partialorder %v8697, 0.0
  %vm8896 = vcmp.gt.f32.partialorder %v8702, 0.0
  %vm8897 = vcmp.gt.f32.partialorder %v8705, 0.0
  %vm8898 = vcmp.gt.f32.partialorder %v8710, 0.0
  %vm8899 = vcmp.gt.f32.partialorder %v8713, 0.0
  %vm8900 = vcmp.gt.f32.partialorder %v8718, 0.0
  %vm8901 = vcmp.gt.f32.partialorder %v8721, 0.0
  %vm8902 = vcmp.gt.f32.partialorder %v8726, 0.0
  %vm8903 = vcmp.gt.f32.partialorder %v8729, 0.0
  %vm8904 = vcmp.gt.f32.partialorder %v8734, 0.0
  %vm8905 = vcmp.gt.f32.partialorder %v8737, 0.0
  %vm8906 = vcmp.gt.f32.partialorder %v8742, 0.0
  %vm8907 = vcmp.gt.f32.partialorder %v8745, 0.0
  %vm8908 = vcmp.gt.f32.partialorder %v8750, 0.0
  %vm8909 = vcmp.gt.f32.partialorder %v8753, 0.0
  %vm8910 = vcmp.gt.f32.partialorder %v8758, 0.0
  %vm8911 = vcmp.gt.f32.partialorder %v8761, 0.0
  %vm8912 = vcmp.gt.f32.partialorder %v8766, 0.0
  %vm8913 = vcmp.gt.f32.partialorder %v8769, 0.0
  %vm8914 = vcmp.gt.f32.partialorder %v8774, 0.0
  %vm8915 = vcmp.gt.f32.partialorder %v8777, 0.0
  %vm8916 = vcmp.gt.f32.partialorder %v8782, 0.0
  %vm8917 = vcmp.gt.f32.partialorder %v8785, 0.0
  %vm8918 = vcmp.gt.f32.partialorder %v8790, 0.0
  %vm8919 = vcmp.gt.f32.partialorder %v8793, 0.0
  %vm8920 = vcmp.gt.f32.partialorder %v8798, 0.0
  %vm8921 = vcmp.gt.f32.partialorder %v8801, 0.0
  %vm8922 = vcmp.gt.f32.partialorder %v8806, 0.0
  %vm8923 = vcmp.gt.f32.partialorder %v8809, 0.0
  %vm8924 = vcmp.gt.f32.partialorder %v8814, 0.0
  %vm8925 = vcmp.gt.f32.partialorder %v8817, 0.0
  %vm8926 = vcmp.gt.f32.partialorder %v8822, 0.0
  %vm8927 = vcmp.gt.f32.partialorder %v8825, 0.0
  %vm8928 = vcmp.gt.f32.partialorder %v8830, 0.0
  %vm8929 = vcmp.gt.f32.partialorder %v8833, 0.0
  %vm8930 = vcmp.gt.f32.partialorder %v8838, 0.0
  %vm8931 = vcmp.gt.f32.partialorder %v8841, 0.0
  %vm8932 = vcmp.gt.f32.partialorder %v8846, 0.0
  %vm8933 = vcmp.gt.f32.partialorder %v8849, 0.0
  %vm8934 = vcmp.gt.f32.partialorder %v8854, 0.0
  %vm8935 = vcmp.gt.f32.partialorder %v8857, 0.0
  %vm8936 = vcmp.gt.f32.partialorder %v8862, 0.0
  %vm8937 = vcmp.gt.f32.partialorder %v8865, 0.0
  %vm8938 = vcmp.gt.f32.partialorder %v8870, 0.0
  %vm8939 = vcmp.gt.f32.partialorder %v8873, 0.0
  %v8940 = vmul.f32 %v8622, 0.2
  %v8941 = vmul.f32 %v8625, 0.2
  %v8942 = vmul.f32 %v8630, 0.2
  %v8943 = vmul.f32 %v8633, 0.2
  %v8944 = vmul.f32 %v8638, 0.2
  %v8945 = vmul.f32 %v8641, 0.2
  %v8946 = vmul.f32 %v8646, 0.2
  %v8947 = vmul.f32 %v8649, 0.2
  %v8948 = vmul.f32 %v8654, 0.2
  %v8949 = vmul.f32 %v8657, 0.2
  %v8950 = vmul.f32 %v8662, 0.2
  %v8951 = vmul.f32 %v8665, 0.2
  %v8952 = vmul.f32 %v8670, 0.2
  %v8953 = vmul.f32 %v8673, 0.2
  %v8954 = vmul.f32 %v8678, 0.2
  %v8955 = vmul.f32 %v8681, 0.2
  %v8956 = vmul.f32 %v8686, 0.2
  %v8957 = vmul.f32 %v8689, 0.2
  %v8958 = vmul.f32 %v8694, 0.2
  %v8959 = vmul.f32 %v8697, 0.2
  %v8960 = vmul.f32 %v8702, 0.2
  %v8961 = vmul.f32 %v8705, 0.2
  %v8962 = vmul.f32 %v8710, 0.2
  %v8963 = vmul.f32 %v8713, 0.2
  %v8964 = vmul.f32 %v8718, 0.2
  %v8965 = vmul.f32 %v8721, 0.2
  %v8966 = vmul.f32 %v8726, 0.2
  %v8967 = vmul.f32 %v8729, 0.2
  %v8968 = vmul.f32 %v8734, 0.2
  %v8969 = vmul.f32 %v8737, 0.2
  %v8970 = vmul.f32 %v8742, 0.2
  %v8971 = vmul.f32 %v8745, 0.2
  %v8972 = vmul.f32 %v8750, 0.2
  %v8973 = vmul.f32 %v8753, 0.2
  %v8974 = vmul.f32 %v8758, 0.2
  %v8975 = vmul.f32 %v8761, 0.2
  %v8976 = vmul.f32 %v8766, 0.2
  %v8977 = vmul.f32 %v8769, 0.2
  %v8978 = vmul.f32 %v8774, 0.2
  %v8979 = vmul.f32 %v8777, 0.2
  %v8980 = vmul.f32 %v8782, 0.2
  %v8981 = vmul.f32 %v8785, 0.2
  %v8982 = vmul.f32 %v8790, 0.2
  %v8983 = vmul.f32 %v8793, 0.2
  %v8984 = vmul.f32 %v8798, 0.2
  %v8985 = vmul.f32 %v8801, 0.2
  %v8986 = vmul.f32 %v8806, 0.2
  %v8987 = vmul.f32 %v8809, 0.2
  %v8988 = vmul.f32 %v8814, 0.2
  %v8989 = vmul.f32 %v8817, 0.2
  %v8990 = vmul.f32 %v8822, 0.2
  %v8991 = vmul.f32 %v8825, 0.2
  %v8992 = vmul.f32 %v8830, 0.2
  %v8993 = vmul.f32 %v8833, 0.2
  %v8994 = vmul.f32 %v8838, 0.2
  %v8995 = vmul.f32 %v8841, 0.2
  %v8996 = vmul.f32 %v8846, 0.2
  %v8997 = vmul.f32 %v8849, 0.2
  %v8998 = vmul.f32 %v8854, 0.2
  %v8999 = vmul.f32 %v8857, 0.2
  %v9000 = vmul.f32 %v8862, 0.2
  %v9001 = vmul.f32 %v8865, 0.2
  %v9002 = vmul.f32 %v8870, 0.2
  %v9003 = vmul.f32 %v8873, 0.2
  %v9004 = vsel %vm8876, %v8622, %v8940
  %v9005 = vsel %vm8877, %v8625, %v8941
  %v9006 = vsel %vm8878, %v8630, %v8942
  %v9007 = vsel %vm8879, %v8633, %v8943
  %v9008 = vsel %vm8880, %v8638, %v8944
  %v9009 = vsel %vm8881, %v8641, %v8945
  %v9010 = vsel %vm8882, %v8646, %v8946
  %v9011 = vsel %vm8883, %v8649, %v8947
  %v9012 = vsel %vm8884, %v8654, %v8948
  %v9013 = vsel %vm8885, %v8657, %v8949
  %v9014 = vsel %vm8886, %v8662, %v8950
  %v9015 = vsel %vm8887, %v8665, %v8951
  %v9016 = vsel %vm8888, %v8670, %v8952
  %v9017 = vsel %vm8889, %v8673, %v8953
  %v9018 = vsel %vm8890, %v8678, %v8954
  %v9019 = vsel %vm8891, %v8681, %v8955
  %v9020 = vsel %vm8892, %v8686, %v8956
  %v9021 = vsel %vm8893, %v8689, %v8957
  %v9022 = vsel %vm8894, %v8694, %v8958
  %v9023 = vsel %vm8895, %v8697, %v8959
  %v9024 = vsel %vm8896, %v8702, %v8960
  %v9025 = vsel %vm8897, %v8705, %v8961
  %v9026 = vsel %vm8898, %v8710, %v8962
  %v9027 = vsel %vm8899, %v8713, %v8963
  %v9028 = vsel %vm8900, %v8718, %v8964
  %v9029 = vsel %vm8901, %v8721, %v8965
  %v9030 = vsel %vm8902, %v8726, %v8966
  %v9031 = vsel %vm8903, %v8729, %v8967
  %v9032 = vsel %vm8904, %v8734, %v8968
  %v9033 = vsel %vm8905, %v8737, %v8969
  %v9034 = vsel %vm8906, %v8742, %v8970
  %v9035 = vsel %vm8907, %v8745, %v8971
  %v9036 = vsel %vm8908, %v8750, %v8972
  %v9037 = vsel %vm8909, %v8753, %v8973
  %v9038 = vsel %vm8910, %v8758, %v8974
  %v9039 = vsel %vm8911, %v8761, %v8975
  %v9040 = vsel %vm8912, %v8766, %v8976
  %v9041 = vsel %vm8913, %v8769, %v8977
  %v9042 = vsel %vm8914, %v8774, %v8978
  %v9043 = vsel %vm8915, %v8777, %v8979
  %v9044 = vsel %vm8916, %v8782, %v8980
  %v9045 = vsel %vm8917, %v8785, %v8981
  %v9046 = vsel %vm8918, %v8790, %v8982
  %v9047 = vsel %vm8919, %v8793, %v8983
  %v9048 = vsel %vm8920, %v8798, %v8984
  %v9049 = vsel %vm8921, %v8801, %v8985
  %v9050 = vsel %vm8922, %v8806, %v8986
  %v9051 = vsel %vm8923, %v8809, %v8987
  %v9052 = vsel %vm8924, %v8814, %v8988
  %v9053 = vsel %vm8925, %v8817, %v8989
  %v9054 = vsel %vm8926, %v8822, %v8990
  %v9055 = vsel %vm8927, %v8825, %v8991
  %v9056 = vsel %vm8928, %v8830, %v8992
  %v9057 = vsel %vm8929, %v8833, %v8993
  %v9058 = vsel %vm8930, %v8838, %v8994
  %v9059 = vsel %vm8931, %v8841, %v8995
  %v9060 = vsel %vm8932, %v8846, %v8996
  %v9061 = vsel %vm8933, %v8849, %v8997
  %v9062 = vsel %vm8934, %v8854, %v8998
  %v9063 = vsel %vm8935, %v8857, %v8999
  %v9064 = vsel %vm8936, %v8862, %v9000
  %v9065 = vsel %vm8937, %v8865, %v9001
  %v9066 = vsel %vm8938, %v8870, %v9002
  %v9067 = vsel %vm8939, %v8873, %v9003
  %vm9068 = vcmask 64512
  %9069 = vst.msk [vmem:[%s2214 + $0x1] sm:$0xff] %vm9068, %v9004
  %9070 = vst.msk [vmem:[%s2214 + $0x11] sm:$0xff] %vm9068, %v9005
  %9071 = vst.msk [vmem:[%s2214 + $0x21] sm:$0xff] %vm9068, %v9006
  %9072 = vst.msk [vmem:[%s2214 + $0x31] sm:$0xff] %vm9068, %v9007
  %9073 = vst.msk [vmem:[%s2214 + $0x41] sm:$0xff] %vm9068, %v9008
  %9074 = vst.msk [vmem:[%s2214 + $0x51] sm:$0xff] %vm9068, %v9009
  %9075 = vst.msk [vmem:[%s2214 + $0x61] sm:$0xff] %vm9068, %v9010
  %9076 = vst.msk [vmem:[%s2214 + $0x71] sm:$0xff] %vm9068, %v9011
  %9077 = vst.msk [vmem:[%s2214 + $0x81] sm:$0xff] %vm9068, %v9012
  %9078 = vst.msk [vmem:[%s2214 + $0x91] sm:$0xff] %vm9068, %v9013
  %9079 = vst.msk [vmem:[%s2214 + $0xa1] sm:$0xff] %vm9068, %v9014
  %9080 = vst.msk [vmem:[%s2214 + $0xb1] sm:$0xff] %vm9068, %v9015
  %9081 = vst.msk [vmem:[%s2214 + $0xc1] sm:$0xff] %vm9068, %v9016
  %9082 = vst.msk [vmem:[%s2214 + $0xd1] sm:$0xff] %vm9068, %v9017
  %9083 = vst.msk [vmem:[%s2214 + $0xe1] sm:$0xff] %vm9068, %v9018
  %9084 = vst.msk [vmem:[%s2214 + $0xf1] sm:$0xff] %vm9068, %v9019
  %9085 = vst.msk [vmem:[%s2214 + $0x101] sm:$0xff] %vm9068, %v9020
  %9086 = vst.msk [vmem:[%s2214 + $0x111] sm:$0xff] %vm9068, %v9021
  %9087 = vst.msk [vmem:[%s2214 + $0x121] sm:$0xff] %vm9068, %v9022
  %9088 = vst.msk [vmem:[%s2214 + $0x131] sm:$0xff] %vm9068, %v9023
  %9089 = vst.msk [vmem:[%s2214 + $0x141] sm:$0xff] %vm9068, %v9024
  %9090 = vst.msk [vmem:[%s2214 + $0x151] sm:$0xff] %vm9068, %v9025
  %9091 = vst.msk [vmem:[%s2214 + $0x161] sm:$0xff] %vm9068, %v9026
  %9092 = vst.msk [vmem:[%s2214 + $0x171] sm:$0xff] %vm9068, %v9027
  %9093 = vst.msk [vmem:[%s2214 + $0x181] sm:$0xff] %vm9068, %v9028
  %9094 = vst.msk [vmem:[%s2214 + $0x191] sm:$0xff] %vm9068, %v9029
  %9095 = vst.msk [vmem:[%s2214 + $0x1a1] sm:$0xff] %vm9068, %v9030
  %9096 = vst.msk [vmem:[%s2214 + $0x1b1] sm:$0xff] %vm9068, %v9031
  %9097 = vst.msk [vmem:[%s2214 + $0x1c1] sm:$0xff] %vm9068, %v9032
  %9098 = vst.msk [vmem:[%s2214 + $0x1d1] sm:$0xff] %vm9068, %v9033
  %9099 = vst.msk [vmem:[%s2214 + $0x1e1] sm:$0xff] %vm9068, %v9034
  %9100 = vst.msk [vmem:[%s2214 + $0x1f1] sm:$0xff] %vm9068, %v9035
  %9101 = vst.msk [vmem:[%s2214 + $0x221] sm:$0xff] %vm9068, %v9036
  %9102 = vst.msk [vmem:[%s2214 + $0x231] sm:$0xff] %vm9068, %v9037
  %9103 = vst.msk [vmem:[%s2214 + $0x241] sm:$0xff] %vm9068, %v9038
  %9104 = vst.msk [vmem:[%s2214 + $0x251] sm:$0xff] %vm9068, %v9039
  %9105 = vst.msk [vmem:[%s2214 + $0x261] sm:$0xff] %vm9068, %v9040
  %9106 = vst.msk [vmem:[%s2214 + $0x271] sm:$0xff] %vm9068, %v9041
  %9107 = vst.msk [vmem:[%s2214 + $0x281] sm:$0xff] %vm9068, %v9042
  %9108 = vst.msk [vmem:[%s2214 + $0x291] sm:$0xff] %vm9068, %v9043
  %9109 = vst.msk [vmem:[%s2214 + $0x2a1] sm:$0xff] %vm9068, %v9044
  %9110 = vst.msk [vmem:[%s2214 + $0x2b1] sm:$0xff] %vm9068, %v9045
  %9111 = vst.msk [vmem:[%s2214 + $0x2c1] sm:$0xff] %vm9068, %v9046
  %9112 = vst.msk [vmem:[%s2214 + $0x2d1] sm:$0xff] %vm9068, %v9047
  %9113 = vst.msk [vmem:[%s2214 + $0x2e1] sm:$0xff] %vm9068, %v9048
  %9114 = vst.msk [vmem:[%s2214 + $0x2f1] sm:$0xff] %vm9068, %v9049
  %9115 = vst.msk [vmem:[%s2214 + $0x301] sm:$0xff] %vm9068, %v9050
  %9116 = vst.msk [vmem:[%s2214 + $0x311] sm:$0xff] %vm9068, %v9051
  %9117 = vst.msk [vmem:[%s2214 + $0x321] sm:$0xff] %vm9068, %v9052
  %9118 = vst.msk [vmem:[%s2214 + $0x331] sm:$0xff] %vm9068, %v9053
  %9119 = vst.msk [vmem:[%s2214 + $0x341] sm:$0xff] %vm9068, %v9054
  %9120 = vst.msk [vmem:[%s2214 + $0x351] sm:$0xff] %vm9068, %v9055
  %9121 = vst.msk [vmem:[%s2214 + $0x361] sm:$0xff] %vm9068, %v9056
  %9122 = vst.msk [vmem:[%s2214 + $0x371] sm:$0xff] %vm9068, %v9057
  %9123 = vst.msk [vmem:[%s2214 + $0x381] sm:$0xff] %vm9068, %v9058
  %9124 = vst.msk [vmem:[%s2214 + $0x391] sm:$0xff] %vm9068, %v9059
  %9125 = vst.msk [vmem:[%s2214 + $0x3a1] sm:$0xff] %vm9068, %v9060
  %9126 = vst.msk [vmem:[%s2214 + $0x3b1] sm:$0xff] %vm9068, %v9061
  %9127 = vst.msk [vmem:[%s2214 + $0x3c1] sm:$0xff] %vm9068, %v9062
  %9128 = vst.msk [vmem:[%s2214 + $0x3d1] sm:$0xff] %vm9068, %v9063
  %9129 = vst.msk [vmem:[%s2214 + $0x3e1] sm:$0xff] %vm9068, %v9064
  %9130 = vst.msk [vmem:[%s2214 + $0x3f1] sm:$0xff] %vm9068, %v9065
  %9131 = vst.msk [vmem:[%s2214 + $0x401] sm:$0xff] %vm9068, %v9066
  %9132 = vst.msk [vmem:[%s2214 + $0x411] sm:$0xff] %vm9068, %v9067
  %9133 = vst.msk [vmem:[#allocation3] sm:$0xff] %vm21, 0.0
  %9134 = vst.msk [vmem:[#allocation3 + $0x8] sm:$0x1] %vm23, 0.0
  %9135 = vst.msk [vmem:[#allocation3 + $0x10] sm:$0xff] %vm21, 0.0
  %9136 = vst.msk [vmem:[#allocation3 + $0x18] sm:$0x1] %vm23, 0.0
  %9137 = vst.msk [vmem:[#allocation3 + $0x20] sm:$0xff] %vm21, 0.0
  %9138 = vst.msk [vmem:[#allocation3 + $0x28] sm:$0x1] %vm23, 0.0
  %9139 = vst.msk [vmem:[#allocation3 + $0x30] sm:$0xff] %vm21, 0.0
  %9140 = vst.msk [vmem:[#allocation3 + $0x38] sm:$0x1] %vm23, 0.0
  %9141 = vst.msk [vmem:[#allocation3 + $0x40] sm:$0xff] %vm21, 0.0
  %9142 = vst.msk [vmem:[#allocation3 + $0x48] sm:$0x1] %vm23, 0.0
  %9143 = vst.msk [vmem:[#allocation3 + $0x50] sm:$0xff] %vm21, 0.0
  %9144 = vst.msk [vmem:[#allocation3 + $0x58] sm:$0x1] %vm23, 0.0
  %9145 = vst.msk [vmem:[#allocation3 + $0x60] sm:$0xff] %vm21, 0.0
  %9146 = vst.msk [vmem:[#allocation3 + $0x68] sm:$0x1] %vm23, 0.0
  %9147 = vst.msk [vmem:[#allocation3 + $0x70] sm:$0xff] %vm21, 0.0
  %9148 = vst.msk [vmem:[#allocation3 + $0x78] sm:$0x1] %vm23, 0.0
  %9149 = vst.msk [vmem:[#allocation3 + $0x80] sm:$0xff] %vm21, 0.0
  %9150 = vst.msk [vmem:[#allocation3 + $0x88] sm:$0x1] %vm23, 0.0
  %9151 = vst.msk [vmem:[#allocation3 + $0x90] sm:$0xff] %vm21, 0.0
  %9152 = vst.msk [vmem:[#allocation3 + $0x98] sm:$0x1] %vm23, 0.0
  %9153 = vst.msk [vmem:[#allocation3 + $0xa0] sm:$0xff] %vm21, 0.0
  %9154 = vst.msk [vmem:[#allocation3 + $0xa8] sm:$0x1] %vm23, 0.0
  %9155 = vst.msk [vmem:[#allocation3 + $0xb0] sm:$0xff] %vm21, 0.0
  %9156 = vst.msk [vmem:[#allocation3 + $0xb8] sm:$0x1] %vm23, 0.0
  %9157 = vst.msk [vmem:[#allocation3 + $0xc0] sm:$0xff] %vm21, 0.0
  %9158 = vst.msk [vmem:[#allocation3 + $0xc8] sm:$0x1] %vm23, 0.0
  %9159 = vst.msk [vmem:[#allocation3 + $0xd0] sm:$0xff] %vm21, 0.0
  %9160 = vst.msk [vmem:[#allocation3 + $0xd8] sm:$0x1] %vm23, 0.0
  %9161 = vst.msk [vmem:[#allocation3 + $0xe0] sm:$0xff] %vm21, 0.0
  %9162 = vst.msk [vmem:[#allocation3 + $0xe8] sm:$0x1] %vm23, 0.0
  %9163 = vst.msk [vmem:[#allocation3 + $0xf0] sm:$0xff] %vm21, 0.0
  %9164 = vst.msk [vmem:[#allocation3 + $0xf8] sm:$0x1] %vm23, 0.0
  %9165 = vst.msk [vmem:[#allocation3 + $0x100] sm:$0xff] %vm21, 0.0
  %9166 = vst.msk [vmem:[#allocation3 + $0x108] sm:$0x1] %vm23, 0.0
  %9167 = vst.msk [vmem:[#allocation3 + $0x110] sm:$0xff] %vm21, 0.0
  %9168 = vst.msk [vmem:[#allocation3 + $0x118] sm:$0x1] %vm23, 0.0
  %9169 = vst.msk [vmem:[#allocation3 + $0x120] sm:$0xff] %vm21, 0.0
  %9170 = vst.msk [vmem:[#allocation3 + $0x128] sm:$0x1] %vm23, 0.0
  %9171 = vst.msk [vmem:[#allocation3 + $0x130] sm:$0xff] %vm21, 0.0
  %9172 = vst.msk [vmem:[#allocation3 + $0x138] sm:$0x1] %vm23, 0.0
  %9173 = vst.msk [vmem:[#allocation3 + $0x140] sm:$0xff] %vm21, 0.0
  %9174 = vst.msk [vmem:[#allocation3 + $0x148] sm:$0x1] %vm23, 0.0
  %9175 = vst.msk [vmem:[#allocation3 + $0x150] sm:$0xff] %vm21, 0.0
  %9176 = vst.msk [vmem:[#allocation3 + $0x158] sm:$0x1] %vm23, 0.0
  %9177 = vst.msk [vmem:[#allocation3 + $0x160] sm:$0xff] %vm21, 0.0
  %9178 = vst.msk [vmem:[#allocation3 + $0x168] sm:$0x1] %vm23, 0.0
  %9179 = vst.msk [vmem:[#allocation3 + $0x170] sm:$0xff] %vm21, 0.0
  %9180 = vst.msk [vmem:[#allocation3 + $0x178] sm:$0x1] %vm23, 0.0
  %9181 = vst.msk [vmem:[#allocation3 + $0x180] sm:$0xff] %vm21, 0.0
  %9182 = vst.msk [vmem:[#allocation3 + $0x188] sm:$0x1] %vm23, 0.0
  %9183 = vst.msk [vmem:[#allocation3 + $0x190] sm:$0xff] %vm21, 0.0
  %9184 = vst.msk [vmem:[#allocation3 + $0x198] sm:$0x1] %vm23, 0.0
  %9185 = vst.msk [vmem:[#allocation3 + $0x1a0] sm:$0xff] %vm21, 0.0
  %9186 = vst.msk [vmem:[#allocation3 + $0x1a8] sm:$0x1] %vm23, 0.0
  %9187 = vst.msk [vmem:[#allocation3 + $0x1b0] sm:$0xff] %vm21, 0.0
  %9188 = vst.msk [vmem:[#allocation3 + $0x1b8] sm:$0x1] %vm23, 0.0
  %9189 = vst.msk [vmem:[#allocation3 + $0x1c0] sm:$0xff] %vm21, 0.0
  %9190 = vst.msk [vmem:[#allocation3 + $0x1c8] sm:$0x1] %vm23, 0.0
  %9191 = vst.msk [vmem:[#allocation3 + $0x1d0] sm:$0xff] %vm21, 0.0
  %9192 = vst.msk [vmem:[#allocation3 + $0x1d8] sm:$0x1] %vm23, 0.0
  %9193 = vst.msk [vmem:[#allocation3 + $0x1e0] sm:$0xff] %vm21, 0.0
  %9194 = vst.msk [vmem:[#allocation3 + $0x1e8] sm:$0x1] %vm23, 0.0
  %9195 = vst.msk [vmem:[#allocation3 + $0x1f0] sm:$0xff] %vm21, 0.0
  %9196 = vst.msk [vmem:[#allocation3 + $0x1f8] sm:$0x1] %vm23, 0.0
  %9197 = vst.msk [vmem:[#allocation3 + $0x200] sm:$0xff] %vm21, 0.0
  %9198 = vst.msk [vmem:[#allocation3 + $0x208] sm:$0x1] %vm23, 0.0
  %9199 = vst.msk [vmem:[#allocation3 + $0x210] sm:$0xff] %vm21, 0.0
  %9200 = vst.msk [vmem:[#allocation3 + $0x218] sm:$0x1] %vm23, 0.0
  %9201 = vst.msk [vmem:[#allocation3 + $0x220] sm:$0xff] %vm21, 0.0
  %9202 = vst.msk [vmem:[#allocation3 + $0x228] sm:$0x1] %vm23, 0.0
  %9203 = vst.msk [vmem:[#allocation3 + $0x230] sm:$0xff] %vm21, 0.0
  %9204 = vst.msk [vmem:[#allocation3 + $0x238] sm:$0x1] %vm23, 0.0
  %v9205 = vld [vmem:[#allocation2] sm:$0xff]
  %v9206 = vld [vmem:[#allocation2 + $0x8] sm:$0x1]
  %v9207 = vld [vmem:[#allocation2 + $0x10] sm:$0xff]
  %v9208 = vld [vmem:[#allocation2 + $0x18] sm:$0x1]
  %v9209 = vld [vmem:[#allocation2 + $0x20] sm:$0xff]
  %v9210 = vld [vmem:[#allocation2 + $0x28] sm:$0x1]
  %v9211 = vld [vmem:[#allocation2 + $0x30] sm:$0xff]
  %v9212 = vld [vmem:[#allocation2 + $0x38] sm:$0x1]
  %v9213 = vld [vmem:[#allocation2 + $0x40] sm:$0xff]
  %v9214 = vld [vmem:[#allocation2 + $0x48] sm:$0x1]
  %v9215 = vld [vmem:[#allocation2 + $0x50] sm:$0xff]
  %v9216 = vld [vmem:[#allocation2 + $0x58] sm:$0x1]
  %v9217 = vld [vmem:[#allocation2 + $0x60] sm:$0xff]
  %v9218 = vld [vmem:[#allocation2 + $0x68] sm:$0x1]
  %v9219 = vld [vmem:[#allocation2 + $0x70] sm:$0xff]
  %v9220 = vld [vmem:[#allocation2 + $0x78] sm:$0x1]
  %v9221 = vld [vmem:[#allocation2 + $0x80] sm:$0xff]
  %v9222 = vld [vmem:[#allocation2 + $0x88] sm:$0x1]
  %v9223 = vld [vmem:[#allocation2 + $0x90] sm:$0xff]
  %v9224 = vld [vmem:[#allocation2 + $0x98] sm:$0x1]
  %v9225 = vld [vmem:[#allocation2 + $0xa0] sm:$0xff]
  %v9226 = vld [vmem:[#allocation2 + $0xa8] sm:$0x1]
  %v9227 = vld [vmem:[#allocation2 + $0xb0] sm:$0xff]
  %v9228 = vld [vmem:[#allocation2 + $0xb8] sm:$0x1]
  %v9229 = vld [vmem:[#allocation2 + $0xc0] sm:$0xff]
  %v9230 = vld [vmem:[#allocation2 + $0xc8] sm:$0x1]
  %v9231 = vld [vmem:[#allocation2 + $0xd0] sm:$0xff]
  %v9232 = vld [vmem:[#allocation2 + $0xd8] sm:$0x1]
  %v9233 = vld [vmem:[#allocation2 + $0xe0] sm:$0xff]
  %v9234 = vld [vmem:[#allocation2 + $0xe8] sm:$0x1]
  %v9235 = vld [vmem:[#allocation2 + $0xf0] sm:$0xff]
  %v9236 = vld [vmem:[#allocation2 + $0xf8] sm:$0x1]
  %v9237 = vld [vmem:[#allocation2 + $0x100] sm:$0xff]
  %v9238 = vld [vmem:[#allocation2 + $0x108] sm:$0x1]
  %v9239 = vld [vmem:[#allocation2 + $0x110] sm:$0xff]
  %v9240 = vld [vmem:[#allocation2 + $0x118] sm:$0x1]
  %v9241 = vld [vmem:[#allocation2 + $0x120] sm:$0xff]
  %v9242 = vld [vmem:[#allocation2 + $0x128] sm:$0x1]
  %v9243 = vld [vmem:[#allocation2 + $0x130] sm:$0xff]
  %v9244 = vld [vmem:[#allocation2 + $0x138] sm:$0x1]
  %v9245 = vld [vmem:[#allocation2 + $0x140] sm:$0xff]
  %v9246 = vld [vmem:[#allocation2 + $0x148] sm:$0x1]
  %v9247 = vld [vmem:[#allocation2 + $0x150] sm:$0xff]
  %v9248 = vld [vmem:[#allocation2 + $0x158] sm:$0x1]
  %v9249 = vld [vmem:[#allocation2 + $0x160] sm:$0xff]
  %v9250 = vld [vmem:[#allocation2 + $0x168] sm:$0x1]
  %v9251 = vld [vmem:[#allocation2 + $0x170] sm:$0xff]
  %v9252 = vld [vmem:[#allocation2 + $0x178] sm:$0x1]
  %v9253 = vld [vmem:[#allocation2 + $0x180] sm:$0xff]
  %v9254 = vld [vmem:[#allocation2 + $0x188] sm:$0x1]
  %v9255 = vld [vmem:[#allocation2 + $0x190] sm:$0xff]
  %v9256 = vld [vmem:[#allocation2 + $0x198] sm:$0x1]
  %v9257 = vld [vmem:[#allocation2 + $0x1a0] sm:$0xff]
  %v9258 = vld [vmem:[#allocation2 + $0x1a8] sm:$0x1]
  %v9259 = vld [vmem:[#allocation2 + $0x1b0] sm:$0xff]
  %v9260 = vld [vmem:[#allocation2 + $0x1b8] sm:$0x1]
  %v9261 = vld [vmem:[#allocation2 + $0x1c0] sm:$0xff]
  %v9262 = vld [vmem:[#allocation2 + $0x1c8] sm:$0x1]
  %v9263 = vld [vmem:[#allocation2 + $0x1d0] sm:$0xff]
  %v9264 = vld [vmem:[#allocation2 + $0x1d8] sm:$0x1]
  %v9265 = vld [vmem:[#allocation2 + $0x1e0] sm:$0xff]
  %v9266 = vld [vmem:[#allocation2 + $0x1e8] sm:$0x1]
  %v9267 = vld [vmem:[#allocation2 + $0x1f0] sm:$0xff]
  %v9268 = vld [vmem:[#allocation2 + $0x1f8] sm:$0x1]
  %v9269 = vld [vmem:[#allocation2 + $0x200] sm:$0xff]
  %v9270 = vld [vmem:[#allocation2 + $0x208] sm:$0x1]
  %v9271 = vld [vmem:[#allocation2 + $0x210] sm:$0xff]
  %v9272 = vld [vmem:[#allocation2 + $0x218] sm:$0x1]
  %v9273 = vld [vmem:[#allocation2 + $0x220] sm:$0xff]
  %v9274 = vld [vmem:[#allocation2 + $0x228] sm:$0x1]
  %v9275 = vld [vmem:[#allocation2 + $0x230] sm:$0xff]
  %v9276 = vld [vmem:[#allocation2 + $0x238] sm:$0x1]
  %v9277 = vld [vmem:[#allocation2 + $0x240] sm:$0xff]
  %v9278 = vld [vmem:[#allocation2 + $0x248] sm:$0x1]
  %v9279 = vld [vmem:[#allocation2 + $0x250] sm:$0xff]
  %v9280 = vld [vmem:[#allocation2 + $0x258] sm:$0x1]
  %v9281 = vld [vmem:[#allocation2 + $0x260] sm:$0xff]
  %v9282 = vld [vmem:[#allocation2 + $0x268] sm:$0x1]
  %v9283 = vld [vmem:[#allocation2 + $0x270] sm:$0xff]
  %v9284 = vld [vmem:[#allocation2 + $0x278] sm:$0x1]
  %v9285 = vld [vmem:[#allocation2 + $0x280] sm:$0xff]
  %v9286 = vld [vmem:[#allocation2 + $0x288] sm:$0x1]
  %v9287 = vld [vmem:[#allocation2 + $0x290] sm:$0xff]
  %v9288 = vld [vmem:[#allocation2 + $0x298] sm:$0x1]
  %v9289 = vld [vmem:[#allocation2 + $0x2a0] sm:$0xff]
  %v9290 = vld [vmem:[#allocation2 + $0x2a8] sm:$0x1]
  %v9291 = vld [vmem:[#allocation2 + $0x2b0] sm:$0xff]
  %v9292 = vld [vmem:[#allocation2 + $0x2b8] sm:$0x1]
  %v9293 = vld [vmem:[#allocation2 + $0x2c0] sm:$0xff]
  %v9294 = vld [vmem:[#allocation2 + $0x2c8] sm:$0x1]
  %v9295 = vld [vmem:[#allocation2 + $0x2d0] sm:$0xff]
  %v9296 = vld [vmem:[#allocation2 + $0x2d8] sm:$0x1]
  %v9297 = vld [vmem:[#allocation2 + $0x2e0] sm:$0xff]
  %v9298 = vld [vmem:[#allocation2 + $0x2e8] sm:$0x1]
  %v9299 = vld [vmem:[#allocation2 + $0x2f0] sm:$0xff]
  %v9300 = vld [vmem:[#allocation2 + $0x2f8] sm:$0x1]
  %v9301 = vld [vmem:[#allocation2 + $0x300] sm:$0xff]
  %v9302 = vld [vmem:[#allocation2 + $0x308] sm:$0x1]
  %v9303 = vld [vmem:[#allocation2 + $0x310] sm:$0xff]
  %v9304 = vld [vmem:[#allocation2 + $0x318] sm:$0x1]
  %v9305 = vld [vmem:[#allocation2 + $0x320] sm:$0xff]
  %v9306 = vld [vmem:[#allocation2 + $0x328] sm:$0x1]
  %v9307 = vld [vmem:[#allocation2 + $0x330] sm:$0xff]
  %v9308 = vld [vmem:[#allocation2 + $0x338] sm:$0x1]
  %v9309 = vld [vmem:[#allocation2 + $0x340] sm:$0xff]
  %v9310 = vld [vmem:[#allocation2 + $0x348] sm:$0x1]
  %v9311 = vld [vmem:[#allocation2 + $0x350] sm:$0xff]
  %v9312 = vld [vmem:[#allocation2 + $0x358] sm:$0x1]
  %v9313 = vld [vmem:[#allocation2 + $0x360] sm:$0xff]
  %v9314 = vld [vmem:[#allocation2 + $0x368] sm:$0x1]
  %v9315 = vld [vmem:[#allocation2 + $0x370] sm:$0xff]
  %v9316 = vld [vmem:[#allocation2 + $0x378] sm:$0x1]
  %v9317 = vld [vmem:[#allocation2 + $0x380] sm:$0xff]
  %v9318 = vld [vmem:[#allocation2 + $0x388] sm:$0x1]
  %v9319 = vld [vmem:[#allocation2 + $0x390] sm:$0xff]
  %v9320 = vld [vmem:[#allocation2 + $0x398] sm:$0x1]
  %v9321 = vld [vmem:[#allocation2 + $0x3a0] sm:$0xff]
  %v9322 = vld [vmem:[#allocation2 + $0x3a8] sm:$0x1]
  %v9323 = vld [vmem:[#allocation2 + $0x3b0] sm:$0xff]
  %v9324 = vld [vmem:[#allocation2 + $0x3b8] sm:$0x1]
  %v9325 = vld [vmem:[#allocation2 + $0x3c0] sm:$0xff]
  %v9326 = vld [vmem:[#allocation2 + $0x3c8] sm:$0x1]
  %v9327 = vld [vmem:[#allocation2 + $0x3d0] sm:$0xff]
  %v9328 = vld [vmem:[#allocation2 + $0x3d8] sm:$0x1]
  %v9329 = vld [vmem:[#allocation2 + $0x3e0] sm:$0xff]
  %v9330 = vld [vmem:[#allocation2 + $0x3e8] sm:$0x1]
  %v9331 = vld [vmem:[#allocation2 + $0x3f0] sm:$0xff]
  %v9332 = vld [vmem:[#allocation2 + $0x3f8] sm:$0x1]
  %v9333 = vld [vmem:[#allocation2 + $0x400] sm:$0xff]
  %v9334 = vld [vmem:[#allocation2 + $0x408] sm:$0x1]
  %v9335 = vld [vmem:[#allocation2 + $0x410] sm:$0xff]
  %v9336 = vld [vmem:[#allocation2 + $0x418] sm:$0x1]
  %v9337 = vld [vmem:[#allocation2 + $0x420] sm:$0xff]
  %v9338 = vld [vmem:[#allocation2 + $0x428] sm:$0x1]
  %v9339 = vld [vmem:[#allocation2 + $0x430] sm:$0xff]
  %v9340 = vld [vmem:[#allocation2 + $0x438] sm:$0x1]
  %9373 = vrot.lane.b32.xlu0 %v9207, 32
  %v9374 = vpop.permute.xlu0 %9373
  %9375 = vrot.lane.b32.xlu0 %v9211, 32
  %v9376 = vpop.permute.xlu0 %9375
  %9377 = vrot.lane.b32.xlu0 %v9215, 32
  %v9378 = vpop.permute.xlu0 %9377
  %9379 = vrot.lane.b32.xlu0 %v9219, 32
  %v9380 = vpop.permute.xlu0 %9379
  %9381 = vrot.lane.b32.xlu0 %v9223, 32
  %v9382 = vpop.permute.xlu0 %9381
  %9383 = vrot.lane.b32.xlu0 %v9227, 32
  %v9384 = vpop.permute.xlu0 %9383
  %9385 = vrot.lane.b32.xlu0 %v9231, 32
  %v9386 = vpop.permute.xlu0 %9385
  %9387 = vrot.lane.b32.xlu0 %v9235, 32
  %v9388 = vpop.permute.xlu0 %9387
  %9389 = vrot.lane.b32.xlu0 %v9239, 32
  %v9390 = vpop.permute.xlu0 %9389
  %9391 = vrot.lane.b32.xlu0 %v9243, 32
  %v9392 = vpop.permute.xlu0 %9391
  %9393 = vrot.lane.b32.xlu0 %v9247, 32
  %v9394 = vpop.permute.xlu0 %9393
  %9395 = vrot.lane.b32.xlu0 %v9251, 32
  %v9396 = vpop.permute.xlu0 %9395
  %9397 = vrot.lane.b32.xlu0 %v9255, 32
  %v9398 = vpop.permute.xlu0 %9397
  %9399 = vrot.lane.b32.xlu0 %v9259, 32
  %v9400 = vpop.permute.xlu0 %9399
  %9401 = vrot.lane.b32.xlu0 %v9263, 32
  %v9402 = vpop.permute.xlu0 %9401
  %9403 = vrot.lane.b32.xlu0 %v9267, 32
  %v9404 = vpop.permute.xlu0 %9403
  %9405 = vrot.lane.b32.xlu0 %v9275, 32
  %v9406 = vpop.permute.xlu0 %9405
  %9407 = vrot.lane.b32.xlu0 %v9279, 32
  %v9408 = vpop.permute.xlu0 %9407
  %9409 = vrot.lane.b32.xlu0 %v9283, 32
  %v9410 = vpop.permute.xlu0 %9409
  %9411 = vrot.lane.b32.xlu0 %v9287, 32
  %v9412 = vpop.permute.xlu0 %9411
  %9413 = vrot.lane.b32.xlu0 %v9291, 32
  %v9414 = vpop.permute.xlu0 %9413
  %9415 = vrot.lane.b32.xlu0 %v9295, 32
  %v9416 = vpop.permute.xlu0 %9415
  %9417 = vrot.lane.b32.xlu0 %v9299, 32
  %v9418 = vpop.permute.xlu0 %9417
  %9419 = vrot.lane.b32.xlu0 %v9303, 32
  %v9420 = vpop.permute.xlu0 %9419
  %9421 = vrot.lane.b32.xlu0 %v9307, 32
  %v9422 = vpop.permute.xlu0 %9421
  %9423 = vrot.lane.b32.xlu0 %v9311, 32
  %v9424 = vpop.permute.xlu0 %9423
  %9425 = vrot.lane.b32.xlu0 %v9315, 32
  %v9426 = vpop.permute.xlu0 %9425
  %9427 = vrot.lane.b32.xlu0 %v9319, 32
  %v9428 = vpop.permute.xlu0 %9427
  %9429 = vrot.lane.b32.xlu0 %v9323, 32
  %v9430 = vpop.permute.xlu0 %9429
  %9431 = vrot.lane.b32.xlu0 %v9327, 32
  %v9432 = vpop.permute.xlu0 %9431
  %9433 = vrot.lane.b32.xlu0 %v9331, 32
  %v9434 = vpop.permute.xlu0 %9433
  %9435 = vrot.lane.b32.xlu0 %v9335, 32
  %v9436 = vpop.permute.xlu0 %9435
  %9501 = vrot.lane.b32.xlu0 %v9209, 64
  %v9502 = vpop.permute.xlu0 %9501
  %9503 = vrot.lane.b32.xlu0 %v9213, 64
  %v9504 = vpop.permute.xlu0 %9503
  %9505 = vrot.lane.b32.xlu0 %v9217, 64
  %v9506 = vpop.permute.xlu0 %9505
  %9507 = vrot.lane.b32.xlu0 %v9221, 64
  %v9508 = vpop.permute.xlu0 %9507
  %9509 = vrot.lane.b32.xlu0 %v9225, 64
  %v9510 = vpop.permute.xlu0 %9509
  %9511 = vrot.lane.b32.xlu0 %v9229, 64
  %v9512 = vpop.permute.xlu0 %9511
  %9513 = vrot.lane.b32.xlu0 %v9233, 64
  %v9514 = vpop.permute.xlu0 %9513
  %9515 = vrot.lane.b32.xlu0 %v9237, 64
  %v9516 = vpop.permute.xlu0 %9515
  %9517 = vrot.lane.b32.xlu0 %v9241, 64
  %v9518 = vpop.permute.xlu0 %9517
  %9519 = vrot.lane.b32.xlu0 %v9245, 64
  %v9520 = vpop.permute.xlu0 %9519
  %9521 = vrot.lane.b32.xlu0 %v9249, 64
  %v9522 = vpop.permute.xlu0 %9521
  %9523 = vrot.lane.b32.xlu0 %v9253, 64
  %v9524 = vpop.permute.xlu0 %9523
  %9525 = vrot.lane.b32.xlu0 %v9257, 64
  %v9526 = vpop.permute.xlu0 %9525
  %9527 = vrot.lane.b32.xlu0 %v9261, 64
  %v9528 = vpop.permute.xlu0 %9527
  %9529 = vrot.lane.b32.xlu0 %v9265, 64
  %v9530 = vpop.permute.xlu0 %9529
  %9531 = vrot.lane.b32.xlu0 %v9269, 64
  %v9532 = vpop.permute.xlu0 %9531
  %9533 = vrot.lane.b32.xlu0 %v9277, 64
  %v9534 = vpop.permute.xlu0 %9533
  %9535 = vrot.lane.b32.xlu0 %v9281, 64
  %v9536 = vpop.permute.xlu0 %9535
  %9537 = vrot.lane.b32.xlu0 %v9285, 64
  %v9538 = vpop.permute.xlu0 %9537
  %9539 = vrot.lane.b32.xlu0 %v9289, 64
  %v9540 = vpop.permute.xlu0 %9539
  %9541 = vrot.lane.b32.xlu0 %v9293, 64
  %v9542 = vpop.permute.xlu0 %9541
  %9543 = vrot.lane.b32.xlu0 %v9297, 64
  %v9544 = vpop.permute.xlu0 %9543
  %9545 = vrot.lane.b32.xlu0 %v9301, 64
  %v9546 = vpop.permute.xlu0 %9545
  %9547 = vrot.lane.b32.xlu0 %v9305, 64
  %v9548 = vpop.permute.xlu0 %9547
  %9549 = vrot.lane.b32.xlu0 %v9309, 64
  %v9550 = vpop.permute.xlu0 %9549
  %9551 = vrot.lane.b32.xlu0 %v9313, 64
  %v9552 = vpop.permute.xlu0 %9551
  %9553 = vrot.lane.b32.xlu0 %v9317, 64
  %v9554 = vpop.permute.xlu0 %9553
  %9555 = vrot.lane.b32.xlu0 %v9321, 64
  %v9556 = vpop.permute.xlu0 %9555
  %9557 = vrot.lane.b32.xlu0 %v9325, 64
  %v9558 = vpop.permute.xlu0 %9557
  %9559 = vrot.lane.b32.xlu0 %v9329, 64
  %v9560 = vpop.permute.xlu0 %9559
  %9561 = vrot.lane.b32.xlu0 %v9333, 64
  %v9562 = vpop.permute.xlu0 %9561
  %9563 = vrot.lane.b32.xlu0 %v9337, 64
  %v9564 = vpop.permute.xlu0 %9563
  %9599 = vrot.lane.b32.xlu0 %v9211, 96
  %v9600 = vpop.permute.xlu0 %9599
  %9601 = vrot.lane.b32.xlu0 %v9215, 96
  %v9602 = vpop.permute.xlu0 %9601
  %9603 = vrot.lane.b32.xlu0 %v9219, 96
  %v9604 = vpop.permute.xlu0 %9603
  %9605 = vrot.lane.b32.xlu0 %v9223, 96
  %v9606 = vpop.permute.xlu0 %9605
  %9607 = vrot.lane.b32.xlu0 %v9227, 96
  %v9608 = vpop.permute.xlu0 %9607
  %9609 = vrot.lane.b32.xlu0 %v9231, 96
  %v9610 = vpop.permute.xlu0 %9609
  %9611 = vrot.lane.b32.xlu0 %v9235, 96
  %v9612 = vpop.permute.xlu0 %9611
  %9613 = vrot.lane.b32.xlu0 %v9239, 96
  %v9614 = vpop.permute.xlu0 %9613
  %9615 = vrot.lane.b32.xlu0 %v9243, 96
  %v9616 = vpop.permute.xlu0 %9615
  %9617 = vrot.lane.b32.xlu0 %v9247, 96
  %v9618 = vpop.permute.xlu0 %9617
  %9619 = vrot.lane.b32.xlu0 %v9251, 96
  %v9620 = vpop.permute.xlu0 %9619
  %9621 = vrot.lane.b32.xlu0 %v9255, 96
  %v9622 = vpop.permute.xlu0 %9621
  %9623 = vrot.lane.b32.xlu0 %v9259, 96
  %v9624 = vpop.permute.xlu0 %9623
  %9625 = vrot.lane.b32.xlu0 %v9263, 96
  %v9626 = vpop.permute.xlu0 %9625
  %9627 = vrot.lane.b32.xlu0 %v9267, 96
  %v9628 = vpop.permute.xlu0 %9627
  %9629 = vrot.lane.b32.xlu0 %v9271, 96
  %v9630 = vpop.permute.xlu0 %9629
  %9631 = vrot.lane.b32.xlu0 %v9279, 96
  %v9632 = vpop.permute.xlu0 %9631
  %9633 = vrot.lane.b32.xlu0 %v9283, 96
  %v9634 = vpop.permute.xlu0 %9633
  %9635 = vrot.lane.b32.xlu0 %v9287, 96
  %v9636 = vpop.permute.xlu0 %9635
  %9637 = vrot.lane.b32.xlu0 %v9291, 96
  %v9638 = vpop.permute.xlu0 %9637
  %9639 = vrot.lane.b32.xlu0 %v9295, 96
  %v9640 = vpop.permute.xlu0 %9639
  %9641 = vrot.lane.b32.xlu0 %v9299, 96
  %v9642 = vpop.permute.xlu0 %9641
  %9643 = vrot.lane.b32.xlu0 %v9303, 96
  %v9644 = vpop.permute.xlu0 %9643
  %9645 = vrot.lane.b32.xlu0 %v9307, 96
  %v9646 = vpop.permute.xlu0 %9645
  %9647 = vrot.lane.b32.xlu0 %v9311, 96
  %v9648 = vpop.permute.xlu0 %9647
  %9649 = vrot.lane.b32.xlu0 %v9315, 96
  %v9650 = vpop.permute.xlu0 %9649
  %9651 = vrot.lane.b32.xlu0 %v9319, 96
  %v9652 = vpop.permute.xlu0 %9651
  %9653 = vrot.lane.b32.xlu0 %v9323, 96
  %v9654 = vpop.permute.xlu0 %9653
  %9655 = vrot.lane.b32.xlu0 %v9327, 96
  %v9656 = vpop.permute.xlu0 %9655
  %9657 = vrot.lane.b32.xlu0 %v9331, 96
  %v9658 = vpop.permute.xlu0 %9657
  %9659 = vrot.lane.b32.xlu0 %v9335, 96
  %v9660 = vpop.permute.xlu0 %9659
  %9661 = vrot.lane.b32.xlu0 %v9339, 96
  %v9662 = vpop.permute.xlu0 %9661
  %v9695 = vsel %vm21, %v9205, %v9374
  %v9696 = vsel %vm21, %v9209, %v9376
  %v9697 = vsel %vm21, %v9213, %v9378
  %v9698 = vsel %vm21, %v9217, %v9380
  %v9699 = vsel %vm21, %v9221, %v9382
  %v9700 = vsel %vm21, %v9225, %v9384
  %v9701 = vsel %vm21, %v9229, %v9386
  %v9702 = vsel %vm21, %v9233, %v9388
  %v9703 = vsel %vm21, %v9237, %v9390
  %v9704 = vsel %vm21, %v9241, %v9392
  %v9705 = vsel %vm21, %v9245, %v9394
  %v9706 = vsel %vm21, %v9249, %v9396
  %v9707 = vsel %vm21, %v9253, %v9398
  %v9708 = vsel %vm21, %v9257, %v9400
  %v9709 = vsel %vm21, %v9261, %v9402
  %v9710 = vsel %vm21, %v9265, %v9404
  %v9711 = vsel %vm21, %v9273, %v9406
  %v9712 = vsel %vm21, %v9277, %v9408
  %v9713 = vsel %vm21, %v9281, %v9410
  %v9714 = vsel %vm21, %v9285, %v9412
  %v9715 = vsel %vm21, %v9289, %v9414
  %v9716 = vsel %vm21, %v9293, %v9416
  %v9717 = vsel %vm21, %v9297, %v9418
  %v9718 = vsel %vm21, %v9301, %v9420
  %v9719 = vsel %vm21, %v9305, %v9422
  %v9720 = vsel %vm21, %v9309, %v9424
  %v9721 = vsel %vm21, %v9313, %v9426
  %v9722 = vsel %vm21, %v9317, %v9428
  %v9723 = vsel %vm21, %v9321, %v9430
  %v9724 = vsel %vm21, %v9325, %v9432
  %v9725 = vsel %vm21, %v9329, %v9434
  %v9726 = vsel %vm21, %v9333, %v9436
  %vm9727 = vcmask 523264
  %v9728 = vsel %vm9727, %v9695, %v9502
  %v9729 = vsel %vm9727, %v9696, %v9504
  %v9730 = vsel %vm9727, %v9697, %v9506
  %v9731 = vsel %vm9727, %v9698, %v9508
  %v9732 = vsel %vm9727, %v9699, %v9510
  %v9733 = vsel %vm9727, %v9700, %v9512
  %v9734 = vsel %vm9727, %v9701, %v9514
  %v9735 = vsel %vm9727, %v9702, %v9516
  %v9736 = vsel %vm9727, %v9703, %v9518
  %v9737 = vsel %vm9727, %v9704, %v9520
  %v9738 = vsel %vm9727, %v9705, %v9522
  %v9739 = vsel %vm9727, %v9706, %v9524
  %v9740 = vsel %vm9727, %v9707, %v9526
  %v9741 = vsel %vm9727, %v9708, %v9528
  %v9742 = vsel %vm9727, %v9709, %v9530
  %v9743 = vsel %vm9727, %v9710, %v9532
  %v9744 = vsel %vm9727, %v9711, %v9534
  %v9745 = vsel %vm9727, %v9712, %v9536
  %v9746 = vsel %vm9727, %v9713, %v9538
  %v9747 = vsel %vm9727, %v9714, %v9540
  %v9748 = vsel %vm9727, %v9715, %v9542
  %v9749 = vsel %vm9727, %v9716, %v9544
  %v9750 = vsel %vm9727, %v9717, %v9546
  %v9751 = vsel %vm9727, %v9718, %v9548
  %v9752 = vsel %vm9727, %v9719, %v9550
  %v9753 = vsel %vm9727, %v9720, %v9552
  %v9754 = vsel %vm9727, %v9721, %v9554
  %v9755 = vsel %vm9727, %v9722, %v9556
  %v9756 = vsel %vm9727, %v9723, %v9558
  %v9757 = vsel %vm9727, %v9724, %v9560
  %v9758 = vsel %vm9727, %v9725, %v9562
  %v9759 = vsel %vm9727, %v9726, %v9564
  %vm9760 = vcmask 785408
  %v9761 = vsel %vm9760, %v9728, %v9600
  %v9762 = vsel %vm9760, %v9729, %v9602
  %v9763 = vsel %vm9760, %v9730, %v9604
  %v9764 = vsel %vm9760, %v9731, %v9606
  %v9765 = vsel %vm9760, %v9732, %v9608
  %v9766 = vsel %vm9760, %v9733, %v9610
  %v9767 = vsel %vm9760, %v9734, %v9612
  %v9768 = vsel %vm9760, %v9735, %v9614
  %v9769 = vsel %vm9760, %v9736, %v9616
  %v9770 = vsel %vm9760, %v9737, %v9618
  %v9771 = vsel %vm9760, %v9738, %v9620
  %v9772 = vsel %vm9760, %v9739, %v9622
  %v9773 = vsel %vm9760, %v9740, %v9624
  %v9774 = vsel %vm9760, %v9741, %v9626
  %v9775 = vsel %vm9760, %v9742, %v9628
  %v9776 = vsel %vm9760, %v9743, %v9630
  %v9777 = vsel %vm9760, %v9744, %v9632
  %v9778 = vsel %vm9760, %v9745, %v9634
  %v9779 = vsel %vm9760, %v9746, %v9636
  %v9780 = vsel %vm9760, %v9747, %v9638
  %v9781 = vsel %vm9760, %v9748, %v9640
  %v9782 = vsel %vm9760, %v9749, %v9642
  %v9783 = vsel %vm9760, %v9750, %v9644
  %v9784 = vsel %vm9760, %v9751, %v9646
  %v9785 = vsel %vm9760, %v9752, %v9648
  %v9786 = vsel %vm9760, %v9753, %v9650
  %v9787 = vsel %vm9760, %v9754, %v9652
  %v9788 = vsel %vm9760, %v9755, %v9654
  %v9789 = vsel %vm9760, %v9756, %v9656
  %v9790 = vsel %vm9760, %v9757, %v9658
  %v9791 = vsel %vm9760, %v9758, %v9660
  %v9792 = vsel %vm9760, %v9759, %v9662
  %v9793 = vpack.c.bf16 %v9762, %v9761
  %v9794 = vpack.c.bf16 %v9764, %v9763
  %v9795 = vpack.c.bf16 %v9766, %v9765
  %v9796 = vpack.c.bf16 %v9768, %v9767
  %v9797 = vpack.c.bf16 %v9770, %v9769
  %v9798 = vpack.c.bf16 %v9772, %v9771
  %v9799 = vpack.c.bf16 %v9774, %v9773
  %v9800 = vpack.c.bf16 %v9776, %v9775
  %v9801 = vpack.c.bf16 %v9778, %v9777
  %v9802 = vpack.c.bf16 %v9780, %v9779
  %v9803 = vpack.c.bf16 %v9782, %v9781
  %v9804 = vpack.c.bf16 %v9784, %v9783
  %v9805 = vpack.c.bf16 %v9786, %v9785
  %v9806 = vpack.c.bf16 %v9788, %v9787
  %v9807 = vpack.c.bf16 %v9790, %v9789
  %v9808 = vpack.c.bf16 %v9792, %v9791
  %v9809 = vld [vmem:[%s2] sm:$0xf]
  %v9810 = vld [vmem:[%s2 + $0x4] sm:$0xf]
  %v9811 = vld [vmem:[%s2 + $0x8] sm:$0xf]
  %v9812 = vld [vmem:[%s2 + $0xc] sm:$0xf]
  %v9813 = vld [vmem:[%s2 + $0x10] sm:$0xf]
  %v9814 = vld [vmem:[%s2 + $0x14] sm:$0xf]
  %v9815 = vld [vmem:[%s2 + $0x18] sm:$0xf]
  %v9816 = vld [vmem:[%s2 + $0x1c] sm:$0xf]
  %v9817 = vld [vmem:[%s2 + $0x20] sm:$0xf]
  %v9818 = vld [vmem:[%s2 + $0x24] sm:$0xf]
  %v9819 = vld [vmem:[%s2 + $0x28] sm:$0xf]
  %v9820 = vld [vmem:[%s2 + $0x2c] sm:$0xf]
  %v9821 = vld [vmem:[%s2 + $0x30] sm:$0xf]
  %v9822 = vld [vmem:[%s2 + $0x34] sm:$0xf]
  %v9823 = vld [vmem:[%s2 + $0x38] sm:$0xf]
  %v9824 = vld [vmem:[%s2 + $0x3c] sm:$0xf]
  %v9841 = vunpack.c.l.b16 %v9809
  %v9842 = vunpack.c.l.b16 %v9810
  %v9843 = vunpack.c.l.b16 %v9811
  %v9844 = vunpack.c.l.b16 %v9812
  %v9845 = vunpack.c.l.b16 %v9813
  %v9846 = vunpack.c.l.b16 %v9814
  %v9847 = vunpack.c.l.b16 %v9815
  %v9848 = vunpack.c.l.b16 %v9816
  %v9849 = vunpack.c.l.b16 %v9817
  %v9850 = vunpack.c.l.b16 %v9818
  %v9851 = vunpack.c.l.b16 %v9819
  %v9852 = vunpack.c.l.b16 %v9820
  %v9853 = vunpack.c.l.b16 %v9821
  %v9854 = vunpack.c.l.b16 %v9822
  %v9855 = vunpack.c.l.b16 %v9823
  %v9856 = vunpack.c.l.b16 %v9824
  %v9857 = vpack.c.b16 %v9842, %v9841
  %v9858 = vpack.c.b16 %v9844, %v9843
  %v9859 = vpack.c.b16 %v9846, %v9845
  %v9860 = vpack.c.b16 %v9848, %v9847
  %v9861 = vpack.c.b16 %v9850, %v9849
  %v9862 = vpack.c.b16 %v9852, %v9851
  %v9863 = vpack.c.b16 %v9854, %v9853
  %v9864 = vpack.c.b16 %v9856, %v9855
  %9873 = vmatprep.subr.bf16.mxu0 0
  %9874 = vmatpush1.bf16.msra.mxu0 %v9864
  %9875 = vmatprep.subr.bf16.mxu0 0
  %9876 = vmatpush1.bf16.msra.mxu0 %v9863
  %9877 = vmatprep.subr.bf16.mxu0 0
  %9878 = vmatpush1.bf16.msra.mxu0 %v9862
  %9879 = vmatprep.subr.bf16.mxu0 0
  %9880 = vmatpush1.bf16.msra.mxu0 %v9861
  %9881 = vmatprep.subr.bf16.mxu0 0
  %9882 = vmatpush1.bf16.msra.mxu0 %v9860
  %9883 = vmatprep.subr.bf16.mxu0 0
  %9884 = vmatpush1.bf16.msra.mxu0 %v9859
  %9885 = vmatprep.subr.bf16.mxu0 0
  %9886 = vmatpush1.bf16.msra.mxu0 %v9858
  %9887 = vmatprep.subr.bf16.mxu0 0
  %9888 = vmatpush1.bf16.msra.mxu0 %v9857
  %9889 = vmatprep.subr.bf16.mxu0 0
  %9890 = vmatpush2.bf16.msra.mxu0 0
  %9891 = vmatprep.subr.bf16.mxu0 0
  %9892 = vmatpush2.bf16.msra.mxu0 0
  %9893 = vmatprep.subr.bf16.mxu0 0
  %9894 = vmatpush2.bf16.msra.mxu0 0
  %9895 = vmatprep.subr.bf16.mxu0 0
  %9896 = vmatpush2.bf16.msra.mxu0 0
  %9897 = vmatprep.subr.bf16.mxu0 0
  %9898 = vmatpush2.bf16.msra.mxu0 0
  %9899 = vmatprep.subr.bf16.mxu0 0
  %9900 = vmatpush2.bf16.msra.mxu0 0
  %9901 = vmatprep.subr.bf16.mxu0 0
  %9902 = vmatpush2.bf16.msra.mxu0 0
  %9903 = vmatprep.subr.bf16.mxu0 0
  %9904 = vmatpush2.bf16.msra.mxu0 0
  %9905 = vmatprep.mubr.bf16.mxu0 0
  %9906 = vmatmul.mubr.bf16.gmra.mxu0 %v9793
  %v9907 = vpop.f32.mrf.mxu0
  %v9908 = vadd.f32 0.0, %v9907
  %v9909 = vpop.f32.mrf.mxu0
  %v9910 = vpop.f32.mrf.mxu0
  %v9911 = vadd.f32 0.0, %v9910
  %v9912 = vpop.f32.mrf.mxu0
  %9913 = vmatprep.mubr.bf16.mxu0 0
  %9914 = vmatmul.mubr.bf16.gmra.mxu0 %v9794
  %v9915 = vpop.f32.mrf.mxu0
  %v9916 = vadd.f32 0.0, %v9915
  %v9917 = vpop.f32.mrf.mxu0
  %v9918 = vpop.f32.mrf.mxu0
  %v9919 = vadd.f32 0.0, %v9918
  %v9920 = vpop.f32.mrf.mxu0
  %9921 = vmatprep.mubr.bf16.mxu0 0
  %9922 = vmatmul.mubr.bf16.gmra.mxu0 %v9795
  %v9923 = vpop.f32.mrf.mxu0
  %v9924 = vadd.f32 0.0, %v9923
  %v9925 = vpop.f32.mrf.mxu0
  %v9926 = vpop.f32.mrf.mxu0
  %v9927 = vadd.f32 0.0, %v9926
  %v9928 = vpop.f32.mrf.mxu0
  %9929 = vmatprep.mubr.bf16.mxu0 0
  %9930 = vmatmul.mubr.bf16.gmra.mxu0 %v9796
  %v9931 = vpop.f32.mrf.mxu0
  %v9932 = vadd.f32 0.0, %v9931
  %v9933 = vpop.f32.mrf.mxu0
  %v9934 = vpop.f32.mrf.mxu0
  %v9935 = vadd.f32 0.0, %v9934
  %v9936 = vpop.f32.mrf.mxu0
  %9937 = vmatprep.mubr.bf16.mxu0 0
  %9938 = vmatmul.mubr.bf16.gmra.mxu0 %v9797
  %v9939 = vpop.f32.mrf.mxu0
  %v9940 = vadd.f32 0.0, %v9939
  %v9941 = vpop.f32.mrf.mxu0
  %v9942 = vpop.f32.mrf.mxu0
  %v9943 = vadd.f32 0.0, %v9942
  %v9944 = vpop.f32.mrf.mxu0
  %9945 = vmatprep.mubr.bf16.mxu0 0
  %9946 = vmatmul.mubr.bf16.gmra.mxu0 %v9798
  %v9947 = vpop.f32.mrf.mxu0
  %v9948 = vadd.f32 0.0, %v9947
  %v9949 = vpop.f32.mrf.mxu0
  %v9950 = vpop.f32.mrf.mxu0
  %v9951 = vadd.f32 0.0, %v9950
  %v9952 = vpop.f32.mrf.mxu0
  %9953 = vmatprep.mubr.bf16.mxu0 0
  %9954 = vmatmul.mubr.bf16.gmra.mxu0 %v9799
  %v9955 = vpop.f32.mrf.mxu0
  %v9956 = vadd.f32 0.0, %v9955
  %v9957 = vpop.f32.mrf.mxu0
  %v9958 = vpop.f32.mrf.mxu0
  %v9959 = vadd.f32 0.0, %v9958
  %v9960 = vpop.f32.mrf.mxu0
  %9961 = vmatprep.mubr.bf16.mxu0 0
  %9962 = vmatmul.mubr.bf16.gmra.mxu0 %v9800
  %v9963 = vpop.f32.mrf.mxu0
  %v9964 = vadd.f32 0.0, %v9963
  %v9965 = vpop.f32.mrf.mxu0
  %v9966 = vpop.f32.mrf.mxu0
  %v9967 = vadd.f32 0.0, %v9966
  %v9968 = vpop.f32.mrf.mxu0
  %9969 = vmatprep.mubr.bf16.mxu0 0
  %9970 = vmatmul.mubr.bf16.gmra.mxu0 %v9801
  %v9971 = vpop.f32.mrf.mxu0
  %v9972 = vadd.f32 0.0, %v9971
  %v9973 = vpop.f32.mrf.mxu0
  %v9974 = vpop.f32.mrf.mxu0
  %v9975 = vadd.f32 0.0, %v9974
  %v9976 = vpop.f32.mrf.mxu0
  %9977 = vmatprep.mubr.bf16.mxu0 0
  %9978 = vmatmul.mubr.bf16.gmra.mxu0 %v9802
  %v9979 = vpop.f32.mrf.mxu0
  %v9980 = vadd.f32 0.0, %v9979
  %v9981 = vpop.f32.mrf.mxu0
  %v9982 = vpop.f32.mrf.mxu0
  %v9983 = vadd.f32 0.0, %v9982
  %v9984 = vpop.f32.mrf.mxu0
  %9985 = vmatprep.mubr.bf16.mxu0 0
  %9986 = vmatmul.mubr.bf16.gmra.mxu0 %v9803
  %v9987 = vpop.f32.mrf.mxu0
  %v9988 = vadd.f32 0.0, %v9987
  %v9989 = vpop.f32.mrf.mxu0
  %v9990 = vpop.f32.mrf.mxu0
  %v9991 = vadd.f32 0.0, %v9990
  %v9992 = vpop.f32.mrf.mxu0
  %9993 = vmatprep.mubr.bf16.mxu0 0
  %9994 = vmatmul.mubr.bf16.gmra.mxu0 %v9804
  %v9995 = vpop.f32.mrf.mxu0
  %v9996 = vadd.f32 0.0, %v9995
  %v9997 = vpop.f32.mrf.mxu0
  %v9998 = vpop.f32.mrf.mxu0
  %v9999 = vadd.f32 0.0, %v9998
  %v10000 = vpop.f32.mrf.mxu0
  %10001 = vmatprep.mubr.bf16.mxu0 0
  %10002 = vmatmul.mubr.bf16.gmra.mxu0 %v9805
  %v10003 = vpop.f32.mrf.mxu0
  %v10004 = vadd.f32 0.0, %v10003
  %v10005 = vpop.f32.mrf.mxu0
  %v10006 = vpop.f32.mrf.mxu0
  %v10007 = vadd.f32 0.0, %v10006
  %v10008 = vpop.f32.mrf.mxu0
  %10009 = vmatprep.mubr.bf16.mxu0 0
  %10010 = vmatmul.mubr.bf16.gmra.mxu0 %v9806
  %v10011 = vpop.f32.mrf.mxu0
  %v10012 = vadd.f32 0.0, %v10011
  %v10013 = vpop.f32.mrf.mxu0
  %v10014 = vpop.f32.mrf.mxu0
  %v10015 = vadd.f32 0.0, %v10014
  %v10016 = vpop.f32.mrf.mxu0
  %10017 = vmatprep.mubr.bf16.mxu0 0
  %10018 = vmatmul.mubr.bf16.gmra.mxu0 %v9807
  %v10019 = vpop.f32.mrf.mxu0
  %v10020 = vadd.f32 0.0, %v10019
  %v10021 = vpop.f32.mrf.mxu0
  %v10022 = vpop.f32.mrf.mxu0
  %v10023 = vadd.f32 0.0, %v10022
  %v10024 = vpop.f32.mrf.mxu0
  %10025 = vmatprep.mubr.bf16.mxu0 0
  %10026 = vmatmul.mubr.bf16.gmra.mxu0 %v9808
  %v10027 = vpop.f32.mrf.mxu0
  %v10028 = vadd.f32 0.0, %v10027
  %v10029 = vpop.f32.mrf.mxu0
  %v10030 = vpop.f32.mrf.mxu0
  %v10031 = vadd.f32 0.0, %v10030
  %v10032 = vpop.f32.mrf.mxu0
  %10033 = vdwg.mxu0
  %10036 = vrot.lane.b32.xlu0 %v9205, 112
  %v10037 = vpop.permute.xlu0 %10036
  %10038 = vrot.lane.b32.xlu0 %v9209, 112
  %v10039 = vpop.permute.xlu0 %10038
  %10040 = vrot.lane.b32.xlu0 %v9213, 112
  %v10041 = vpop.permute.xlu0 %10040
  %10042 = vrot.lane.b32.xlu0 %v9217, 112
  %v10043 = vpop.permute.xlu0 %10042
  %10044 = vrot.lane.b32.xlu0 %v9221, 112
  %v10045 = vpop.permute.xlu0 %10044
  %10046 = vrot.lane.b32.xlu0 %v9225, 112
  %v10047 = vpop.permute.xlu0 %10046
  %10048 = vrot.lane.b32.xlu0 %v9229, 112
  %v10049 = vpop.permute.xlu0 %10048
  %10050 = vrot.lane.b32.xlu0 %v9233, 112
  %v10051 = vpop.permute.xlu0 %10050
  %10052 = vrot.lane.b32.xlu0 %v9237, 112
  %v10053 = vpop.permute.xlu0 %10052
  %10054 = vrot.lane.b32.xlu0 %v9241, 112
  %v10055 = vpop.permute.xlu0 %10054
  %10056 = vrot.lane.b32.xlu0 %v9245, 112
  %v10057 = vpop.permute.xlu0 %10056
  %10058 = vrot.lane.b32.xlu0 %v9249, 112
  %v10059 = vpop.permute.xlu0 %10058
  %10060 = vrot.lane.b32.xlu0 %v9253, 112
  %v10061 = vpop.permute.xlu0 %10060
  %10062 = vrot.lane.b32.xlu0 %v9257, 112
  %v10063 = vpop.permute.xlu0 %10062
  %10064 = vrot.lane.b32.xlu0 %v9261, 112
  %v10065 = vpop.permute.xlu0 %10064
  %10066 = vrot.lane.b32.xlu0 %v9265, 112
  %v10067 = vpop.permute.xlu0 %10066
  %10068 = vrot.lane.b32.xlu0 %v9273, 112
  %v10069 = vpop.permute.xlu0 %10068
  %10070 = vrot.lane.b32.xlu0 %v9277, 112
  %v10071 = vpop.permute.xlu0 %10070
  %10072 = vrot.lane.b32.xlu0 %v9281, 112
  %v10073 = vpop.permute.xlu0 %10072
  %10074 = vrot.lane.b32.xlu0 %v9285, 112
  %v10075 = vpop.permute.xlu0 %10074
  %10076 = vrot.lane.b32.xlu0 %v9289, 112
  %v10077 = vpop.permute.xlu0 %10076
  %10078 = vrot.lane.b32.xlu0 %v9293, 112
  %v10079 = vpop.permute.xlu0 %10078
  %10080 = vrot.lane.b32.xlu0 %v9297, 112
  %v10081 = vpop.permute.xlu0 %10080
  %10082 = vrot.lane.b32.xlu0 %v9301, 112
  %v10083 = vpop.permute.xlu0 %10082
  %10084 = vrot.lane.b32.xlu0 %v9305, 112
  %v10085 = vpop.permute.xlu0 %10084
  %10086 = vrot.lane.b32.xlu0 %v9309, 112
  %v10087 = vpop.permute.xlu0 %10086
  %10088 = vrot.lane.b32.xlu0 %v9313, 112
  %v10089 = vpop.permute.xlu0 %10088
  %10090 = vrot.lane.b32.xlu0 %v9317, 112
  %v10091 = vpop.permute.xlu0 %10090
  %10092 = vrot.lane.b32.xlu0 %v9321, 112
  %v10093 = vpop.permute.xlu0 %10092
  %10094 = vrot.lane.b32.xlu0 %v9325, 112
  %v10095 = vpop.permute.xlu0 %10094
  %10096 = vrot.lane.b32.xlu0 %v9329, 112
  %v10097 = vpop.permute.xlu0 %10096
  %10098 = vrot.lane.b32.xlu0 %v9333, 112
  %v10099 = vpop.permute.xlu0 %10098
  %v10164 = vrot.slane %v9205, 1
  %v10165 = vrot.slane %v9206, 1
  %v10166 = vsel %vm6174, %v10164, %v10165
  %v10167 = vrot.slane %v9209, 1
  %v10168 = vrot.slane %v9210, 1
  %v10169 = vsel %vm6174, %v10167, %v10168
  %v10170 = vrot.slane %v9213, 1
  %v10171 = vrot.slane %v9214, 1
  %v10172 = vsel %vm6174, %v10170, %v10171
  %v10173 = vrot.slane %v9217, 1
  %v10174 = vrot.slane %v9218, 1
  %v10175 = vsel %vm6174, %v10173, %v10174
  %v10176 = vrot.slane %v9221, 1
  %v10177 = vrot.slane %v9222, 1
  %v10178 = vsel %vm6174, %v10176, %v10177
  %v10179 = vrot.slane %v9225, 1
  %v10180 = vrot.slane %v9226, 1
  %v10181 = vsel %vm6174, %v10179, %v10180
  %v10182 = vrot.slane %v9229, 1
  %v10183 = vrot.slane %v9230, 1
  %v10184 = vsel %vm6174, %v10182, %v10183
  %v10185 = vrot.slane %v9233, 1
  %v10186 = vrot.slane %v9234, 1
  %v10187 = vsel %vm6174, %v10185, %v10186
  %v10188 = vrot.slane %v9237, 1
  %v10189 = vrot.slane %v9238, 1
  %v10190 = vsel %vm6174, %v10188, %v10189
  %v10191 = vrot.slane %v9241, 1
  %v10192 = vrot.slane %v9242, 1
  %v10193 = vsel %vm6174, %v10191, %v10192
  %v10194 = vrot.slane %v9245, 1
  %v10195 = vrot.slane %v9246, 1
  %v10196 = vsel %vm6174, %v10194, %v10195
  %v10197 = vrot.slane %v9249, 1
  %v10198 = vrot.slane %v9250, 1
  %v10199 = vsel %vm6174, %v10197, %v10198
  %v10200 = vrot.slane %v9253, 1
  %v10201 = vrot.slane %v9254, 1
  %v10202 = vsel %vm6174, %v10200, %v10201
  %v10203 = vrot.slane %v9257, 1
  %v10204 = vrot.slane %v9258, 1
  %v10205 = vsel %vm6174, %v10203, %v10204
  %v10206 = vrot.slane %v9261, 1
  %v10207 = vrot.slane %v9262, 1
  %v10208 = vsel %vm6174, %v10206, %v10207
  %v10209 = vrot.slane %v9265, 1
  %v10210 = vrot.slane %v9266, 1
  %v10211 = vsel %vm6174, %v10209, %v10210
  %v10212 = vrot.slane %v9273, 1
  %v10213 = vrot.slane %v9274, 1
  %v10214 = vsel %vm6174, %v10212, %v10213
  %v10215 = vrot.slane %v9277, 1
  %v10216 = vrot.slane %v9278, 1
  %v10217 = vsel %vm6174, %v10215, %v10216
  %v10218 = vrot.slane %v9281, 1
  %v10219 = vrot.slane %v9282, 1
  %v10220 = vsel %vm6174, %v10218, %v10219
  %v10221 = vrot.slane %v9285, 1
  %v10222 = vrot.slane %v9286, 1
  %v10223 = vsel %vm6174, %v10221, %v10222
  %v10224 = vrot.slane %v9289, 1
  %v10225 = vrot.slane %v9290, 1
  %v10226 = vsel %vm6174, %v10224, %v10225
  %v10227 = vrot.slane %v9293, 1
  %v10228 = vrot.slane %v9294, 1
  %v10229 = vsel %vm6174, %v10227, %v10228
  %v10230 = vrot.slane %v9297, 1
  %v10231 = vrot.slane %v9298, 1
  %v10232 = vsel %vm6174, %v10230, %v10231
  %v10233 = vrot.slane %v9301, 1
  %v10234 = vrot.slane %v9302, 1
  %v10235 = vsel %vm6174, %v10233, %v10234
  %v10236 = vrot.slane %v9305, 1
  %v10237 = vrot.slane %v9306, 1
  %v10238 = vsel %vm6174, %v10236, %v10237
  %v10239 = vrot.slane %v9309, 1
  %v10240 = vrot.slane %v9310, 1
  %v10241 = vsel %vm6174, %v10239, %v10240
  %v10242 = vrot.slane %v9313, 1
  %v10243 = vrot.slane %v9314, 1
  %v10244 = vsel %vm6174, %v10242, %v10243
  %v10245 = vrot.slane %v9317, 1
  %v10246 = vrot.slane %v9318, 1
  %v10247 = vsel %vm6174, %v10245, %v10246
  %v10248 = vrot.slane %v9321, 1
  %v10249 = vrot.slane %v9322, 1
  %v10250 = vsel %vm6174, %v10248, %v10249
  %v10251 = vrot.slane %v9325, 1
  %v10252 = vrot.slane %v9326, 1
  %v10253 = vsel %vm6174, %v10251, %v10252
  %v10254 = vrot.slane %v9329, 1
  %v10255 = vrot.slane %v9330, 1
  %v10256 = vsel %vm6174, %v10254, %v10255
  %v10257 = vrot.slane %v9333, 1
  %v10258 = vrot.slane %v9334, 1
  %v10259 = vsel %vm6174, %v10257, %v10258
  %10260 = vrot.lane.b32.xlu0 %v10166, 16
  %v10261 = vpop.permute.xlu0 %10260
  %10262 = vrot.lane.b32.xlu0 %v10169, 16
  %v10263 = vpop.permute.xlu0 %10262
  %10264 = vrot.lane.b32.xlu0 %v10172, 16
  %v10265 = vpop.permute.xlu0 %10264
  %10266 = vrot.lane.b32.xlu0 %v10175, 16
  %v10267 = vpop.permute.xlu0 %10266
  %10268 = vrot.lane.b32.xlu0 %v10178, 16
  %v10269 = vpop.permute.xlu0 %10268
  %10270 = vrot.lane.b32.xlu0 %v10181, 16
  %v10271 = vpop.permute.xlu0 %10270
  %10272 = vrot.lane.b32.xlu0 %v10184, 16
  %v10273 = vpop.permute.xlu0 %10272
  %10274 = vrot.lane.b32.xlu0 %v10187, 16
  %v10275 = vpop.permute.xlu0 %10274
  %10276 = vrot.lane.b32.xlu0 %v10190, 16
  %v10277 = vpop.permute.xlu0 %10276
  %10278 = vrot.lane.b32.xlu0 %v10193, 16
  %v10279 = vpop.permute.xlu0 %10278
  %10280 = vrot.lane.b32.xlu0 %v10196, 16
  %v10281 = vpop.permute.xlu0 %10280
  %10282 = vrot.lane.b32.xlu0 %v10199, 16
  %v10283 = vpop.permute.xlu0 %10282
  %10284 = vrot.lane.b32.xlu0 %v10202, 16
  %v10285 = vpop.permute.xlu0 %10284
  %10286 = vrot.lane.b32.xlu0 %v10205, 16
  %v10287 = vpop.permute.xlu0 %10286
  %10288 = vrot.lane.b32.xlu0 %v10208, 16
  %v10289 = vpop.permute.xlu0 %10288
  %10290 = vrot.lane.b32.xlu0 %v10211, 16
  %v10291 = vpop.permute.xlu0 %10290
  %10292 = vrot.lane.b32.xlu0 %v10214, 16
  %v10293 = vpop.permute.xlu0 %10292
  %10294 = vrot.lane.b32.xlu0 %v10217, 16
  %v10295 = vpop.permute.xlu0 %10294
  %10296 = vrot.lane.b32.xlu0 %v10220, 16
  %v10297 = vpop.permute.xlu0 %10296
  %10298 = vrot.lane.b32.xlu0 %v10223, 16
  %v10299 = vpop.permute.xlu0 %10298
  %10300 = vrot.lane.b32.xlu0 %v10226, 16
  %v10301 = vpop.permute.xlu0 %10300
  %10302 = vrot.lane.b32.xlu0 %v10229, 16
  %v10303 = vpop.permute.xlu0 %10302
  %10304 = vrot.lane.b32.xlu0 %v10232, 16
  %v10305 = vpop.permute.xlu0 %10304
  %10306 = vrot.lane.b32.xlu0 %v10235, 16
  %v10307 = vpop.permute.xlu0 %10306
  %10308 = vrot.lane.b32.xlu0 %v10238, 16
  %v10309 = vpop.permute.xlu0 %10308
  %10310 = vrot.lane.b32.xlu0 %v10241, 16
  %v10311 = vpop.permute.xlu0 %10310
  %10312 = vrot.lane.b32.xlu0 %v10244, 16
  %v10313 = vpop.permute.xlu0 %10312
  %10314 = vrot.lane.b32.xlu0 %v10247, 16
  %v10315 = vpop.permute.xlu0 %10314
  %10316 = vrot.lane.b32.xlu0 %v10250, 16
  %v10317 = vpop.permute.xlu0 %10316
  %10318 = vrot.lane.b32.xlu0 %v10253, 16
  %v10319 = vpop.permute.xlu0 %10318
  %10320 = vrot.lane.b32.xlu0 %v10256, 16
  %v10321 = vpop.permute.xlu0 %10320
  %10322 = vrot.lane.b32.xlu0 %v10259, 16
  %v10323 = vpop.permute.xlu0 %10322
  %10356 = vrot.lane.b32.xlu0 %v9207, 16
  %v10357 = vpop.permute.xlu0 %10356
  %10358 = vrot.lane.b32.xlu0 %v9211, 16
  %v10359 = vpop.permute.xlu0 %10358
  %10360 = vrot.lane.b32.xlu0 %v9215, 16
  %v10361 = vpop.permute.xlu0 %10360
  %10362 = vrot.lane.b32.xlu0 %v9219, 16
  %v10363 = vpop.permute.xlu0 %10362
  %10364 = vrot.lane.b32.xlu0 %v9223, 16
  %v10365 = vpop.permute.xlu0 %10364
  %10366 = vrot.lane.b32.xlu0 %v9227, 16
  %v10367 = vpop.permute.xlu0 %10366
  %10368 = vrot.lane.b32.xlu0 %v9231, 16
  %v10369 = vpop.permute.xlu0 %10368
  %10370 = vrot.lane.b32.xlu0 %v9235, 16
  %v10371 = vpop.permute.xlu0 %10370
  %10372 = vrot.lane.b32.xlu0 %v9239, 16
  %v10373 = vpop.permute.xlu0 %10372
  %10374 = vrot.lane.b32.xlu0 %v9243, 16
  %v10375 = vpop.permute.xlu0 %10374
  %10376 = vrot.lane.b32.xlu0 %v9247, 16
  %v10377 = vpop.permute.xlu0 %10376
  %10378 = vrot.lane.b32.xlu0 %v9251, 16
  %v10379 = vpop.permute.xlu0 %10378
  %10380 = vrot.lane.b32.xlu0 %v9255, 16
  %v10381 = vpop.permute.xlu0 %10380
  %10382 = vrot.lane.b32.xlu0 %v9259, 16
  %v10383 = vpop.permute.xlu0 %10382
  %10384 = vrot.lane.b32.xlu0 %v9263, 16
  %v10385 = vpop.permute.xlu0 %10384
  %10386 = vrot.lane.b32.xlu0 %v9267, 16
  %v10387 = vpop.permute.xlu0 %10386
  %10388 = vrot.lane.b32.xlu0 %v9275, 16
  %v10389 = vpop.permute.xlu0 %10388
  %10390 = vrot.lane.b32.xlu0 %v9279, 16
  %v10391 = vpop.permute.xlu0 %10390
  %10392 = vrot.lane.b32.xlu0 %v9283, 16
  %v10393 = vpop.permute.xlu0 %10392
  %10394 = vrot.lane.b32.xlu0 %v9287, 16
  %v10395 = vpop.permute.xlu0 %10394
  %10396 = vrot.lane.b32.xlu0 %v9291, 16
  %v10397 = vpop.permute.xlu0 %10396
  %10398 = vrot.lane.b32.xlu0 %v9295, 16
  %v10399 = vpop.permute.xlu0 %10398
  %10400 = vrot.lane.b32.xlu0 %v9299, 16
  %v10401 = vpop.permute.xlu0 %10400
  %10402 = vrot.lane.b32.xlu0 %v9303, 16
  %v10403 = vpop.permute.xlu0 %10402
  %10404 = vrot.lane.b32.xlu0 %v9307, 16
  %v10405 = vpop.permute.xlu0 %10404
  %10406 = vrot.lane.b32.xlu0 %v9311, 16
  %v10407 = vpop.permute.xlu0 %10406
  %10408 = vrot.lane.b32.xlu0 %v9315, 16
  %v10409 = vpop.permute.xlu0 %10408
  %10410 = vrot.lane.b32.xlu0 %v9319, 16
  %v10411 = vpop.permute.xlu0 %10410
  %10412 = vrot.lane.b32.xlu0 %v9323, 16
  %v10413 = vpop.permute.xlu0 %10412
  %10414 = vrot.lane.b32.xlu0 %v9327, 16
  %v10415 = vpop.permute.xlu0 %10414
  %10416 = vrot.lane.b32.xlu0 %v9331, 16
  %v10417 = vpop.permute.xlu0 %10416
  %10418 = vrot.lane.b32.xlu0 %v9335, 16
  %v10419 = vpop.permute.xlu0 %10418
  %v10484 = vrot.slane %v9207, 1
  %v10485 = vrot.slane %v9208, 1
  %v10486 = vsel %vm6174, %v10484, %v10485
  %v10487 = vrot.slane %v9211, 1
  %v10488 = vrot.slane %v9212, 1
  %v10489 = vsel %vm6174, %v10487, %v10488
  %v10490 = vrot.slane %v9215, 1
  %v10491 = vrot.slane %v9216, 1
  %v10492 = vsel %vm6174, %v10490, %v10491
  %v10493 = vrot.slane %v9219, 1
  %v10494 = vrot.slane %v9220, 1
  %v10495 = vsel %vm6174, %v10493, %v10494
  %v10496 = vrot.slane %v9223, 1
  %v10497 = vrot.slane %v9224, 1
  %v10498 = vsel %vm6174, %v10496, %v10497
  %v10499 = vrot.slane %v9227, 1
  %v10500 = vrot.slane %v9228, 1
  %v10501 = vsel %vm6174, %v10499, %v10500
  %v10502 = vrot.slane %v9231, 1
  %v10503 = vrot.slane %v9232, 1
  %v10504 = vsel %vm6174, %v10502, %v10503
  %v10505 = vrot.slane %v9235, 1
  %v10506 = vrot.slane %v9236, 1
  %v10507 = vsel %vm6174, %v10505, %v10506
  %v10508 = vrot.slane %v9239, 1
  %v10509 = vrot.slane %v9240, 1
  %v10510 = vsel %vm6174, %v10508, %v10509
  %v10511 = vrot.slane %v9243, 1
  %v10512 = vrot.slane %v9244, 1
  %v10513 = vsel %vm6174, %v10511, %v10512
  %v10514 = vrot.slane %v9247, 1
  %v10515 = vrot.slane %v9248, 1
  %v10516 = vsel %vm6174, %v10514, %v10515
  %v10517 = vrot.slane %v9251, 1
  %v10518 = vrot.slane %v9252, 1
  %v10519 = vsel %vm6174, %v10517, %v10518
  %v10520 = vrot.slane %v9255, 1
  %v10521 = vrot.slane %v9256, 1
  %v10522 = vsel %vm6174, %v10520, %v10521
  %v10523 = vrot.slane %v9259, 1
  %v10524 = vrot.slane %v9260, 1
  %v10525 = vsel %vm6174, %v10523, %v10524
  %v10526 = vrot.slane %v9263, 1
  %v10527 = vrot.slane %v9264, 1
  %v10528 = vsel %vm6174, %v10526, %v10527
  %v10529 = vrot.slane %v9267, 1
  %v10530 = vrot.slane %v9268, 1
  %v10531 = vsel %vm6174, %v10529, %v10530
  %v10532 = vrot.slane %v9275, 1
  %v10533 = vrot.slane %v9276, 1
  %v10534 = vsel %vm6174, %v10532, %v10533
  %v10535 = vrot.slane %v9279, 1
  %v10536 = vrot.slane %v9280, 1
  %v10537 = vsel %vm6174, %v10535, %v10536
  %v10538 = vrot.slane %v9283, 1
  %v10539 = vrot.slane %v9284, 1
  %v10540 = vsel %vm6174, %v10538, %v10539
  %v10541 = vrot.slane %v9287, 1
  %v10542 = vrot.slane %v9288, 1
  %v10543 = vsel %vm6174, %v10541, %v10542
  %v10544 = vrot.slane %v9291, 1
  %v10545 = vrot.slane %v9292, 1
  %v10546 = vsel %vm6174, %v10544, %v10545
  %v10547 = vrot.slane %v9295, 1
  %v10548 = vrot.slane %v9296, 1
  %v10549 = vsel %vm6174, %v10547, %v10548
  %v10550 = vrot.slane %v9299, 1
  %v10551 = vrot.slane %v9300, 1
  %v10552 = vsel %vm6174, %v10550, %v10551
  %v10553 = vrot.slane %v9303, 1
  %v10554 = vrot.slane %v9304, 1
  %v10555 = vsel %vm6174, %v10553, %v10554
  %v10556 = vrot.slane %v9307, 1
  %v10557 = vrot.slane %v9308, 1
  %v10558 = vsel %vm6174, %v10556, %v10557
  %v10559 = vrot.slane %v9311, 1
  %v10560 = vrot.slane %v9312, 1
  %v10561 = vsel %vm6174, %v10559, %v10560
  %v10562 = vrot.slane %v9315, 1
  %v10563 = vrot.slane %v9316, 1
  %v10564 = vsel %vm6174, %v10562, %v10563
  %v10565 = vrot.slane %v9319, 1
  %v10566 = vrot.slane %v9320, 1
  %v10567 = vsel %vm6174, %v10565, %v10566
  %v10568 = vrot.slane %v9323, 1
  %v10569 = vrot.slane %v9324, 1
  %v10570 = vsel %vm6174, %v10568, %v10569
  %v10571 = vrot.slane %v9327, 1
  %v10572 = vrot.slane %v9328, 1
  %v10573 = vsel %vm6174, %v10571, %v10572
  %v10574 = vrot.slane %v9331, 1
  %v10575 = vrot.slane %v9332, 1
  %v10576 = vsel %vm6174, %v10574, %v10575
  %v10577 = vrot.slane %v9335, 1
  %v10578 = vrot.slane %v9336, 1
  %v10579 = vsel %vm6174, %v10577, %v10578
  %10580 = vrot.lane.b32.xlu0 %v10486, 48
  %v10581 = vpop.permute.xlu0 %10580
  %10582 = vrot.lane.b32.xlu0 %v10489, 48
  %v10583 = vpop.permute.xlu0 %10582
  %10584 = vrot.lane.b32.xlu0 %v10492, 48
  %v10585 = vpop.permute.xlu0 %10584
  %10586 = vrot.lane.b32.xlu0 %v10495, 48
  %v10587 = vpop.permute.xlu0 %10586
  %10588 = vrot.lane.b32.xlu0 %v10498, 48
  %v10589 = vpop.permute.xlu0 %10588
  %10590 = vrot.lane.b32.xlu0 %v10501, 48
  %v10591 = vpop.permute.xlu0 %10590
  %10592 = vrot.lane.b32.xlu0 %v10504, 48
  %v10593 = vpop.permute.xlu0 %10592
  %10594 = vrot.lane.b32.xlu0 %v10507, 48
  %v10595 = vpop.permute.xlu0 %10594
  %10596 = vrot.lane.b32.xlu0 %v10510, 48
  %v10597 = vpop.permute.xlu0 %10596
  %10598 = vrot.lane.b32.xlu0 %v10513, 48
  %v10599 = vpop.permute.xlu0 %10598
  %10600 = vrot.lane.b32.xlu0 %v10516, 48
  %v10601 = vpop.permute.xlu0 %10600
  %10602 = vrot.lane.b32.xlu0 %v10519, 48
  %v10603 = vpop.permute.xlu0 %10602
  %10604 = vrot.lane.b32.xlu0 %v10522, 48
  %v10605 = vpop.permute.xlu0 %10604
  %10606 = vrot.lane.b32.xlu0 %v10525, 48
  %v10607 = vpop.permute.xlu0 %10606
  %10608 = vrot.lane.b32.xlu0 %v10528, 48
  %v10609 = vpop.permute.xlu0 %10608
  %10610 = vrot.lane.b32.xlu0 %v10531, 48
  %v10611 = vpop.permute.xlu0 %10610
  %10612 = vrot.lane.b32.xlu0 %v10534, 48
  %v10613 = vpop.permute.xlu0 %10612
  %10614 = vrot.lane.b32.xlu0 %v10537, 48
  %v10615 = vpop.permute.xlu0 %10614
  %10616 = vrot.lane.b32.xlu0 %v10540, 48
  %v10617 = vpop.permute.xlu0 %10616
  %10618 = vrot.lane.b32.xlu0 %v10543, 48
  %v10619 = vpop.permute.xlu0 %10618
  %10620 = vrot.lane.b32.xlu0 %v10546, 48
  %v10621 = vpop.permute.xlu0 %10620
  %10622 = vrot.lane.b32.xlu0 %v10549, 48
  %v10623 = vpop.permute.xlu0 %10622
  %10624 = vrot.lane.b32.xlu0 %v10552, 48
  %v10625 = vpop.permute.xlu0 %10624
  %10626 = vrot.lane.b32.xlu0 %v10555, 48
  %v10627 = vpop.permute.xlu0 %10626
  %10628 = vrot.lane.b32.xlu0 %v10558, 48
  %v10629 = vpop.permute.xlu0 %10628
  %10630 = vrot.lane.b32.xlu0 %v10561, 48
  %v10631 = vpop.permute.xlu0 %10630
  %10632 = vrot.lane.b32.xlu0 %v10564, 48
  %v10633 = vpop.permute.xlu0 %10632
  %10634 = vrot.lane.b32.xlu0 %v10567, 48
  %v10635 = vpop.permute.xlu0 %10634
  %10636 = vrot.lane.b32.xlu0 %v10570, 48
  %v10637 = vpop.permute.xlu0 %10636
  %10638 = vrot.lane.b32.xlu0 %v10573, 48
  %v10639 = vpop.permute.xlu0 %10638
  %10640 = vrot.lane.b32.xlu0 %v10576, 48
  %v10641 = vpop.permute.xlu0 %10640
  %10642 = vrot.lane.b32.xlu0 %v10579, 48
  %v10643 = vpop.permute.xlu0 %10642
  %10676 = vrot.lane.b32.xlu0 %v9209, 48
  %v10677 = vpop.permute.xlu0 %10676
  %10678 = vrot.lane.b32.xlu0 %v9213, 48
  %v10679 = vpop.permute.xlu0 %10678
  %10680 = vrot.lane.b32.xlu0 %v9217, 48
  %v10681 = vpop.permute.xlu0 %10680
  %10682 = vrot.lane.b32.xlu0 %v9221, 48
  %v10683 = vpop.permute.xlu0 %10682
  %10684 = vrot.lane.b32.xlu0 %v9225, 48
  %v10685 = vpop.permute.xlu0 %10684
  %10686 = vrot.lane.b32.xlu0 %v9229, 48
  %v10687 = vpop.permute.xlu0 %10686
  %10688 = vrot.lane.b32.xlu0 %v9233, 48
  %v10689 = vpop.permute.xlu0 %10688
  %10690 = vrot.lane.b32.xlu0 %v9237, 48
  %v10691 = vpop.permute.xlu0 %10690
  %10692 = vrot.lane.b32.xlu0 %v9241, 48
  %v10693 = vpop.permute.xlu0 %10692
  %10694 = vrot.lane.b32.xlu0 %v9245, 48
  %v10695 = vpop.permute.xlu0 %10694
  %10696 = vrot.lane.b32.xlu0 %v9249, 48
  %v10697 = vpop.permute.xlu0 %10696
  %10698 = vrot.lane.b32.xlu0 %v9253, 48
  %v10699 = vpop.permute.xlu0 %10698
  %10700 = vrot.lane.b32.xlu0 %v9257, 48
  %v10701 = vpop.permute.xlu0 %10700
  %10702 = vrot.lane.b32.xlu0 %v9261, 48
  %v10703 = vpop.permute.xlu0 %10702
  %10704 = vrot.lane.b32.xlu0 %v9265, 48
  %v10705 = vpop.permute.xlu0 %10704
  %10706 = vrot.lane.b32.xlu0 %v9269, 48
  %v10707 = vpop.permute.xlu0 %10706
  %10708 = vrot.lane.b32.xlu0 %v9277, 48
  %v10709 = vpop.permute.xlu0 %10708
  %10710 = vrot.lane.b32.xlu0 %v9281, 48
  %v10711 = vpop.permute.xlu0 %10710
  %10712 = vrot.lane.b32.xlu0 %v9285, 48
  %v10713 = vpop.permute.xlu0 %10712
  %10714 = vrot.lane.b32.xlu0 %v9289, 48
  %v10715 = vpop.permute.xlu0 %10714
  %10716 = vrot.lane.b32.xlu0 %v9293, 48
  %v10717 = vpop.permute.xlu0 %10716
  %10718 = vrot.lane.b32.xlu0 %v9297, 48
  %v10719 = vpop.permute.xlu0 %10718
  %10720 = vrot.lane.b32.xlu0 %v9301, 48
  %v10721 = vpop.permute.xlu0 %10720
  %10722 = vrot.lane.b32.xlu0 %v9305, 48
  %v10723 = vpop.permute.xlu0 %10722
  %10724 = vrot.lane.b32.xlu0 %v9309, 48
  %v10725 = vpop.permute.xlu0 %10724
  %10726 = vrot.lane.b32.xlu0 %v9313, 48
  %v10727 = vpop.permute.xlu0 %10726
  %10728 = vrot.lane.b32.xlu0 %v9317, 48
  %v10729 = vpop.permute.xlu0 %10728
  %10730 = vrot.lane.b32.xlu0 %v9321, 48
  %v10731 = vpop.permute.xlu0 %10730
  %10732 = vrot.lane.b32.xlu0 %v9325, 48
  %v10733 = vpop.permute.xlu0 %10732
  %10734 = vrot.lane.b32.xlu0 %v9329, 48
  %v10735 = vpop.permute.xlu0 %10734
  %10736 = vrot.lane.b32.xlu0 %v9333, 48
  %v10737 = vpop.permute.xlu0 %10736
  %10738 = vrot.lane.b32.xlu0 %v9337, 48
  %v10739 = vpop.permute.xlu0 %10738
  %v10774 = vrot.slane %v9269, 1
  %v10775 = vrot.slane %v9270, 1
  %v10776 = vsel %vm6174, %v10774, %v10775
  %v10777 = vrot.slane %v9337, 1
  %v10778 = vrot.slane %v9338, 1
  %v10779 = vsel %vm6174, %v10777, %v10778
  %10780 = vrot.lane.b32.xlu0 %v10169, 80
  %v10781 = vpop.permute.xlu0 %10780
  %10782 = vrot.lane.b32.xlu0 %v10172, 80
  %v10783 = vpop.permute.xlu0 %10782
  %10784 = vrot.lane.b32.xlu0 %v10175, 80
  %v10785 = vpop.permute.xlu0 %10784
  %10786 = vrot.lane.b32.xlu0 %v10178, 80
  %v10787 = vpop.permute.xlu0 %10786
  %10788 = vrot.lane.b32.xlu0 %v10181, 80
  %v10789 = vpop.permute.xlu0 %10788
  %10790 = vrot.lane.b32.xlu0 %v10184, 80
  %v10791 = vpop.permute.xlu0 %10790
  %10792 = vrot.lane.b32.xlu0 %v10187, 80
  %v10793 = vpop.permute.xlu0 %10792
  %10794 = vrot.lane.b32.xlu0 %v10190, 80
  %v10795 = vpop.permute.xlu0 %10794
  %10796 = vrot.lane.b32.xlu0 %v10193, 80
  %v10797 = vpop.permute.xlu0 %10796
  %10798 = vrot.lane.b32.xlu0 %v10196, 80
  %v10799 = vpop.permute.xlu0 %10798
  %10800 = vrot.lane.b32.xlu0 %v10199, 80
  %v10801 = vpop.permute.xlu0 %10800
  %10802 = vrot.lane.b32.xlu0 %v10202, 80
  %v10803 = vpop.permute.xlu0 %10802
  %10804 = vrot.lane.b32.xlu0 %v10205, 80
  %v10805 = vpop.permute.xlu0 %10804
  %10806 = vrot.lane.b32.xlu0 %v10208, 80
  %v10807 = vpop.permute.xlu0 %10806
  %10808 = vrot.lane.b32.xlu0 %v10211, 80
  %v10809 = vpop.permute.xlu0 %10808
  %10810 = vrot.lane.b32.xlu0 %v10776, 80
  %v10811 = vpop.permute.xlu0 %10810
  %10812 = vrot.lane.b32.xlu0 %v10217, 80
  %v10813 = vpop.permute.xlu0 %10812
  %10814 = vrot.lane.b32.xlu0 %v10220, 80
  %v10815 = vpop.permute.xlu0 %10814
  %10816 = vrot.lane.b32.xlu0 %v10223, 80
  %v10817 = vpop.permute.xlu0 %10816
  %10818 = vrot.lane.b32.xlu0 %v10226, 80
  %v10819 = vpop.permute.xlu0 %10818
  %10820 = vrot.lane.b32.xlu0 %v10229, 80
  %v10821 = vpop.permute.xlu0 %10820
  %10822 = vrot.lane.b32.xlu0 %v10232, 80
  %v10823 = vpop.permute.xlu0 %10822
  %10824 = vrot.lane.b32.xlu0 %v10235, 80
  %v10825 = vpop.permute.xlu0 %10824
  %10826 = vrot.lane.b32.xlu0 %v10238, 80
  %v10827 = vpop.permute.xlu0 %10826
  %10828 = vrot.lane.b32.xlu0 %v10241, 80
  %v10829 = vpop.permute.xlu0 %10828
  %10830 = vrot.lane.b32.xlu0 %v10244, 80
  %v10831 = vpop.permute.xlu0 %10830
  %10832 = vrot.lane.b32.xlu0 %v10247, 80
  %v10833 = vpop.permute.xlu0 %10832
  %10834 = vrot.lane.b32.xlu0 %v10250, 80
  %v10835 = vpop.permute.xlu0 %10834
  %10836 = vrot.lane.b32.xlu0 %v10253, 80
  %v10837 = vpop.permute.xlu0 %10836
  %10838 = vrot.lane.b32.xlu0 %v10256, 80
  %v10839 = vpop.permute.xlu0 %10838
  %10840 = vrot.lane.b32.xlu0 %v10259, 80
  %v10841 = vpop.permute.xlu0 %10840
  %10842 = vrot.lane.b32.xlu0 %v10779, 80
  %v10843 = vpop.permute.xlu0 %10842
  %10876 = vrot.lane.b32.xlu0 %v9211, 80
  %v10877 = vpop.permute.xlu0 %10876
  %10878 = vrot.lane.b32.xlu0 %v9215, 80
  %v10879 = vpop.permute.xlu0 %10878
  %10880 = vrot.lane.b32.xlu0 %v9219, 80
  %v10881 = vpop.permute.xlu0 %10880
  %10882 = vrot.lane.b32.xlu0 %v9223, 80
  %v10883 = vpop.permute.xlu0 %10882
  %10884 = vrot.lane.b32.xlu0 %v9227, 80
  %v10885 = vpop.permute.xlu0 %10884
  %10886 = vrot.lane.b32.xlu0 %v9231, 80
  %v10887 = vpop.permute.xlu0 %10886
  %10888 = vrot.lane.b32.xlu0 %v9235, 80
  %v10889 = vpop.permute.xlu0 %10888
  %10890 = vrot.lane.b32.xlu0 %v9239, 80
  %v10891 = vpop.permute.xlu0 %10890
  %10892 = vrot.lane.b32.xlu0 %v9243, 80
  %v10893 = vpop.permute.xlu0 %10892
  %10894 = vrot.lane.b32.xlu0 %v9247, 80
  %v10895 = vpop.permute.xlu0 %10894
  %10896 = vrot.lane.b32.xlu0 %v9251, 80
  %v10897 = vpop.permute.xlu0 %10896
  %10898 = vrot.lane.b32.xlu0 %v9255, 80
  %v10899 = vpop.permute.xlu0 %10898
  %10900 = vrot.lane.b32.xlu0 %v9259, 80
  %v10901 = vpop.permute.xlu0 %10900
  %10902 = vrot.lane.b32.xlu0 %v9263, 80
  %v10903 = vpop.permute.xlu0 %10902
  %10904 = vrot.lane.b32.xlu0 %v9267, 80
  %v10905 = vpop.permute.xlu0 %10904
  %10906 = vrot.lane.b32.xlu0 %v9271, 80
  %v10907 = vpop.permute.xlu0 %10906
  %10908 = vrot.lane.b32.xlu0 %v9279, 80
  %v10909 = vpop.permute.xlu0 %10908
  %10910 = vrot.lane.b32.xlu0 %v9283, 80
  %v10911 = vpop.permute.xlu0 %10910
  %10912 = vrot.lane.b32.xlu0 %v9287, 80
  %v10913 = vpop.permute.xlu0 %10912
  %10914 = vrot.lane.b32.xlu0 %v9291, 80
  %v10915 = vpop.permute.xlu0 %10914
  %10916 = vrot.lane.b32.xlu0 %v9295, 80
  %v10917 = vpop.permute.xlu0 %10916
  %10918 = vrot.lane.b32.xlu0 %v9299, 80
  %v10919 = vpop.permute.xlu0 %10918
  %10920 = vrot.lane.b32.xlu0 %v9303, 80
  %v10921 = vpop.permute.xlu0 %10920
  %10922 = vrot.lane.b32.xlu0 %v9307, 80
  %v10923 = vpop.permute.xlu0 %10922
  %10924 = vrot.lane.b32.xlu0 %v9311, 80
  %v10925 = vpop.permute.xlu0 %10924
  %10926 = vrot.lane.b32.xlu0 %v9315, 80
  %v10927 = vpop.permute.xlu0 %10926
  %10928 = vrot.lane.b32.xlu0 %v9319, 80
  %v10929 = vpop.permute.xlu0 %10928
  %10930 = vrot.lane.b32.xlu0 %v9323, 80
  %v10931 = vpop.permute.xlu0 %10930
  %10932 = vrot.lane.b32.xlu0 %v9327, 80
  %v10933 = vpop.permute.xlu0 %10932
  %10934 = vrot.lane.b32.xlu0 %v9331, 80
  %v10935 = vpop.permute.xlu0 %10934
  %10936 = vrot.lane.b32.xlu0 %v9335, 80
  %v10937 = vpop.permute.xlu0 %10936
  %10938 = vrot.lane.b32.xlu0 %v9339, 80
  %v10939 = vpop.permute.xlu0 %10938
  %v10974 = vrot.slane %v9271, 1
  %v10975 = vrot.slane %v9272, 1
  %v10976 = vsel %vm6174, %v10974, %v10975
  %v10977 = vrot.slane %v9339, 1
  %v10978 = vrot.slane %v9340, 1
  %v10979 = vsel %vm6174, %v10977, %v10978
  %10980 = vrot.lane.b32.xlu0 %v10489, 112
  %v10981 = vpop.permute.xlu0 %10980
  %10982 = vrot.lane.b32.xlu0 %v10492, 112
  %v10983 = vpop.permute.xlu0 %10982
  %10984 = vrot.lane.b32.xlu0 %v10495, 112
  %v10985 = vpop.permute.xlu0 %10984
  %10986 = vrot.lane.b32.xlu0 %v10498, 112
  %v10987 = vpop.permute.xlu0 %10986
  %10988 = vrot.lane.b32.xlu0 %v10501, 112
  %v10989 = vpop.permute.xlu0 %10988
  %10990 = vrot.lane.b32.xlu0 %v10504, 112
  %v10991 = vpop.permute.xlu0 %10990
  %10992 = vrot.lane.b32.xlu0 %v10507, 112
  %v10993 = vpop.permute.xlu0 %10992
  %10994 = vrot.lane.b32.xlu0 %v10510, 112
  %v10995 = vpop.permute.xlu0 %10994
  %10996 = vrot.lane.b32.xlu0 %v10513, 112
  %v10997 = vpop.permute.xlu0 %10996
  %10998 = vrot.lane.b32.xlu0 %v10516, 112
  %v10999 = vpop.permute.xlu0 %10998
  %11000 = vrot.lane.b32.xlu0 %v10519, 112
  %v11001 = vpop.permute.xlu0 %11000
  %11002 = vrot.lane.b32.xlu0 %v10522, 112
  %v11003 = vpop.permute.xlu0 %11002
  %11004 = vrot.lane.b32.xlu0 %v10525, 112
  %v11005 = vpop.permute.xlu0 %11004
  %11006 = vrot.lane.b32.xlu0 %v10528, 112
  %v11007 = vpop.permute.xlu0 %11006
  %11008 = vrot.lane.b32.xlu0 %v10531, 112
  %v11009 = vpop.permute.xlu0 %11008
  %11010 = vrot.lane.b32.xlu0 %v10976, 112
  %v11011 = vpop.permute.xlu0 %11010
  %11012 = vrot.lane.b32.xlu0 %v10537, 112
  %v11013 = vpop.permute.xlu0 %11012
  %11014 = vrot.lane.b32.xlu0 %v10540, 112
  %v11015 = vpop.permute.xlu0 %11014
  %11016 = vrot.lane.b32.xlu0 %v10543, 112
  %v11017 = vpop.permute.xlu0 %11016
  %11018 = vrot.lane.b32.xlu0 %v10546, 112
  %v11019 = vpop.permute.xlu0 %11018
  %11020 = vrot.lane.b32.xlu0 %v10549, 112
  %v11021 = vpop.permute.xlu0 %11020
  %11022 = vrot.lane.b32.xlu0 %v10552, 112
  %v11023 = vpop.permute.xlu0 %11022
  %11024 = vrot.lane.b32.xlu0 %v10555, 112
  %v11025 = vpop.permute.xlu0 %11024
  %11026 = vrot.lane.b32.xlu0 %v10558, 112
  %v11027 = vpop.permute.xlu0 %11026
  %11028 = vrot.lane.b32.xlu0 %v10561, 112
  %v11029 = vpop.permute.xlu0 %11028
  %11030 = vrot.lane.b32.xlu0 %v10564, 112
  %v11031 = vpop.permute.xlu0 %11030
  %11032 = vrot.lane.b32.xlu0 %v10567, 112
  %v11033 = vpop.permute.xlu0 %11032
  %11034 = vrot.lane.b32.xlu0 %v10570, 112
  %v11035 = vpop.permute.xlu0 %11034
  %11036 = vrot.lane.b32.xlu0 %v10573, 112
  %v11037 = vpop.permute.xlu0 %11036
  %11038 = vrot.lane.b32.xlu0 %v10576, 112
  %v11039 = vpop.permute.xlu0 %11038
  %11040 = vrot.lane.b32.xlu0 %v10579, 112
  %v11041 = vpop.permute.xlu0 %11040
  %11042 = vrot.lane.b32.xlu0 %v10979, 112
  %v11043 = vpop.permute.xlu0 %11042
  %vm11076 = vcmask 130048
  %v11077 = vsel %vm11076, %v10037, %v10261
  %v11078 = vsel %vm11076, %v10039, %v10263
  %v11079 = vsel %vm11076, %v10041, %v10265
  %v11080 = vsel %vm11076, %v10043, %v10267
  %v11081 = vsel %vm11076, %v10045, %v10269
  %v11082 = vsel %vm11076, %v10047, %v10271
  %v11083 = vsel %vm11076, %v10049, %v10273
  %v11084 = vsel %vm11076, %v10051, %v10275
  %v11085 = vsel %vm11076, %v10053, %v10277
  %v11086 = vsel %vm11076, %v10055, %v10279
  %v11087 = vsel %vm11076, %v10057, %v10281
  %v11088 = vsel %vm11076, %v10059, %v10283
  %v11089 = vsel %vm11076, %v10061, %v10285
  %v11090 = vsel %vm11076, %v10063, %v10287
  %v11091 = vsel %vm11076, %v10065, %v10289
  %v11092 = vsel %vm11076, %v10067, %v10291
  %v11093 = vsel %vm11076, %v10069, %v10293
  %v11094 = vsel %vm11076, %v10071, %v10295
  %v11095 = vsel %vm11076, %v10073, %v10297
  %v11096 = vsel %vm11076, %v10075, %v10299
  %v11097 = vsel %vm11076, %v10077, %v10301
  %v11098 = vsel %vm11076, %v10079, %v10303
  %v11099 = vsel %vm11076, %v10081, %v10305
  %v11100 = vsel %vm11076, %v10083, %v10307
  %v11101 = vsel %vm11076, %v10085, %v10309
  %v11102 = vsel %vm11076, %v10087, %v10311
  %v11103 = vsel %vm11076, %v10089, %v10313
  %v11104 = vsel %vm11076, %v10091, %v10315
  %v11105 = vsel %vm11076, %v10093, %v10317
  %v11106 = vsel %vm11076, %v10095, %v10319
  %v11107 = vsel %vm11076, %v10097, %v10321
  %v11108 = vsel %vm11076, %v10099, %v10323
  %v11109 = vsel %vm21, %v11077, %v10357
  %v11110 = vsel %vm21, %v11078, %v10359
  %v11111 = vsel %vm21, %v11079, %v10361
  %v11112 = vsel %vm21, %v11080, %v10363
  %v11113 = vsel %vm21, %v11081, %v10365
  %v11114 = vsel %vm21, %v11082, %v10367
  %v11115 = vsel %vm21, %v11083, %v10369
  %v11116 = vsel %vm21, %v11084, %v10371
  %v11117 = vsel %vm21, %v11085, %v10373
  %v11118 = vsel %vm21, %v11086, %v10375
  %v11119 = vsel %vm21, %v11087, %v10377
  %v11120 = vsel %vm21, %v11088, %v10379
  %v11121 = vsel %vm21, %v11089, %v10381
  %v11122 = vsel %vm21, %v11090, %v10383
  %v11123 = vsel %vm21, %v11091, %v10385
  %v11124 = vsel %vm21, %v11092, %v10387
  %v11125 = vsel %vm21, %v11093, %v10389
  %v11126 = vsel %vm21, %v11094, %v10391
  %v11127 = vsel %vm21, %v11095, %v10393
  %v11128 = vsel %vm21, %v11096, %v10395
  %v11129 = vsel %vm21, %v11097, %v10397
  %v11130 = vsel %vm21, %v11098, %v10399
  %v11131 = vsel %vm21, %v11099, %v10401
  %v11132 = vsel %vm21, %v11100, %v10403
  %v11133 = vsel %vm21, %v11101, %v10405
  %v11134 = vsel %vm21, %v11102, %v10407
  %v11135 = vsel %vm21, %v11103, %v10409
  %v11136 = vsel %vm21, %v11104, %v10411
  %v11137 = vsel %vm21, %v11105, %v10413
  %v11138 = vsel %vm21, %v11106, %v10415
  %v11139 = vsel %vm21, %v11107, %v10417
  %v11140 = vsel %vm21, %v11108, %v10419
  %v11141 = vsel %vm1380, %v11109, %v10581
  %v11142 = vsel %vm1380, %v11110, %v10583
  %v11143 = vsel %vm1380, %v11111, %v10585
  %v11144 = vsel %vm1380, %v11112, %v10587
  %v11145 = vsel %vm1380, %v11113, %v10589
  %v11146 = vsel %vm1380, %v11114, %v10591
  %v11147 = vsel %vm1380, %v11115, %v10593
  %v11148 = vsel %vm1380, %v11116, %v10595
  %v11149 = vsel %vm1380, %v11117, %v10597
  %v11150 = vsel %vm1380, %v11118, %v10599
  %v11151 = vsel %vm1380, %v11119, %v10601
  %v11152 = vsel %vm1380, %v11120, %v10603
  %v11153 = vsel %vm1380, %v11121, %v10605
  %v11154 = vsel %vm1380, %v11122, %v10607
  %v11155 = vsel %vm1380, %v11123, %v10609
  %v11156 = vsel %vm1380, %v11124, %v10611
  %v11157 = vsel %vm1380, %v11125, %v10613
  %v11158 = vsel %vm1380, %v11126, %v10615
  %v11159 = vsel %vm1380, %v11127, %v10617
  %v11160 = vsel %vm1380, %v11128, %v10619
  %v11161 = vsel %vm1380, %v11129, %v10621
  %v11162 = vsel %vm1380, %v11130, %v10623
  %v11163 = vsel %vm1380, %v11131, %v10625
  %v11164 = vsel %vm1380, %v11132, %v10627
  %v11165 = vsel %vm1380, %v11133, %v10629
  %v11166 = vsel %vm1380, %v11134, %v10631
  %v11167 = vsel %vm1380, %v11135, %v10633
  %v11168 = vsel %vm1380, %v11136, %v10635
  %v11169 = vsel %vm1380, %v11137, %v10637
  %v11170 = vsel %vm1380, %v11138, %v10639
  %v11171 = vsel %vm1380, %v11139, %v10641
  %v11172 = vsel %vm1380, %v11140, %v10643
  %v11173 = vsel %vm9727, %v11141, %v10677
  %v11174 = vsel %vm9727, %v11142, %v10679
  %v11175 = vsel %vm9727, %v11143, %v10681
  %v11176 = vsel %vm9727, %v11144, %v10683
  %v11177 = vsel %vm9727, %v11145, %v10685
  %v11178 = vsel %vm9727, %v11146, %v10687
  %v11179 = vsel %vm9727, %v11147, %v10689
  %v11180 = vsel %vm9727, %v11148, %v10691
  %v11181 = vsel %vm9727, %v11149, %v10693
  %v11182 = vsel %vm9727, %v11150, %v10695
  %v11183 = vsel %vm9727, %v11151, %v10697
  %v11184 = vsel %vm9727, %v11152, %v10699
  %v11185 = vsel %vm9727, %v11153, %v10701
  %v11186 = vsel %vm9727, %v11154, %v10703
  %v11187 = vsel %vm9727, %v11155, %v10705
  %v11188 = vsel %vm9727, %v11156, %v10707
  %v11189 = vsel %vm9727, %v11157, %v10709
  %v11190 = vsel %vm9727, %v11158, %v10711
  %v11191 = vsel %vm9727, %v11159, %v10713
  %v11192 = vsel %vm9727, %v11160, %v10715
  %v11193 = vsel %vm9727, %v11161, %v10717
  %v11194 = vsel %vm9727, %v11162, %v10719
  %v11195 = vsel %vm9727, %v11163, %v10721
  %v11196 = vsel %vm9727, %v11164, %v10723
  %v11197 = vsel %vm9727, %v11165, %v10725
  %v11198 = vsel %vm9727, %v11166, %v10727
  %v11199 = vsel %vm9727, %v11167, %v10729
  %v11200 = vsel %vm9727, %v11168, %v10731
  %v11201 = vsel %vm9727, %v11169, %v10733
  %v11202 = vsel %vm9727, %v11170, %v10735
  %v11203 = vsel %vm9727, %v11171, %v10737
  %v11204 = vsel %vm9727, %v11172, %v10739
  %vm11205 = vcmask 654336
  %v11206 = vsel %vm11205, %v11173, %v10781
  %v11207 = vsel %vm11205, %v11174, %v10783
  %v11208 = vsel %vm11205, %v11175, %v10785
  %v11209 = vsel %vm11205, %v11176, %v10787
  %v11210 = vsel %vm11205, %v11177, %v10789
  %v11211 = vsel %vm11205, %v11178, %v10791
  %v11212 = vsel %vm11205, %v11179, %v10793
  %v11213 = vsel %vm11205, %v11180, %v10795
  %v11214 = vsel %vm11205, %v11181, %v10797
  %v11215 = vsel %vm11205, %v11182, %v10799
  %v11216 = vsel %vm11205, %v11183, %v10801
  %v11217 = vsel %vm11205, %v11184, %v10803
  %v11218 = vsel %vm11205, %v11185, %v10805
  %v11219 = vsel %vm11205, %v11186, %v10807
  %v11220 = vsel %vm11205, %v11187, %v10809
  %v11221 = vsel %vm11205, %v11188, %v10811
  %v11222 = vsel %vm11205, %v11189, %v10813
  %v11223 = vsel %vm11205, %v11190, %v10815
  %v11224 = vsel %vm11205, %v11191, %v10817
  %v11225 = vsel %vm11205, %v11192, %v10819
  %v11226 = vsel %vm11205, %v11193, %v10821
  %v11227 = vsel %vm11205, %v11194, %v10823
  %v11228 = vsel %vm11205, %v11195, %v10825
  %v11229 = vsel %vm11205, %v11196, %v10827
  %v11230 = vsel %vm11205, %v11197, %v10829
  %v11231 = vsel %vm11205, %v11198, %v10831
  %v11232 = vsel %vm11205, %v11199, %v10833
  %v11233 = vsel %vm11205, %v11200, %v10835
  %v11234 = vsel %vm11205, %v11201, %v10837
  %v11235 = vsel %vm11205, %v11202, %v10839
  %v11236 = vsel %vm11205, %v11203, %v10841
  %v11237 = vsel %vm11205, %v11204, %v10843
  %v11238 = vsel %vm9760, %v11206, %v10877
  %v11239 = vsel %vm9760, %v11207, %v10879
  %v11240 = vsel %vm9760, %v11208, %v10881
  %v11241 = vsel %vm9760, %v11209, %v10883
  %v11242 = vsel %vm9760, %v11210, %v10885
  %v11243 = vsel %vm9760, %v11211, %v10887
  %v11244 = vsel %vm9760, %v11212, %v10889
  %v11245 = vsel %vm9760, %v11213, %v10891
  %v11246 = vsel %vm9760, %v11214, %v10893
  %v11247 = vsel %vm9760, %v11215, %v10895
  %v11248 = vsel %vm9760, %v11216, %v10897
  %v11249 = vsel %vm9760, %v11217, %v10899
  %v11250 = vsel %vm9760, %v11218, %v10901
  %v11251 = vsel %vm9760, %v11219, %v10903
  %v11252 = vsel %vm9760, %v11220, %v10905
  %v11253 = vsel %vm9760, %v11221, %v10907
  %v11254 = vsel %vm9760, %v11222, %v10909
  %v11255 = vsel %vm9760, %v11223, %v10911
  %v11256 = vsel %vm9760, %v11224, %v10913
  %v11257 = vsel %vm9760, %v11225, %v10915
  %v11258 = vsel %vm9760, %v11226, %v10917
  %v11259 = vsel %vm9760, %v11227, %v10919
  %v11260 = vsel %vm9760, %v11228, %v10921
  %v11261 = vsel %vm9760, %v11229, %v10923
  %v11262 = vsel %vm9760, %v11230, %v10925
  %v11263 = vsel %vm9760, %v11231, %v10927
  %v11264 = vsel %vm9760, %v11232, %v10929
  %v11265 = vsel %vm9760, %v11233, %v10931
  %v11266 = vsel %vm9760, %v11234, %v10933
  %v11267 = vsel %vm9760, %v11235, %v10935
  %v11268 = vsel %vm9760, %v11236, %v10937
  %v11269 = vsel %vm9760, %v11237, %v10939
  %vm11270 = vcmask 916480
  %v11271 = vsel %vm11270, %v11238, %v10981
  %v11272 = vsel %vm11270, %v11239, %v10983
  %v11273 = vsel %vm11270, %v11240, %v10985
  %v11274 = vsel %vm11270, %v11241, %v10987
  %v11275 = vsel %vm11270, %v11242, %v10989
  %v11276 = vsel %vm11270, %v11243, %v10991
  %v11277 = vsel %vm11270, %v11244, %v10993
  %v11278 = vsel %vm11270, %v11245, %v10995
  %v11279 = vsel %vm11270, %v11246, %v10997
  %v11280 = vsel %vm11270, %v11247, %v10999
  %v11281 = vsel %vm11270, %v11248, %v11001
  %v11282 = vsel %vm11270, %v11249, %v11003
  %v11283 = vsel %vm11270, %v11250, %v11005
  %v11284 = vsel %vm11270, %v11251, %v11007
  %v11285 = vsel %vm11270, %v11252, %v11009
  %v11286 = vsel %vm11270, %v11253, %v11011
  %v11287 = vsel %vm11270, %v11254, %v11013
  %v11288 = vsel %vm11270, %v11255, %v11015
  %v11289 = vsel %vm11270, %v11256, %v11017
  %v11290 = vsel %vm11270, %v11257, %v11019
  %v11291 = vsel %vm11270, %v11258, %v11021
  %v11292 = vsel %vm11270, %v11259, %v11023
  %v11293 = vsel %vm11270, %v11260, %v11025
  %v11294 = vsel %vm11270, %v11261, %v11027
  %v11295 = vsel %vm11270, %v11262, %v11029
  %v11296 = vsel %vm11270, %v11263, %v11031
  %v11297 = vsel %vm11270, %v11264, %v11033
  %v11298 = vsel %vm11270, %v11265, %v11035
  %v11299 = vsel %vm11270, %v11266, %v11037
  %v11300 = vsel %vm11270, %v11267, %v11039
  %v11301 = vsel %vm11270, %v11268, %v11041
  %v11302 = vsel %vm11270, %v11269, %v11043
  %v11303 = vpack.c.bf16 %v11272, %v11271
  %v11304 = vpack.c.bf16 %v11274, %v11273
  %v11305 = vpack.c.bf16 %v11276, %v11275
  %v11306 = vpack.c.bf16 %v11278, %v11277
  %v11307 = vpack.c.bf16 %v11280, %v11279
  %v11308 = vpack.c.bf16 %v11282, %v11281
  %v11309 = vpack.c.bf16 %v11284, %v11283
  %v11310 = vpack.c.bf16 %v11286, %v11285
  %v11311 = vpack.c.bf16 %v11288, %v11287
  %v11312 = vpack.c.bf16 %v11290, %v11289
  %v11313 = vpack.c.bf16 %v11292, %v11291
  %v11314 = vpack.c.bf16 %v11294, %v11293
  %v11315 = vpack.c.bf16 %v11296, %v11295
  %v11316 = vpack.c.bf16 %v11298, %v11297
  %v11317 = vpack.c.bf16 %v11300, %v11299
  %v11318 = vpack.c.bf16 %v11302, %v11301
  %11319 = vmatprep.subr.bf16.mxu0 0
  %11320 = vmatpush1.bf16.msra.mxu0 %v9864
  %11321 = vmatprep.subr.bf16.mxu0 0
  %11322 = vmatpush1.bf16.msra.mxu0 %v9863
  %11323 = vmatprep.subr.bf16.mxu0 0
  %11324 = vmatpush1.bf16.msra.mxu0 %v9862
  %11325 = vmatprep.subr.bf16.mxu0 0
  %11326 = vmatpush1.bf16.msra.mxu0 %v9861
  %11327 = vmatprep.subr.bf16.mxu0 0
  %11328 = vmatpush1.bf16.msra.mxu0 %v9860
  %11329 = vmatprep.subr.bf16.mxu0 0
  %11330 = vmatpush1.bf16.msra.mxu0 %v9859
  %11331 = vmatprep.subr.bf16.mxu0 0
  %11332 = vmatpush1.bf16.msra.mxu0 %v9858
  %11333 = vmatprep.subr.bf16.mxu0 0
  %11334 = vmatpush1.bf16.msra.mxu0 %v9857
  %11335 = vmatprep.subr.bf16.mxu0 0
  %11336 = vmatpush2.bf16.msra.mxu0 0
  %11337 = vmatprep.subr.bf16.mxu0 0
  %11338 = vmatpush2.bf16.msra.mxu0 0
  %11339 = vmatprep.subr.bf16.mxu0 0
  %11340 = vmatpush2.bf16.msra.mxu0 0
  %11341 = vmatprep.subr.bf16.mxu0 0
  %11342 = vmatpush2.bf16.msra.mxu0 0
  %11343 = vmatprep.subr.bf16.mxu0 0
  %11344 = vmatpush2.bf16.msra.mxu0 0
  %11345 = vmatprep.subr.bf16.mxu0 0
  %11346 = vmatpush2.bf16.msra.mxu0 0
  %11347 = vmatprep.subr.bf16.mxu0 0
  %11348 = vmatpush2.bf16.msra.mxu0 0
  %11349 = vmatprep.subr.bf16.mxu0 0
  %11350 = vmatpush2.bf16.msra.mxu0 0
  %11351 = vmatprep.mubr.bf16.mxu0 0
  %11352 = vmatmul.mubr.bf16.gmra.mxu0 %v11303
  %v11353 = vpop.f32.mrf.mxu0
  %v11354 = vadd.f32 0.0, %v11353
  %v11355 = vpop.f32.mrf.mxu0
  %v11356 = vpop.f32.mrf.mxu0
  %v11357 = vadd.f32 0.0, %v11356
  %v11358 = vpop.f32.mrf.mxu0
  %11359 = vmatprep.mubr.bf16.mxu0 0
  %11360 = vmatmul.mubr.bf16.gmra.mxu0 %v11304
  %v11361 = vpop.f32.mrf.mxu0
  %v11362 = vadd.f32 0.0, %v11361
  %v11363 = vpop.f32.mrf.mxu0
  %v11364 = vpop.f32.mrf.mxu0
  %v11365 = vadd.f32 0.0, %v11364
  %v11366 = vpop.f32.mrf.mxu0
  %11367 = vmatprep.mubr.bf16.mxu0 0
  %11368 = vmatmul.mubr.bf16.gmra.mxu0 %v11305
  %v11369 = vpop.f32.mrf.mxu0
  %v11370 = vadd.f32 0.0, %v11369
  %v11371 = vpop.f32.mrf.mxu0
  %v11372 = vpop.f32.mrf.mxu0
  %v11373 = vadd.f32 0.0, %v11372
  %v11374 = vpop.f32.mrf.mxu0
  %11375 = vmatprep.mubr.bf16.mxu0 0
  %11376 = vmatmul.mubr.bf16.gmra.mxu0 %v11306
  %v11377 = vpop.f32.mrf.mxu0
  %v11378 = vadd.f32 0.0, %v11377
  %v11379 = vpop.f32.mrf.mxu0
  %v11380 = vpop.f32.mrf.mxu0
  %v11381 = vadd.f32 0.0, %v11380
  %v11382 = vpop.f32.mrf.mxu0
  %11383 = vmatprep.mubr.bf16.mxu0 0
  %11384 = vmatmul.mubr.bf16.gmra.mxu0 %v11307
  %v11385 = vpop.f32.mrf.mxu0
  %v11386 = vadd.f32 0.0, %v11385
  %v11387 = vpop.f32.mrf.mxu0
  %v11388 = vpop.f32.mrf.mxu0
  %v11389 = vadd.f32 0.0, %v11388
  %v11390 = vpop.f32.mrf.mxu0
  %11391 = vmatprep.mubr.bf16.mxu0 0
  %11392 = vmatmul.mubr.bf16.gmra.mxu0 %v11308
  %v11393 = vpop.f32.mrf.mxu0
  %v11394 = vadd.f32 0.0, %v11393
  %v11395 = vpop.f32.mrf.mxu0
  %v11396 = vpop.f32.mrf.mxu0
  %v11397 = vadd.f32 0.0, %v11396
  %v11398 = vpop.f32.mrf.mxu0
  %11399 = vmatprep.mubr.bf16.mxu0 0
  %11400 = vmatmul.mubr.bf16.gmra.mxu0 %v11309
  %v11401 = vpop.f32.mrf.mxu0
  %v11402 = vadd.f32 0.0, %v11401
  %v11403 = vpop.f32.mrf.mxu0
  %v11404 = vpop.f32.mrf.mxu0
  %v11405 = vadd.f32 0.0, %v11404
  %v11406 = vpop.f32.mrf.mxu0
  %11407 = vmatprep.mubr.bf16.mxu0 0
  %11408 = vmatmul.mubr.bf16.gmra.mxu0 %v11310
  %v11409 = vpop.f32.mrf.mxu0
  %v11410 = vadd.f32 0.0, %v11409
  %v11411 = vpop.f32.mrf.mxu0
  %v11412 = vpop.f32.mrf.mxu0
  %v11413 = vadd.f32 0.0, %v11412
  %v11414 = vpop.f32.mrf.mxu0
  %11415 = vmatprep.mubr.bf16.mxu0 0
  %11416 = vmatmul.mubr.bf16.gmra.mxu0 %v11311
  %v11417 = vpop.f32.mrf.mxu0
  %v11418 = vadd.f32 0.0, %v11417
  %v11419 = vpop.f32.mrf.mxu0
  %v11420 = vpop.f32.mrf.mxu0
  %v11421 = vadd.f32 0.0, %v11420
  %v11422 = vpop.f32.mrf.mxu0
  %11423 = vmatprep.mubr.bf16.mxu0 0
  %11424 = vmatmul.mubr.bf16.gmra.mxu0 %v11312
  %v11425 = vpop.f32.mrf.mxu0
  %v11426 = vadd.f32 0.0, %v11425
  %v11427 = vpop.f32.mrf.mxu0
  %v11428 = vpop.f32.mrf.mxu0
  %v11429 = vadd.f32 0.0, %v11428
  %v11430 = vpop.f32.mrf.mxu0
  %11431 = vmatprep.mubr.bf16.mxu0 0
  %11432 = vmatmul.mubr.bf16.gmra.mxu0 %v11313
  %v11433 = vpop.f32.mrf.mxu0
  %v11434 = vadd.f32 0.0, %v11433
  %v11435 = vpop.f32.mrf.mxu0
  %v11436 = vpop.f32.mrf.mxu0
  %v11437 = vadd.f32 0.0, %v11436
  %v11438 = vpop.f32.mrf.mxu0
  %11439 = vmatprep.mubr.bf16.mxu0 0
  %11440 = vmatmul.mubr.bf16.gmra.mxu0 %v11314
  %v11441 = vpop.f32.mrf.mxu0
  %v11442 = vadd.f32 0.0, %v11441
  %v11443 = vpop.f32.mrf.mxu0
  %v11444 = vpop.f32.mrf.mxu0
  %v11445 = vadd.f32 0.0, %v11444
  %v11446 = vpop.f32.mrf.mxu0
  %11447 = vmatprep.mubr.bf16.mxu0 0
  %11448 = vmatmul.mubr.bf16.gmra.mxu0 %v11315
  %v11449 = vpop.f32.mrf.mxu0
  %v11450 = vadd.f32 0.0, %v11449
  %v11451 = vpop.f32.mrf.mxu0
  %v11452 = vpop.f32.mrf.mxu0
  %v11453 = vadd.f32 0.0, %v11452
  %v11454 = vpop.f32.mrf.mxu0
  %11455 = vmatprep.mubr.bf16.mxu0 0
  %11456 = vmatmul.mubr.bf16.gmra.mxu0 %v11316
  %v11457 = vpop.f32.mrf.mxu0
  %v11458 = vadd.f32 0.0, %v11457
  %v11459 = vpop.f32.mrf.mxu0
  %v11460 = vpop.f32.mrf.mxu0
  %v11461 = vadd.f32 0.0, %v11460
  %v11462 = vpop.f32.mrf.mxu0
  %11463 = vmatprep.mubr.bf16.mxu0 0
  %11464 = vmatmul.mubr.bf16.gmra.mxu0 %v11317
  %v11465 = vpop.f32.mrf.mxu0
  %v11466 = vadd.f32 0.0, %v11465
  %v11467 = vpop.f32.mrf.mxu0
  %v11468 = vpop.f32.mrf.mxu0
  %v11469 = vadd.f32 0.0, %v11468
  %v11470 = vpop.f32.mrf.mxu0
  %11471 = vmatprep.mubr.bf16.mxu0 0
  %11472 = vmatmul.mubr.bf16.gmra.mxu0 %v11318
  %v11473 = vpop.f32.mrf.mxu0
  %v11474 = vadd.f32 0.0, %v11473
  %v11475 = vpop.f32.mrf.mxu0
  %v11476 = vpop.f32.mrf.mxu0
  %v11477 = vadd.f32 0.0, %v11476
  %v11478 = vpop.f32.mrf.mxu0
  %11479 = vdwg.mxu0
  %v11480 = vsel %vm11076, %v9908, 0.0
  %v11481 = vsel %vm11076, %v9911, 0.0
  %v11482 = vadd.f32 %v11480, %v11481
  %v11483 = vsel %vm11076, %v9916, 0.0
  %v11484 = vadd.f32 %v11482, %v11483
  %v11485 = vsel %vm11076, %v9919, 0.0
  %v11486 = vadd.f32 %v11484, %v11485
  %v11487 = vsel %vm11076, %v9924, 0.0
  %v11488 = vadd.f32 %v11486, %v11487
  %v11489 = vsel %vm11076, %v9927, 0.0
  %v11490 = vadd.f32 %v11488, %v11489
  %v11491 = vsel %vm11076, %v9932, 0.0
  %v11492 = vadd.f32 %v11490, %v11491
  %v11493 = vsel %vm11076, %v9935, 0.0
  %v11494 = vadd.f32 %v11492, %v11493
  %v11495 = vsel %vm11076, %v9940, 0.0
  %v11496 = vadd.f32 %v11494, %v11495
  %v11497 = vsel %vm11076, %v9943, 0.0
  %v11498 = vadd.f32 %v11496, %v11497
  %v11499 = vsel %vm11076, %v9948, 0.0
  %v11500 = vadd.f32 %v11498, %v11499
  %v11501 = vsel %vm11076, %v9951, 0.0
  %v11502 = vadd.f32 %v11500, %v11501
  %v11503 = vsel %vm11076, %v9956, 0.0
  %v11504 = vadd.f32 %v11502, %v11503
  %v11505 = vsel %vm11076, %v9959, 0.0
  %v11506 = vadd.f32 %v11504, %v11505
  %v11507 = vsel %vm11076, %v9964, 0.0
  %v11508 = vadd.f32 %v11506, %v11507
  %v11509 = vsel %vm11076, %v9967, 0.0
  %v11510 = vadd.f32 %v11508, %v11509
  %v11511 = vsel %vm11076, %v9972, 0.0
  %v11512 = vadd.f32 %v11510, %v11511
  %v11513 = vsel %vm11076, %v9975, 0.0
  %v11514 = vadd.f32 %v11512, %v11513
  %v11515 = vsel %vm11076, %v9980, 0.0
  %v11516 = vadd.f32 %v11514, %v11515
  %v11517 = vsel %vm11076, %v9983, 0.0
  %v11518 = vadd.f32 %v11516, %v11517
  %v11519 = vsel %vm11076, %v9988, 0.0
  %v11520 = vadd.f32 %v11518, %v11519
  %v11521 = vsel %vm11076, %v9991, 0.0
  %v11522 = vadd.f32 %v11520, %v11521
  %v11523 = vsel %vm11076, %v9996, 0.0
  %v11524 = vadd.f32 %v11522, %v11523
  %v11525 = vsel %vm11076, %v9999, 0.0
  %v11526 = vadd.f32 %v11524, %v11525
  %v11527 = vsel %vm11076, %v10004, 0.0
  %v11528 = vadd.f32 %v11526, %v11527
  %v11529 = vsel %vm11076, %v10007, 0.0
  %v11530 = vadd.f32 %v11528, %v11529
  %v11531 = vsel %vm11076, %v10012, 0.0
  %v11532 = vadd.f32 %v11530, %v11531
  %v11533 = vsel %vm11076, %v10015, 0.0
  %v11534 = vadd.f32 %v11532, %v11533
  %v11535 = vsel %vm11076, %v10020, 0.0
  %v11536 = vadd.f32 %v11534, %v11535
  %v11537 = vsel %vm11076, %v10023, 0.0
  %v11538 = vadd.f32 %v11536, %v11537
  %v11539 = vsel %vm11076, %v10028, 0.0
  %v11540 = vadd.f32 %v11538, %v11539
  %v11541 = vsel %vm11076, %v10031, 0.0
  %v11542 = vadd.f32 %v11540, %v11541
  %v11543 = vsel %vm11076, %v11354, 0.0
  %v11544 = vadd.f32 %v11542, %v11543
  %v11545 = vsel %vm11076, %v11357, 0.0
  %v11546 = vadd.f32 %v11544, %v11545
  %v11547 = vsel %vm11076, %v11362, 0.0
  %v11548 = vadd.f32 %v11546, %v11547
  %v11549 = vsel %vm11076, %v11365, 0.0
  %v11550 = vadd.f32 %v11548, %v11549
  %v11551 = vsel %vm11076, %v11370, 0.0
  %v11552 = vadd.f32 %v11550, %v11551
  %v11553 = vsel %vm11076, %v11373, 0.0
  %v11554 = vadd.f32 %v11552, %v11553
  %v11555 = vsel %vm11076, %v11378, 0.0
  %v11556 = vadd.f32 %v11554, %v11555
  %v11557 = vsel %vm11076, %v11381, 0.0
  %v11558 = vadd.f32 %v11556, %v11557
  %v11559 = vsel %vm11076, %v11386, 0.0
  %v11560 = vadd.f32 %v11558, %v11559
  %v11561 = vsel %vm11076, %v11389, 0.0
  %v11562 = vadd.f32 %v11560, %v11561
  %v11563 = vsel %vm11076, %v11394, 0.0
  %v11564 = vadd.f32 %v11562, %v11563
  %v11565 = vsel %vm11076, %v11397, 0.0
  %v11566 = vadd.f32 %v11564, %v11565
  %v11567 = vsel %vm11076, %v11402, 0.0
  %v11568 = vadd.f32 %v11566, %v11567
  %v11569 = vsel %vm11076, %v11405, 0.0
  %v11570 = vadd.f32 %v11568, %v11569
  %v11571 = vsel %vm11076, %v11410, 0.0
  %v11572 = vadd.f32 %v11570, %v11571
  %v11573 = vsel %vm11076, %v11413, 0.0
  %v11574 = vadd.f32 %v11572, %v11573
  %v11575 = vsel %vm11076, %v11418, 0.0
  %v11576 = vadd.f32 %v11574, %v11575
  %v11577 = vsel %vm11076, %v11421, 0.0
  %v11578 = vadd.f32 %v11576, %v11577
  %v11579 = vsel %vm11076, %v11426, 0.0
  %v11580 = vadd.f32 %v11578, %v11579
  %v11581 = vsel %vm11076, %v11429, 0.0
  %v11582 = vadd.f32 %v11580, %v11581
  %v11583 = vsel %vm11076, %v11434, 0.0
  %v11584 = vadd.f32 %v11582, %v11583
  %v11585 = vsel %vm11076, %v11437, 0.0
  %v11586 = vadd.f32 %v11584, %v11585
  %v11587 = vsel %vm11076, %v11442, 0.0
  %v11588 = vadd.f32 %v11586, %v11587
  %v11589 = vsel %vm11076, %v11445, 0.0
  %v11590 = vadd.f32 %v11588, %v11589
  %v11591 = vsel %vm11076, %v11450, 0.0
  %v11592 = vadd.f32 %v11590, %v11591
  %v11593 = vsel %vm11076, %v11453, 0.0
  %v11594 = vadd.f32 %v11592, %v11593
  %v11595 = vsel %vm11076, %v11458, 0.0
  %v11596 = vadd.f32 %v11594, %v11595
  %v11597 = vsel %vm11076, %v11461, 0.0
  %v11598 = vadd.f32 %v11596, %v11597
  %v11599 = vsel %vm11076, %v11466, 0.0
  %v11600 = vadd.f32 %v11598, %v11599
  %v11601 = vsel %vm11076, %v11469, 0.0
  %v11602 = vadd.f32 %v11600, %v11601
  %v11603 = vsel %vm11076, %v11474, 0.0
  %v11604 = vadd.f32 %v11602, %v11603
  %v11605 = vsel %vm11076, %v11477, 0.0
  %v11606 = vadd.f32 %v11604, %v11605
  %v11607 = vrot.slane %v11606, 4
  %v11608 = vadd.f32 %v11606, %v11607
  %v11609 = vrot.slane %v11608, 2
  %v11610 = vadd.f32 %v11608, %v11609
  %v11611 = vrot.slane %v11610, 1
  %v11612 = vadd.f32 %v11610, %v11611
  %v11613 = vrcp.pop 512.0
  %v11614 = vmul.f32 %v11612, %v11613
  %v11615 = vsub.f32 %v9908, %v11614
  %v11616 = vsub.f32 %v9911, %v11614
  %v11617 = vsub.f32 %v9916, %v11614
  %v11618 = vsub.f32 %v9919, %v11614
  %v11619 = vsub.f32 %v9924, %v11614
  %v11620 = vsub.f32 %v9927, %v11614
  %v11621 = vsub.f32 %v9932, %v11614
  %v11622 = vsub.f32 %v9935, %v11614
  %v11623 = vsub.f32 %v9940, %v11614
  %v11624 = vsub.f32 %v9943, %v11614
  %v11625 = vsub.f32 %v9948, %v11614
  %v11626 = vsub.f32 %v9951, %v11614
  %v11627 = vsub.f32 %v9956, %v11614
  %v11628 = vsub.f32 %v9959, %v11614
  %v11629 = vsub.f32 %v9964, %v11614
  %v11630 = vsub.f32 %v9967, %v11614
  %v11631 = vsub.f32 %v9972, %v11614
  %v11632 = vsub.f32 %v9975, %v11614
  %v11633 = vsub.f32 %v9980, %v11614
  %v11634 = vsub.f32 %v9983, %v11614
  %v11635 = vsub.f32 %v9988, %v11614
  %v11636 = vsub.f32 %v9991, %v11614
  %v11637 = vsub.f32 %v9996, %v11614
  %v11638 = vsub.f32 %v9999, %v11614
  %v11639 = vsub.f32 %v10004, %v11614
  %v11640 = vsub.f32 %v10007, %v11614
  %v11641 = vsub.f32 %v10012, %v11614
  %v11642 = vsub.f32 %v10015, %v11614
  %v11643 = vsub.f32 %v10020, %v11614
  %v11644 = vsub.f32 %v10023, %v11614
  %v11645 = vsub.f32 %v10028, %v11614
  %v11646 = vsub.f32 %v10031, %v11614
  %v11647 = vsub.f32 %v11354, %v11614
  %v11648 = vsub.f32 %v11357, %v11614
  %v11649 = vsub.f32 %v11362, %v11614
  %v11650 = vsub.f32 %v11365, %v11614
  %v11651 = vsub.f32 %v11370, %v11614
  %v11652 = vsub.f32 %v11373, %v11614
  %v11653 = vsub.f32 %v11378, %v11614
  %v11654 = vsub.f32 %v11381, %v11614
  %v11655 = vsub.f32 %v11386, %v11614
  %v11656 = vsub.f32 %v11389, %v11614
  %v11657 = vsub.f32 %v11394, %v11614
  %v11658 = vsub.f32 %v11397, %v11614
  %v11659 = vsub.f32 %v11402, %v11614
  %v11660 = vsub.f32 %v11405, %v11614
  %v11661 = vsub.f32 %v11410, %v11614
  %v11662 = vsub.f32 %v11413, %v11614
  %v11663 = vsub.f32 %v11418, %v11614
  %v11664 = vsub.f32 %v11421, %v11614
  %v11665 = vsub.f32 %v11426, %v11614
  %v11666 = vsub.f32 %v11429, %v11614
  %v11667 = vsub.f32 %v11434, %v11614
  %v11668 = vsub.f32 %v11437, %v11614
  %v11669 = vsub.f32 %v11442, %v11614
  %v11670 = vsub.f32 %v11445, %v11614
  %v11671 = vsub.f32 %v11450, %v11614
  %v11672 = vsub.f32 %v11453, %v11614
  %v11673 = vsub.f32 %v11458, %v11614
  %v11674 = vsub.f32 %v11461, %v11614
  %v11675 = vsub.f32 %v11466, %v11614
  %v11676 = vsub.f32 %v11469, %v11614
  %v11677 = vsub.f32 %v11474, %v11614
  %v11678 = vsub.f32 %v11477, %v11614
  %v11679 = vmul.f32 %v11615, %v11615
  %v11680 = vmul.f32 %v11616, %v11616
  %v11681 = vmul.f32 %v11617, %v11617
  %v11682 = vmul.f32 %v11618, %v11618
  %v11683 = vmul.f32 %v11619, %v11619
  %v11684 = vmul.f32 %v11620, %v11620
  %v11685 = vmul.f32 %v11621, %v11621
  %v11686 = vmul.f32 %v11622, %v11622
  %v11687 = vmul.f32 %v11623, %v11623
  %v11688 = vmul.f32 %v11624, %v11624
  %v11689 = vmul.f32 %v11625, %v11625
  %v11690 = vmul.f32 %v11626, %v11626
  %v11691 = vmul.f32 %v11627, %v11627
  %v11692 = vmul.f32 %v11628, %v11628
  %v11693 = vmul.f32 %v11629, %v11629
  %v11694 = vmul.f32 %v11630, %v11630
  %v11695 = vmul.f32 %v11631, %v11631
  %v11696 = vmul.f32 %v11632, %v11632
  %v11697 = vmul.f32 %v11633, %v11633
  %v11698 = vmul.f32 %v11634, %v11634
  %v11699 = vmul.f32 %v11635, %v11635
  %v11700 = vmul.f32 %v11636, %v11636
  %v11701 = vmul.f32 %v11637, %v11637
  %v11702 = vmul.f32 %v11638, %v11638
  %v11703 = vmul.f32 %v11639, %v11639
  %v11704 = vmul.f32 %v11640, %v11640
  %v11705 = vmul.f32 %v11641, %v11641
  %v11706 = vmul.f32 %v11642, %v11642
  %v11707 = vmul.f32 %v11643, %v11643
  %v11708 = vmul.f32 %v11644, %v11644
  %v11709 = vmul.f32 %v11645, %v11645
  %v11710 = vmul.f32 %v11646, %v11646
  %v11711 = vmul.f32 %v11647, %v11647
  %v11712 = vmul.f32 %v11648, %v11648
  %v11713 = vmul.f32 %v11649, %v11649
  %v11714 = vmul.f32 %v11650, %v11650
  %v11715 = vmul.f32 %v11651, %v11651
  %v11716 = vmul.f32 %v11652, %v11652
  %v11717 = vmul.f32 %v11653, %v11653
  %v11718 = vmul.f32 %v11654, %v11654
  %v11719 = vmul.f32 %v11655, %v11655
  %v11720 = vmul.f32 %v11656, %v11656
  %v11721 = vmul.f32 %v11657, %v11657
  %v11722 = vmul.f32 %v11658, %v11658
  %v11723 = vmul.f32 %v11659, %v11659
  %v11724 = vmul.f32 %v11660, %v11660
  %v11725 = vmul.f32 %v11661, %v11661
  %v11726 = vmul.f32 %v11662, %v11662
  %v11727 = vmul.f32 %v11663, %v11663
  %v11728 = vmul.f32 %v11664, %v11664
  %v11729 = vmul.f32 %v11665, %v11665
  %v11730 = vmul.f32 %v11666, %v11666
  %v11731 = vmul.f32 %v11667, %v11667
  %v11732 = vmul.f32 %v11668, %v11668
  %v11733 = vmul.f32 %v11669, %v11669
  %v11734 = vmul.f32 %v11670, %v11670
  %v11735 = vmul.f32 %v11671, %v11671
  %v11736 = vmul.f32 %v11672, %v11672
  %v11737 = vmul.f32 %v11673, %v11673
  %v11738 = vmul.f32 %v11674, %v11674
  %v11739 = vmul.f32 %v11675, %v11675
  %v11740 = vmul.f32 %v11676, %v11676
  %v11741 = vmul.f32 %v11677, %v11677
  %v11742 = vmul.f32 %v11678, %v11678
  %v11743 = vsel %vm11076, %v11679, 0.0
  %v11744 = vsel %vm11076, %v11680, 0.0
  %v11745 = vadd.f32 %v11743, %v11744
  %v11746 = vsel %vm11076, %v11681, 0.0
  %v11747 = vadd.f32 %v11745, %v11746
  %v11748 = vsel %vm11076, %v11682, 0.0
  %v11749 = vadd.f32 %v11747, %v11748
  %v11750 = vsel %vm11076, %v11683, 0.0
  %v11751 = vadd.f32 %v11749, %v11750
  %v11752 = vsel %vm11076, %v11684, 0.0
  %v11753 = vadd.f32 %v11751, %v11752
  %v11754 = vsel %vm11076, %v11685, 0.0
  %v11755 = vadd.f32 %v11753, %v11754
  %v11756 = vsel %vm11076, %v11686, 0.0
  %v11757 = vadd.f32 %v11755, %v11756
  %v11758 = vsel %vm11076, %v11687, 0.0
  %v11759 = vadd.f32 %v11757, %v11758
  %v11760 = vsel %vm11076, %v11688, 0.0
  %v11761 = vadd.f32 %v11759, %v11760
  %v11762 = vsel %vm11076, %v11689, 0.0
  %v11763 = vadd.f32 %v11761, %v11762
  %v11764 = vsel %vm11076, %v11690, 0.0
  %v11765 = vadd.f32 %v11763, %v11764
  %v11766 = vsel %vm11076, %v11691, 0.0
  %v11767 = vadd.f32 %v11765, %v11766
  %v11768 = vsel %vm11076, %v11692, 0.0
  %v11769 = vadd.f32 %v11767, %v11768
  %v11770 = vsel %vm11076, %v11693, 0.0
  %v11771 = vadd.f32 %v11769, %v11770
  %v11772 = vsel %vm11076, %v11694, 0.0
  %v11773 = vadd.f32 %v11771, %v11772
  %v11774 = vsel %vm11076, %v11695, 0.0
  %v11775 = vadd.f32 %v11773, %v11774
  %v11776 = vsel %vm11076, %v11696, 0.0
  %v11777 = vadd.f32 %v11775, %v11776
  %v11778 = vsel %vm11076, %v11697, 0.0
  %v11779 = vadd.f32 %v11777, %v11778
  %v11780 = vsel %vm11076, %v11698, 0.0
  %v11781 = vadd.f32 %v11779, %v11780
  %v11782 = vsel %vm11076, %v11699, 0.0
  %v11783 = vadd.f32 %v11781, %v11782
  %v11784 = vsel %vm11076, %v11700, 0.0
  %v11785 = vadd.f32 %v11783, %v11784
  %v11786 = vsel %vm11076, %v11701, 0.0
  %v11787 = vadd.f32 %v11785, %v11786
  %v11788 = vsel %vm11076, %v11702, 0.0
  %v11789 = vadd.f32 %v11787, %v11788
  %v11790 = vsel %vm11076, %v11703, 0.0
  %v11791 = vadd.f32 %v11789, %v11790
  %v11792 = vsel %vm11076, %v11704, 0.0
  %v11793 = vadd.f32 %v11791, %v11792
  %v11794 = vsel %vm11076, %v11705, 0.0
  %v11795 = vadd.f32 %v11793, %v11794
  %v11796 = vsel %vm11076, %v11706, 0.0
  %v11797 = vadd.f32 %v11795, %v11796
  %v11798 = vsel %vm11076, %v11707, 0.0
  %v11799 = vadd.f32 %v11797, %v11798
  %v11800 = vsel %vm11076, %v11708, 0.0
  %v11801 = vadd.f32 %v11799, %v11800
  %v11802 = vsel %vm11076, %v11709, 0.0
  %v11803 = vadd.f32 %v11801, %v11802
  %v11804 = vsel %vm11076, %v11710, 0.0
  %v11805 = vadd.f32 %v11803, %v11804
  %v11806 = vsel %vm11076, %v11711, 0.0
  %v11807 = vadd.f32 %v11805, %v11806
  %v11808 = vsel %vm11076, %v11712, 0.0
  %v11809 = vadd.f32 %v11807, %v11808
  %v11810 = vsel %vm11076, %v11713, 0.0
  %v11811 = vadd.f32 %v11809, %v11810
  %v11812 = vsel %vm11076, %v11714, 0.0
  %v11813 = vadd.f32 %v11811, %v11812
  %v11814 = vsel %vm11076, %v11715, 0.0
  %v11815 = vadd.f32 %v11813, %v11814
  %v11816 = vsel %vm11076, %v11716, 0.0
  %v11817 = vadd.f32 %v11815, %v11816
  %v11818 = vsel %vm11076, %v11717, 0.0
  %v11819 = vadd.f32 %v11817, %v11818
  %v11820 = vsel %vm11076, %v11718, 0.0
  %v11821 = vadd.f32 %v11819, %v11820
  %v11822 = vsel %vm11076, %v11719, 0.0
  %v11823 = vadd.f32 %v11821, %v11822
  %v11824 = vsel %vm11076, %v11720, 0.0
  %v11825 = vadd.f32 %v11823, %v11824
  %v11826 = vsel %vm11076, %v11721, 0.0
  %v11827 = vadd.f32 %v11825, %v11826
  %v11828 = vsel %vm11076, %v11722, 0.0
  %v11829 = vadd.f32 %v11827, %v11828
  %v11830 = vsel %vm11076, %v11723, 0.0
  %v11831 = vadd.f32 %v11829, %v11830
  %v11832 = vsel %vm11076, %v11724, 0.0
  %v11833 = vadd.f32 %v11831, %v11832
  %v11834 = vsel %vm11076, %v11725, 0.0
  %v11835 = vadd.f32 %v11833, %v11834
  %v11836 = vsel %vm11076, %v11726, 0.0
  %v11837 = vadd.f32 %v11835, %v11836
  %v11838 = vsel %vm11076, %v11727, 0.0
  %v11839 = vadd.f32 %v11837, %v11838
  %v11840 = vsel %vm11076, %v11728, 0.0
  %v11841 = vadd.f32 %v11839, %v11840
  %v11842 = vsel %vm11076, %v11729, 0.0
  %v11843 = vadd.f32 %v11841, %v11842
  %v11844 = vsel %vm11076, %v11730, 0.0
  %v11845 = vadd.f32 %v11843, %v11844
  %v11846 = vsel %vm11076, %v11731, 0.0
  %v11847 = vadd.f32 %v11845, %v11846
  %v11848 = vsel %vm11076, %v11732, 0.0
  %v11849 = vadd.f32 %v11847, %v11848
  %v11850 = vsel %vm11076, %v11733, 0.0
  %v11851 = vadd.f32 %v11849, %v11850
  %v11852 = vsel %vm11076, %v11734, 0.0
  %v11853 = vadd.f32 %v11851, %v11852
  %v11854 = vsel %vm11076, %v11735, 0.0
  %v11855 = vadd.f32 %v11853, %v11854
  %v11856 = vsel %vm11076, %v11736, 0.0
  %v11857 = vadd.f32 %v11855, %v11856
  %v11858 = vsel %vm11076, %v11737, 0.0
  %v11859 = vadd.f32 %v11857, %v11858
  %v11860 = vsel %vm11076, %v11738, 0.0
  %v11861 = vadd.f32 %v11859, %v11860
  %v11862 = vsel %vm11076, %v11739, 0.0
  %v11863 = vadd.f32 %v11861, %v11862
  %v11864 = vsel %vm11076, %v11740, 0.0
  %v11865 = vadd.f32 %v11863, %v11864
  %v11866 = vsel %vm11076, %v11741, 0.0
  %v11867 = vadd.f32 %v11865, %v11866
  %v11868 = vsel %vm11076, %v11742, 0.0
  %v11869 = vadd.f32 %v11867, %v11868
  %v11870 = vrot.slane %v11869, 4
  %v11871 = vadd.f32 %v11869, %v11870
  %v11872 = vrot.slane %v11871, 2
  %v11873 = vadd.f32 %v11871, %v11872
  %v11874 = vrot.slane %v11873, 1
  %v11875 = vadd.f32 %v11873, %v11874
  %v11876 = vmul.f32 %v11875, %v11613
  %v11877 = vadd.f32 %v11876, 1e-05
  %v11878 = vrsqrt.pop %v11877
  %v11879 = vmul.f32 %v11615, %v11878
  %v11880 = vmul.f32 %v11616, %v11878
  %v11881 = vmul.f32 %v11617, %v11878
  %v11882 = vmul.f32 %v11618, %v11878
  %v11883 = vmul.f32 %v11619, %v11878
  %v11884 = vmul.f32 %v11620, %v11878
  %v11885 = vmul.f32 %v11621, %v11878
  %v11886 = vmul.f32 %v11622, %v11878
  %v11887 = vmul.f32 %v11623, %v11878
  %v11888 = vmul.f32 %v11624, %v11878
  %v11889 = vmul.f32 %v11625, %v11878
  %v11890 = vmul.f32 %v11626, %v11878
  %v11891 = vmul.f32 %v11627, %v11878
  %v11892 = vmul.f32 %v11628, %v11878
  %v11893 = vmul.f32 %v11629, %v11878
  %v11894 = vmul.f32 %v11630, %v11878
  %v11895 = vmul.f32 %v11631, %v11878
  %v11896 = vmul.f32 %v11632, %v11878
  %v11897 = vmul.f32 %v11633, %v11878
  %v11898 = vmul.f32 %v11634, %v11878
  %v11899 = vmul.f32 %v11635, %v11878
  %v11900 = vmul.f32 %v11636, %v11878
  %v11901 = vmul.f32 %v11637, %v11878
  %v11902 = vmul.f32 %v11638, %v11878
  %v11903 = vmul.f32 %v11639, %v11878
  %v11904 = vmul.f32 %v11640, %v11878
  %v11905 = vmul.f32 %v11641, %v11878
  %v11906 = vmul.f32 %v11642, %v11878
  %v11907 = vmul.f32 %v11643, %v11878
  %v11908 = vmul.f32 %v11644, %v11878
  %v11909 = vmul.f32 %v11645, %v11878
  %v11910 = vmul.f32 %v11646, %v11878
  %v11911 = vmul.f32 %v11647, %v11878
  %v11912 = vmul.f32 %v11648, %v11878
  %v11913 = vmul.f32 %v11649, %v11878
  %v11914 = vmul.f32 %v11650, %v11878
  %v11915 = vmul.f32 %v11651, %v11878
  %v11916 = vmul.f32 %v11652, %v11878
  %v11917 = vmul.f32 %v11653, %v11878
  %v11918 = vmul.f32 %v11654, %v11878
  %v11919 = vmul.f32 %v11655, %v11878
  %v11920 = vmul.f32 %v11656, %v11878
  %v11921 = vmul.f32 %v11657, %v11878
  %v11922 = vmul.f32 %v11658, %v11878
  %v11923 = vmul.f32 %v11659, %v11878
  %v11924 = vmul.f32 %v11660, %v11878
  %v11925 = vmul.f32 %v11661, %v11878
  %v11926 = vmul.f32 %v11662, %v11878
  %v11927 = vmul.f32 %v11663, %v11878
  %v11928 = vmul.f32 %v11664, %v11878
  %v11929 = vmul.f32 %v11665, %v11878
  %v11930 = vmul.f32 %v11666, %v11878
  %v11931 = vmul.f32 %v11667, %v11878
  %v11932 = vmul.f32 %v11668, %v11878
  %v11933 = vmul.f32 %v11669, %v11878
  %v11934 = vmul.f32 %v11670, %v11878
  %v11935 = vmul.f32 %v11671, %v11878
  %v11936 = vmul.f32 %v11672, %v11878
  %v11937 = vmul.f32 %v11673, %v11878
  %v11938 = vmul.f32 %v11674, %v11878
  %v11939 = vmul.f32 %v11675, %v11878
  %v11940 = vmul.f32 %v11676, %v11878
  %v11941 = vmul.f32 %v11677, %v11878
  %v11942 = vmul.f32 %v11678, %v11878
  %vm11943 = vcmp.gt.f32.partialorder %v11879, 0.0
  %vm11944 = vcmp.gt.f32.partialorder %v11880, 0.0
  %vm11945 = vcmp.gt.f32.partialorder %v11881, 0.0
  %vm11946 = vcmp.gt.f32.partialorder %v11882, 0.0
  %vm11947 = vcmp.gt.f32.partialorder %v11883, 0.0
  %vm11948 = vcmp.gt.f32.partialorder %v11884, 0.0
  %vm11949 = vcmp.gt.f32.partialorder %v11885, 0.0
  %vm11950 = vcmp.gt.f32.partialorder %v11886, 0.0
  %vm11951 = vcmp.gt.f32.partialorder %v11887, 0.0
  %vm11952 = vcmp.gt.f32.partialorder %v11888, 0.0
  %vm11953 = vcmp.gt.f32.partialorder %v11889, 0.0
  %vm11954 = vcmp.gt.f32.partialorder %v11890, 0.0
  %vm11955 = vcmp.gt.f32.partialorder %v11891, 0.0
  %vm11956 = vcmp.gt.f32.partialorder %v11892, 0.0
  %vm11957 = vcmp.gt.f32.partialorder %v11893, 0.0
  %vm11958 = vcmp.gt.f32.partialorder %v11894, 0.0
  %vm11959 = vcmp.gt.f32.partialorder %v11895, 0.0
  %vm11960 = vcmp.gt.f32.partialorder %v11896, 0.0
  %vm11961 = vcmp.gt.f32.partialorder %v11897, 0.0
  %vm11962 = vcmp.gt.f32.partialorder %v11898, 0.0
  %vm11963 = vcmp.gt.f32.partialorder %v11899, 0.0
  %vm11964 = vcmp.gt.f32.partialorder %v11900, 0.0
  %vm11965 = vcmp.gt.f32.partialorder %v11901, 0.0
  %vm11966 = vcmp.gt.f32.partialorder %v11902, 0.0
  %vm11967 = vcmp.gt.f32.partialorder %v11903, 0.0
  %vm11968 = vcmp.gt.f32.partialorder %v11904, 0.0
  %vm11969 = vcmp.gt.f32.partialorder %v11905, 0.0
  %vm11970 = vcmp.gt.f32.partialorder %v11906, 0.0
  %vm11971 = vcmp.gt.f32.partialorder %v11907, 0.0
  %vm11972 = vcmp.gt.f32.partialorder %v11908, 0.0
  %vm11973 = vcmp.gt.f32.partialorder %v11909, 0.0
  %vm11974 = vcmp.gt.f32.partialorder %v11910, 0.0
  %vm11975 = vcmp.gt.f32.partialorder %v11911, 0.0
  %vm11976 = vcmp.gt.f32.partialorder %v11912, 0.0
  %vm11977 = vcmp.gt.f32.partialorder %v11913, 0.0
  %vm11978 = vcmp.gt.f32.partialorder %v11914, 0.0
  %vm11979 = vcmp.gt.f32.partialorder %v11915, 0.0
  %vm11980 = vcmp.gt.f32.partialorder %v11916, 0.0
  %vm11981 = vcmp.gt.f32.partialorder %v11917, 0.0
  %vm11982 = vcmp.gt.f32.partialorder %v11918, 0.0
  %vm11983 = vcmp.gt.f32.partialorder %v11919, 0.0
  %vm11984 = vcmp.gt.f32.partialorder %v11920, 0.0
  %vm11985 = vcmp.gt.f32.partialorder %v11921, 0.0
  %vm11986 = vcmp.gt.f32.partialorder %v11922, 0.0
  %vm11987 = vcmp.gt.f32.partialorder %v11923, 0.0
  %vm11988 = vcmp.gt.f32.partialorder %v11924, 0.0
  %vm11989 = vcmp.gt.f32.partialorder %v11925, 0.0
  %vm11990 = vcmp.gt.f32.partialorder %v11926, 0.0
  %vm11991 = vcmp.gt.f32.partialorder %v11927, 0.0
  %vm11992 = vcmp.gt.f32.partialorder %v11928, 0.0
  %vm11993 = vcmp.gt.f32.partialorder %v11929, 0.0
  %vm11994 = vcmp.gt.f32.partialorder %v11930, 0.0
  %vm11995 = vcmp.gt.f32.partialorder %v11931, 0.0
  %vm11996 = vcmp.gt.f32.partialorder %v11932, 0.0
  %vm11997 = vcmp.gt.f32.partialorder %v11933, 0.0
  %vm11998 = vcmp.gt.f32.partialorder %v11934, 0.0
  %vm11999 = vcmp.gt.f32.partialorder %v11935, 0.0
  %vm12000 = vcmp.gt.f32.partialorder %v11936, 0.0
  %vm12001 = vcmp.gt.f32.partialorder %v11937, 0.0
  %vm12002 = vcmp.gt.f32.partialorder %v11938, 0.0
  %vm12003 = vcmp.gt.f32.partialorder %v11939, 0.0
  %vm12004 = vcmp.gt.f32.partialorder %v11940, 0.0
  %vm12005 = vcmp.gt.f32.partialorder %v11941, 0.0
  %vm12006 = vcmp.gt.f32.partialorder %v11942, 0.0
  %v12007 = vmul.f32 %v11879, 0.2
  %v12008 = vmul.f32 %v11880, 0.2
  %v12009 = vmul.f32 %v11881, 0.2
  %v12010 = vmul.f32 %v11882, 0.2
  %v12011 = vmul.f32 %v11883, 0.2
  %v12012 = vmul.f32 %v11884, 0.2
  %v12013 = vmul.f32 %v11885, 0.2
  %v12014 = vmul.f32 %v11886, 0.2
  %v12015 = vmul.f32 %v11887, 0.2
  %v12016 = vmul.f32 %v11888, 0.2
  %v12017 = vmul.f32 %v11889, 0.2
  %v12018 = vmul.f32 %v11890, 0.2
  %v12019 = vmul.f32 %v11891, 0.2
  %v12020 = vmul.f32 %v11892, 0.2
  %v12021 = vmul.f32 %v11893, 0.2
  %v12022 = vmul.f32 %v11894, 0.2
  %v12023 = vmul.f32 %v11895, 0.2
  %v12024 = vmul.f32 %v11896, 0.2
  %v12025 = vmul.f32 %v11897, 0.2
  %v12026 = vmul.f32 %v11898, 0.2
  %v12027 = vmul.f32 %v11899, 0.2
  %v12028 = vmul.f32 %v11900, 0.2
  %v12029 = vmul.f32 %v11901, 0.2
  %v12030 = vmul.f32 %v11902, 0.2
  %v12031 = vmul.f32 %v11903, 0.2
  %v12032 = vmul.f32 %v11904, 0.2
  %v12033 = vmul.f32 %v11905, 0.2
  %v12034 = vmul.f32 %v11906, 0.2
  %v12035 = vmul.f32 %v11907, 0.2
  %v12036 = vmul.f32 %v11908, 0.2
  %v12037 = vmul.f32 %v11909, 0.2
  %v12038 = vmul.f32 %v11910, 0.2
  %v12039 = vmul.f32 %v11911, 0.2
  %v12040 = vmul.f32 %v11912, 0.2
  %v12041 = vmul.f32 %v11913, 0.2
  %v12042 = vmul.f32 %v11914, 0.2
  %v12043 = vmul.f32 %v11915, 0.2
  %v12044 = vmul.f32 %v11916, 0.2
  %v12045 = vmul.f32 %v11917, 0.2
  %v12046 = vmul.f32 %v11918, 0.2
  %v12047 = vmul.f32 %v11919, 0.2
  %v12048 = vmul.f32 %v11920, 0.2
  %v12049 = vmul.f32 %v11921, 0.2
  %v12050 = vmul.f32 %v11922, 0.2
  %v12051 = vmul.f32 %v11923, 0.2
  %v12052 = vmul.f32 %v11924, 0.2
  %v12053 = vmul.f32 %v11925, 0.2
  %v12054 = vmul.f32 %v11926, 0.2
  %v12055 = vmul.f32 %v11927, 0.2
  %v12056 = vmul.f32 %v11928, 0.2
  %v12057 = vmul.f32 %v11929, 0.2
  %v12058 = vmul.f32 %v11930, 0.2
  %v12059 = vmul.f32 %v11931, 0.2
  %v12060 = vmul.f32 %v11932, 0.2
  %v12061 = vmul.f32 %v11933, 0.2
  %v12062 = vmul.f32 %v11934, 0.2
  %v12063 = vmul.f32 %v11935, 0.2
  %v12064 = vmul.f32 %v11936, 0.2
  %v12065 = vmul.f32 %v11937, 0.2
  %v12066 = vmul.f32 %v11938, 0.2
  %v12067 = vmul.f32 %v11939, 0.2
  %v12068 = vmul.f32 %v11940, 0.2
  %v12069 = vmul.f32 %v11941, 0.2
  %v12070 = vmul.f32 %v11942, 0.2
  %v12071 = vsel %vm11943, %v11879, %v12007
  %v12072 = vsel %vm11944, %v11880, %v12008
  %v12073 = vsel %vm11945, %v11881, %v12009
  %v12074 = vsel %vm11946, %v11882, %v12010
  %v12075 = vsel %vm11947, %v11883, %v12011
  %v12076 = vsel %vm11948, %v11884, %v12012
  %v12077 = vsel %vm11949, %v11885, %v12013
  %v12078 = vsel %vm11950, %v11886, %v12014
  %v12079 = vsel %vm11951, %v11887, %v12015
  %v12080 = vsel %vm11952, %v11888, %v12016
  %v12081 = vsel %vm11953, %v11889, %v12017
  %v12082 = vsel %vm11954, %v11890, %v12018
  %v12083 = vsel %vm11955, %v11891, %v12019
  %v12084 = vsel %vm11956, %v11892, %v12020
  %v12085 = vsel %vm11957, %v11893, %v12021
  %v12086 = vsel %vm11958, %v11894, %v12022
  %v12087 = vsel %vm11959, %v11895, %v12023
  %v12088 = vsel %vm11960, %v11896, %v12024
  %v12089 = vsel %vm11961, %v11897, %v12025
  %v12090 = vsel %vm11962, %v11898, %v12026
  %v12091 = vsel %vm11963, %v11899, %v12027
  %v12092 = vsel %vm11964, %v11900, %v12028
  %v12093 = vsel %vm11965, %v11901, %v12029
  %v12094 = vsel %vm11966, %v11902, %v12030
  %v12095 = vsel %vm11967, %v11903, %v12031
  %v12096 = vsel %vm11968, %v11904, %v12032
  %v12097 = vsel %vm11969, %v11905, %v12033
  %v12098 = vsel %vm11970, %v11906, %v12034
  %v12099 = vsel %vm11971, %v11907, %v12035
  %v12100 = vsel %vm11972, %v11908, %v12036
  %v12101 = vsel %vm11973, %v11909, %v12037
  %v12102 = vsel %vm11974, %v11910, %v12038
  %v12103 = vsel %vm11975, %v11911, %v12039
  %v12104 = vsel %vm11976, %v11912, %v12040
  %v12105 = vsel %vm11977, %v11913, %v12041
  %v12106 = vsel %vm11978, %v11914, %v12042
  %v12107 = vsel %vm11979, %v11915, %v12043
  %v12108 = vsel %vm11980, %v11916, %v12044
  %v12109 = vsel %vm11981, %v11917, %v12045
  %v12110 = vsel %vm11982, %v11918, %v12046
  %v12111 = vsel %vm11983, %v11919, %v12047
  %v12112 = vsel %vm11984, %v11920, %v12048
  %v12113 = vsel %vm11985, %v11921, %v12049
  %v12114 = vsel %vm11986, %v11922, %v12050
  %v12115 = vsel %vm11987, %v11923, %v12051
  %v12116 = vsel %vm11988, %v11924, %v12052
  %v12117 = vsel %vm11989, %v11925, %v12053
  %v12118 = vsel %vm11990, %v11926, %v12054
  %v12119 = vsel %vm11991, %v11927, %v12055
  %v12120 = vsel %vm11992, %v11928, %v12056
  %v12121 = vsel %vm11993, %v11929, %v12057
  %v12122 = vsel %vm11994, %v11930, %v12058
  %v12123 = vsel %vm11995, %v11931, %v12059
  %v12124 = vsel %vm11996, %v11932, %v12060
  %v12125 = vsel %vm11997, %v11933, %v12061
  %v12126 = vsel %vm11998, %v11934, %v12062
  %v12127 = vsel %vm11999, %v11935, %v12063
  %v12128 = vsel %vm12000, %v11936, %v12064
  %v12129 = vsel %vm12001, %v11937, %v12065
  %v12130 = vsel %vm12002, %v11938, %v12066
  %v12131 = vsel %vm12003, %v11939, %v12067
  %v12132 = vsel %vm12004, %v11940, %v12068
  %v12133 = vsel %vm12005, %v11941, %v12069
  %v12134 = vsel %vm12006, %v11942, %v12070
  %12167 = vrot.lane.b32.xlu0 %v12071, 16
  %v12168 = vpop.permute.xlu0 %12167
  %12169 = vrot.lane.b32.xlu0 %v12072, 16
  %v12170 = vpop.permute.xlu0 %12169
  %12171 = vrot.lane.b32.xlu0 %v12073, 16
  %v12172 = vpop.permute.xlu0 %12171
  %12173 = vrot.lane.b32.xlu0 %v12074, 16
  %v12174 = vpop.permute.xlu0 %12173
  %12175 = vrot.lane.b32.xlu0 %v12075, 16
  %v12176 = vpop.permute.xlu0 %12175
  %12177 = vrot.lane.b32.xlu0 %v12076, 16
  %v12178 = vpop.permute.xlu0 %12177
  %12179 = vrot.lane.b32.xlu0 %v12077, 16
  %v12180 = vpop.permute.xlu0 %12179
  %12181 = vrot.lane.b32.xlu0 %v12078, 16
  %v12182 = vpop.permute.xlu0 %12181
  %12183 = vrot.lane.b32.xlu0 %v12079, 16
  %v12184 = vpop.permute.xlu0 %12183
  %12185 = vrot.lane.b32.xlu0 %v12080, 16
  %v12186 = vpop.permute.xlu0 %12185
  %12187 = vrot.lane.b32.xlu0 %v12081, 16
  %v12188 = vpop.permute.xlu0 %12187
  %12189 = vrot.lane.b32.xlu0 %v12082, 16
  %v12190 = vpop.permute.xlu0 %12189
  %12191 = vrot.lane.b32.xlu0 %v12083, 16
  %v12192 = vpop.permute.xlu0 %12191
  %12193 = vrot.lane.b32.xlu0 %v12084, 16
  %v12194 = vpop.permute.xlu0 %12193
  %12195 = vrot.lane.b32.xlu0 %v12085, 16
  %v12196 = vpop.permute.xlu0 %12195
  %12197 = vrot.lane.b32.xlu0 %v12086, 16
  %v12198 = vpop.permute.xlu0 %12197
  %12199 = vrot.lane.b32.xlu0 %v12087, 16
  %v12200 = vpop.permute.xlu0 %12199
  %12201 = vrot.lane.b32.xlu0 %v12088, 16
  %v12202 = vpop.permute.xlu0 %12201
  %12203 = vrot.lane.b32.xlu0 %v12089, 16
  %v12204 = vpop.permute.xlu0 %12203
  %12205 = vrot.lane.b32.xlu0 %v12090, 16
  %v12206 = vpop.permute.xlu0 %12205
  %12207 = vrot.lane.b32.xlu0 %v12091, 16
  %v12208 = vpop.permute.xlu0 %12207
  %12209 = vrot.lane.b32.xlu0 %v12092, 16
  %v12210 = vpop.permute.xlu0 %12209
  %12211 = vrot.lane.b32.xlu0 %v12093, 16
  %v12212 = vpop.permute.xlu0 %12211
  %12213 = vrot.lane.b32.xlu0 %v12094, 16
  %v12214 = vpop.permute.xlu0 %12213
  %12215 = vrot.lane.b32.xlu0 %v12095, 16
  %v12216 = vpop.permute.xlu0 %12215
  %12217 = vrot.lane.b32.xlu0 %v12096, 16
  %v12218 = vpop.permute.xlu0 %12217
  %12219 = vrot.lane.b32.xlu0 %v12097, 16
  %v12220 = vpop.permute.xlu0 %12219
  %12221 = vrot.lane.b32.xlu0 %v12098, 16
  %v12222 = vpop.permute.xlu0 %12221
  %12223 = vrot.lane.b32.xlu0 %v12099, 16
  %v12224 = vpop.permute.xlu0 %12223
  %12225 = vrot.lane.b32.xlu0 %v12100, 16
  %v12226 = vpop.permute.xlu0 %12225
  %12227 = vrot.lane.b32.xlu0 %v12101, 16
  %v12228 = vpop.permute.xlu0 %12227
  %12229 = vrot.lane.b32.xlu0 %v12102, 16
  %v12230 = vpop.permute.xlu0 %12229
  %s12263 = scalar_lea.vmem [#allocation3], 16
  %vm12264 = vcmask 261248
  %12265 = vst.msk [vmem:[%s12263] sm:$0xff] %vm12264, %v12168
  %12266 = vst.msk [vmem:[%s12263 + $0x10] sm:$0xff] %vm12264, %v12170
  %12267 = vst.msk [vmem:[%s12263 + $0x20] sm:$0xff] %vm12264, %v12172
  %12268 = vst.msk [vmem:[%s12263 + $0x30] sm:$0xff] %vm12264, %v12174
  %12269 = vst.msk [vmem:[%s12263 + $0x40] sm:$0xff] %vm12264, %v12176
  %12270 = vst.msk [vmem:[%s12263 + $0x50] sm:$0xff] %vm12264, %v12178
  %12271 = vst.msk [vmem:[%s12263 + $0x60] sm:$0xff] %vm12264, %v12180
  %12272 = vst.msk [vmem:[%s12263 + $0x70] sm:$0xff] %vm12264, %v12182
  %12273 = vst.msk [vmem:[%s12263 + $0x80] sm:$0xff] %vm12264, %v12184
  %12274 = vst.msk [vmem:[%s12263 + $0x90] sm:$0xff] %vm12264, %v12186
  %12275 = vst.msk [vmem:[%s12263 + $0xa0] sm:$0xff] %vm12264, %v12188
  %12276 = vst.msk [vmem:[%s12263 + $0xb0] sm:$0xff] %vm12264, %v12190
  %12277 = vst.msk [vmem:[%s12263 + $0xc0] sm:$0xff] %vm12264, %v12192
  %12278 = vst.msk [vmem:[%s12263 + $0xd0] sm:$0xff] %vm12264, %v12194
  %12279 = vst.msk [vmem:[%s12263 + $0xe0] sm:$0xff] %vm12264, %v12196
  %12280 = vst.msk [vmem:[%s12263 + $0xf0] sm:$0xff] %vm12264, %v12198
  %12281 = vst.msk [vmem:[%s12263 + $0x120] sm:$0xff] %vm12264, %v12200
  %12282 = vst.msk [vmem:[%s12263 + $0x130] sm:$0xff] %vm12264, %v12202
  %12283 = vst.msk [vmem:[%s12263 + $0x140] sm:$0xff] %vm12264, %v12204
  %12284 = vst.msk [vmem:[%s12263 + $0x150] sm:$0xff] %vm12264, %v12206
  %12285 = vst.msk [vmem:[%s12263 + $0x160] sm:$0xff] %vm12264, %v12208
  %12286 = vst.msk [vmem:[%s12263 + $0x170] sm:$0xff] %vm12264, %v12210
  %12287 = vst.msk [vmem:[%s12263 + $0x180] sm:$0xff] %vm12264, %v12212
  %12288 = vst.msk [vmem:[%s12263 + $0x190] sm:$0xff] %vm12264, %v12214
  %12289 = vst.msk [vmem:[%s12263 + $0x1a0] sm:$0xff] %vm12264, %v12216
  %12290 = vst.msk [vmem:[%s12263 + $0x1b0] sm:$0xff] %vm12264, %v12218
  %12291 = vst.msk [vmem:[%s12263 + $0x1c0] sm:$0xff] %vm12264, %v12220
  %12292 = vst.msk [vmem:[%s12263 + $0x1d0] sm:$0xff] %vm12264, %v12222
  %12293 = vst.msk [vmem:[%s12263 + $0x1e0] sm:$0xff] %vm12264, %v12224
  %12294 = vst.msk [vmem:[%s12263 + $0x1f0] sm:$0xff] %vm12264, %v12226
  %12295 = vst.msk [vmem:[%s12263 + $0x200] sm:$0xff] %vm12264, %v12228
  %12296 = vst.msk [vmem:[%s12263 + $0x210] sm:$0xff] %vm12264, %v12230
  %12297 = vst.msk [vmem:[%s12263 + $0x1] sm:$0xff] %vm11076, %v12103
  %12298 = vst.msk [vmem:[%s12263 + $0x11] sm:$0xff] %vm11076, %v12104
  %12299 = vst.msk [vmem:[%s12263 + $0x21] sm:$0xff] %vm11076, %v12105
  %12300 = vst.msk [vmem:[%s12263 + $0x31] sm:$0xff] %vm11076, %v12106
  %12301 = vst.msk [vmem:[%s12263 + $0x41] sm:$0xff] %vm11076, %v12107
  %12302 = vst.msk [vmem:[%s12263 + $0x51] sm:$0xff] %vm11076, %v12108
  %12303 = vst.msk [vmem:[%s12263 + $0x61] sm:$0xff] %vm11076, %v12109
  %12304 = vst.msk [vmem:[%s12263 + $0x71] sm:$0xff] %vm11076, %v12110
  %12305 = vst.msk [vmem:[%s12263 + $0x81] sm:$0xff] %vm11076, %v12111
  %12306 = vst.msk [vmem:[%s12263 + $0x91] sm:$0xff] %vm11076, %v12112
  %12307 = vst.msk [vmem:[%s12263 + $0xa1] sm:$0xff] %vm11076, %v12113
  %12308 = vst.msk [vmem:[%s12263 + $0xb1] sm:$0xff] %vm11076, %v12114
  %12309 = vst.msk [vmem:[%s12263 + $0xc1] sm:$0xff] %vm11076, %v12115
  %12310 = vst.msk [vmem:[%s12263 + $0xd1] sm:$0xff] %vm11076, %v12116
  %12311 = vst.msk [vmem:[%s12263 + $0xe1] sm:$0xff] %vm11076, %v12117
  %12312 = vst.msk [vmem:[%s12263 + $0xf1] sm:$0xff] %vm11076, %v12118
  %12313 = vst.msk [vmem:[%s12263 + $0x121] sm:$0xff] %vm11076, %v12119
  %12314 = vst.msk [vmem:[%s12263 + $0x131] sm:$0xff] %vm11076, %v12120
  %12315 = vst.msk [vmem:[%s12263 + $0x141] sm:$0xff] %vm11076, %v12121
  %12316 = vst.msk [vmem:[%s12263 + $0x151] sm:$0xff] %vm11076, %v12122
  %12317 = vst.msk [vmem:[%s12263 + $0x161] sm:$0xff] %vm11076, %v12123
  %12318 = vst.msk [vmem:[%s12263 + $0x171] sm:$0xff] %vm11076, %v12124
  %12319 = vst.msk [vmem:[%s12263 + $0x181] sm:$0xff] %vm11076, %v12125
  %12320 = vst.msk [vmem:[%s12263 + $0x191] sm:$0xff] %vm11076, %v12126
  %12321 = vst.msk [vmem:[%s12263 + $0x1a1] sm:$0xff] %vm11076, %v12127
  %12322 = vst.msk [vmem:[%s12263 + $0x1b1] sm:$0xff] %vm11076, %v12128
  %12323 = vst.msk [vmem:[%s12263 + $0x1c1] sm:$0xff] %vm11076, %v12129
  %12324 = vst.msk [vmem:[%s12263 + $0x1d1] sm:$0xff] %vm11076, %v12130
  %12325 = vst.msk [vmem:[%s12263 + $0x1e1] sm:$0xff] %vm11076, %v12131
  %12326 = vst.msk [vmem:[%s12263 + $0x1f1] sm:$0xff] %vm11076, %v12132
  %12327 = vst.msk [vmem:[%s12263 + $0x201] sm:$0xff] %vm11076, %v12133
  %12328 = vst.msk [vmem:[%s12263 + $0x211] sm:$0xff] %vm11076, %v12134
  %v12329 = vld [vmem:[#allocation3] sm:$0xff]
  %v12330 = vld [vmem:[#allocation3 + $0x8] sm:$0x1]
  %v12331 = vld [vmem:[#allocation3 + $0x10] sm:$0xff]
  %v12332 = vld [vmem:[#allocation3 + $0x18] sm:$0x1]
  %v12333 = vld [vmem:[#allocation3 + $0x20] sm:$0xff]
  %v12334 = vld [vmem:[#allocation3 + $0x28] sm:$0x1]
  %v12335 = vld [vmem:[#allocation3 + $0x30] sm:$0xff]
  %v12336 = vld [vmem:[#allocation3 + $0x38] sm:$0x1]
  %v12337 = vld [vmem:[#allocation3 + $0x40] sm:$0xff]
  %v12338 = vld [vmem:[#allocation3 + $0x48] sm:$0x1]
  %v12339 = vld [vmem:[#allocation3 + $0x50] sm:$0xff]
  %v12340 = vld [vmem:[#allocation3 + $0x58] sm:$0x1]
  %v12341 = vld [vmem:[#allocation3 + $0x60] sm:$0xff]
  %v12342 = vld [vmem:[#allocation3 + $0x68] sm:$0x1]
  %v12343 = vld [vmem:[#allocation3 + $0x70] sm:$0xff]
  %v12344 = vld [vmem:[#allocation3 + $0x78] sm:$0x1]
  %v12345 = vld [vmem:[#allocation3 + $0x80] sm:$0xff]
  %v12346 = vld [vmem:[#allocation3 + $0x88] sm:$0x1]
  %v12347 = vld [vmem:[#allocation3 + $0x90] sm:$0xff]
  %v12348 = vld [vmem:[#allocation3 + $0x98] sm:$0x1]
  %v12349 = vld [vmem:[#allocation3 + $0xa0] sm:$0xff]
  %v12350 = vld [vmem:[#allocation3 + $0xa8] sm:$0x1]
  %v12351 = vld [vmem:[#allocation3 + $0xb0] sm:$0xff]
  %v12352 = vld [vmem:[#allocation3 + $0xb8] sm:$0x1]
  %v12353 = vld [vmem:[#allocation3 + $0xc0] sm:$0xff]
  %v12354 = vld [vmem:[#allocation3 + $0xc8] sm:$0x1]
  %v12355 = vld [vmem:[#allocation3 + $0xd0] sm:$0xff]
  %v12356 = vld [vmem:[#allocation3 + $0xd8] sm:$0x1]
  %v12357 = vld [vmem:[#allocation3 + $0xe0] sm:$0xff]
  %v12358 = vld [vmem:[#allocation3 + $0xe8] sm:$0x1]
  %v12359 = vld [vmem:[#allocation3 + $0xf0] sm:$0xff]
  %v12360 = vld [vmem:[#allocation3 + $0xf8] sm:$0x1]
  %v12361 = vld [vmem:[#allocation3 + $0x100] sm:$0xff]
  %v12362 = vld [vmem:[#allocation3 + $0x108] sm:$0x1]
  %v12363 = vld [vmem:[#allocation3 + $0x110] sm:$0xff]
  %v12364 = vld [vmem:[#allocation3 + $0x118] sm:$0x1]
  %v12365 = vld [vmem:[#allocation3 + $0x120] sm:$0xff]
  %v12366 = vld [vmem:[#allocation3 + $0x128] sm:$0x1]
  %v12367 = vld [vmem:[#allocation3 + $0x130] sm:$0xff]
  %v12368 = vld [vmem:[#allocation3 + $0x138] sm:$0x1]
  %v12369 = vld [vmem:[#allocation3 + $0x140] sm:$0xff]
  %v12370 = vld [vmem:[#allocation3 + $0x148] sm:$0x1]
  %v12371 = vld [vmem:[#allocation3 + $0x150] sm:$0xff]
  %v12372 = vld [vmem:[#allocation3 + $0x158] sm:$0x1]
  %v12373 = vld [vmem:[#allocation3 + $0x160] sm:$0xff]
  %v12374 = vld [vmem:[#allocation3 + $0x168] sm:$0x1]
  %v12375 = vld [vmem:[#allocation3 + $0x170] sm:$0xff]
  %v12376 = vld [vmem:[#allocation3 + $0x178] sm:$0x1]
  %v12377 = vld [vmem:[#allocation3 + $0x180] sm:$0xff]
  %v12378 = vld [vmem:[#allocation3 + $0x188] sm:$0x1]
  %v12379 = vld [vmem:[#allocation3 + $0x190] sm:$0xff]
  %v12380 = vld [vmem:[#allocation3 + $0x198] sm:$0x1]
  %v12381 = vld [vmem:[#allocation3 + $0x1a0] sm:$0xff]
  %v12382 = vld [vmem:[#allocation3 + $0x1a8] sm:$0x1]
  %v12383 = vld [vmem:[#allocation3 + $0x1b0] sm:$0xff]
  %v12384 = vld [vmem:[#allocation3 + $0x1b8] sm:$0x1]
  %v12385 = vld [vmem:[#allocation3 + $0x1c0] sm:$0xff]
  %v12386 = vld [vmem:[#allocation3 + $0x1c8] sm:$0x1]
  %v12387 = vld [vmem:[#allocation3 + $0x1d0] sm:$0xff]
  %v12388 = vld [vmem:[#allocation3 + $0x1d8] sm:$0x1]
  %v12389 = vld [vmem:[#allocation3 + $0x1e0] sm:$0xff]
  %v12390 = vld [vmem:[#allocation3 + $0x1e8] sm:$0x1]
  %v12391 = vld [vmem:[#allocation3 + $0x1f0] sm:$0xff]
  %v12392 = vld [vmem:[#allocation3 + $0x1f8] sm:$0x1]
  %v12393 = vld [vmem:[#allocation3 + $0x200] sm:$0xff]
  %v12394 = vld [vmem:[#allocation3 + $0x208] sm:$0x1]
  %v12395 = vld [vmem:[#allocation3 + $0x210] sm:$0xff]
  %v12396 = vld [vmem:[#allocation3 + $0x218] sm:$0x1]
  %v12397 = vld [vmem:[#allocation3 + $0x220] sm:$0xff]
  %v12398 = vld [vmem:[#allocation3 + $0x228] sm:$0x1]
  %v12399 = vld [vmem:[#allocation3 + $0x230] sm:$0xff]
  %v12400 = vld [vmem:[#allocation3 + $0x238] sm:$0x1]
  %v12433 = vrot.slane %v12329, 1
  %v12434 = vrot.slane %v12330, 1
  %v12435 = vsel %vm6174, %v12433, %v12434
  %v12436 = vrot.slane %v12333, 1
  %v12437 = vrot.slane %v12334, 1
  %v12438 = vsel %vm6174, %v12436, %v12437
  %v12439 = vrot.slane %v12337, 1
  %v12440 = vrot.slane %v12338, 1
  %v12441 = vsel %vm6174, %v12439, %v12440
  %v12442 = vrot.slane %v12341, 1
  %v12443 = vrot.slane %v12342, 1
  %v12444 = vsel %vm6174, %v12442, %v12443
  %v12445 = vrot.slane %v12345, 1
  %v12446 = vrot.slane %v12346, 1
  %v12447 = vsel %vm6174, %v12445, %v12446
  %v12448 = vrot.slane %v12349, 1
  %v12449 = vrot.slane %v12350, 1
  %v12450 = vsel %vm6174, %v12448, %v12449
  %v12451 = vrot.slane %v12353, 1
  %v12452 = vrot.slane %v12354, 1
  %v12453 = vsel %vm6174, %v12451, %v12452
  %v12454 = vrot.slane %v12357, 1
  %v12455 = vrot.slane %v12358, 1
  %v12456 = vsel %vm6174, %v12454, %v12455
  %v12457 = vrot.slane %v12365, 1
  %v12458 = vrot.slane %v12366, 1
  %v12459 = vsel %vm6174, %v12457, %v12458
  %v12460 = vrot.slane %v12369, 1
  %v12461 = vrot.slane %v12370, 1
  %v12462 = vsel %vm6174, %v12460, %v12461
  %v12463 = vrot.slane %v12373, 1
  %v12464 = vrot.slane %v12374, 1
  %v12465 = vsel %vm6174, %v12463, %v12464
  %v12466 = vrot.slane %v12377, 1
  %v12467 = vrot.slane %v12378, 1
  %v12468 = vsel %vm6174, %v12466, %v12467
  %v12469 = vrot.slane %v12381, 1
  %v12470 = vrot.slane %v12382, 1
  %v12471 = vsel %vm6174, %v12469, %v12470
  %v12472 = vrot.slane %v12385, 1
  %v12473 = vrot.slane %v12386, 1
  %v12474 = vsel %vm6174, %v12472, %v12473
  %v12475 = vrot.slane %v12389, 1
  %v12476 = vrot.slane %v12390, 1
  %v12477 = vsel %vm6174, %v12475, %v12476
  %v12478 = vrot.slane %v12393, 1
  %v12479 = vrot.slane %v12394, 1
  %v12480 = vsel %vm6174, %v12478, %v12479
  %12481 = vrot.lane.b32.xlu0 %v12435, 32
  %v12482 = vpop.permute.xlu0 %12481
  %12483 = vrot.lane.b32.xlu0 %v12438, 32
  %v12484 = vpop.permute.xlu0 %12483
  %12485 = vrot.lane.b32.xlu0 %v12441, 32
  %v12486 = vpop.permute.xlu0 %12485
  %12487 = vrot.lane.b32.xlu0 %v12444, 32
  %v12488 = vpop.permute.xlu0 %12487
  %12489 = vrot.lane.b32.xlu0 %v12447, 32
  %v12490 = vpop.permute.xlu0 %12489
  %12491 = vrot.lane.b32.xlu0 %v12450, 32
  %v12492 = vpop.permute.xlu0 %12491
  %12493 = vrot.lane.b32.xlu0 %v12453, 32
  %v12494 = vpop.permute.xlu0 %12493
  %12495 = vrot.lane.b32.xlu0 %v12456, 32
  %v12496 = vpop.permute.xlu0 %12495
  %12497 = vrot.lane.b32.xlu0 %v12459, 32
  %v12498 = vpop.permute.xlu0 %12497
  %12499 = vrot.lane.b32.xlu0 %v12462, 32
  %v12500 = vpop.permute.xlu0 %12499
  %12501 = vrot.lane.b32.xlu0 %v12465, 32
  %v12502 = vpop.permute.xlu0 %12501
  %12503 = vrot.lane.b32.xlu0 %v12468, 32
  %v12504 = vpop.permute.xlu0 %12503
  %12505 = vrot.lane.b32.xlu0 %v12471, 32
  %v12506 = vpop.permute.xlu0 %12505
  %12507 = vrot.lane.b32.xlu0 %v12474, 32
  %v12508 = vpop.permute.xlu0 %12507
  %12509 = vrot.lane.b32.xlu0 %v12477, 32
  %v12510 = vpop.permute.xlu0 %12509
  %12511 = vrot.lane.b32.xlu0 %v12480, 32
  %v12512 = vpop.permute.xlu0 %12511
  %12545 = vrot.lane.b32.xlu0 %v12331, 64
  %v12546 = vpop.permute.xlu0 %12545
  %12547 = vrot.lane.b32.xlu0 %v12335, 64
  %v12548 = vpop.permute.xlu0 %12547
  %12549 = vrot.lane.b32.xlu0 %v12339, 64
  %v12550 = vpop.permute.xlu0 %12549
  %12551 = vrot.lane.b32.xlu0 %v12343, 64
  %v12552 = vpop.permute.xlu0 %12551
  %12553 = vrot.lane.b32.xlu0 %v12347, 64
  %v12554 = vpop.permute.xlu0 %12553
  %12555 = vrot.lane.b32.xlu0 %v12351, 64
  %v12556 = vpop.permute.xlu0 %12555
  %12557 = vrot.lane.b32.xlu0 %v12355, 64
  %v12558 = vpop.permute.xlu0 %12557
  %12559 = vrot.lane.b32.xlu0 %v12359, 64
  %v12560 = vpop.permute.xlu0 %12559
  %12561 = vrot.lane.b32.xlu0 %v12367, 64
  %v12562 = vpop.permute.xlu0 %12561
  %12563 = vrot.lane.b32.xlu0 %v12371, 64
  %v12564 = vpop.permute.xlu0 %12563
  %12565 = vrot.lane.b32.xlu0 %v12375, 64
  %v12566 = vpop.permute.xlu0 %12565
  %12567 = vrot.lane.b32.xlu0 %v12379, 64
  %v12568 = vpop.permute.xlu0 %12567
  %12569 = vrot.lane.b32.xlu0 %v12383, 64
  %v12570 = vpop.permute.xlu0 %12569
  %12571 = vrot.lane.b32.xlu0 %v12387, 64
  %v12572 = vpop.permute.xlu0 %12571
  %12573 = vrot.lane.b32.xlu0 %v12391, 64
  %v12574 = vpop.permute.xlu0 %12573
  %12575 = vrot.lane.b32.xlu0 %v12395, 64
  %v12576 = vpop.permute.xlu0 %12575
  %v12609 = vrot.slane %v12331, 1
  %v12610 = vrot.slane %v12332, 1
  %v12611 = vsel %vm6174, %v12609, %v12610
  %v12612 = vrot.slane %v12335, 1
  %v12613 = vrot.slane %v12336, 1
  %v12614 = vsel %vm6174, %v12612, %v12613
  %v12615 = vrot.slane %v12339, 1
  %v12616 = vrot.slane %v12340, 1
  %v12617 = vsel %vm6174, %v12615, %v12616
  %v12618 = vrot.slane %v12343, 1
  %v12619 = vrot.slane %v12344, 1
  %v12620 = vsel %vm6174, %v12618, %v12619
  %v12621 = vrot.slane %v12347, 1
  %v12622 = vrot.slane %v12348, 1
  %v12623 = vsel %vm6174, %v12621, %v12622
  %v12624 = vrot.slane %v12351, 1
  %v12625 = vrot.slane %v12352, 1
  %v12626 = vsel %vm6174, %v12624, %v12625
  %v12627 = vrot.slane %v12355, 1
  %v12628 = vrot.slane %v12356, 1
  %v12629 = vsel %vm6174, %v12627, %v12628
  %v12630 = vrot.slane %v12359, 1
  %v12631 = vrot.slane %v12360, 1
  %v12632 = vsel %vm6174, %v12630, %v12631
  %v12633 = vrot.slane %v12367, 1
  %v12634 = vrot.slane %v12368, 1
  %v12635 = vsel %vm6174, %v12633, %v12634
  %v12636 = vrot.slane %v12371, 1
  %v12637 = vrot.slane %v12372, 1
  %v12638 = vsel %vm6174, %v12636, %v12637
  %v12639 = vrot.slane %v12375, 1
  %v12640 = vrot.slane %v12376, 1
  %v12641 = vsel %vm6174, %v12639, %v12640
  %v12642 = vrot.slane %v12379, 1
  %v12643 = vrot.slane %v12380, 1
  %v12644 = vsel %vm6174, %v12642, %v12643
  %v12645 = vrot.slane %v12383, 1
  %v12646 = vrot.slane %v12384, 1
  %v12647 = vsel %vm6174, %v12645, %v12646
  %v12648 = vrot.slane %v12387, 1
  %v12649 = vrot.slane %v12388, 1
  %v12650 = vsel %vm6174, %v12648, %v12649
  %v12651 = vrot.slane %v12391, 1
  %v12652 = vrot.slane %v12392, 1
  %v12653 = vsel %vm6174, %v12651, %v12652
  %v12654 = vrot.slane %v12395, 1
  %v12655 = vrot.slane %v12396, 1
  %v12656 = vsel %vm6174, %v12654, %v12655
  %12657 = vrot.lane.b32.xlu0 %v12611, 96
  %v12658 = vpop.permute.xlu0 %12657
  %12659 = vrot.lane.b32.xlu0 %v12614, 96
  %v12660 = vpop.permute.xlu0 %12659
  %12661 = vrot.lane.b32.xlu0 %v12617, 96
  %v12662 = vpop.permute.xlu0 %12661
  %12663 = vrot.lane.b32.xlu0 %v12620, 96
  %v12664 = vpop.permute.xlu0 %12663
  %12665 = vrot.lane.b32.xlu0 %v12623, 96
  %v12666 = vpop.permute.xlu0 %12665
  %12667 = vrot.lane.b32.xlu0 %v12626, 96
  %v12668 = vpop.permute.xlu0 %12667
  %12669 = vrot.lane.b32.xlu0 %v12629, 96
  %v12670 = vpop.permute.xlu0 %12669
  %12671 = vrot.lane.b32.xlu0 %v12632, 96
  %v12672 = vpop.permute.xlu0 %12671
  %12673 = vrot.lane.b32.xlu0 %v12635, 96
  %v12674 = vpop.permute.xlu0 %12673
  %12675 = vrot.lane.b32.xlu0 %v12638, 96
  %v12676 = vpop.permute.xlu0 %12675
  %12677 = vrot.lane.b32.xlu0 %v12641, 96
  %v12678 = vpop.permute.xlu0 %12677
  %12679 = vrot.lane.b32.xlu0 %v12644, 96
  %v12680 = vpop.permute.xlu0 %12679
  %12681 = vrot.lane.b32.xlu0 %v12647, 96
  %v12682 = vpop.permute.xlu0 %12681
  %12683 = vrot.lane.b32.xlu0 %v12650, 96
  %v12684 = vpop.permute.xlu0 %12683
  %12685 = vrot.lane.b32.xlu0 %v12653, 96
  %v12686 = vpop.permute.xlu0 %12685
  %12687 = vrot.lane.b32.xlu0 %v12656, 96
  %v12688 = vpop.permute.xlu0 %12687
  %v12709 = vrot.slane %v12361, 1
  %v12710 = vrot.slane %v12362, 1
  %v12711 = vsel %vm6174, %v12709, %v12710
  %v12712 = vrot.slane %v12397, 1
  %v12713 = vrot.slane %v12398, 1
  %v12714 = vsel %vm6174, %v12712, %v12713
  %12715 = vrot.lane.b32.xlu0 %v12711, 32
  %v12716 = vpop.permute.xlu0 %12715
  %12717 = vrot.lane.b32.xlu0 %v12714, 32
  %v12718 = vpop.permute.xlu0 %12717
  %12723 = vrot.lane.b32.xlu0 %v12363, 64
  %v12724 = vpop.permute.xlu0 %12723
  %12725 = vrot.lane.b32.xlu0 %v12399, 64
  %v12726 = vpop.permute.xlu0 %12725
  %v12731 = vrot.slane %v12363, 1
  %v12732 = vrot.slane %v12364, 1
  %v12733 = vsel %vm6174, %v12731, %v12732
  %v12734 = vrot.slane %v12399, 1
  %v12735 = vrot.slane %v12400, 1
  %v12736 = vsel %vm6174, %v12734, %v12735
  %12737 = vrot.lane.b32.xlu0 %v12733, 96
  %v12738 = vpop.permute.xlu0 %12737
  %12739 = vrot.lane.b32.xlu0 %v12736, 96
  %v12740 = vpop.permute.xlu0 %12739
  %v12743 = vsel %vm21, %v12329, %v12482
  %v12744 = vsel %vm21, %v12333, %v12484
  %v12745 = vsel %vm21, %v12337, %v12486
  %v12746 = vsel %vm21, %v12341, %v12488
  %v12747 = vsel %vm21, %v12345, %v12490
  %v12748 = vsel %vm21, %v12349, %v12492
  %v12749 = vsel %vm21, %v12353, %v12494
  %v12750 = vsel %vm21, %v12357, %v12496
  %v12751 = vsel %vm21, %v12365, %v12498
  %v12752 = vsel %vm21, %v12369, %v12500
  %v12753 = vsel %vm21, %v12373, %v12502
  %v12754 = vsel %vm21, %v12377, %v12504
  %v12755 = vsel %vm21, %v12381, %v12506
  %v12756 = vsel %vm21, %v12385, %v12508
  %v12757 = vsel %vm21, %v12389, %v12510
  %v12758 = vsel %vm21, %v12393, %v12512
  %v12759 = vsel %vm9727, %v12743, %v12546
  %v12760 = vsel %vm9727, %v12744, %v12548
  %v12761 = vsel %vm9727, %v12745, %v12550
  %v12762 = vsel %vm9727, %v12746, %v12552
  %v12763 = vsel %vm9727, %v12747, %v12554
  %v12764 = vsel %vm9727, %v12748, %v12556
  %v12765 = vsel %vm9727, %v12749, %v12558
  %v12766 = vsel %vm9727, %v12750, %v12560
  %v12767 = vsel %vm9727, %v12751, %v12562
  %v12768 = vsel %vm9727, %v12752, %v12564
  %v12769 = vsel %vm9727, %v12753, %v12566
  %v12770 = vsel %vm9727, %v12754, %v12568
  %v12771 = vsel %vm9727, %v12755, %v12570
  %v12772 = vsel %vm9727, %v12756, %v12572
  %v12773 = vsel %vm9727, %v12757, %v12574
  %v12774 = vsel %vm9727, %v12758, %v12576
  %v12775 = vsel %vm9760, %v12759, %v12658
  %v12776 = vsel %vm9760, %v12760, %v12660
  %v12777 = vsel %vm9760, %v12761, %v12662
  %v12778 = vsel %vm9760, %v12762, %v12664
  %v12779 = vsel %vm9760, %v12763, %v12666
  %v12780 = vsel %vm9760, %v12764, %v12668
  %v12781 = vsel %vm9760, %v12765, %v12670
  %v12782 = vsel %vm9760, %v12766, %v12672
  %v12783 = vsel %vm9760, %v12767, %v12674
  %v12784 = vsel %vm9760, %v12768, %v12676
  %v12785 = vsel %vm9760, %v12769, %v12678
  %v12786 = vsel %vm9760, %v12770, %v12680
  %v12787 = vsel %vm9760, %v12771, %v12682
  %v12788 = vsel %vm9760, %v12772, %v12684
  %v12789 = vsel %vm9760, %v12773, %v12686
  %v12790 = vsel %vm9760, %v12774, %v12688
  %v12791 = vsel %vm21, %v12361, %v12716
  %v12792 = vsel %vm21, %v12397, %v12718
  %v12793 = vsel %vm9727, %v12791, %v12724
  %v12794 = vsel %vm9727, %v12792, %v12726
  %v12795 = vsel %vm9760, %v12793, %v12738
  %v12796 = vsel %vm9760, %v12794, %v12740
  %v12797 = vpack.c.bf16 %v12776, %v12775
  %v12798 = vpack.c.bf16 %v12777, %v12776
  %v12799 = vpack.c.bf16 %v12778, %v12777
  %v12800 = vpack.c.bf16 %v12779, %v12778
  %v12801 = vpack.c.bf16 %v12780, %v12779
  %v12802 = vpack.c.bf16 %v12781, %v12780
  %v12803 = vpack.c.bf16 %v12782, %v12781
  %v12804 = vpack.c.bf16 %v12795, %v12782
  %v12805 = vpack.c.bf16 %v12784, %v12783
  %v12806 = vpack.c.bf16 %v12785, %v12784
  %v12807 = vpack.c.bf16 %v12786, %v12785
  %v12808 = vpack.c.bf16 %v12787, %v12786
  %v12809 = vpack.c.bf16 %v12788, %v12787
  %v12810 = vpack.c.bf16 %v12789, %v12788
  %v12811 = vpack.c.bf16 %v12790, %v12789
  %v12812 = vpack.c.bf16 %v12796, %v12790
  %v12813 = vld [vmem:[%s3] sm:$0xf]
  %v12814 = vld [vmem:[%s3 + $0x4] sm:$0xf]
  %v12815 = vld [vmem:[%s3 + $0x8] sm:$0xf]
  %v12816 = vld [vmem:[%s3 + $0xc] sm:$0xf]
  %v12817 = vld [vmem:[%s3 + $0x10] sm:$0xf]
  %v12818 = vld [vmem:[%s3 + $0x14] sm:$0xf]
  %v12819 = vld [vmem:[%s3 + $0x18] sm:$0xf]
  %v12820 = vld [vmem:[%s3 + $0x1c] sm:$0xf]
  %v12821 = vld [vmem:[%s3 + $0x20] sm:$0xf]
  %v12822 = vld [vmem:[%s3 + $0x24] sm:$0xf]
  %v12823 = vld [vmem:[%s3 + $0x28] sm:$0xf]
  %v12824 = vld [vmem:[%s3 + $0x2c] sm:$0xf]
  %v12825 = vld [vmem:[%s3 + $0x30] sm:$0xf]
  %v12826 = vld [vmem:[%s3 + $0x34] sm:$0xf]
  %v12827 = vld [vmem:[%s3 + $0x38] sm:$0xf]
  %v12828 = vld [vmem:[%s3 + $0x3c] sm:$0xf]
  %v12829 = vld [vmem:[%s3 + $0x40] sm:$0xf]
  %v12830 = vld [vmem:[%s3 + $0x44] sm:$0xf]
  %v12831 = vld [vmem:[%s3 + $0x48] sm:$0xf]
  %v12832 = vld [vmem:[%s3 + $0x4c] sm:$0xf]
  %v12833 = vld [vmem:[%s3 + $0x50] sm:$0xf]
  %v12834 = vld [vmem:[%s3 + $0x54] sm:$0xf]
  %v12835 = vld [vmem:[%s3 + $0x58] sm:$0xf]
  %v12836 = vld [vmem:[%s3 + $0x5c] sm:$0xf]
  %v12837 = vld [vmem:[%s3 + $0x60] sm:$0xf]
  %v12838 = vld [vmem:[%s3 + $0x64] sm:$0xf]
  %v12839 = vld [vmem:[%s3 + $0x68] sm:$0xf]
  %v12840 = vld [vmem:[%s3 + $0x6c] sm:$0xf]
  %v12841 = vld [vmem:[%s3 + $0x70] sm:$0xf]
  %v12842 = vld [vmem:[%s3 + $0x74] sm:$0xf]
  %v12843 = vld [vmem:[%s3 + $0x78] sm:$0xf]
  %v12844 = vld [vmem:[%s3 + $0x7c] sm:$0xf]
  %v12877 = vunpack.c.l.b16 %v12813
  %v12878 = vunpack.c.l.b16 %v12814
  %v12879 = vunpack.c.l.b16 %v12815
  %v12880 = vunpack.c.l.b16 %v12816
  %v12881 = vunpack.c.l.b16 %v12817
  %v12882 = vunpack.c.l.b16 %v12818
  %v12883 = vunpack.c.l.b16 %v12819
  %v12884 = vunpack.c.l.b16 %v12820
  %v12885 = vunpack.c.l.b16 %v12821
  %v12886 = vunpack.c.l.b16 %v12822
  %v12887 = vunpack.c.l.b16 %v12823
  %v12888 = vunpack.c.l.b16 %v12824
  %v12889 = vunpack.c.l.b16 %v12825
  %v12890 = vunpack.c.l.b16 %v12826
  %v12891 = vunpack.c.l.b16 %v12827
  %v12892 = vunpack.c.l.b16 %v12828
  %v12893 = vunpack.c.l.b16 %v12829
  %v12894 = vunpack.c.l.b16 %v12830
  %v12895 = vunpack.c.l.b16 %v12831
  %v12896 = vunpack.c.l.b16 %v12832
  %v12897 = vunpack.c.l.b16 %v12833
  %v12898 = vunpack.c.l.b16 %v12834
  %v12899 = vunpack.c.l.b16 %v12835
  %v12900 = vunpack.c.l.b16 %v12836
  %v12901 = vunpack.c.l.b16 %v12837
  %v12902 = vunpack.c.l.b16 %v12838
  %v12903 = vunpack.c.l.b16 %v12839
  %v12904 = vunpack.c.l.b16 %v12840
  %v12905 = vunpack.c.l.b16 %v12841
  %v12906 = vunpack.c.l.b16 %v12842
  %v12907 = vunpack.c.l.b16 %v12843
  %v12908 = vunpack.c.l.b16 %v12844
  %v12909 = vpack.c.b16 %v12878, %v12877
  %v12910 = vpack.c.b16 %v12880, %v12879
  %v12911 = vpack.c.b16 %v12882, %v12881
  %v12912 = vpack.c.b16 %v12884, %v12883
  %v12913 = vpack.c.b16 %v12886, %v12885
  %v12914 = vpack.c.b16 %v12888, %v12887
  %v12915 = vpack.c.b16 %v12890, %v12889
  %v12916 = vpack.c.b16 %v12892, %v12891
  %v12917 = vpack.c.b16 %v12894, %v12893
  %v12918 = vpack.c.b16 %v12896, %v12895
  %v12919 = vpack.c.b16 %v12898, %v12897
  %v12920 = vpack.c.b16 %v12900, %v12899
  %v12921 = vpack.c.b16 %v12902, %v12901
  %v12922 = vpack.c.b16 %v12904, %v12903
  %v12923 = vpack.c.b16 %v12906, %v12905
  %v12924 = vpack.c.b16 %v12908, %v12907
  %12941 = vmatprep.subr.bf16.mxu0 0
  %12942 = vmatpush1.bf16.msra.mxu0 %v12916
  %12943 = vmatprep.subr.bf16.mxu0 0
  %12944 = vmatpush1.bf16.msra.mxu0 %v12915
  %12945 = vmatprep.subr.bf16.mxu0 0
  %12946 = vmatpush1.bf16.msra.mxu0 %v12914
  %12947 = vmatprep.subr.bf16.mxu0 0
  %12948 = vmatpush1.bf16.msra.mxu0 %v12913
  %12949 = vmatprep.subr.bf16.mxu0 0
  %12950 = vmatpush1.bf16.msra.mxu0 %v12912
  %12951 = vmatprep.subr.bf16.mxu0 0
  %12952 = vmatpush1.bf16.msra.mxu0 %v12911
  %12953 = vmatprep.subr.bf16.mxu0 0
  %12954 = vmatpush1.bf16.msra.mxu0 %v12910
  %12955 = vmatprep.subr.bf16.mxu0 0
  %12956 = vmatpush1.bf16.msra.mxu0 %v12909
  %12957 = vmatprep.subr.bf16.mxu0 0
  %12958 = vmatpush2.bf16.msra.mxu0 %v12924
  %12959 = vmatprep.subr.bf16.mxu0 0
  %12960 = vmatpush2.bf16.msra.mxu0 %v12923
  %12961 = vmatprep.subr.bf16.mxu0 0
  %12962 = vmatpush2.bf16.msra.mxu0 %v12922
  %12963 = vmatprep.subr.bf16.mxu0 0
  %12964 = vmatpush2.bf16.msra.mxu0 %v12921
  %12965 = vmatprep.subr.bf16.mxu0 0
  %12966 = vmatpush2.bf16.msra.mxu0 %v12920
  %12967 = vmatprep.subr.bf16.mxu0 0
  %12968 = vmatpush2.bf16.msra.mxu0 %v12919
  %12969 = vmatprep.subr.bf16.mxu0 0
  %12970 = vmatpush2.bf16.msra.mxu0 %v12918
  %12971 = vmatprep.subr.bf16.mxu0 0
  %12972 = vmatpush2.bf16.msra.mxu0 %v12917
  %12973 = vmatprep.mubr.bf16.mxu0 %v12798
  %12974 = vmatmul.mubr.bf16.gmra.mxu0 %v12797
  %v12975 = vpop.f32.mrf.mxu0
  %v12976 = vadd.f32 0.0, %v12975
  %v12977 = vpop.f32.mrf.mxu0
  %v12978 = vpop.f32.mrf.mxu0
  %v12979 = vadd.f32 0.0, %v12978
  %v12980 = vpop.f32.mrf.mxu0
  %12981 = vmatprep.mubr.bf16.mxu0 %v12800
  %12982 = vmatmul.mubr.bf16.gmra.mxu0 %v12799
  %v12983 = vpop.f32.mrf.mxu0
  %v12984 = vadd.f32 0.0, %v12983
  %v12985 = vpop.f32.mrf.mxu0
  %v12986 = vpop.f32.mrf.mxu0
  %v12987 = vadd.f32 0.0, %v12986
  %v12988 = vpop.f32.mrf.mxu0
  %12989 = vmatprep.mubr.bf16.mxu0 %v12802
  %12990 = vmatmul.mubr.bf16.gmra.mxu0 %v12801
  %v12991 = vpop.f32.mrf.mxu0
  %v12992 = vadd.f32 0.0, %v12991
  %v12993 = vpop.f32.mrf.mxu0
  %v12994 = vpop.f32.mrf.mxu0
  %v12995 = vadd.f32 0.0, %v12994
  %v12996 = vpop.f32.mrf.mxu0
  %12997 = vmatprep.mubr.bf16.mxu0 %v12804
  %12998 = vmatmul.mubr.bf16.gmra.mxu0 %v12803
  %v12999 = vpop.f32.mrf.mxu0
  %v13000 = vadd.f32 0.0, %v12999
  %v13001 = vpop.f32.mrf.mxu0
  %v13002 = vpop.f32.mrf.mxu0
  %v13003 = vadd.f32 0.0, %v13002
  %v13004 = vpop.f32.mrf.mxu0
  %13005 = vmatprep.mubr.bf16.mxu0 %v12806
  %13006 = vmatmul.mubr.bf16.gmra.mxu0 %v12805
  %v13007 = vpop.f32.mrf.mxu0
  %v13008 = vadd.f32 0.0, %v13007
  %v13009 = vpop.f32.mrf.mxu0
  %v13010 = vpop.f32.mrf.mxu0
  %v13011 = vadd.f32 0.0, %v13010
  %v13012 = vpop.f32.mrf.mxu0
  %13013 = vmatprep.mubr.bf16.mxu0 %v12808
  %13014 = vmatmul.mubr.bf16.gmra.mxu0 %v12807
  %v13015 = vpop.f32.mrf.mxu0
  %v13016 = vadd.f32 0.0, %v13015
  %v13017 = vpop.f32.mrf.mxu0
  %v13018 = vpop.f32.mrf.mxu0
  %v13019 = vadd.f32 0.0, %v13018
  %v13020 = vpop.f32.mrf.mxu0
  %13021 = vmatprep.mubr.bf16.mxu0 %v12810
  %13022 = vmatmul.mubr.bf16.gmra.mxu0 %v12809
  %v13023 = vpop.f32.mrf.mxu0
  %v13024 = vadd.f32 0.0, %v13023
  %v13025 = vpop.f32.mrf.mxu0
  %v13026 = vpop.f32.mrf.mxu0
  %v13027 = vadd.f32 0.0, %v13026
  %v13028 = vpop.f32.mrf.mxu0
  %13029 = vmatprep.mubr.bf16.mxu0 %v12812
  %13030 = vmatmul.mubr.bf16.gmra.mxu0 %v12811
  %v13031 = vpop.f32.mrf.mxu0
  %v13032 = vadd.f32 0.0, %v13031
  %v13033 = vpop.f32.mrf.mxu0
  %v13034 = vpop.f32.mrf.mxu0
  %v13035 = vadd.f32 0.0, %v13034
  %v13036 = vpop.f32.mrf.mxu0
  %13037 = vdwg.mxu0
  %v13038 = vsel %vm21, %v12976, 0.0
  %v13039 = vsel %vm21, %v12979, 0.0
  %v13040 = vadd.f32 %v13038, %v13039
  %v13041 = vsel %vm21, %v12984, 0.0
  %v13042 = vadd.f32 %v13040, %v13041
  %v13043 = vsel %vm21, %v12987, 0.0
  %v13044 = vadd.f32 %v13042, %v13043
  %v13045 = vsel %vm21, %v12992, 0.0
  %v13046 = vadd.f32 %v13044, %v13045
  %v13047 = vsel %vm21, %v12995, 0.0
  %v13048 = vadd.f32 %v13046, %v13047
  %v13049 = vsel %vm21, %v13000, 0.0
  %v13050 = vadd.f32 %v13048, %v13049
  %v13051 = vsel %vm21, %v13003, 0.0
  %v13052 = vadd.f32 %v13050, %v13051
  %v13053 = vsel %vm21, %v13008, 0.0
  %v13054 = vadd.f32 %v13052, %v13053
  %v13055 = vsel %vm21, %v13011, 0.0
  %v13056 = vadd.f32 %v13054, %v13055
  %v13057 = vsel %vm21, %v13016, 0.0
  %v13058 = vadd.f32 %v13056, %v13057
  %v13059 = vsel %vm21, %v13019, 0.0
  %v13060 = vadd.f32 %v13058, %v13059
  %v13061 = vsel %vm21, %v13024, 0.0
  %v13062 = vadd.f32 %v13060, %v13061
  %v13063 = vsel %vm21, %v13027, 0.0
  %v13064 = vadd.f32 %v13062, %v13063
  %v13065 = vsel %vm21, %v13032, 0.0
  %v13066 = vadd.f32 %v13064, %v13065
  %v13067 = vsel %vm21, %v13035, 0.0
  %v13068 = vadd.f32 %v13066, %v13067
  %v13069 = vrot.slane %v13068, 4
  %v13070 = vadd.f32 %v13068, %v13069
  %v13071 = vrot.slane %v13070, 2
  %v13072 = vadd.f32 %v13070, %v13071
  %v13073 = vrot.slane %v13072, 1
  %v13074 = vadd.f32 %v13072, %v13073
  %v13075 = vrcp.pop 128.0
  %v13076 = vmul.f32 %v13074, %v13075
  %v13077 = vsub.f32 %v12976, %v13076
  %v13078 = vsub.f32 %v12979, %v13076
  %v13079 = vsub.f32 %v12984, %v13076
  %v13080 = vsub.f32 %v12987, %v13076
  %v13081 = vsub.f32 %v12992, %v13076
  %v13082 = vsub.f32 %v12995, %v13076
  %v13083 = vsub.f32 %v13000, %v13076
  %v13084 = vsub.f32 %v13003, %v13076
  %v13085 = vsub.f32 %v13008, %v13076
  %v13086 = vsub.f32 %v13011, %v13076
  %v13087 = vsub.f32 %v13016, %v13076
  %v13088 = vsub.f32 %v13019, %v13076
  %v13089 = vsub.f32 %v13024, %v13076
  %v13090 = vsub.f32 %v13027, %v13076
  %v13091 = vsub.f32 %v13032, %v13076
  %v13092 = vsub.f32 %v13035, %v13076
  %v13093 = vmul.f32 %v13077, %v13077
  %v13094 = vmul.f32 %v13078, %v13078
  %v13095 = vmul.f32 %v13079, %v13079
  %v13096 = vmul.f32 %v13080, %v13080
  %v13097 = vmul.f32 %v13081, %v13081
  %v13098 = vmul.f32 %v13082, %v13082
  %v13099 = vmul.f32 %v13083, %v13083
  %v13100 = vmul.f32 %v13084, %v13084
  %v13101 = vmul.f32 %v13085, %v13085
  %v13102 = vmul.f32 %v13086, %v13086
  %v13103 = vmul.f32 %v13087, %v13087
  %v13104 = vmul.f32 %v13088, %v13088
  %v13105 = vmul.f32 %v13089, %v13089
  %v13106 = vmul.f32 %v13090, %v13090
  %v13107 = vmul.f32 %v13091, %v13091
  %v13108 = vmul.f32 %v13092, %v13092
  %v13109 = vsel %vm21, %v13093, 0.0
  %v13110 = vsel %vm21, %v13094, 0.0
  %v13111 = vadd.f32 %v13109, %v13110
  %v13112 = vsel %vm21, %v13095, 0.0
  %v13113 = vadd.f32 %v13111, %v13112
  %v13114 = vsel %vm21, %v13096, 0.0
  %v13115 = vadd.f32 %v13113, %v13114
  %v13116 = vsel %vm21, %v13097, 0.0
  %v13117 = vadd.f32 %v13115, %v13116
  %v13118 = vsel %vm21, %v13098, 0.0
  %v13119 = vadd.f32 %v13117, %v13118
  %v13120 = vsel %vm21, %v13099, 0.0
  %v13121 = vadd.f32 %v13119, %v13120
  %v13122 = vsel %vm21, %v13100, 0.0
  %v13123 = vadd.f32 %v13121, %v13122
  %v13124 = vsel %vm21, %v13101, 0.0
  %v13125 = vadd.f32 %v13123, %v13124
  %v13126 = vsel %vm21, %v13102, 0.0
  %v13127 = vadd.f32 %v13125, %v13126
  %v13128 = vsel %vm21, %v13103, 0.0
  %v13129 = vadd.f32 %v13127, %v13128
  %v13130 = vsel %vm21, %v13104, 0.0
  %v13131 = vadd.f32 %v13129, %v13130
  %v13132 = vsel %vm21, %v13105, 0.0
  %v13133 = vadd.f32 %v13131, %v13132
  %v13134 = vsel %vm21, %v13106, 0.0
  %v13135 = vadd.f32 %v13133, %v13134
  %v13136 = vsel %vm21, %v13107, 0.0
  %v13137 = vadd.f32 %v13135, %v13136
  %v13138 = vsel %vm21, %v13108, 0.0
  %v13139 = vadd.f32 %v13137, %v13138
  %v13140 = vrot.slane %v13139, 4
  %v13141 = vadd.f32 %v13139, %v13140
  %v13142 = vrot.slane %v13141, 2
  %v13143 = vadd.f32 %v13141, %v13142
  %v13144 = vrot.slane %v13143, 1
  %v13145 = vadd.f32 %v13143, %v13144
  %v13146 = vmul.f32 %v13145, %v13075
  %v13147 = vadd.f32 %v13146, 1e-05
  %v13148 = vrsqrt.pop %v13147
  %v13149 = vmul.f32 %v13077, %v13148
  %v13150 = vmul.f32 %v13078, %v13148
  %v13151 = vmul.f32 %v13079, %v13148
  %v13152 = vmul.f32 %v13080, %v13148
  %v13153 = vmul.f32 %v13081, %v13148
  %v13154 = vmul.f32 %v13082, %v13148
  %v13155 = vmul.f32 %v13083, %v13148
  %v13156 = vmul.f32 %v13084, %v13148
  %v13157 = vmul.f32 %v13085, %v13148
  %v13158 = vmul.f32 %v13086, %v13148
  %v13159 = vmul.f32 %v13087, %v13148
  %v13160 = vmul.f32 %v13088, %v13148
  %v13161 = vmul.f32 %v13089, %v13148
  %v13162 = vmul.f32 %v13090, %v13148
  %v13163 = vmul.f32 %v13091, %v13148
  %v13164 = vmul.f32 %v13092, %v13148
  %vm13165 = vcmp.gt.f32.partialorder %v13149, 0.0
  %vm13166 = vcmp.gt.f32.partialorder %v13150, 0.0
  %vm13167 = vcmp.gt.f32.partialorder %v13151, 0.0
  %vm13168 = vcmp.gt.f32.partialorder %v13152, 0.0
  %vm13169 = vcmp.gt.f32.partialorder %v13153, 0.0
  %vm13170 = vcmp.gt.f32.partialorder %v13154, 0.0
  %vm13171 = vcmp.gt.f32.partialorder %v13155, 0.0
  %vm13172 = vcmp.gt.f32.partialorder %v13156, 0.0
  %vm13173 = vcmp.gt.f32.partialorder %v13157, 0.0
  %vm13174 = vcmp.gt.f32.partialorder %v13158, 0.0
  %vm13175 = vcmp.gt.f32.partialorder %v13159, 0.0
  %vm13176 = vcmp.gt.f32.partialorder %v13160, 0.0
  %vm13177 = vcmp.gt.f32.partialorder %v13161, 0.0
  %vm13178 = vcmp.gt.f32.partialorder %v13162, 0.0
  %vm13179 = vcmp.gt.f32.partialorder %v13163, 0.0
  %vm13180 = vcmp.gt.f32.partialorder %v13164, 0.0
  %v13181 = vmul.f32 %v13149, 0.2
  %v13182 = vmul.f32 %v13150, 0.2
  %v13183 = vmul.f32 %v13151, 0.2
  %v13184 = vmul.f32 %v13152, 0.2
  %v13185 = vmul.f32 %v13153, 0.2
  %v13186 = vmul.f32 %v13154, 0.2
  %v13187 = vmul.f32 %v13155, 0.2
  %v13188 = vmul.f32 %v13156, 0.2
  %v13189 = vmul.f32 %v13157, 0.2
  %v13190 = vmul.f32 %v13158, 0.2
  %v13191 = vmul.f32 %v13159, 0.2
  %v13192 = vmul.f32 %v13160, 0.2
  %v13193 = vmul.f32 %v13161, 0.2
  %v13194 = vmul.f32 %v13162, 0.2
  %v13195 = vmul.f32 %v13163, 0.2
  %v13196 = vmul.f32 %v13164, 0.2
  %v13197 = vsel %vm13165, %v13149, %v13181
  %v13198 = vsel %vm13166, %v13150, %v13182
  %v13199 = vsel %vm13167, %v13151, %v13183
  %v13200 = vsel %vm13168, %v13152, %v13184
  %v13201 = vsel %vm13169, %v13153, %v13185
  %v13202 = vsel %vm13170, %v13154, %v13186
  %v13203 = vsel %vm13171, %v13155, %v13187
  %v13204 = vsel %vm13172, %v13156, %v13188
  %v13205 = vsel %vm13173, %v13157, %v13189
  %v13206 = vsel %vm13174, %v13158, %v13190
  %v13207 = vsel %vm13175, %v13159, %v13191
  %v13208 = vsel %vm13176, %v13160, %v13192
  %v13209 = vsel %vm13177, %v13161, %v13193
  %v13210 = vsel %vm13178, %v13162, %v13194
  %v13211 = vsel %vm13179, %v13163, %v13195
  %v13212 = vsel %vm13180, %v13164, %v13196
  %v13213 = vld [vmem:[%s4] sm:$0xff]
  %v13214 = vld [vmem:[%s4 + $0x8] sm:$0xff]
  %v13215 = vld [vmem:[%s4 + $0x10] sm:$0xff]
  %v13216 = vld [vmem:[%s4 + $0x18] sm:$0xff]
  %v13217 = vld [vmem:[%s4 + $0x20] sm:$0xff]
  %v13218 = vld [vmem:[%s4 + $0x28] sm:$0xff]
  %v13219 = vld [vmem:[%s4 + $0x30] sm:$0xff]
  %v13220 = vld [vmem:[%s4 + $0x38] sm:$0xff]
  %v13221 = vmul.f32 %v13197, %v13213
  %v13222 = vmul.f32 %v13198, %v13214
  %v13223 = vmul.f32 %v13199, %v13215
  %v13224 = vmul.f32 %v13200, %v13216
  %v13225 = vmul.f32 %v13201, %v13217
  %v13226 = vmul.f32 %v13202, %v13218
  %v13227 = vmul.f32 %v13203, %v13219
  %v13228 = vmul.f32 %v13204, %v13220
  %v13229 = vmul.f32 %v13205, %v13213
  %v13230 = vmul.f32 %v13206, %v13214
  %v13231 = vmul.f32 %v13207, %v13215
  %v13232 = vmul.f32 %v13208, %v13216
  %v13233 = vmul.f32 %v13209, %v13217
  %v13234 = vmul.f32 %v13210, %v13218
  %v13235 = vmul.f32 %v13211, %v13219
  %v13236 = vmul.f32 %v13212, %v13220
  %v13237 = vsel %vm21, %v13221, 0.0
  %13238 = vadd.xlane.f32.xlu0 %v13237
  %v13239 = vpop.xlane.xlu0 %13238
  %v13240 = vsel %vm21, %v13222, 0.0
  %13241 = vadd.xlane.f32.xlu0 %v13240
  %v13242 = vpop.xlane.xlu0 %13241
  %v13243 = vsel %vm21, %v13223, 0.0
  %13244 = vadd.xlane.f32.xlu0 %v13243
  %v13245 = vpop.xlane.xlu0 %13244
  %v13246 = vsel %vm21, %v13224, 0.0
  %13247 = vadd.xlane.f32.xlu0 %v13246
  %v13248 = vpop.xlane.xlu0 %13247
  %v13249 = vsel %vm21, %v13225, 0.0
  %13250 = vadd.xlane.f32.xlu0 %v13249
  %v13251 = vpop.xlane.xlu0 %13250
  %v13252 = vsel %vm21, %v13226, 0.0
  %13253 = vadd.xlane.f32.xlu0 %v13252
  %v13254 = vpop.xlane.xlu0 %13253
  %v13255 = vsel %vm21, %v13227, 0.0
  %13256 = vadd.xlane.f32.xlu0 %v13255
  %v13257 = vpop.xlane.xlu0 %13256
  %v13258 = vsel %vm21, %v13228, 0.0
  %13259 = vadd.xlane.f32.xlu0 %v13258
  %v13260 = vpop.xlane.xlu0 %13259
  %v13261 = vsel %vm21, %v13229, 0.0
  %13262 = vadd.xlane.f32.xlu0 %v13261
  %v13263 = vpop.xlane.xlu0 %13262
  %v13264 = vsel %vm21, %v13230, 0.0
  %13265 = vadd.xlane.f32.xlu0 %v13264
  %v13266 = vpop.xlane.xlu0 %13265
  %v13267 = vsel %vm21, %v13231, 0.0
  %13268 = vadd.xlane.f32.xlu0 %v13267
  %v13269 = vpop.xlane.xlu0 %13268
  %v13270 = vsel %vm21, %v13232, 0.0
  %13271 = vadd.xlane.f32.xlu0 %v13270
  %v13272 = vpop.xlane.xlu0 %13271
  %v13273 = vsel %vm21, %v13233, 0.0
  %13274 = vadd.xlane.f32.xlu0 %v13273
  %v13275 = vpop.xlane.xlu0 %13274
  %v13276 = vsel %vm21, %v13234, 0.0
  %13277 = vadd.xlane.f32.xlu0 %v13276
  %v13278 = vpop.xlane.xlu0 %13277
  %v13279 = vsel %vm21, %v13235, 0.0
  %13280 = vadd.xlane.f32.xlu0 %v13279
  %v13281 = vpop.xlane.xlu0 %13280
  %v13282 = vsel %vm21, %v13236, 0.0
  %13283 = vadd.xlane.f32.xlu0 %v13282
  %v13284 = vpop.xlane.xlu0 %13283
  %v13285 = vadd.f32 %v13239, %v13242
  %v13286 = vadd.f32 %v13285, %v13245
  %v13287 = vadd.f32 %v13286, %v13248
  %v13288 = vadd.f32 %v13287, %v13251
  %v13289 = vadd.f32 %v13288, %v13254
  %v13290 = vadd.f32 %v13289, %v13257
  %v13291 = vadd.f32 %v13290, %v13260
  %v13292 = vrot.slane %v13291, 4
  %v13293 = vadd.f32 %v13291, %v13292
  %v13294 = vrot.slane %v13293, 2
  %v13295 = vadd.f32 %v13293, %v13294
  %v13296 = vrot.slane %v13295, 1
  %v13297 = vadd.f32 %v13295, %v13296
  %v13298 = vadd.f32 %v13263, %v13266
  %v13299 = vadd.f32 %v13298, %v13269
  %v13300 = vadd.f32 %v13299, %v13272
  %v13301 = vadd.f32 %v13300, %v13275
  %v13302 = vadd.f32 %v13301, %v13278
  %v13303 = vadd.f32 %v13302, %v13281
  %v13304 = vadd.f32 %v13303, %v13284
  %v13305 = vrot.slane %v13304, 4
  %v13306 = vadd.f32 %v13304, %v13305
  %v13307 = vrot.slane %v13306, 2
  %v13308 = vadd.f32 %v13306, %v13307
  %v13309 = vrot.slane %v13308, 1
  %v13310 = vadd.f32 %v13308, %v13309
  %v13311 = vxor.u32 %v13297, 2147483648
  %v13312 = vxor.u32 %v13310, 2147483648
  %v13313 = vmul.f32 %v13311, 1.442695
  %v13314 = vpow.pop %v13313
  %v13315 = vmul.f32 %v13312, 1.442695
  %v13316 = vpow.pop %v13315
  %v13317 = vadd.f32 %v13314, 1.0
  %v13318 = vadd.f32 %v13316, 1.0
  %v13319 = vrcp.pop %v13317
  %v13320 = vmul.f32 1.0, %v13319
  %v13321 = vrcp.pop %v13318
  %v13322 = vmul.f32 1.0, %v13321
  %vm13323 = vcmask 0
  %13324 = vst.msk [vmem:[%s5] sm:$0x1] %vm13323, %v13320
  %13325 = vst.msk [vmem:[%s5 + $0x1] sm:$0x1] %vm13323, %v13322
  // Predicated region
  $region22: #{quick_discriminator.1} parent=0 // pred_check
    _
  $region23: #{quick_discriminator.1} parent=0 // pred_check_branch
    %13327 = sbr.rel (0) target = $region25
  $region24: #{quick_discriminator.1} parent=0 // pred_region
    _
  $region25: #{quick_discriminator.1} parent=0 // pred_fallthru
    _
  // Predicated region
  $region26: #{quick_discriminator.1} parent=0 // pred_check
    _
  $region27: #{quick_discriminator.1} parent=0 // pred_check_branch
    %13329 = sbr.rel (0) target = $region29
  $region28: #{quick_discriminator.1} parent=0 // pred_region
    _
  $region29: #{quick_discriminator.1} parent=0 // pred_fallthru
    _

</llo_original>
